<compile_context>
chip_gen: v6e
topology: v6e:2x2x1
jax: 0.10.0
libtpu: 0.0.40
codegen_flags: <defaults>
</compile_context>

<pallas_src>
import functools
import math

import jax
import jax.numpy as jnp
from jax.experimental import pallas as pl
from jax.experimental.pallas import tpu as pltpu

F32 = jnp.float32
BN_EPS = 1e-5


# ---------------------------------------------------------------------------
# Fused GRCN kernel: whole model, whole batch, one invocation.
# ---------------------------------------------------------------------------
def _grcn_kernel(x_ref, lap_ref, w1_ref, b1_ref, w2_ref, b2_ref,
                 hw_ref, hb_ref, o_ref, *, c_out, K, T, BN):
    # Block-diagonal (over folded batch) Chebyshev polys, hops 1..K-1 only.
    lap = [lap_ref[k] for k in range(K - 1)]

    w1 = w1_ref[...]          # [4c, K*(c_in + c_out)]  rows permuted [i,f,o,j]
    b1 = b1_ref[...]          # [4c, 1]
    w2 = w2_ref[...]          # [4c, K*(c_out + c_out)]
    b2 = b2_ref[...]          # [4c, 1]

    def cell(inp, h, c, w, b):
        # Graph-conv LSTM step on z = concat(inp, h), batch folded onto lanes.
        z = jnp.concatenate([inp, h], axis=0)               # [cin_blk+c_out, BN]
        zs = [z] + [jnp.dot(z, lap[k], preferred_element_type=F32)
                    for k in range(K - 1)]                   # hop 0 is identity
        Z = jnp.concatenate(zs, axis=0)                      # [K*(cin_blk+c_out), BN]
        gates = jnp.dot(w, Z, preferred_element_type=F32) + b  # [4c, BN]
        sig = jax.nn.sigmoid(gates[:3 * c_out])              # i, f, o together
        j_g = jnp.tanh(gates[3 * c_out:])
        i_g = sig[:c_out]
        f_g = sig[c_out:2 * c_out]
        o_g = sig[2 * c_out:3 * c_out]
        c_new = c * f_g + i_g * j_g
        h_new = jnp.tanh(c_new) * o_g
        return h_new, c_new

    h1 = jnp.zeros((c_out, BN), F32)
    c1 = jnp.zeros((c_out, BN), F32)
    h2 = jnp.zeros((c_out, BN), F32)
    c2 = jnp.zeros((c_out, BN), F32)
    acc = jnp.zeros((12, BN), F32)

    for t in range(T):
        h1, c1 = cell(x_ref[t], h1, c1, w1, b1)              # block1 step t
        h2, c2 = cell(h1, h2, c2, w2, b2)                    # block2 step t
        acc = acc + jnp.dot(hw_ref[t], h2,                   # fused output head
                            preferred_element_type=F32)      # [12, BN]

    # Emit final layout directly: [B*N, 12] (+ head bias).
    o_ref[...] = acc.T + hb_ref[...]


# ---------------------------------------------------------------------------
# Wrapper: parameter prep (weight merge / gate reorder / BN fold / Laplacians)
# + a single pallas_call.
# ---------------------------------------------------------------------------
def grcn_forward(params, x_w, x_d, x_r, supports, *, c_in, c_out, K, recent):
    # GRCN.forward only uses x_r (x_w / x_d are accepted but unused).
    del x_w, x_d
    bsz, _, n, t = x_r.shape
    assert t == recent
    BN = bsz * n

    # BatchNorm2d(c_in, affine=False), eval mode, default running stats:
    # identity up to 1/sqrt(1+eps); fold into block1's input weight columns.
    bn_scale = 1.0 / math.sqrt(1.0 + BN_EPS)

    # Chebyshev polynomials of supports^T (matches previous semantics), made
    # block-diagonal over the folded batch; hop 0 (identity) is skipped.
    adj_t = supports.T.astype(F32)
    lap_list = [jnp.eye(n, dtype=F32), adj_t]
    for _ in range(2, K):
        lap_list.append(2.0 * jnp.dot(adj_t, lap_list[-1]) - lap_list[-2])
    eye_b = jnp.eye(bsz, dtype=F32)
    lap_bd = jnp.stack([jnp.kron(eye_b, lap_list[k]) for k in range(1, K)])  # [K-1,BN,BN]

    # Gate row permutation: [i, j, f, o] -> [i, f, o, j] (sigmoids contiguous).
    gate_perm = jnp.concatenate([
        jnp.arange(0, c_out), jnp.arange(2 * c_out, 3 * c_out),
        jnp.arange(3 * c_out, 4 * c_out), jnp.arange(c_out, 2 * c_out)])

    def merge_gcn(w, b, c_in_blk, in_scale=1.0):
        # Conv1d weight of gcn_conv_hop: [4*c_out, (c_in_blk + c_out)*K]
        # flattened channel index = c*K + k (input channels first, then h).
        wx = w[:, :c_in_blk * K].reshape(4 * c_out, c_in_blk, K) * in_scale
        wh = w[:, c_in_blk * K:].reshape(4 * c_out, c_out, K)
        cols = []
        for k in range(K):                  # column order matches in-kernel Z
            cols.append(wx[:, :, k])
            cols.append(wh[:, :, k])
        w_big = jnp.concatenate(cols, axis=1)[gate_perm].astype(F32)
        b_big = b.reshape(4 * c_out, 1)[gate_perm].astype(F32)
        return w_big, b_big

    w1, b1 = merge_gcn(params["gcn1_w"], params["gcn1_b"], c_in, in_scale=bn_scale)
    w2, b2 = merge_gcn(params["gcn2_w"], params["gcn2_b"], c_out)

    # Output head: Conv2d(c_out, 12, kernel_size=(1, recent)).
    head_w = params["conv1_w"].reshape(12, c_out, recent).transpose(2, 0, 1).astype(F32)
    head_b = params["conv1_b"].reshape(1, 12).astype(F32)

    # Time-major, batch folded onto the lane axis: [T, c_in, B*N].
    x_t = jnp.transpose(x_r, (3, 1, 0, 2)).reshape(recent, c_in, BN).astype(F32)

    kern = functools.partial(_grcn_kernel, c_out=c_out, K=K, T=recent, BN=BN)
    out = pl.pallas_call(
        kern,
        out_shape=jax.ShapeDtypeStruct((BN, 12), F32),
        grid=(1,),
        in_specs=[
            pl.BlockSpec(x_t.shape, lambda i: (0, 0, 0)),
            pl.BlockSpec(lap_bd.shape, lambda i: (0, 0, 0)),
            pl.BlockSpec(w1.shape, lambda i: (0, 0)),
            pl.BlockSpec(b1.shape, lambda i: (0, 0)),
            pl.BlockSpec(w2.shape, lambda i: (0, 0)),
            pl.BlockSpec(b2.shape, lambda i: (0, 0)),
            pl.BlockSpec(head_w.shape, lambda i: (0, 0, 0)),
            pl.BlockSpec(head_b.shape, lambda i: (0, 0)),
        ],
        out_specs=pl.BlockSpec((BN, 12), lambda i: (0, 0)),
        compiler_params=pltpu.CompilerParams(dimension_semantics=("arbitrary",)),
    )(x_t, lap_bd, w1, b1, w2, b2, head_w, head_b)

    # Kernel already produces the final (node-major, 12-minor) layout.
    x_out = out.reshape(bsz, n, 12)
    return x_out, supports, supports


# ---------------------------------------------------------------------------
# Deterministic parameter initialization
# ---------------------------------------------------------------------------
def init_params(key, c_in, c_out, recent, K):
    keys = iter(jax.random.split(key, 8))

    def nrm(shape, scale=0.1):
        return (scale * jax.random.normal(next(keys), shape)).astype(F32)

    return dict(
        # gcn_conv_hop of block1: Conv1d((c_in+c_out)*K -> 4*c_out, k=1)
        gcn1_w=nrm((4 * c_out, (c_in + c_out) * K)),
        gcn1_b=nrm((4 * c_out,)),
        # gcn_conv_hop of block2: Conv1d((c_out+c_out)*K -> 4*c_out, k=1)
        gcn2_w=nrm((4 * c_out, 2 * c_out * K)),
        gcn2_b=nrm((4 * c_out,)),
        # head: Conv2d(c_out, 12, kernel_size=(1, recent))
        conv1_w=nrm((12, c_out, 1, recent)),
        conv1_b=nrm((12,)),
    )


if __name__ == "__main__":
    B, c_in, c_out = 2, 2, 4
    num_nodes, week, day, recent = 8, 24, 24, 12
    K, Kt = 3, 3

    key = jax.random.PRNGKey(0)
    k_p, k_w, k_d, k_r, k_s = jax.random.split(key, 5)
    params = init_params(k_p, c_in, c_out, recent, K)
    x_w = jax.random.normal(k_w, (B, c_in, num_nodes, week), dtype=F32)
    x_d = jax.random.normal(k_d, (B, c_in, num_nodes, day), dtype=F32)
    x_r = jax.random.normal(k_r, (B, c_in, num_nodes, recent), dtype=F32)
    supports = jax.nn.softmax(
        jax.random.normal(k_s, (num_nodes, num_nodes)), axis=-1).astype(F32)

    fwd = jax.jit(functools.partial(
        grcn_forward, c_in=c_in, c_out=c_out, K=K, recent=recent))
    out, s1, s2 = fwd(params, x_w, x_d, x_r, supports)
    jax.block_until_ready((out, s1, s2))

    assert out.shape == (B, num_nodes, 12)
    assert s1.shape == (num_nodes, num_nodes) and s2.shape == (num_nodes, num_nodes)
    assert bool(jnp.all(jnp.isfinite(out)))
    print("KERNEL_OK")
</pallas_src>

<mosaic_0001>
module attributes {stable_mosaic.version = 11 : i64} {
  func.func @_grcn_kernel(%arg0: i32, %arg1: memref<12x2x16xf32, #tpu.memory_space<vmem>>, %arg2: memref<2x16x16xf32, #tpu.memory_space<vmem>>, %arg3: memref<16x18xf32, #tpu.memory_space<vmem>>, %arg4: memref<16x1xf32, #tpu.memory_space<vmem>>, %arg5: memref<16x24xf32, #tpu.memory_space<vmem>>, %arg6: memref<16x1xf32, #tpu.memory_space<vmem>>, %arg7: memref<12x12x4xf32, #tpu.memory_space<vmem>>, %arg8: memref<1x12xf32, #tpu.memory_space<vmem>>, %arg9: memref<16x12xf32, #tpu.memory_space<vmem>>) attributes {dimension_semantics = [#tpu.dimension_semantics<arbitrary>], iteration_bounds = array<i64: 1>, scalar_prefetch = 0 : i64, scratch_operands = 0 : i64, tpu.core_type = #tpu.core_type<tc>, window_params = [{pipeline_mode = #tpu.pipeline_mode<synchronous>, transform_indices = @transform_0, window_bounds = array<i64: 12, 2, 16>}, {pipeline_mode = #tpu.pipeline_mode<synchronous>, transform_indices = @transform_1, window_bounds = array<i64: 2, 16, 16>}, {pipeline_mode = #tpu.pipeline_mode<synchronous>, transform_indices = @transform_2, window_bounds = array<i64: 16, 18>}, {pipeline_mode = #tpu.pipeline_mode<synchronous>, transform_indices = @transform_3, window_bounds = array<i64: 16, 1>}, {pipeline_mode = #tpu.pipeline_mode<synchronous>, transform_indices = @transform_4, window_bounds = array<i64: 16, 24>}, {pipeline_mode = #tpu.pipeline_mode<synchronous>, transform_indices = @transform_5, window_bounds = array<i64: 16, 1>}, {pipeline_mode = #tpu.pipeline_mode<synchronous>, transform_indices = @transform_6, window_bounds = array<i64: 12, 12, 4>}, {pipeline_mode = #tpu.pipeline_mode<synchronous>, transform_indices = @transform_7, window_bounds = array<i64: 1, 12>}, {pipeline_mode = #tpu.pipeline_mode<synchronous>, transform_indices = @transform_8, window_bounds = array<i64: 16, 12>}]} {
    %c0 = arith.constant 0 : index
    %c0_0 = arith.constant 0 : index
    %c0_1 = arith.constant 0 : index
    %0 = vector.load %arg2[%c0, %c0_0, %c0_1] : memref<2x16x16xf32, #tpu.memory_space<vmem>>, vector<1x16x16xf32>
    %1 = vector.shape_cast %0 : vector<1x16x16xf32> to vector<16x16xf32>
    %c1 = arith.constant 1 : index
    %c0_2 = arith.constant 0 : index
    %c0_3 = arith.constant 0 : index
    %2 = vector.load %arg2[%c1, %c0_2, %c0_3] : memref<2x16x16xf32, #tpu.memory_space<vmem>>, vector<1x16x16xf32>
    %3 = vector.shape_cast %2 : vector<1x16x16xf32> to vector<16x16xf32>
    %c0_4 = arith.constant 0 : index
    %c0_5 = arith.constant 0 : index
    %4 = vector.load %arg3[%c0_4, %c0_5] : memref<16x18xf32, #tpu.memory_space<vmem>>, vector<16x18xf32>
    %c0_6 = arith.constant 0 : index
    %c0_7 = arith.constant 0 : index
    %5 = vector.load %arg4[%c0_6, %c0_7] : memref<16x1xf32, #tpu.memory_space<vmem>>, vector<16x1xf32>
    %c0_8 = arith.constant 0 : index
    %c0_9 = arith.constant 0 : index
    %6 = vector.load %arg5[%c0_8, %c0_9] : memref<16x24xf32, #tpu.memory_space<vmem>>, vector<16x24xf32>
    %c0_10 = arith.constant 0 : index
    %c0_11 = arith.constant 0 : index
    %7 = vector.load %arg6[%c0_10, %c0_11] : memref<16x1xf32, #tpu.memory_space<vmem>>, vector<16x1xf32>
    %cst = arith.constant 0.000000e+00 : f32
    %8 = vector.broadcast %cst : f32 to vector<4x16xf32>
    %cst_12 = arith.constant 0.000000e+00 : f32
    %9 = vector.broadcast %cst_12 : f32 to vector<4x16xf32>
    %cst_13 = arith.constant 0.000000e+00 : f32
    %10 = vector.broadcast %cst_13 : f32 to vector<4x16xf32>
    %cst_14 = arith.constant 0.000000e+00 : f32
    %11 = vector.broadcast %cst_14 : f32 to vector<4x16xf32>
    %cst_15 = arith.constant 0.000000e+00 : f32
    %12 = vector.broadcast %cst_15 : f32 to vector<12x16xf32>
    %c0_16 = arith.constant 0 : index
    %c0_17 = arith.constant 0 : index
    %c0_18 = arith.constant 0 : index
    %13 = vector.load %arg1[%c0_16, %c0_17, %c0_18] : memref<12x2x16xf32, #tpu.memory_space<vmem>>, vector<1x2x16xf32>
    %14 = vector.shape_cast %13 : vector<1x2x16xf32> to vector<2x16xf32>
    %15 = tpu.concatenate %14, %8 in 0 : vector<2x16xf32>, vector<4x16xf32> -> vector<6x16xf32>
    %cst_19 = arith.constant dense<0.000000e+00> : vector<6x16xf32>
    %16 = tpu.matmul %15, %1, %cst_19 {dimension_numbers = #tpu.dot_dimension_numbers<[1], [0], [0], [1], [0, 0, 1, 1], [], []>} : vector<6x16xf32>, vector<16x16xf32>, vector<6x16xf32> -> vector<6x16xf32>
    %cst_20 = arith.constant dense<0.000000e+00> : vector<6x16xf32>
    %17 = tpu.matmul %15, %3, %cst_20 {dimension_numbers = #tpu.dot_dimension_numbers<[1], [0], [0], [1], [0, 0, 1, 1], [], []>} : vector<6x16xf32>, vector<16x16xf32>, vector<6x16xf32> -> vector<6x16xf32>
    %18 = tpu.concatenate %15, %16, %17 in 0 : vector<6x16xf32>, vector<6x16xf32>, vector<6x16xf32> -> vector<18x16xf32>
    %cst_21 = arith.constant dense<0.000000e+00> : vector<16x16xf32>
    %19 = tpu.matmul %4, %18, %cst_21 {dimension_numbers = #tpu.dot_dimension_numbers<[1], [0], [0], [1], [0, 0, 1, 1], [], []>} : vector<16x18xf32>, vector<18x16xf32>, vector<16x16xf32> -> vector<16x16xf32>
    %20 = vector.broadcast %5 : vector<16x1xf32> to vector<16x16xf32>
    %21 = arith.addf %19, %20 : vector<16x16xf32>
    %22 = vector.extract_strided_slice %21 {offsets = [0, 0], sizes = [12, 16], strides = [1, 1]} : vector<16x16xf32> to vector<12x16xf32>
    %23 = arith.negf %22 : vector<12x16xf32>
    %24 = math.exp %23 : vector<12x16xf32>
    %cst_22 = arith.constant 1.000000e+00 : f32
    %25 = vector.broadcast %cst_22 : f32 to vector<12x16xf32>
    %26 = arith.addf %25, %24 : vector<12x16xf32>
    %27 = arith.divf %25, %26 : vector<12x16xf32>
    %28 = vector.extract_strided_slice %21 {offsets = [12, 0], sizes = [4, 16], strides = [1, 1]} : vector<16x16xf32> to vector<4x16xf32>
    %29 = math.tanh %28 : vector<4x16xf32>
    %30 = vector.extract_strided_slice %27 {offsets = [0, 0], sizes = [4, 16], strides = [1, 1]} : vector<12x16xf32> to vector<4x16xf32>
    %31 = vector.extract_strided_slice %27 {offsets = [4, 0], sizes = [4, 16], strides = [1, 1]} : vector<12x16xf32> to vector<4x16xf32>
    %32 = vector.extract_strided_slice %27 {offsets = [8, 0], sizes = [4, 16], strides = [1, 1]} : vector<12x16xf32> to vector<4x16xf32>
    %33 = arith.mulf %9, %31 : vector<4x16xf32>
    %34 = arith.mulf %30, %29 : vector<4x16xf32>
    %35 = arith.addf %33, %34 : vector<4x16xf32>
    %36 = math.tanh %35 : vector<4x16xf32>
    %37 = arith.mulf %36, %32 : vector<4x16xf32>
    %38 = tpu.concatenate %37, %10 in 0 : vector<4x16xf32>, vector<4x16xf32> -> vector<8x16xf32>
    %cst_23 = arith.constant dense<0.000000e+00> : vector<8x16xf32>
    %39 = tpu.matmul %38, %1, %cst_23 {dimension_numbers = #tpu.dot_dimension_numbers<[1], [0], [0], [1], [0, 0, 1, 1], [], []>} : vector<8x16xf32>, vector<16x16xf32>, vector<8x16xf32> -> vector<8x16xf32>
    %cst_24 = arith.constant dense<0.000000e+00> : vector<8x16xf32>
    %40 = tpu.matmul %38, %3, %cst_24 {dimension_numbers = #tpu.dot_dimension_numbers<[1], [0], [0], [1], [0, 0, 1, 1], [], []>} : vector<8x16xf32>, vector<16x16xf32>, vector<8x16xf32> -> vector<8x16xf32>
    %41 = tpu.concatenate %38, %39, %40 in 0 : vector<8x16xf32>, vector<8x16xf32>, vector<8x16xf32> -> vector<24x16xf32>
    %cst_25 = arith.constant dense<0.000000e+00> : vector<16x16xf32>
    %42 = tpu.matmul %6, %41, %cst_25 {dimension_numbers = #tpu.dot_dimension_numbers<[1], [0], [0], [1], [0, 0, 1, 1], [], []>} : vector<16x24xf32>, vector<24x16xf32>, vector<16x16xf32> -> vector<16x16xf32>
    %43 = vector.broadcast %7 : vector<16x1xf32> to vector<16x16xf32>
    %44 = arith.addf %42, %43 : vector<16x16xf32>
    %45 = vector.extract_strided_slice %44 {offsets = [0, 0], sizes = [12, 16], strides = [1, 1]} : vector<16x16xf32> to vector<12x16xf32>
    %46 = arith.negf %45 : vector<12x16xf32>
    %47 = math.exp %46 : vector<12x16xf32>
    %cst_26 = arith.constant 1.000000e+00 : f32
    %48 = vector.broadcast %cst_26 : f32 to vector<12x16xf32>
    %49 = arith.addf %48, %47 : vector<12x16xf32>
    %50 = arith.divf %48, %49 : vector<12x16xf32>
    %51 = vector.extract_strided_slice %44 {offsets = [12, 0], sizes = [4, 16], strides = [1, 1]} : vector<16x16xf32> to vector<4x16xf32>
    %52 = math.tanh %51 : vector<4x16xf32>
    %53 = vector.extract_strided_slice %50 {offsets = [0, 0], sizes = [4, 16], strides = [1, 1]} : vector<12x16xf32> to vector<4x16xf32>
    %54 = vector.extract_strided_slice %50 {offsets = [4, 0], sizes = [4, 16], strides = [1, 1]} : vector<12x16xf32> to vector<4x16xf32>
    %55 = vector.extract_strided_slice %50 {offsets = [8, 0], sizes = [4, 16], strides = [1, 1]} : vector<12x16xf32> to vector<4x16xf32>
    %56 = arith.mulf %11, %54 : vector<4x16xf32>
    %57 = arith.mulf %53, %52 : vector<4x16xf32>
    %58 = arith.addf %56, %57 : vector<4x16xf32>
    %59 = math.tanh %58 : vector<4x16xf32>
    %60 = arith.mulf %59, %55 : vector<4x16xf32>
    %c0_27 = arith.constant 0 : index
    %c0_28 = arith.constant 0 : index
    %c0_29 = arith.constant 0 : index
    %61 = vector.load %arg7[%c0_27, %c0_28, %c0_29] : memref<12x12x4xf32, #tpu.memory_space<vmem>>, vector<1x12x4xf32>
    %62 = vector.shape_cast %61 : vector<1x12x4xf32> to vector<12x4xf32>
    %cst_30 = arith.constant dense<0.000000e+00> : vector<12x16xf32>
    %63 = tpu.matmul %62, %60, %cst_30 {dimension_numbers = #tpu.dot_dimension_numbers<[1], [0], [0], [1], [0, 0, 1, 1], [], []>} : vector<12x4xf32>, vector<4x16xf32>, vector<12x16xf32> -> vector<12x16xf32>
    %64 = arith.addf %12, %63 : vector<12x16xf32>
    %c1_31 = arith.constant 1 : index
    %c0_32 = arith.constant 0 : index
    %c0_33 = arith.constant 0 : index
    %65 = vector.load %arg1[%c1_31, %c0_32, %c0_33] : memref<12x2x16xf32, #tpu.memory_space<vmem>>, vector<1x2x16xf32>
    %66 = vector.shape_cast %65 : vector<1x2x16xf32> to vector<2x16xf32>
    %67 = tpu.concatenate %66, %37 in 0 : vector<2x16xf32>, vector<4x16xf32> -> vector<6x16xf32>
    %cst_34 = arith.constant dense<0.000000e+00> : vector<6x16xf32>
    %68 = tpu.matmul %67, %1, %cst_34 {dimension_numbers = #tpu.dot_dimension_numbers<[1], [0], [0], [1], [0, 0, 1, 1], [], []>} : vector<6x16xf32>, vector<16x16xf32>, vector<6x16xf32> -> vector<6x16xf32>
    %cst_35 = arith.constant dense<0.000000e+00> : vector<6x16xf32>
    %69 = tpu.matmul %67, %3, %cst_35 {dimension_numbers = #tpu.dot_dimension_numbers<[1], [0], [0], [1], [0, 0, 1, 1], [], []>} : vector<6x16xf32>, vector<16x16xf32>, vector<6x16xf32> -> vector<6x16xf32>
    %70 = tpu.concatenate %67, %68, %69 in 0 : vector<6x16xf32>, vector<6x16xf32>, vector<6x16xf32> -> vector<18x16xf32>
    %cst_36 = arith.constant dense<0.000000e+00> : vector<16x16xf32>
    %71 = tpu.matmul %4, %70, %cst_36 {dimension_numbers = #tpu.dot_dimension_numbers<[1], [0], [0], [1], [0, 0, 1, 1], [], []>} : vector<16x18xf32>, vector<18x16xf32>, vector<16x16xf32> -> vector<16x16xf32>
    %72 = vector.broadcast %5 : vector<16x1xf32> to vector<16x16xf32>
    %73 = arith.addf %71, %72 : vector<16x16xf32>
    %74 = vector.extract_strided_slice %73 {offsets = [0, 0], sizes = [12, 16], strides = [1, 1]} : vector<16x16xf32> to vector<12x16xf32>
    %75 = arith.negf %74 : vector<12x16xf32>
    %76 = math.exp %75 : vector<12x16xf32>
    %cst_37 = arith.constant 1.000000e+00 : f32
    %77 = vector.broadcast %cst_37 : f32 to vector<12x16xf32>
    %78 = arith.addf %77, %76 : vector<12x16xf32>
    %79 = arith.divf %77, %78 : vector<12x16xf32>
    %80 = vector.extract_strided_slice %73 {offsets = [12, 0], sizes = [4, 16], strides = [1, 1]} : vector<16x16xf32> to vector<4x16xf32>
    %81 = math.tanh %80 : vector<4x16xf32>
    %82 = vector.extract_strided_slice %79 {offsets = [0, 0], sizes = [4, 16], strides = [1, 1]} : vector<12x16xf32> to vector<4x16xf32>
    %83 = vector.extract_strided_slice %79 {offsets = [4, 0], sizes = [4, 16], strides = [1, 1]} : vector<12x16xf32> to vector<4x16xf32>
    %84 = vector.extract_strided_slice %79 {offsets = [8, 0], sizes = [4, 16], strides = [1, 1]} : vector<12x16xf32> to vector<4x16xf32>
    %85 = arith.mulf %35, %83 : vector<4x16xf32>
    %86 = arith.mulf %82, %81 : vector<4x16xf32>
    %87 = arith.addf %85, %86 : vector<4x16xf32>
    %88 = math.tanh %87 : vector<4x16xf32>
    %89 = arith.mulf %88, %84 : vector<4x16xf32>
    %90 = tpu.concatenate %89, %60 in 0 : vector<4x16xf32>, vector<4x16xf32> -> vector<8x16xf32>
    %cst_38 = arith.constant dense<0.000000e+00> : vector<8x16xf32>
    %91 = tpu.matmul %90, %1, %cst_38 {dimension_numbers = #tpu.dot_dimension_numbers<[1], [0], [0], [1], [0, 0, 1, 1], [], []>} : vector<8x16xf32>, vector<16x16xf32>, vector<8x16xf32> -> vector<8x16xf32>
    %cst_39 = arith.constant dense<0.000000e+00> : vector<8x16xf32>
    %92 = tpu.matmul %90, %3, %cst_39 {dimension_numbers = #tpu.dot_dimension_numbers<[1], [0], [0], [1], [0, 0, 1, 1], [], []>} : vector<8x16xf32>, vector<16x16xf32>, vector<8x16xf32> -> vector<8x16xf32>
    %93 = tpu.concatenate %90, %91, %92 in 0 : vector<8x16xf32>, vector<8x16xf32>, vector<8x16xf32> -> vector<24x16xf32>
    %cst_40 = arith.constant dense<0.000000e+00> : vector<16x16xf32>
    %94 = tpu.matmul %6, %93, %cst_40 {dimension_numbers = #tpu.dot_dimension_numbers<[1], [0], [0], [1], [0, 0, 1, 1], [], []>} : vector<16x24xf32>, vector<24x16xf32>, vector<16x16xf32> -> vector<16x16xf32>
    %95 = vector.broadcast %7 : vector<16x1xf32> to vector<16x16xf32>
    %96 = arith.addf %94, %95 : vector<16x16xf32>
    %97 = vector.extract_strided_slice %96 {offsets = [0, 0], sizes = [12, 16], strides = [1, 1]} : vector<16x16xf32> to vector<12x16xf32>
    %98 = arith.negf %97 : vector<12x16xf32>
    %99 = math.exp %98 : vector<12x16xf32>
    %cst_41 = arith.constant 1.000000e+00 : f32
    %100 = vector.broadcast %cst_41 : f32 to vector<12x16xf32>
    %101 = arith.addf %100, %99 : vector<12x16xf32>
    %102 = arith.divf %100, %101 : vector<12x16xf32>
    %103 = vector.extract_strided_slice %96 {offsets = [12, 0], sizes = [4, 16], strides = [1, 1]} : vector<16x16xf32> to vector<4x16xf32>
    %104 = math.tanh %103 : vector<4x16xf32>
    %105 = vector.extract_strided_slice %102 {offsets = [0, 0], sizes = [4, 16], strides = [1, 1]} : vector<12x16xf32> to vector<4x16xf32>
    %106 = vector.extract_strided_slice %102 {offsets = [4, 0], sizes = [4, 16], strides = [1, 1]} : vector<12x16xf32> to vector<4x16xf32>
    %107 = vector.extract_strided_slice %102 {offsets = [8, 0], sizes = [4, 16], strides = [1, 1]} : vector<12x16xf32> to vector<4x16xf32>
    %108 = arith.mulf %58, %106 : vector<4x16xf32>
    %109 = arith.mulf %105, %104 : vector<4x16xf32>
    %110 = arith.addf %108, %109 : vector<4x16xf32>
    %111 = math.tanh %110 : vector<4x16xf32>
    %112 = arith.mulf %111, %107 : vector<4x16xf32>
    %c1_42 = arith.constant 1 : index
    %c0_43 = arith.constant 0 : index
    %c0_44 = arith.constant 0 : index
    %113 = vector.load %arg7[%c1_42, %c0_43, %c0_44] : memref<12x12x4xf32, #tpu.memory_space<vmem>>, vector<1x12x4xf32>
    %114 = vector.shape_cast %113 : vector<1x12x4xf32> to vector<12x4xf32>
    %cst_45 = arith.constant dense<0.000000e+00> : vector<12x16xf32>
    %115 = tpu.matmul %114, %112, %cst_45 {dimension_numbers = #tpu.dot_dimension_numbers<[1], [0], [0], [1], [0, 0, 1, 1], [], []>} : vector<12x4xf32>, vector<4x16xf32>, vector<12x16xf32> -> vector<12x16xf32>
    %116 = arith.addf %64, %115 : vector<12x16xf32>
    %c2 = arith.constant 2 : index
    %c0_46 = arith.constant 0 : index
    %c0_47 = arith.constant 0 : index
    %117 = vector.load %arg1[%c2, %c0_46, %c0_47] : memref<12x2x16xf32, #tpu.memory_space<vmem>>, vector<1x2x16xf32>
    %118 = vector.shape_cast %117 : vector<1x2x16xf32> to vector<2x16xf32>
    %119 = tpu.concatenate %118, %89 in 0 : vector<2x16xf32>, vector<4x16xf32> -> vector<6x16xf32>
    %cst_48 = arith.constant dense<0.000000e+00> : vector<6x16xf32>
    %120 = tpu.matmul %119, %1, %cst_48 {dimension_numbers = #tpu.dot_dimension_numbers<[1], [0], [0], [1], [0, 0, 1, 1], [], []>} : vector<6x16xf32>, vector<16x16xf32>, vector<6x16xf32> -> vector<6x16xf32>
    %cst_49 = arith.constant dense<0.000000e+00> : vector<6x16xf32>
    %121 = tpu.matmul %119, %3, %cst_49 {dimension_numbers = #tpu.dot_dimension_numbers<[1], [0], [0], [1], [0, 0, 1, 1], [], []>} : vector<6x16xf32>, vector<16x16xf32>, vector<6x16xf32> -> vector<6x16xf32>
    %122 = tpu.concatenate %119, %120, %121 in 0 : vector<6x16xf32>, vector<6x16xf32>, vector<6x16xf32> -> vector<18x16xf32>
    %cst_50 = arith.constant dense<0.000000e+00> : vector<16x16xf32>
    %123 = tpu.matmul %4, %122, %cst_50 {dimension_numbers = #tpu.dot_dimension_numbers<[1], [0], [0], [1], [0, 0, 1, 1], [], []>} : vector<16x18xf32>, vector<18x16xf32>, vector<16x16xf32> -> vector<16x16xf32>
    %124 = vector.broadcast %5 : vector<16x1xf32> to vector<16x16xf32>
    %125 = arith.addf %123, %124 : vector<16x16xf32>
    %126 = vector.extract_strided_slice %125 {offsets = [0, 0], sizes = [12, 16], strides = [1, 1]} : vector<16x16xf32> to vector<12x16xf32>
    %127 = arith.negf %126 : vector<12x16xf32>
    %128 = math.exp %127 : vector<12x16xf32>
    %cst_51 = arith.constant 1.000000e+00 : f32
    %129 = vector.broadcast %cst_51 : f32 to vector<12x16xf32>
    %130 = arith.addf %129, %128 : vector<12x16xf32>
    %131 = arith.divf %129, %130 : vector<12x16xf32>
    %132 = vector.extract_strided_slice %125 {offsets = [12, 0], sizes = [4, 16], strides = [1, 1]} : vector<16x16xf32> to vector<4x16xf32>
    %133 = math.tanh %132 : vector<4x16xf32>
    %134 = vector.extract_strided_slice %131 {offsets = [0, 0], sizes = [4, 16], strides = [1, 1]} : vector<12x16xf32> to vector<4x16xf32>
    %135 = vector.extract_strided_slice %131 {offsets = [4, 0], sizes = [4, 16], strides = [1, 1]} : vector<12x16xf32> to vector<4x16xf32>
    %136 = vector.extract_strided_slice %131 {offsets = [8, 0], sizes = [4, 16], strides = [1, 1]} : vector<12x16xf32> to vector<4x16xf32>
    %137 = arith.mulf %87, %135 : vector<4x16xf32>
    %138 = arith.mulf %134, %133 : vector<4x16xf32>
    %139 = arith.addf %137, %138 : vector<4x16xf32>
    %140 = math.tanh %139 : vector<4x16xf32>
    %141 = arith.mulf %140, %136 : vector<4x16xf32>
    %142 = tpu.concatenate %141, %112 in 0 : vector<4x16xf32>, vector<4x16xf32> -> vector<8x16xf32>
    %cst_52 = arith.constant dense<0.000000e+00> : vector<8x16xf32>
    %143 = tpu.matmul %142, %1, %cst_52 {dimension_numbers = #tpu.dot_dimension_numbers<[1], [0], [0], [1], [0, 0, 1, 1], [], []>} : vector<8x16xf32>, vector<16x16xf32>, vector<8x16xf32> -> vector<8x16xf32>
    %cst_53 = arith.constant dense<0.000000e+00> : vector<8x16xf32>
    %144 = tpu.matmul %142, %3, %cst_53 {dimension_numbers = #tpu.dot_dimension_numbers<[1], [0], [0], [1], [0, 0, 1, 1], [], []>} : vector<8x16xf32>, vector<16x16xf32>, vector<8x16xf32> -> vector<8x16xf32>
    %145 = tpu.concatenate %142, %143, %144 in 0 : vector<8x16xf32>, vector<8x16xf32>, vector<8x16xf32> -> vector<24x16xf32>
    %cst_54 = arith.constant dense<0.000000e+00> : vector<16x16xf32>
    %146 = tpu.matmul %6, %145, %cst_54 {dimension_numbers = #tpu.dot_dimension_numbers<[1], [0], [0], [1], [0, 0, 1, 1], [], []>} : vector<16x24xf32>, vector<24x16xf32>, vector<16x16xf32> -> vector<16x16xf32>
    %147 = vector.broadcast %7 : vector<16x1xf32> to vector<16x16xf32>
    %148 = arith.addf %146, %147 : vector<16x16xf32>
    %149 = vector.extract_strided_slice %148 {offsets = [0, 0], sizes = [12, 16], strides = [1, 1]} : vector<16x16xf32> to vector<12x16xf32>
    %150 = arith.negf %149 : vector<12x16xf32>
    %151 = math.exp %150 : vector<12x16xf32>
    %cst_55 = arith.constant 1.000000e+00 : f32
    %152 = vector.broadcast %cst_55 : f32 to vector<12x16xf32>
    %153 = arith.addf %152, %151 : vector<12x16xf32>
    %154 = arith.divf %152, %153 : vector<12x16xf32>
    %155 = vector.extract_strided_slice %148 {offsets = [12, 0], sizes = [4, 16], strides = [1, 1]} : vector<16x16xf32> to vector<4x16xf32>
    %156 = math.tanh %155 : vector<4x16xf32>
    %157 = vector.extract_strided_slice %154 {offsets = [0, 0], sizes = [4, 16], strides = [1, 1]} : vector<12x16xf32> to vector<4x16xf32>
    %158 = vector.extract_strided_slice %154 {offsets = [4, 0], sizes = [4, 16], strides = [1, 1]} : vector<12x16xf32> to vector<4x16xf32>
    %159 = vector.extract_strided_slice %154 {offsets = [8, 0], sizes = [4, 16], strides = [1, 1]} : vector<12x16xf32> to vector<4x16xf32>
    %160 = arith.mulf %110, %158 : vector<4x16xf32>
    %161 = arith.mulf %157, %156 : vector<4x16xf32>
    %162 = arith.addf %160, %161 : vector<4x16xf32>
    %163 = math.tanh %162 : vector<4x16xf32>
    %164 = arith.mulf %163, %159 : vector<4x16xf32>
    %c2_56 = arith.constant 2 : index
    %c0_57 = arith.constant 0 : index
    %c0_58 = arith.constant 0 : index
    %165 = vector.load %arg7[%c2_56, %c0_57, %c0_58] : memref<12x12x4xf32, #tpu.memory_space<vmem>>, vector<1x12x4xf32>
    %166 = vector.shape_cast %165 : vector<1x12x4xf32> to vector<12x4xf32>
    %cst_59 = arith.constant dense<0.000000e+00> : vector<12x16xf32>
    %167 = tpu.matmul %166, %164, %cst_59 {dimension_numbers = #tpu.dot_dimension_numbers<[1], [0], [0], [1], [0, 0, 1, 1], [], []>} : vector<12x4xf32>, vector<4x16xf32>, vector<12x16xf32> -> vector<12x16xf32>
    %168 = arith.addf %116, %167 : vector<12x16xf32>
    %c3 = arith.constant 3 : index
    %c0_60 = arith.constant 0 : index
    %c0_61 = arith.constant 0 : index
    %169 = vector.load %arg1[%c3, %c0_60, %c0_61] : memref<12x2x16xf32, #tpu.memory_space<vmem>>, vector<1x2x16xf32>
    %170 = vector.shape_cast %169 : vector<1x2x16xf32> to vector<2x16xf32>
    %171 = tpu.concatenate %170, %141 in 0 : vector<2x16xf32>, vector<4x16xf32> -> vector<6x16xf32>
    %cst_62 = arith.constant dense<0.000000e+00> : vector<6x16xf32>
    %172 = tpu.matmul %171, %1, %cst_62 {dimension_numbers = #tpu.dot_dimension_numbers<[1], [0], [0], [1], [0, 0, 1, 1], [], []>} : vector<6x16xf32>, vector<16x16xf32>, vector<6x16xf32> -> vector<6x16xf32>
    %cst_63 = arith.constant dense<0.000000e+00> : vector<6x16xf32>
    %173 = tpu.matmul %171, %3, %cst_63 {dimension_numbers = #tpu.dot_dimension_numbers<[1], [0], [0], [1], [0, 0, 1, 1], [], []>} : vector<6x16xf32>, vector<16x16xf32>, vector<6x16xf32> -> vector<6x16xf32>
    %174 = tpu.concatenate %171, %172, %173 in 0 : vector<6x16xf32>, vector<6x16xf32>, vector<6x16xf32> -> vector<18x16xf32>
    %cst_64 = arith.constant dense<0.000000e+00> : vector<16x16xf32>
    %175 = tpu.matmul %4, %174, %cst_64 {dimension_numbers = #tpu.dot_dimension_numbers<[1], [0], [0], [1], [0, 0, 1, 1], [], []>} : vector<16x18xf32>, vector<18x16xf32>, vector<16x16xf32> -> vector<16x16xf32>
    %176 = vector.broadcast %5 : vector<16x1xf32> to vector<16x16xf32>
    %177 = arith.addf %175, %176 : vector<16x16xf32>
    %178 = vector.extract_strided_slice %177 {offsets = [0, 0], sizes = [12, 16], strides = [1, 1]} : vector<16x16xf32> to vector<12x16xf32>
    %179 = arith.negf %178 : vector<12x16xf32>
    %180 = math.exp %179 : vector<12x16xf32>
    %cst_65 = arith.constant 1.000000e+00 : f32
    %181 = vector.broadcast %cst_65 : f32 to vector<12x16xf32>
    %182 = arith.addf %181, %180 : vector<12x16xf32>
    %183 = arith.divf %181, %182 : vector<12x16xf32>
    %184 = vector.extract_strided_slice %177 {offsets = [12, 0], sizes = [4, 16], strides = [1, 1]} : vector<16x16xf32> to vector<4x16xf32>
    %185 = math.tanh %184 : vector<4x16xf32>
    %186 = vector.extract_strided_slice %183 {offsets = [0, 0], sizes = [4, 16], strides = [1, 1]} : vector<12x16xf32> to vector<4x16xf32>
    %187 = vector.extract_strided_slice %183 {offsets = [4, 0], sizes = [4, 16], strides = [1, 1]} : vector<12x16xf32> to vector<4x16xf32>
    %188 = vector.extract_strided_slice %183 {offsets = [8, 0], sizes = [4, 16], strides = [1, 1]} : vector<12x16xf32> to vector<4x16xf32>
    %189 = arith.mulf %139, %187 : vector<4x16xf32>
    %190 = arith.mulf %186, %185 : vector<4x16xf32>
    %191 = arith.addf %189, %190 : vector<4x16xf32>
    %192 = math.tanh %191 : vector<4x16xf32>
    %193 = arith.mulf %192, %188 : vector<4x16xf32>
    %194 = tpu.concatenate %193, %164 in 0 : vector<4x16xf32>, vector<4x16xf32> -> vector<8x16xf32>
    %cst_66 = arith.constant dense<0.000000e+00> : vector<8x16xf32>
    %195 = tpu.matmul %194, %1, %cst_66 {dimension_numbers = #tpu.dot_dimension_numbers<[1], [0], [0], [1], [0, 0, 1, 1], [], []>} : vector<8x16xf32>, vector<16x16xf32>, vector<8x16xf32> -> vector<8x16xf32>
    %cst_67 = arith.constant dense<0.000000e+00> : vector<8x16xf32>
    %196 = tpu.matmul %194, %3, %cst_67 {dimension_numbers = #tpu.dot_dimension_numbers<[1], [0], [0], [1], [0, 0, 1, 1], [], []>} : vector<8x16xf32>, vector<16x16xf32>, vector<8x16xf32> -> vector<8x16xf32>
    %197 = tpu.concatenate %194, %195, %196 in 0 : vector<8x16xf32>, vector<8x16xf32>, vector<8x16xf32> -> vector<24x16xf32>
    %cst_68 = arith.constant dense<0.000000e+00> : vector<16x16xf32>
    %198 = tpu.matmul %6, %197, %cst_68 {dimension_numbers = #tpu.dot_dimension_numbers<[1], [0], [0], [1], [0, 0, 1, 1], [], []>} : vector<16x24xf32>, vector<24x16xf32>, vector<16x16xf32> -> vector<16x16xf32>
    %199 = vector.broadcast %7 : vector<16x1xf32> to vector<16x16xf32>
    %200 = arith.addf %198, %199 : vector<16x16xf32>
    %201 = vector.extract_strided_slice %200 {offsets = [0, 0], sizes = [12, 16], strides = [1, 1]} : vector<16x16xf32> to vector<12x16xf32>
    %202 = arith.negf %201 : vector<12x16xf32>
    %203 = math.exp %202 : vector<12x16xf32>
    %cst_69 = arith.constant 1.000000e+00 : f32
    %204 = vector.broadcast %cst_69 : f32 to vector<12x16xf32>
    %205 = arith.addf %204, %203 : vector<12x16xf32>
    %206 = arith.divf %204, %205 : vector<12x16xf32>
    %207 = vector.extract_strided_slice %200 {offsets = [12, 0], sizes = [4, 16], strides = [1, 1]} : vector<16x16xf32> to vector<4x16xf32>
    %208 = math.tanh %207 : vector<4x16xf32>
    %209 = vector.extract_strided_slice %206 {offsets = [0, 0], sizes = [4, 16], strides = [1, 1]} : vector<12x16xf32> to vector<4x16xf32>
    %210 = vector.extract_strided_slice %206 {offsets = [4, 0], sizes = [4, 16], strides = [1, 1]} : vector<12x16xf32> to vector<4x16xf32>
    %211 = vector.extract_strided_slice %206 {offsets = [8, 0], sizes = [4, 16], strides = [1, 1]} : vector<12x16xf32> to vector<4x16xf32>
    %212 = arith.mulf %162, %210 : vector<4x16xf32>
    %213 = arith.mulf %209, %208 : vector<4x16xf32>
    %214 = arith.addf %212, %213 : vector<4x16xf32>
    %215 = math.tanh %214 : vector<4x16xf32>
    %216 = arith.mulf %215, %211 : vector<4x16xf32>
    %c3_70 = arith.constant 3 : index
    %c0_71 = arith.constant 0 : index
    %c0_72 = arith.constant 0 : index
    %217 = vector.load %arg7[%c3_70, %c0_71, %c0_72] : memref<12x12x4xf32, #tpu.memory_space<vmem>>, vector<1x12x4xf32>
    %218 = vector.shape_cast %217 : vector<1x12x4xf32> to vector<12x4xf32>
    %cst_73 = arith.constant dense<0.000000e+00> : vector<12x16xf32>
    %219 = tpu.matmul %218, %216, %cst_73 {dimension_numbers = #tpu.dot_dimension_numbers<[1], [0], [0], [1], [0, 0, 1, 1], [], []>} : vector<12x4xf32>, vector<4x16xf32>, vector<12x16xf32> -> vector<12x16xf32>
    %220 = arith.addf %168, %219 : vector<12x16xf32>
    %c4 = arith.constant 4 : index
    %c0_74 = arith.constant 0 : index
    %c0_75 = arith.constant 0 : index
    %221 = vector.load %arg1[%c4, %c0_74, %c0_75] : memref<12x2x16xf32, #tpu.memory_space<vmem>>, vector<1x2x16xf32>
    %222 = vector.shape_cast %221 : vector<1x2x16xf32> to vector<2x16xf32>
    %223 = tpu.concatenate %222, %193 in 0 : vector<2x16xf32>, vector<4x16xf32> -> vector<6x16xf32>
    %cst_76 = arith.constant dense<0.000000e+00> : vector<6x16xf32>
    %224 = tpu.matmul %223, %1, %cst_76 {dimension_numbers = #tpu.dot_dimension_numbers<[1], [0], [0], [1], [0, 0, 1, 1], [], []>} : vector<6x16xf32>, vector<16x16xf32>, vector<6x16xf32> -> vector<6x16xf32>
    %cst_77 = arith.constant dense<0.000000e+00> : vector<6x16xf32>
    %225 = tpu.matmul %223, %3, %cst_77 {dimension_numbers = #tpu.dot_dimension_numbers<[1], [0], [0], [1], [0, 0, 1, 1], [], []>} : vector<6x16xf32>, vector<16x16xf32>, vector<6x16xf32> -> vector<6x16xf32>
    %226 = tpu.concatenate %223, %224, %225 in 0 : vector<6x16xf32>, vector<6x16xf32>, vector<6x16xf32> -> vector<18x16xf32>
    %cst_78 = arith.constant dense<0.000000e+00> : vector<16x16xf32>
    %227 = tpu.matmul %4, %226, %cst_78 {dimension_numbers = #tpu.dot_dimension_numbers<[1], [0], [0], [1], [0, 0, 1, 1], [], []>} : vector<16x18xf32>, vector<18x16xf32>, vector<16x16xf32> -> vector<16x16xf32>
    %228 = vector.broadcast %5 : vector<16x1xf32> to vector<16x16xf32>
    %229 = arith.addf %227, %228 : vector<16x16xf32>
    %230 = vector.extract_strided_slice %229 {offsets = [0, 0], sizes = [12, 16], strides = [1, 1]} : vector<16x16xf32> to vector<12x16xf32>
    %231 = arith.negf %230 : vector<12x16xf32>
    %232 = math.exp %231 : vector<12x16xf32>
    %cst_79 = arith.constant 1.000000e+00 : f32
    %233 = vector.broadcast %cst_79 : f32 to vector<12x16xf32>
    %234 = arith.addf %233, %232 : vector<12x16xf32>
    %235 = arith.divf %233, %234 : vector<12x16xf32>
    %236 = vector.extract_strided_slice %229 {offsets = [12, 0], sizes = [4, 16], strides = [1, 1]} : vector<16x16xf32> to vector<4x16xf32>
    %237 = math.tanh %236 : vector<4x16xf32>
    %238 = vector.extract_strided_slice %235 {offsets = [0, 0], sizes = [4, 16], strides = [1, 1]} : vector<12x16xf32> to vector<4x16xf32>
    %239 = vector.extract_strided_slice %235 {offsets = [4, 0], sizes = [4, 16], strides = [1, 1]} : vector<12x16xf32> to vector<4x16xf32>
    %240 = vector.extract_strided_slice %235 {offsets = [8, 0], sizes = [4, 16], strides = [1, 1]} : vector<12x16xf32> to vector<4x16xf32>
    %241 = arith.mulf %191, %239 : vector<4x16xf32>
    %242 = arith.mulf %238, %237 : vector<4x16xf32>
    %243 = arith.addf %241, %242 : vector<4x16xf32>
    %244 = math.tanh %243 : vector<4x16xf32>
    %245 = arith.mulf %244, %240 : vector<4x16xf32>
    %246 = tpu.concatenate %245, %216 in 0 : vector<4x16xf32>, vector<4x16xf32> -> vector<8x16xf32>
    %cst_80 = arith.constant dense<0.000000e+00> : vector<8x16xf32>
    %247 = tpu.matmul %246, %1, %cst_80 {dimension_numbers = #tpu.dot_dimension_numbers<[1], [0], [0], [1], [0, 0, 1, 1], [], []>} : vector<8x16xf32>, vector<16x16xf32>, vector<8x16xf32> -> vector<8x16xf32>
    %cst_81 = arith.constant dense<0.000000e+00> : vector<8x16xf32>
    %248 = tpu.matmul %246, %3, %cst_81 {dimension_numbers = #tpu.dot_dimension_numbers<[1], [0], [0], [1], [0, 0, 1, 1], [], []>} : vector<8x16xf32>, vector<16x16xf32>, vector<8x16xf32> -> vector<8x16xf32>
    %249 = tpu.concatenate %246, %247, %248 in 0 : vector<8x16xf32>, vector<8x16xf32>, vector<8x16xf32> -> vector<24x16xf32>
    %cst_82 = arith.constant dense<0.000000e+00> : vector<16x16xf32>
    %250 = tpu.matmul %6, %249, %cst_82 {dimension_numbers = #tpu.dot_dimension_numbers<[1], [0], [0], [1], [0, 0, 1, 1], [], []>} : vector<16x24xf32>, vector<24x16xf32>, vector<16x16xf32> -> vector<16x16xf32>
    %251 = vector.broadcast %7 : vector<16x1xf32> to vector<16x16xf32>
    %252 = arith.addf %250, %251 : vector<16x16xf32>
    %253 = vector.extract_strided_slice %252 {offsets = [0, 0], sizes = [12, 16], strides = [1, 1]} : vector<16x16xf32> to vector<12x16xf32>
    %254 = arith.negf %253 : vector<12x16xf32>
    %255 = math.exp %254 : vector<12x16xf32>
    %cst_83 = arith.constant 1.000000e+00 : f32
    %256 = vector.broadcast %cst_83 : f32 to vector<12x16xf32>
    %257 = arith.addf %256, %255 : vector<12x16xf32>
    %258 = arith.divf %256, %257 : vector<12x16xf32>
    %259 = vector.extract_strided_slice %252 {offsets = [12, 0], sizes = [4, 16], strides = [1, 1]} : vector<16x16xf32> to vector<4x16xf32>
    %260 = math.tanh %259 : vector<4x16xf32>
    %261 = vector.extract_strided_slice %258 {offsets = [0, 0], sizes = [4, 16], strides = [1, 1]} : vector<12x16xf32> to vector<4x16xf32>
    %262 = vector.extract_strided_slice %258 {offsets = [4, 0], sizes = [4, 16], strides = [1, 1]} : vector<12x16xf32> to vector<4x16xf32>
    %263 = vector.extract_strided_slice %258 {offsets = [8, 0], sizes = [4, 16], strides = [1, 1]} : vector<12x16xf32> to vector<4x16xf32>
    %264 = arith.mulf %214, %262 : vector<4x16xf32>
    %265 = arith.mulf %261, %260 : vector<4x16xf32>
    %266 = arith.addf %264, %265 : vector<4x16xf32>
    %267 = math.tanh %266 : vector<4x16xf32>
    %268 = arith.mulf %267, %263 : vector<4x16xf32>
    %c4_84 = arith.constant 4 : index
    %c0_85 = arith.constant 0 : index
    %c0_86 = arith.constant 0 : index
    %269 = vector.load %arg7[%c4_84, %c0_85, %c0_86] : memref<12x12x4xf32, #tpu.memory_space<vmem>>, vector<1x12x4xf32>
    %270 = vector.shape_cast %269 : vector<1x12x4xf32> to vector<12x4xf32>
    %cst_87 = arith.constant dense<0.000000e+00> : vector<12x16xf32>
    %271 = tpu.matmul %270, %268, %cst_87 {dimension_numbers = #tpu.dot_dimension_numbers<[1], [0], [0], [1], [0, 0, 1, 1], [], []>} : vector<12x4xf32>, vector<4x16xf32>, vector<12x16xf32> -> vector<12x16xf32>
    %272 = arith.addf %220, %271 : vector<12x16xf32>
    %c5 = arith.constant 5 : index
    %c0_88 = arith.constant 0 : index
    %c0_89 = arith.constant 0 : index
    %273 = vector.load %arg1[%c5, %c0_88, %c0_89] : memref<12x2x16xf32, #tpu.memory_space<vmem>>, vector<1x2x16xf32>
    %274 = vector.shape_cast %273 : vector<1x2x16xf32> to vector<2x16xf32>
    %275 = tpu.concatenate %274, %245 in 0 : vector<2x16xf32>, vector<4x16xf32> -> vector<6x16xf32>
    %cst_90 = arith.constant dense<0.000000e+00> : vector<6x16xf32>
    %276 = tpu.matmul %275, %1, %cst_90 {dimension_numbers = #tpu.dot_dimension_numbers<[1], [0], [0], [1], [0, 0, 1, 1], [], []>} : vector<6x16xf32>, vector<16x16xf32>, vector<6x16xf32> -> vector<6x16xf32>
    %cst_91 = arith.constant dense<0.000000e+00> : vector<6x16xf32>
    %277 = tpu.matmul %275, %3, %cst_91 {dimension_numbers = #tpu.dot_dimension_numbers<[1], [0], [0], [1], [0, 0, 1, 1], [], []>} : vector<6x16xf32>, vector<16x16xf32>, vector<6x16xf32> -> vector<6x16xf32>
    %278 = tpu.concatenate %275, %276, %277 in 0 : vector<6x16xf32>, vector<6x16xf32>, vector<6x16xf32> -> vector<18x16xf32>
    %cst_92 = arith.constant dense<0.000000e+00> : vector<16x16xf32>
    %279 = tpu.matmul %4, %278, %cst_92 {dimension_numbers = #tpu.dot_dimension_numbers<[1], [0], [0], [1], [0, 0, 1, 1], [], []>} : vector<16x18xf32>, vector<18x16xf32>, vector<16x16xf32> -> vector<16x16xf32>
    %280 = vector.broadcast %5 : vector<16x1xf32> to vector<16x16xf32>
    %281 = arith.addf %279, %280 : vector<16x16xf32>
    %282 = vector.extract_strided_slice %281 {offsets = [0, 0], sizes = [12, 16], strides = [1, 1]} : vector<16x16xf32> to vector<12x16xf32>
    %283 = arith.negf %282 : vector<12x16xf32>
    %284 = math.exp %283 : vector<12x16xf32>
    %cst_93 = arith.constant 1.000000e+00 : f32
    %285 = vector.broadcast %cst_93 : f32 to vector<12x16xf32>
    %286 = arith.addf %285, %284 : vector<12x16xf32>
    %287 = arith.divf %285, %286 : vector<12x16xf32>
    %288 = vector.extract_strided_slice %281 {offsets = [12, 0], sizes = [4, 16], strides = [1, 1]} : vector<16x16xf32> to vector<4x16xf32>
    %289 = math.tanh %288 : vector<4x16xf32>
    %290 = vector.extract_strided_slice %287 {offsets = [0, 0], sizes = [4, 16], strides = [1, 1]} : vector<12x16xf32> to vector<4x16xf32>
    %291 = vector.extract_strided_slice %287 {offsets = [4, 0], sizes = [4, 16], strides = [1, 1]} : vector<12x16xf32> to vector<4x16xf32>
    %292 = vector.extract_strided_slice %287 {offsets = [8, 0], sizes = [4, 16], strides = [1, 1]} : vector<12x16xf32> to vector<4x16xf32>
    %293 = arith.mulf %243, %291 : vector<4x16xf32>
    %294 = arith.mulf %290, %289 : vector<4x16xf32>
    %295 = arith.addf %293, %294 : vector<4x16xf32>
    %296 = math.tanh %295 : vector<4x16xf32>
    %297 = arith.mulf %296, %292 : vector<4x16xf32>
    %298 = tpu.concatenate %297, %268 in 0 : vector<4x16xf32>, vector<4x16xf32> -> vector<8x16xf32>
    %cst_94 = arith.constant dense<0.000000e+00> : vector<8x16xf32>
    %299 = tpu.matmul %298, %1, %cst_94 {dimension_numbers = #tpu.dot_dimension_numbers<[1], [0], [0], [1], [0, 0, 1, 1], [], []>} : vector<8x16xf32>, vector<16x16xf32>, vector<8x16xf32> -> vector<8x16xf32>
    %cst_95 = arith.constant dense<0.000000e+00> : vector<8x16xf32>
    %300 = tpu.matmul %298, %3, %cst_95 {dimension_numbers = #tpu.dot_dimension_numbers<[1], [0], [0], [1], [0, 0, 1, 1], [], []>} : vector<8x16xf32>, vector<16x16xf32>, vector<8x16xf32> -> vector<8x16xf32>
    %301 = tpu.concatenate %298, %299, %300 in 0 : vector<8x16xf32>, vector<8x16xf32>, vector<8x16xf32> -> vector<24x16xf32>
    %cst_96 = arith.constant dense<0.000000e+00> : vector<16x16xf32>
    %302 = tpu.matmul %6, %301, %cst_96 {dimension_numbers = #tpu.dot_dimension_numbers<[1], [0], [0], [1], [0, 0, 1, 1], [], []>} : vector<16x24xf32>, vector<24x16xf32>, vector<16x16xf32> -> vector<16x16xf32>
    %303 = vector.broadcast %7 : vector<16x1xf32> to vector<16x16xf32>
    %304 = arith.addf %302, %303 : vector<16x16xf32>
    %305 = vector.extract_strided_slice %304 {offsets = [0, 0], sizes = [12, 16], strides = [1, 1]} : vector<16x16xf32> to vector<12x16xf32>
    %306 = arith.negf %305 : vector<12x16xf32>
    %307 = math.exp %306 : vector<12x16xf32>
    %cst_97 = arith.constant 1.000000e+00 : f32
    %308 = vector.broadcast %cst_97 : f32 to vector<12x16xf32>
    %309 = arith.addf %308, %307 : vector<12x16xf32>
    %310 = arith.divf %308, %309 : vector<12x16xf32>
    %311 = vector.extract_strided_slice %304 {offsets = [12, 0], sizes = [4, 16], strides = [1, 1]} : vector<16x16xf32> to vector<4x16xf32>
    %312 = math.tanh %311 : vector<4x16xf32>
    %313 = vector.extract_strided_slice %310 {offsets = [0, 0], sizes = [4, 16], strides = [1, 1]} : vector<12x16xf32> to vector<4x16xf32>
    %314 = vector.extract_strided_slice %310 {offsets = [4, 0], sizes = [4, 16], strides = [1, 1]} : vector<12x16xf32> to vector<4x16xf32>
    %315 = vector.extract_strided_slice %310 {offsets = [8, 0], sizes = [4, 16], strides = [1, 1]} : vector<12x16xf32> to vector<4x16xf32>
    %316 = arith.mulf %266, %314 : vector<4x16xf32>
    %317 = arith.mulf %313, %312 : vector<4x16xf32>
    %318 = arith.addf %316, %317 : vector<4x16xf32>
    %319 = math.tanh %318 : vector<4x16xf32>
    %320 = arith.mulf %319, %315 : vector<4x16xf32>
    %c5_98 = arith.constant 5 : index
    %c0_99 = arith.constant 0 : index
    %c0_100 = arith.constant 0 : index
    %321 = vector.load %arg7[%c5_98, %c0_99, %c0_100] : memref<12x12x4xf32, #tpu.memory_space<vmem>>, vector<1x12x4xf32>
    %322 = vector.shape_cast %321 : vector<1x12x4xf32> to vector<12x4xf32>
    %cst_101 = arith.constant dense<0.000000e+00> : vector<12x16xf32>
    %323 = tpu.matmul %322, %320, %cst_101 {dimension_numbers = #tpu.dot_dimension_numbers<[1], [0], [0], [1], [0, 0, 1, 1], [], []>} : vector<12x4xf32>, vector<4x16xf32>, vector<12x16xf32> -> vector<12x16xf32>
    %324 = arith.addf %272, %323 : vector<12x16xf32>
    %c6 = arith.constant 6 : index
    %c0_102 = arith.constant 0 : index
    %c0_103 = arith.constant 0 : index
    %325 = vector.load %arg1[%c6, %c0_102, %c0_103] : memref<12x2x16xf32, #tpu.memory_space<vmem>>, vector<1x2x16xf32>
    %326 = vector.shape_cast %325 : vector<1x2x16xf32> to vector<2x16xf32>
    %327 = tpu.concatenate %326, %297 in 0 : vector<2x16xf32>, vector<4x16xf32> -> vector<6x16xf32>
    %cst_104 = arith.constant dense<0.000000e+00> : vector<6x16xf32>
    %328 = tpu.matmul %327, %1, %cst_104 {dimension_numbers = #tpu.dot_dimension_numbers<[1], [0], [0], [1], [0, 0, 1, 1], [], []>} : vector<6x16xf32>, vector<16x16xf32>, vector<6x16xf32> -> vector<6x16xf32>
    %cst_105 = arith.constant dense<0.000000e+00> : vector<6x16xf32>
    %329 = tpu.matmul %327, %3, %cst_105 {dimension_numbers = #tpu.dot_dimension_numbers<[1], [0], [0], [1], [0, 0, 1, 1], [], []>} : vector<6x16xf32>, vector<16x16xf32>, vector<6x16xf32> -> vector<6x16xf32>
    %330 = tpu.concatenate %327, %328, %329 in 0 : vector<6x16xf32>, vector<6x16xf32>, vector<6x16xf32> -> vector<18x16xf32>
    %cst_106 = arith.constant dense<0.000000e+00> : vector<16x16xf32>
    %331 = tpu.matmul %4, %330, %cst_106 {dimension_numbers = #tpu.dot_dimension_numbers<[1], [0], [0], [1], [0, 0, 1, 1], [], []>} : vector<16x18xf32>, vector<18x16xf32>, vector<16x16xf32> -> vector<16x16xf32>
    %332 = vector.broadcast %5 : vector<16x1xf32> to vector<16x16xf32>
    %333 = arith.addf %331, %332 : vector<16x16xf32>
    %334 = vector.extract_strided_slice %333 {offsets = [0, 0], sizes = [12, 16], strides = [1, 1]} : vector<16x16xf32> to vector<12x16xf32>
    %335 = arith.negf %334 : vector<12x16xf32>
    %336 = math.exp %335 : vector<12x16xf32>
    %cst_107 = arith.constant 1.000000e+00 : f32
    %337 = vector.broadcast %cst_107 : f32 to vector<12x16xf32>
    %338 = arith.addf %337, %336 : vector<12x16xf32>
    %339 = arith.divf %337, %338 : vector<12x16xf32>
    %340 = vector.extract_strided_slice %333 {offsets = [12, 0], sizes = [4, 16], strides = [1, 1]} : vector<16x16xf32> to vector<4x16xf32>
    %341 = math.tanh %340 : vector<4x16xf32>
    %342 = vector.extract_strided_slice %339 {offsets = [0, 0], sizes = [4, 16], strides = [1, 1]} : vector<12x16xf32> to vector<4x16xf32>
    %343 = vector.extract_strided_slice %339 {offsets = [4, 0], sizes = [4, 16], strides = [1, 1]} : vector<12x16xf32> to vector<4x16xf32>
    %344 = vector.extract_strided_slice %339 {offsets = [8, 0], sizes = [4, 16], strides = [1, 1]} : vector<12x16xf32> to vector<4x16xf32>
    %345 = arith.mulf %295, %343 : vector<4x16xf32>
    %346 = arith.mulf %342, %341 : vector<4x16xf32>
    %347 = arith.addf %345, %346 : vector<4x16xf32>
    %348 = math.tanh %347 : vector<4x16xf32>
    %349 = arith.mulf %348, %344 : vector<4x16xf32>
    %350 = tpu.concatenate %349, %320 in 0 : vector<4x16xf32>, vector<4x16xf32> -> vector<8x16xf32>
    %cst_108 = arith.constant dense<0.000000e+00> : vector<8x16xf32>
    %351 = tpu.matmul %350, %1, %cst_108 {dimension_numbers = #tpu.dot_dimension_numbers<[1], [0], [0], [1], [0, 0, 1, 1], [], []>} : vector<8x16xf32>, vector<16x16xf32>, vector<8x16xf32> -> vector<8x16xf32>
    %cst_109 = arith.constant dense<0.000000e+00> : vector<8x16xf32>
    %352 = tpu.matmul %350, %3, %cst_109 {dimension_numbers = #tpu.dot_dimension_numbers<[1], [0], [0], [1], [0, 0, 1, 1], [], []>} : vector<8x16xf32>, vector<16x16xf32>, vector<8x16xf32> -> vector<8x16xf32>
    %353 = tpu.concatenate %350, %351, %352 in 0 : vector<8x16xf32>, vector<8x16xf32>, vector<8x16xf32> -> vector<24x16xf32>
    %cst_110 = arith.constant dense<0.000000e+00> : vector<16x16xf32>
    %354 = tpu.matmul %6, %353, %cst_110 {dimension_numbers = #tpu.dot_dimension_numbers<[1], [0], [0], [1], [0, 0, 1, 1], [], []>} : vector<16x24xf32>, vector<24x16xf32>, vector<16x16xf32> -> vector<16x16xf32>
    %355 = vector.broadcast %7 : vector<16x1xf32> to vector<16x16xf32>
    %356 = arith.addf %354, %355 : vector<16x16xf32>
    %357 = vector.extract_strided_slice %356 {offsets = [0, 0], sizes = [12, 16], strides = [1, 1]} : vector<16x16xf32> to vector<12x16xf32>
    %358 = arith.negf %357 : vector<12x16xf32>
    %359 = math.exp %358 : vector<12x16xf32>
    %cst_111 = arith.constant 1.000000e+00 : f32
    %360 = vector.broadcast %cst_111 : f32 to vector<12x16xf32>
    %361 = arith.addf %360, %359 : vector<12x16xf32>
    %362 = arith.divf %360, %361 : vector<12x16xf32>
    %363 = vector.extract_strided_slice %356 {offsets = [12, 0], sizes = [4, 16], strides = [1, 1]} : vector<16x16xf32> to vector<4x16xf32>
    %364 = math.tanh %363 : vector<4x16xf32>
    %365 = vector.extract_strided_slice %362 {offsets = [0, 0], sizes = [4, 16], strides = [1, 1]} : vector<12x16xf32> to vector<4x16xf32>
    %366 = vector.extract_strided_slice %362 {offsets = [4, 0], sizes = [4, 16], strides = [1, 1]} : vector<12x16xf32> to vector<4x16xf32>
    %367 = vector.extract_strided_slice %362 {offsets = [8, 0], sizes = [4, 16], strides = [1, 1]} : vector<12x16xf32> to vector<4x16xf32>
    %368 = arith.mulf %318, %366 : vector<4x16xf32>
    %369 = arith.mulf %365, %364 : vector<4x16xf32>
    %370 = arith.addf %368, %369 : vector<4x16xf32>
    %371 = math.tanh %370 : vector<4x16xf32>
    %372 = arith.mulf %371, %367 : vector<4x16xf32>
    %c6_112 = arith.constant 6 : index
    %c0_113 = arith.constant 0 : index
    %c0_114 = arith.constant 0 : index
    %373 = vector.load %arg7[%c6_112, %c0_113, %c0_114] : memref<12x12x4xf32, #tpu.memory_space<vmem>>, vector<1x12x4xf32>
    %374 = vector.shape_cast %373 : vector<1x12x4xf32> to vector<12x4xf32>
    %cst_115 = arith.constant dense<0.000000e+00> : vector<12x16xf32>
    %375 = tpu.matmul %374, %372, %cst_115 {dimension_numbers = #tpu.dot_dimension_numbers<[1], [0], [0], [1], [0, 0, 1, 1], [], []>} : vector<12x4xf32>, vector<4x16xf32>, vector<12x16xf32> -> vector<12x16xf32>
    %376 = arith.addf %324, %375 : vector<12x16xf32>
    %c7 = arith.constant 7 : index
    %c0_116 = arith.constant 0 : index
    %c0_117 = arith.constant 0 : index
    %377 = vector.load %arg1[%c7, %c0_116, %c0_117] : memref<12x2x16xf32, #tpu.memory_space<vmem>>, vector<1x2x16xf32>
    %378 = vector.shape_cast %377 : vector<1x2x16xf32> to vector<2x16xf32>
    %379 = tpu.concatenate %378, %349 in 0 : vector<2x16xf32>, vector<4x16xf32> -> vector<6x16xf32>
    %cst_118 = arith.constant dense<0.000000e+00> : vector<6x16xf32>
    %380 = tpu.matmul %379, %1, %cst_118 {dimension_numbers = #tpu.dot_dimension_numbers<[1], [0], [0], [1], [0, 0, 1, 1], [], []>} : vector<6x16xf32>, vector<16x16xf32>, vector<6x16xf32> -> vector<6x16xf32>
    %cst_119 = arith.constant dense<0.000000e+00> : vector<6x16xf32>
    %381 = tpu.matmul %379, %3, %cst_119 {dimension_numbers = #tpu.dot_dimension_numbers<[1], [0], [0], [1], [0, 0, 1, 1], [], []>} : vector<6x16xf32>, vector<16x16xf32>, vector<6x16xf32> -> vector<6x16xf32>
    %382 = tpu.concatenate %379, %380, %381 in 0 : vector<6x16xf32>, vector<6x16xf32>, vector<6x16xf32> -> vector<18x16xf32>
    %cst_120 = arith.constant dense<0.000000e+00> : vector<16x16xf32>
    %383 = tpu.matmul %4, %382, %cst_120 {dimension_numbers = #tpu.dot_dimension_numbers<[1], [0], [0], [1], [0, 0, 1, 1], [], []>} : vector<16x18xf32>, vector<18x16xf32>, vector<16x16xf32> -> vector<16x16xf32>
    %384 = vector.broadcast %5 : vector<16x1xf32> to vector<16x16xf32>
    %385 = arith.addf %383, %384 : vector<16x16xf32>
    %386 = vector.extract_strided_slice %385 {offsets = [0, 0], sizes = [12, 16], strides = [1, 1]} : vector<16x16xf32> to vector<12x16xf32>
    %387 = arith.negf %386 : vector<12x16xf32>
    %388 = math.exp %387 : vector<12x16xf32>
    %cst_121 = arith.constant 1.000000e+00 : f32
    %389 = vector.broadcast %cst_121 : f32 to vector<12x16xf32>
    %390 = arith.addf %389, %388 : vector<12x16xf32>
    %391 = arith.divf %389, %390 : vector<12x16xf32>
    %392 = vector.extract_strided_slice %385 {offsets = [12, 0], sizes = [4, 16], strides = [1, 1]} : vector<16x16xf32> to vector<4x16xf32>
    %393 = math.tanh %392 : vector<4x16xf32>
    %394 = vector.extract_strided_slice %391 {offsets = [0, 0], sizes = [4, 16], strides = [1, 1]} : vector<12x16xf32> to vector<4x16xf32>
    %395 = vector.extract_strided_slice %391 {offsets = [4, 0], sizes = [4, 16], strides = [1, 1]} : vector<12x16xf32> to vector<4x16xf32>
    %396 = vector.extract_strided_slice %391 {offsets = [8, 0], sizes = [4, 16], strides = [1, 1]} : vector<12x16xf32> to vector<4x16xf32>
    %397 = arith.mulf %347, %395 : vector<4x16xf32>
    %398 = arith.mulf %394, %393 : vector<4x16xf32>
    %399 = arith.addf %397, %398 : vector<4x16xf32>
    %400 = math.tanh %399 : vector<4x16xf32>
    %401 = arith.mulf %400, %396 : vector<4x16xf32>
    %402 = tpu.concatenate %401, %372 in 0 : vector<4x16xf32>, vector<4x16xf32> -> vector<8x16xf32>
    %cst_122 = arith.constant dense<0.000000e+00> : vector<8x16xf32>
    %403 = tpu.matmul %402, %1, %cst_122 {dimension_numbers = #tpu.dot_dimension_numbers<[1], [0], [0], [1], [0, 0, 1, 1], [], []>} : vector<8x16xf32>, vector<16x16xf32>, vector<8x16xf32> -> vector<8x16xf32>
    %cst_123 = arith.constant dense<0.000000e+00> : vector<8x16xf32>
    %404 = tpu.matmul %402, %3, %cst_123 {dimension_numbers = #tpu.dot_dimension_numbers<[1], [0], [0], [1], [0, 0, 1, 1], [], []>} : vector<8x16xf32>, vector<16x16xf32>, vector<8x16xf32> -> vector<8x16xf32>
    %405 = tpu.concatenate %402, %403, %404 in 0 : vector<8x16xf32>, vector<8x16xf32>, vector<8x16xf32> -> vector<24x16xf32>
    %cst_124 = arith.constant dense<0.000000e+00> : vector<16x16xf32>
    %406 = tpu.matmul %6, %405, %cst_124 {dimension_numbers = #tpu.dot_dimension_numbers<[1], [0], [0], [1], [0, 0, 1, 1], [], []>} : vector<16x24xf32>, vector<24x16xf32>, vector<16x16xf32> -> vector<16x16xf32>
    %407 = vector.broadcast %7 : vector<16x1xf32> to vector<16x16xf32>
    %408 = arith.addf %406, %407 : vector<16x16xf32>
    %409 = vector.extract_strided_slice %408 {offsets = [0, 0], sizes = [12, 16], strides = [1, 1]} : vector<16x16xf32> to vector<12x16xf32>
    %410 = arith.negf %409 : vector<12x16xf32>
    %411 = math.exp %410 : vector<12x16xf32>
    %cst_125 = arith.constant 1.000000e+00 : f32
    %412 = vector.broadcast %cst_125 : f32 to vector<12x16xf32>
    %413 = arith.addf %412, %411 : vector<12x16xf32>
    %414 = arith.divf %412, %413 : vector<12x16xf32>
    %415 = vector.extract_strided_slice %408 {offsets = [12, 0], sizes = [4, 16], strides = [1, 1]} : vector<16x16xf32> to vector<4x16xf32>
    %416 = math.tanh %415 : vector<4x16xf32>
    %417 = vector.extract_strided_slice %414 {offsets = [0, 0], sizes = [4, 16], strides = [1, 1]} : vector<12x16xf32> to vector<4x16xf32>
    %418 = vector.extract_strided_slice %414 {offsets = [4, 0], sizes = [4, 16], strides = [1, 1]} : vector<12x16xf32> to vector<4x16xf32>
    %419 = vector.extract_strided_slice %414 {offsets = [8, 0], sizes = [4, 16], strides = [1, 1]} : vector<12x16xf32> to vector<4x16xf32>
    %420 = arith.mulf %370, %418 : vector<4x16xf32>
    %421 = arith.mulf %417, %416 : vector<4x16xf32>
    %422 = arith.addf %420, %421 : vector<4x16xf32>
    %423 = math.tanh %422 : vector<4x16xf32>
    %424 = arith.mulf %423, %419 : vector<4x16xf32>
    %c7_126 = arith.constant 7 : index
    %c0_127 = arith.constant 0 : index
    %c0_128 = arith.constant 0 : index
    %425 = vector.load %arg7[%c7_126, %c0_127, %c0_128] : memref<12x12x4xf32, #tpu.memory_space<vmem>>, vector<1x12x4xf32>
    %426 = vector.shape_cast %425 : vector<1x12x4xf32> to vector<12x4xf32>
    %cst_129 = arith.constant dense<0.000000e+00> : vector<12x16xf32>
    %427 = tpu.matmul %426, %424, %cst_129 {dimension_numbers = #tpu.dot_dimension_numbers<[1], [0], [0], [1], [0, 0, 1, 1], [], []>} : vector<12x4xf32>, vector<4x16xf32>, vector<12x16xf32> -> vector<12x16xf32>
    %428 = arith.addf %376, %427 : vector<12x16xf32>
    %c8 = arith.constant 8 : index
    %c0_130 = arith.constant 0 : index
    %c0_131 = arith.constant 0 : index
    %429 = vector.load %arg1[%c8, %c0_130, %c0_131] : memref<12x2x16xf32, #tpu.memory_space<vmem>>, vector<1x2x16xf32>
    %430 = vector.shape_cast %429 : vector<1x2x16xf32> to vector<2x16xf32>
    %431 = tpu.concatenate %430, %401 in 0 : vector<2x16xf32>, vector<4x16xf32> -> vector<6x16xf32>
    %cst_132 = arith.constant dense<0.000000e+00> : vector<6x16xf32>
    %432 = tpu.matmul %431, %1, %cst_132 {dimension_numbers = #tpu.dot_dimension_numbers<[1], [0], [0], [1], [0, 0, 1, 1], [], []>} : vector<6x16xf32>, vector<16x16xf32>, vector<6x16xf32> -> vector<6x16xf32>
    %cst_133 = arith.constant dense<0.000000e+00> : vector<6x16xf32>
    %433 = tpu.matmul %431, %3, %cst_133 {dimension_numbers = #tpu.dot_dimension_numbers<[1], [0], [0], [1], [0, 0, 1, 1], [], []>} : vector<6x16xf32>, vector<16x16xf32>, vector<6x16xf32> -> vector<6x16xf32>
    %434 = tpu.concatenate %431, %432, %433 in 0 : vector<6x16xf32>, vector<6x16xf32>, vector<6x16xf32> -> vector<18x16xf32>
    %cst_134 = arith.constant dense<0.000000e+00> : vector<16x16xf32>
    %435 = tpu.matmul %4, %434, %cst_134 {dimension_numbers = #tpu.dot_dimension_numbers<[1], [0], [0], [1], [0, 0, 1, 1], [], []>} : vector<16x18xf32>, vector<18x16xf32>, vector<16x16xf32> -> vector<16x16xf32>
    %436 = vector.broadcast %5 : vector<16x1xf32> to vector<16x16xf32>
    %437 = arith.addf %435, %436 : vector<16x16xf32>
    %438 = vector.extract_strided_slice %437 {offsets = [0, 0], sizes = [12, 16], strides = [1, 1]} : vector<16x16xf32> to vector<12x16xf32>
    %439 = arith.negf %438 : vector<12x16xf32>
    %440 = math.exp %439 : vector<12x16xf32>
    %cst_135 = arith.constant 1.000000e+00 : f32
    %441 = vector.broadcast %cst_135 : f32 to vector<12x16xf32>
    %442 = arith.addf %441, %440 : vector<12x16xf32>
    %443 = arith.divf %441, %442 : vector<12x16xf32>
    %444 = vector.extract_strided_slice %437 {offsets = [12, 0], sizes = [4, 16], strides = [1, 1]} : vector<16x16xf32> to vector<4x16xf32>
    %445 = math.tanh %444 : vector<4x16xf32>
    %446 = vector.extract_strided_slice %443 {offsets = [0, 0], sizes = [4, 16], strides = [1, 1]} : vector<12x16xf32> to vector<4x16xf32>
    %447 = vector.extract_strided_slice %443 {offsets = [4, 0], sizes = [4, 16], strides = [1, 1]} : vector<12x16xf32> to vector<4x16xf32>
    %448 = vector.extract_strided_slice %443 {offsets = [8, 0], sizes = [4, 16], strides = [1, 1]} : vector<12x16xf32> to vector<4x16xf32>
    %449 = arith.mulf %399, %447 : vector<4x16xf32>
    %450 = arith.mulf %446, %445 : vector<4x16xf32>
    %451 = arith.addf %449, %450 : vector<4x16xf32>
    %452 = math.tanh %451 : vector<4x16xf32>
    %453 = arith.mulf %452, %448 : vector<4x16xf32>
    %454 = tpu.concatenate %453, %424 in 0 : vector<4x16xf32>, vector<4x16xf32> -> vector<8x16xf32>
    %cst_136 = arith.constant dense<0.000000e+00> : vector<8x16xf32>
    %455 = tpu.matmul %454, %1, %cst_136 {dimension_numbers = #tpu.dot_dimension_numbers<[1], [0], [0], [1], [0, 0, 1, 1], [], []>} : vector<8x16xf32>, vector<16x16xf32>, vector<8x16xf32> -> vector<8x16xf32>
    %cst_137 = arith.constant dense<0.000000e+00> : vector<8x16xf32>
    %456 = tpu.matmul %454, %3, %cst_137 {dimension_numbers = #tpu.dot_dimension_numbers<[1], [0], [0], [1], [0, 0, 1, 1], [], []>} : vector<8x16xf32>, vector<16x16xf32>, vector<8x16xf32> -> vector<8x16xf32>
    %457 = tpu.concatenate %454, %455, %456 in 0 : vector<8x16xf32>, vector<8x16xf32>, vector<8x16xf32> -> vector<24x16xf32>
    %cst_138 = arith.constant dense<0.000000e+00> : vector<16x16xf32>
    %458 = tpu.matmul %6, %457, %cst_138 {dimension_numbers = #tpu.dot_dimension_numbers<[1], [0], [0], [1], [0, 0, 1, 1], [], []>} : vector<16x24xf32>, vector<24x16xf32>, vector<16x16xf32> -> vector<16x16xf32>
    %459 = vector.broadcast %7 : vector<16x1xf32> to vector<16x16xf32>
    %460 = arith.addf %458, %459 : vector<16x16xf32>
    %461 = vector.extract_strided_slice %460 {offsets = [0, 0], sizes = [12, 16], strides = [1, 1]} : vector<16x16xf32> to vector<12x16xf32>
    %462 = arith.negf %461 : vector<12x16xf32>
    %463 = math.exp %462 : vector<12x16xf32>
    %cst_139 = arith.constant 1.000000e+00 : f32
    %464 = vector.broadcast %cst_139 : f32 to vector<12x16xf32>
    %465 = arith.addf %464, %463 : vector<12x16xf32>
    %466 = arith.divf %464, %465 : vector<12x16xf32>
    %467 = vector.extract_strided_slice %460 {offsets = [12, 0], sizes = [4, 16], strides = [1, 1]} : vector<16x16xf32> to vector<4x16xf32>
    %468 = math.tanh %467 : vector<4x16xf32>
    %469 = vector.extract_strided_slice %466 {offsets = [0, 0], sizes = [4, 16], strides = [1, 1]} : vector<12x16xf32> to vector<4x16xf32>
    %470 = vector.extract_strided_slice %466 {offsets = [4, 0], sizes = [4, 16], strides = [1, 1]} : vector<12x16xf32> to vector<4x16xf32>
    %471 = vector.extract_strided_slice %466 {offsets = [8, 0], sizes = [4, 16], strides = [1, 1]} : vector<12x16xf32> to vector<4x16xf32>
    %472 = arith.mulf %422, %470 : vector<4x16xf32>
    %473 = arith.mulf %469, %468 : vector<4x16xf32>
    %474 = arith.addf %472, %473 : vector<4x16xf32>
    %475 = math.tanh %474 : vector<4x16xf32>
    %476 = arith.mulf %475, %471 : vector<4x16xf32>
    %c8_140 = arith.constant 8 : index
    %c0_141 = arith.constant 0 : index
    %c0_142 = arith.constant 0 : index
    %477 = vector.load %arg7[%c8_140, %c0_141, %c0_142] : memref<12x12x4xf32, #tpu.memory_space<vmem>>, vector<1x12x4xf32>
    %478 = vector.shape_cast %477 : vector<1x12x4xf32> to vector<12x4xf32>
    %cst_143 = arith.constant dense<0.000000e+00> : vector<12x16xf32>
    %479 = tpu.matmul %478, %476, %cst_143 {dimension_numbers = #tpu.dot_dimension_numbers<[1], [0], [0], [1], [0, 0, 1, 1], [], []>} : vector<12x4xf32>, vector<4x16xf32>, vector<12x16xf32> -> vector<12x16xf32>
    %480 = arith.addf %428, %479 : vector<12x16xf32>
    %c9 = arith.constant 9 : index
    %c0_144 = arith.constant 0 : index
    %c0_145 = arith.constant 0 : index
    %481 = vector.load %arg1[%c9, %c0_144, %c0_145] : memref<12x2x16xf32, #tpu.memory_space<vmem>>, vector<1x2x16xf32>
    %482 = vector.shape_cast %481 : vector<1x2x16xf32> to vector<2x16xf32>
    %483 = tpu.concatenate %482, %453 in 0 : vector<2x16xf32>, vector<4x16xf32> -> vector<6x16xf32>
    %cst_146 = arith.constant dense<0.000000e+00> : vector<6x16xf32>
    %484 = tpu.matmul %483, %1, %cst_146 {dimension_numbers = #tpu.dot_dimension_numbers<[1], [0], [0], [1], [0, 0, 1, 1], [], []>} : vector<6x16xf32>, vector<16x16xf32>, vector<6x16xf32> -> vector<6x16xf32>
    %cst_147 = arith.constant dense<0.000000e+00> : vector<6x16xf32>
    %485 = tpu.matmul %483, %3, %cst_147 {dimension_numbers = #tpu.dot_dimension_numbers<[1], [0], [0], [1], [0, 0, 1, 1], [], []>} : vector<6x16xf32>, vector<16x16xf32>, vector<6x16xf32> -> vector<6x16xf32>
    %486 = tpu.concatenate %483, %484, %485 in 0 : vector<6x16xf32>, vector<6x16xf32>, vector<6x16xf32> -> vector<18x16xf32>
    %cst_148 = arith.constant dense<0.000000e+00> : vector<16x16xf32>
    %487 = tpu.matmul %4, %486, %cst_148 {dimension_numbers = #tpu.dot_dimension_numbers<[1], [0], [0], [1], [0, 0, 1, 1], [], []>} : vector<16x18xf32>, vector<18x16xf32>, vector<16x16xf32> -> vector<16x16xf32>
    %488 = vector.broadcast %5 : vector<16x1xf32> to vector<16x16xf32>
    %489 = arith.addf %487, %488 : vector<16x16xf32>
    %490 = vector.extract_strided_slice %489 {offsets = [0, 0], sizes = [12, 16], strides = [1, 1]} : vector<16x16xf32> to vector<12x16xf32>
    %491 = arith.negf %490 : vector<12x16xf32>
    %492 = math.exp %491 : vector<12x16xf32>
    %cst_149 = arith.constant 1.000000e+00 : f32
    %493 = vector.broadcast %cst_149 : f32 to vector<12x16xf32>
    %494 = arith.addf %493, %492 : vector<12x16xf32>
    %495 = arith.divf %493, %494 : vector<12x16xf32>
    %496 = vector.extract_strided_slice %489 {offsets = [12, 0], sizes = [4, 16], strides = [1, 1]} : vector<16x16xf32> to vector<4x16xf32>
    %497 = math.tanh %496 : vector<4x16xf32>
    %498 = vector.extract_strided_slice %495 {offsets = [0, 0], sizes = [4, 16], strides = [1, 1]} : vector<12x16xf32> to vector<4x16xf32>
    %499 = vector.extract_strided_slice %495 {offsets = [4, 0], sizes = [4, 16], strides = [1, 1]} : vector<12x16xf32> to vector<4x16xf32>
    %500 = vector.extract_strided_slice %495 {offsets = [8, 0], sizes = [4, 16], strides = [1, 1]} : vector<12x16xf32> to vector<4x16xf32>
    %501 = arith.mulf %451, %499 : vector<4x16xf32>
    %502 = arith.mulf %498, %497 : vector<4x16xf32>
    %503 = arith.addf %501, %502 : vector<4x16xf32>
    %504 = math.tanh %503 : vector<4x16xf32>
    %505 = arith.mulf %504, %500 : vector<4x16xf32>
    %506 = tpu.concatenate %505, %476 in 0 : vector<4x16xf32>, vector<4x16xf32> -> vector<8x16xf32>
    %cst_150 = arith.constant dense<0.000000e+00> : vector<8x16xf32>
    %507 = tpu.matmul %506, %1, %cst_150 {dimension_numbers = #tpu.dot_dimension_numbers<[1], [0], [0], [1], [0, 0, 1, 1], [], []>} : vector<8x16xf32>, vector<16x16xf32>, vector<8x16xf32> -> vector<8x16xf32>
    %cst_151 = arith.constant dense<0.000000e+00> : vector<8x16xf32>
    %508 = tpu.matmul %506, %3, %cst_151 {dimension_numbers = #tpu.dot_dimension_numbers<[1], [0], [0], [1], [0, 0, 1, 1], [], []>} : vector<8x16xf32>, vector<16x16xf32>, vector<8x16xf32> -> vector<8x16xf32>
    %509 = tpu.concatenate %506, %507, %508 in 0 : vector<8x16xf32>, vector<8x16xf32>, vector<8x16xf32> -> vector<24x16xf32>
    %cst_152 = arith.constant dense<0.000000e+00> : vector<16x16xf32>
    %510 = tpu.matmul %6, %509, %cst_152 {dimension_numbers = #tpu.dot_dimension_numbers<[1], [0], [0], [1], [0, 0, 1, 1], [], []>} : vector<16x24xf32>, vector<24x16xf32>, vector<16x16xf32> -> vector<16x16xf32>
    %511 = vector.broadcast %7 : vector<16x1xf32> to vector<16x16xf32>
    %512 = arith.addf %510, %511 : vector<16x16xf32>
    %513 = vector.extract_strided_slice %512 {offsets = [0, 0], sizes = [12, 16], strides = [1, 1]} : vector<16x16xf32> to vector<12x16xf32>
    %514 = arith.negf %513 : vector<12x16xf32>
    %515 = math.exp %514 : vector<12x16xf32>
    %cst_153 = arith.constant 1.000000e+00 : f32
    %516 = vector.broadcast %cst_153 : f32 to vector<12x16xf32>
    %517 = arith.addf %516, %515 : vector<12x16xf32>
    %518 = arith.divf %516, %517 : vector<12x16xf32>
    %519 = vector.extract_strided_slice %512 {offsets = [12, 0], sizes = [4, 16], strides = [1, 1]} : vector<16x16xf32> to vector<4x16xf32>
    %520 = math.tanh %519 : vector<4x16xf32>
    %521 = vector.extract_strided_slice %518 {offsets = [0, 0], sizes = [4, 16], strides = [1, 1]} : vector<12x16xf32> to vector<4x16xf32>
    %522 = vector.extract_strided_slice %518 {offsets = [4, 0], sizes = [4, 16], strides = [1, 1]} : vector<12x16xf32> to vector<4x16xf32>
    %523 = vector.extract_strided_slice %518 {offsets = [8, 0], sizes = [4, 16], strides = [1, 1]} : vector<12x16xf32> to vector<4x16xf32>
    %524 = arith.mulf %474, %522 : vector<4x16xf32>
    %525 = arith.mulf %521, %520 : vector<4x16xf32>
    %526 = arith.addf %524, %525 : vector<4x16xf32>
    %527 = math.tanh %526 : vector<4x16xf32>
    %528 = arith.mulf %527, %523 : vector<4x16xf32>
    %c9_154 = arith.constant 9 : index
    %c0_155 = arith.constant 0 : index
    %c0_156 = arith.constant 0 : index
    %529 = vector.load %arg7[%c9_154, %c0_155, %c0_156] : memref<12x12x4xf32, #tpu.memory_space<vmem>>, vector<1x12x4xf32>
    %530 = vector.shape_cast %529 : vector<1x12x4xf32> to vector<12x4xf32>
    %cst_157 = arith.constant dense<0.000000e+00> : vector<12x16xf32>
    %531 = tpu.matmul %530, %528, %cst_157 {dimension_numbers = #tpu.dot_dimension_numbers<[1], [0], [0], [1], [0, 0, 1, 1], [], []>} : vector<12x4xf32>, vector<4x16xf32>, vector<12x16xf32> -> vector<12x16xf32>
    %532 = arith.addf %480, %531 : vector<12x16xf32>
    %c10 = arith.constant 10 : index
    %c0_158 = arith.constant 0 : index
    %c0_159 = arith.constant 0 : index
    %533 = vector.load %arg1[%c10, %c0_158, %c0_159] : memref<12x2x16xf32, #tpu.memory_space<vmem>>, vector<1x2x16xf32>
    %534 = vector.shape_cast %533 : vector<1x2x16xf32> to vector<2x16xf32>
    %535 = tpu.concatenate %534, %505 in 0 : vector<2x16xf32>, vector<4x16xf32> -> vector<6x16xf32>
    %cst_160 = arith.constant dense<0.000000e+00> : vector<6x16xf32>
    %536 = tpu.matmul %535, %1, %cst_160 {dimension_numbers = #tpu.dot_dimension_numbers<[1], [0], [0], [1], [0, 0, 1, 1], [], []>} : vector<6x16xf32>, vector<16x16xf32>, vector<6x16xf32> -> vector<6x16xf32>
    %cst_161 = arith.constant dense<0.000000e+00> : vector<6x16xf32>
    %537 = tpu.matmul %535, %3, %cst_161 {dimension_numbers = #tpu.dot_dimension_numbers<[1], [0], [0], [1], [0, 0, 1, 1], [], []>} : vector<6x16xf32>, vector<16x16xf32>, vector<6x16xf32> -> vector<6x16xf32>
    %538 = tpu.concatenate %535, %536, %537 in 0 : vector<6x16xf32>, vector<6x16xf32>, vector<6x16xf32> -> vector<18x16xf32>
    %cst_162 = arith.constant dense<0.000000e+00> : vector<16x16xf32>
    %539 = tpu.matmul %4, %538, %cst_162 {dimension_numbers = #tpu.dot_dimension_numbers<[1], [0], [0], [1], [0, 0, 1, 1], [], []>} : vector<16x18xf32>, vector<18x16xf32>, vector<16x16xf32> -> vector<16x16xf32>
    %540 = vector.broadcast %5 : vector<16x1xf32> to vector<16x16xf32>
    %541 = arith.addf %539, %540 : vector<16x16xf32>
    %542 = vector.extract_strided_slice %541 {offsets = [0, 0], sizes = [12, 16], strides = [1, 1]} : vector<16x16xf32> to vector<12x16xf32>
    %543 = arith.negf %542 : vector<12x16xf32>
    %544 = math.exp %543 : vector<12x16xf32>
    %cst_163 = arith.constant 1.000000e+00 : f32
    %545 = vector.broadcast %cst_163 : f32 to vector<12x16xf32>
    %546 = arith.addf %545, %544 : vector<12x16xf32>
    %547 = arith.divf %545, %546 : vector<12x16xf32>
    %548 = vector.extract_strided_slice %541 {offsets = [12, 0], sizes = [4, 16], strides = [1, 1]} : vector<16x16xf32> to vector<4x16xf32>
    %549 = math.tanh %548 : vector<4x16xf32>
    %550 = vector.extract_strided_slice %547 {offsets = [0, 0], sizes = [4, 16], strides = [1, 1]} : vector<12x16xf32> to vector<4x16xf32>
    %551 = vector.extract_strided_slice %547 {offsets = [4, 0], sizes = [4, 16], strides = [1, 1]} : vector<12x16xf32> to vector<4x16xf32>
    %552 = vector.extract_strided_slice %547 {offsets = [8, 0], sizes = [4, 16], strides = [1, 1]} : vector<12x16xf32> to vector<4x16xf32>
    %553 = arith.mulf %503, %551 : vector<4x16xf32>
    %554 = arith.mulf %550, %549 : vector<4x16xf32>
    %555 = arith.addf %553, %554 : vector<4x16xf32>
    %556 = math.tanh %555 : vector<4x16xf32>
    %557 = arith.mulf %556, %552 : vector<4x16xf32>
    %558 = tpu.concatenate %557, %528 in 0 : vector<4x16xf32>, vector<4x16xf32> -> vector<8x16xf32>
    %cst_164 = arith.constant dense<0.000000e+00> : vector<8x16xf32>
    %559 = tpu.matmul %558, %1, %cst_164 {dimension_numbers = #tpu.dot_dimension_numbers<[1], [0], [0], [1], [0, 0, 1, 1], [], []>} : vector<8x16xf32>, vector<16x16xf32>, vector<8x16xf32> -> vector<8x16xf32>
    %cst_165 = arith.constant dense<0.000000e+00> : vector<8x16xf32>
    %560 = tpu.matmul %558, %3, %cst_165 {dimension_numbers = #tpu.dot_dimension_numbers<[1], [0], [0], [1], [0, 0, 1, 1], [], []>} : vector<8x16xf32>, vector<16x16xf32>, vector<8x16xf32> -> vector<8x16xf32>
    %561 = tpu.concatenate %558, %559, %560 in 0 : vector<8x16xf32>, vector<8x16xf32>, vector<8x16xf32> -> vector<24x16xf32>
    %cst_166 = arith.constant dense<0.000000e+00> : vector<16x16xf32>
    %562 = tpu.matmul %6, %561, %cst_166 {dimension_numbers = #tpu.dot_dimension_numbers<[1], [0], [0], [1], [0, 0, 1, 1], [], []>} : vector<16x24xf32>, vector<24x16xf32>, vector<16x16xf32> -> vector<16x16xf32>
    %563 = vector.broadcast %7 : vector<16x1xf32> to vector<16x16xf32>
    %564 = arith.addf %562, %563 : vector<16x16xf32>
    %565 = vector.extract_strided_slice %564 {offsets = [0, 0], sizes = [12, 16], strides = [1, 1]} : vector<16x16xf32> to vector<12x16xf32>
    %566 = arith.negf %565 : vector<12x16xf32>
    %567 = math.exp %566 : vector<12x16xf32>
    %cst_167 = arith.constant 1.000000e+00 : f32
    %568 = vector.broadcast %cst_167 : f32 to vector<12x16xf32>
    %569 = arith.addf %568, %567 : vector<12x16xf32>
    %570 = arith.divf %568, %569 : vector<12x16xf32>
    %571 = vector.extract_strided_slice %564 {offsets = [12, 0], sizes = [4, 16], strides = [1, 1]} : vector<16x16xf32> to vector<4x16xf32>
    %572 = math.tanh %571 : vector<4x16xf32>
    %573 = vector.extract_strided_slice %570 {offsets = [0, 0], sizes = [4, 16], strides = [1, 1]} : vector<12x16xf32> to vector<4x16xf32>
    %574 = vector.extract_strided_slice %570 {offsets = [4, 0], sizes = [4, 16], strides = [1, 1]} : vector<12x16xf32> to vector<4x16xf32>
    %575 = vector.extract_strided_slice %570 {offsets = [8, 0], sizes = [4, 16], strides = [1, 1]} : vector<12x16xf32> to vector<4x16xf32>
    %576 = arith.mulf %526, %574 : vector<4x16xf32>
    %577 = arith.mulf %573, %572 : vector<4x16xf32>
    %578 = arith.addf %576, %577 : vector<4x16xf32>
    %579 = math.tanh %578 : vector<4x16xf32>
    %580 = arith.mulf %579, %575 : vector<4x16xf32>
    %c10_168 = arith.constant 10 : index
    %c0_169 = arith.constant 0 : index
    %c0_170 = arith.constant 0 : index
    %581 = vector.load %arg7[%c10_168, %c0_169, %c0_170] : memref<12x12x4xf32, #tpu.memory_space<vmem>>, vector<1x12x4xf32>
    %582 = vector.shape_cast %581 : vector<1x12x4xf32> to vector<12x4xf32>
    %cst_171 = arith.constant dense<0.000000e+00> : vector<12x16xf32>
    %583 = tpu.matmul %582, %580, %cst_171 {dimension_numbers = #tpu.dot_dimension_numbers<[1], [0], [0], [1], [0, 0, 1, 1], [], []>} : vector<12x4xf32>, vector<4x16xf32>, vector<12x16xf32> -> vector<12x16xf32>
    %584 = arith.addf %532, %583 : vector<12x16xf32>
    %c11 = arith.constant 11 : index
    %c0_172 = arith.constant 0 : index
    %c0_173 = arith.constant 0 : index
    %585 = vector.load %arg1[%c11, %c0_172, %c0_173] : memref<12x2x16xf32, #tpu.memory_space<vmem>>, vector<1x2x16xf32>
    %586 = vector.shape_cast %585 : vector<1x2x16xf32> to vector<2x16xf32>
    %587 = tpu.concatenate %586, %557 in 0 : vector<2x16xf32>, vector<4x16xf32> -> vector<6x16xf32>
    %cst_174 = arith.constant dense<0.000000e+00> : vector<6x16xf32>
    %588 = tpu.matmul %587, %1, %cst_174 {dimension_numbers = #tpu.dot_dimension_numbers<[1], [0], [0], [1], [0, 0, 1, 1], [], []>} : vector<6x16xf32>, vector<16x16xf32>, vector<6x16xf32> -> vector<6x16xf32>
    %cst_175 = arith.constant dense<0.000000e+00> : vector<6x16xf32>
    %589 = tpu.matmul %587, %3, %cst_175 {dimension_numbers = #tpu.dot_dimension_numbers<[1], [0], [0], [1], [0, 0, 1, 1], [], []>} : vector<6x16xf32>, vector<16x16xf32>, vector<6x16xf32> -> vector<6x16xf32>
    %590 = tpu.concatenate %587, %588, %589 in 0 : vector<6x16xf32>, vector<6x16xf32>, vector<6x16xf32> -> vector<18x16xf32>
    %cst_176 = arith.constant dense<0.000000e+00> : vector<16x16xf32>
    %591 = tpu.matmul %4, %590, %cst_176 {dimension_numbers = #tpu.dot_dimension_numbers<[1], [0], [0], [1], [0, 0, 1, 1], [], []>} : vector<16x18xf32>, vector<18x16xf32>, vector<16x16xf32> -> vector<16x16xf32>
    %592 = vector.broadcast %5 : vector<16x1xf32> to vector<16x16xf32>
    %593 = arith.addf %591, %592 : vector<16x16xf32>
    %594 = vector.extract_strided_slice %593 {offsets = [0, 0], sizes = [12, 16], strides = [1, 1]} : vector<16x16xf32> to vector<12x16xf32>
    %595 = arith.negf %594 : vector<12x16xf32>
    %596 = math.exp %595 : vector<12x16xf32>
    %cst_177 = arith.constant 1.000000e+00 : f32
    %597 = vector.broadcast %cst_177 : f32 to vector<12x16xf32>
    %598 = arith.addf %597, %596 : vector<12x16xf32>
    %599 = arith.divf %597, %598 : vector<12x16xf32>
    %600 = vector.extract_strided_slice %593 {offsets = [12, 0], sizes = [4, 16], strides = [1, 1]} : vector<16x16xf32> to vector<4x16xf32>
    %601 = math.tanh %600 : vector<4x16xf32>
    %602 = vector.extract_strided_slice %599 {offsets = [0, 0], sizes = [4, 16], strides = [1, 1]} : vector<12x16xf32> to vector<4x16xf32>
    %603 = vector.extract_strided_slice %599 {offsets = [4, 0], sizes = [4, 16], strides = [1, 1]} : vector<12x16xf32> to vector<4x16xf32>
    %604 = vector.extract_strided_slice %599 {offsets = [8, 0], sizes = [4, 16], strides = [1, 1]} : vector<12x16xf32> to vector<4x16xf32>
    %605 = arith.mulf %555, %603 : vector<4x16xf32>
    %606 = arith.mulf %602, %601 : vector<4x16xf32>
    %607 = arith.addf %605, %606 : vector<4x16xf32>
    %608 = math.tanh %607 : vector<4x16xf32>
    %609 = arith.mulf %608, %604 : vector<4x16xf32>
    %610 = tpu.concatenate %609, %580 in 0 : vector<4x16xf32>, vector<4x16xf32> -> vector<8x16xf32>
    %cst_178 = arith.constant dense<0.000000e+00> : vector<8x16xf32>
    %611 = tpu.matmul %610, %1, %cst_178 {dimension_numbers = #tpu.dot_dimension_numbers<[1], [0], [0], [1], [0, 0, 1, 1], [], []>} : vector<8x16xf32>, vector<16x16xf32>, vector<8x16xf32> -> vector<8x16xf32>
    %cst_179 = arith.constant dense<0.000000e+00> : vector<8x16xf32>
    %612 = tpu.matmul %610, %3, %cst_179 {dimension_numbers = #tpu.dot_dimension_numbers<[1], [0], [0], [1], [0, 0, 1, 1], [], []>} : vector<8x16xf32>, vector<16x16xf32>, vector<8x16xf32> -> vector<8x16xf32>
    %613 = tpu.concatenate %610, %611, %612 in 0 : vector<8x16xf32>, vector<8x16xf32>, vector<8x16xf32> -> vector<24x16xf32>
    %cst_180 = arith.constant dense<0.000000e+00> : vector<16x16xf32>
    %614 = tpu.matmul %6, %613, %cst_180 {dimension_numbers = #tpu.dot_dimension_numbers<[1], [0], [0], [1], [0, 0, 1, 1], [], []>} : vector<16x24xf32>, vector<24x16xf32>, vector<16x16xf32> -> vector<16x16xf32>
    %615 = vector.broadcast %7 : vector<16x1xf32> to vector<16x16xf32>
    %616 = arith.addf %614, %615 : vector<16x16xf32>
    %617 = vector.extract_strided_slice %616 {offsets = [0, 0], sizes = [12, 16], strides = [1, 1]} : vector<16x16xf32> to vector<12x16xf32>
    %618 = arith.negf %617 : vector<12x16xf32>
    %619 = math.exp %618 : vector<12x16xf32>
    %cst_181 = arith.constant 1.000000e+00 : f32
    %620 = vector.broadcast %cst_181 : f32 to vector<12x16xf32>
    %621 = arith.addf %620, %619 : vector<12x16xf32>
    %622 = arith.divf %620, %621 : vector<12x16xf32>
    %623 = vector.extract_strided_slice %616 {offsets = [12, 0], sizes = [4, 16], strides = [1, 1]} : vector<16x16xf32> to vector<4x16xf32>
    %624 = math.tanh %623 : vector<4x16xf32>
    %625 = vector.extract_strided_slice %622 {offsets = [0, 0], sizes = [4, 16], strides = [1, 1]} : vector<12x16xf32> to vector<4x16xf32>
    %626 = vector.extract_strided_slice %622 {offsets = [4, 0], sizes = [4, 16], strides = [1, 1]} : vector<12x16xf32> to vector<4x16xf32>
    %627 = vector.extract_strided_slice %622 {offsets = [8, 0], sizes = [4, 16], strides = [1, 1]} : vector<12x16xf32> to vector<4x16xf32>
    %628 = arith.mulf %578, %626 : vector<4x16xf32>
    %629 = arith.mulf %625, %624 : vector<4x16xf32>
    %630 = arith.addf %628, %629 : vector<4x16xf32>
    %631 = math.tanh %630 : vector<4x16xf32>
    %632 = arith.mulf %631, %627 : vector<4x16xf32>
    %c11_182 = arith.constant 11 : index
    %c0_183 = arith.constant 0 : index
    %c0_184 = arith.constant 0 : index
    %633 = vector.load %arg7[%c11_182, %c0_183, %c0_184] : memref<12x12x4xf32, #tpu.memory_space<vmem>>, vector<1x12x4xf32>
    %634 = vector.shape_cast %633 : vector<1x12x4xf32> to vector<12x4xf32>
    %cst_185 = arith.constant dense<0.000000e+00> : vector<12x16xf32>
    %635 = tpu.matmul %634, %632, %cst_185 {dimension_numbers = #tpu.dot_dimension_numbers<[1], [0], [0], [1], [0, 0, 1, 1], [], []>} : vector<12x4xf32>, vector<4x16xf32>, vector<12x16xf32> -> vector<12x16xf32>
    %636 = arith.addf %584, %635 : vector<12x16xf32>
    %637 = tpu.transpose %636, [1, 0] : vector<12x16xf32> -> vector<16x12xf32>
    %c0_186 = arith.constant 0 : index
    %c0_187 = arith.constant 0 : index
    %638 = vector.load %arg8[%c0_186, %c0_187] : memref<1x12xf32, #tpu.memory_space<vmem>>, vector<1x12xf32>
    %639 = vector.broadcast %638 : vector<1x12xf32> to vector<16x12xf32>
    %640 = arith.addf %637, %639 : vector<16x12xf32>
    %c0_188 = arith.constant 0 : index
    %c0_189 = arith.constant 0 : index
    %641 = vector.load %arg9[%c0_188, %c0_189] : memref<16x12xf32, #tpu.memory_space<vmem>>, vector<16x12xf32>
    tpu.vector_store %arg9[%c0_188, %c0_189], %640 {strides = array<i32>} : memref<16x12xf32, #tpu.memory_space<vmem>>, vector<16x12xf32>,
    return
  }
  func.func @transform_0(%arg0: i32) -> (i32, i32, i32) {
    %c0_i32 = arith.constant 0 : i32
    %c0_i32_0 = arith.constant 0 : i32
    %c0_i32_1 = arith.constant 0 : i32
    %c0_i32_2 = arith.constant 0 : i32
    return %c0_i32, %c0_i32_0, %c0_i32_1 : i32, i32, i32
  }
  func.func @transform_1(%arg0: i32) -> (i32, i32, i32) {
    %c0_i32 = arith.constant 0 : i32
    %c0_i32_0 = arith.constant 0 : i32
    %c0_i32_1 = arith.constant 0 : i32
    %c0_i32_2 = arith.constant 0 : i32
    return %c0_i32, %c0_i32_0, %c0_i32_1 : i32, i32, i32
  }
  func.func @transform_2(%arg0: i32) -> (i32, i32) {
    %c0_i32 = arith.constant 0 : i32
    %c0_i32_0 = arith.constant 0 : i32
    %c0_i32_1 = arith.constant 0 : i32
    return %c0_i32, %c0_i32_0 : i32, i32
  }
  func.func @transform_3(%arg0: i32) -> (i32, i32) {
    %c0_i32 = arith.constant 0 : i32
    %c0_i32_0 = arith.constant 0 : i32
    %c0_i32_1 = arith.constant 0 : i32
    return %c0_i32, %c0_i32_0 : i32, i32
  }
  func.func @transform_4(%arg0: i32) -> (i32, i32) {
    %c0_i32 = arith.constant 0 : i32
    %c0_i32_0 = arith.constant 0 : i32
    %c0_i32_1 = arith.constant 0 : i32
    return %c0_i32, %c0_i32_0 : i32, i32
  }
  func.func @transform_5(%arg0: i32) -> (i32, i32) {
    %c0_i32 = arith.constant 0 : i32
    %c0_i32_0 = arith.constant 0 : i32
    %c0_i32_1 = arith.constant 0 : i32
    return %c0_i32, %c0_i32_0 : i32, i32
  }
  func.func @transform_6(%arg0: i32) -> (i32, i32, i32) {
    %c0_i32 = arith.constant 0 : i32
    %c0_i32_0 = arith.constant 0 : i32
    %c0_i32_1 = arith.constant 0 : i32
    %c0_i32_2 = arith.constant 0 : i32
    return %c0_i32, %c0_i32_0, %c0_i32_1 : i32, i32, i32
  }
  func.func @transform_7(%arg0: i32) -> (i32, i32) {
    %c0_i32 = arith.constant 0 : i32
    %c0_i32_0 = arith.constant 0 : i32
    %c0_i32_1 = arith.constant 0 : i32
    return %c0_i32, %c0_i32_0 : i32, i32
  }
  func.func @transform_8(%arg0: i32) -> (i32, i32) {
    %c0_i32 = arith.constant 0 : i32
    %c0_i32_0 = arith.constant 0 : i32
    %c0_i32_1 = arith.constant 0 : i32
    return %c0_i32, %c0_i32_0 : i32, i32
  }
}

</mosaic_0001>

<llo_original>
// kernel: grcn_forward.1
$region0: #{grcn_forward.1}
  #allocation0 [shape = 'u32[]', space=smem, size = 0x4, offset = 0x4, fixed_abs, tag = 'smem constant byte address 0x4 - core index']
  #allocation1 [shape = 'u32[144,128]{1,0:T(1,128)}', space=vmem, size = 0x12000, scoped, tag = 'internal scratch']
  %s0 = inlined_call_operand.vmem [shape: f32[12,2,16], index: 0, kind: input, shape index: {}]
  %s1 = inlined_call_operand.vmem [shape: f32[2,16,16], index: 1, kind: input, shape index: {}]
  %s2 = inlined_call_operand.vmem [shape: f32[16,18], index: 2, kind: input, shape index: {}]
  %s3 = inlined_call_operand.vmem [shape: f32[16,1], index: 3, kind: input, shape index: {}]
  %s4 = inlined_call_operand.vmem [shape: f32[16,24], index: 4, kind: input, shape index: {}]
  %s5 = inlined_call_operand.vmem [shape: f32[16,1], index: 5, kind: input, shape index: {}]
  %s6 = inlined_call_operand.vmem [shape: f32[12,12,4], index: 6, kind: input, shape index: {}]
  %s7 = inlined_call_operand.vmem [shape: f32[1,12], index: 7, kind: input, shape index: {}]
  %s8 = inlined_call_operand.hbm [shape: f32[16,12], index: 8, kind: output, shape index: {}]
  %s9 = sld [smem:[#allocation0]]
  $region42: #{grcn_forward.1} parent=0
    _
  %s11 = ssub.s32 1, %s9
  %s12 = scalar_select 0, %s11, %s9
  $region1: #{grcn_forward.1} parent=0
    #allocation2 [shape = 'u8[8192]{0}', space=vmem, size = 0x2000, scoped, tag = 'output window, operand 0, single buffered']
    #allocation3 [shape = 's32[1]{0}', space=sflag, size = 0x4, scoped, tag = 'scoped memory for grcn_forward.1']
    %13 = vsyncpa [#allocation3], 0
    // Predicated region
    $region2: #{grcn_forward.1} parent=1 // pred_check
      _
    $region3: #{grcn_forward.1} parent=1 // pred_check_branch
      %15 = sbr.rel (0) target = $region5
    $region4: #{grcn_forward.1} parent=1 // pred_region
      _
    $region5: #{grcn_forward.1} parent=1 // pred_fallthru
      _
    // Predicated region
    $region6: #{grcn_forward.1} parent=1 // pred_check
      _
    $region7: #{grcn_forward.1} parent=1 // pred_check_branch
      %17 = sbr.rel (0) target = $region9
    $region8: #{grcn_forward.1} parent=1 // pred_region
      _
    $region9: #{grcn_forward.1} parent=1 // pred_fallthru
      _
    // Predicated region
    $region10: #{grcn_forward.1} parent=1 // pred_check
      _
    $region11: #{grcn_forward.1} parent=1 // pred_check_branch
      %19 = sbr.rel (0) target = $region13
    $region12: #{grcn_forward.1} parent=1 // pred_region
      _
    $region13: #{grcn_forward.1} parent=1 // pred_fallthru
      _
    // Predicated region
    $region14: #{grcn_forward.1} parent=1 // pred_check
      _
    $region15: #{grcn_forward.1} parent=1 // pred_check_branch
      %21 = sbr.rel (0) target = $region17
    $region16: #{grcn_forward.1} parent=1 // pred_region
      _
    $region17: #{grcn_forward.1} parent=1 // pred_fallthru
      _
    // Predicated region
    $region18: #{grcn_forward.1} parent=1 // pred_check
      _
    $region19: #{grcn_forward.1} parent=1 // pred_check_branch
      %23 = sbr.rel (0) target = $region21
    $region20: #{grcn_forward.1} parent=1 // pred_region
      _
    $region21: #{grcn_forward.1} parent=1 // pred_fallthru
      _
    // Predicated region
    $region22: #{grcn_forward.1} parent=1 // pred_check
      _
    $region23: #{grcn_forward.1} parent=1 // pred_check_branch
      %25 = sbr.rel (0) target = $region25
    $region24: #{grcn_forward.1} parent=1 // pred_region
      _
    $region25: #{grcn_forward.1} parent=1 // pred_fallthru
      _
    // Predicated region
    $region26: #{grcn_forward.1} parent=1 // pred_check
      _
    $region27: #{grcn_forward.1} parent=1 // pred_check_branch
      %27 = sbr.rel (0) target = $region29
    $region28: #{grcn_forward.1} parent=1 // pred_region
      _
    $region29: #{grcn_forward.1} parent=1 // pred_fallthru
      _
    // Predicated region
    $region30: #{grcn_forward.1} parent=1 // pred_check
      _
    $region31: #{grcn_forward.1} parent=1 // pred_check_branch
      %29 = sbr.rel (0) target = $region33
    $region32: #{grcn_forward.1} parent=1 // pred_region
      _
    $region33: #{grcn_forward.1} parent=1 // pred_fallthru
      _
    %v30 = vld [vmem:[%s1] sm:$0xff]
    %v31 = vld [vmem:[%s1 + $0x8] sm:$0xff]
    %s32 = scalar_lea.vmem %s1, 16
    %v33 = vld [vmem:[%s32] sm:$0xff]
    %v34 = vld [vmem:[%s32 + $0x8] sm:$0xff]
    %v35 = vld [vmem:[%s2] sm:$0xff]
    %v36 = vld [vmem:[%s2 + $0x8] sm:$0xff]
    %v37 = vld [vmem:[%s3] sm:$0xff]
    %v38 = vld [vmem:[%s3 + $0x8] sm:$0xff]
    %v39 = vld [vmem:[%s4] sm:$0xff]
    %v40 = vld [vmem:[%s4 + $0x8] sm:$0xff]
    %v41 = vld [vmem:[%s5] sm:$0xff]
    %v42 = vld [vmem:[%s5 + $0x8] sm:$0xff]
    %v43 = vld [vmem:[%s0] sm:$0x3]
    %vm44 = vcmask 1041408
    %v45 = vsel %vm44, %v43, 0.0
    %vm46 = vcmask 130048
    %v48 = vsel %vm46, %v45, 0
    %50 = vmatprep.subr.mxu0 0.0
    %51 = vmatpush1.msra.mxu0 0.0
    %52 = vmatprep.subr.mxu0 0.0
    %53 = vmatpush1.msra.mxu0 0.0
    %54 = vmatprep.subr.mxu0 0.0
    %55 = vmatpush1.msra.mxu0 0.0
    %56 = vmatprep.subr.mxu0 0.0
    %57 = vmatpush1.msra.mxu0 0.0
    %58 = vmatprep.subr.mxu0 0.0
    %59 = vmatpush1.msra.mxu0 0.0
    %60 = vmatprep.subr.mxu0 0.0
    %61 = vmatpush1.msra.mxu0 0.0
    %62 = vmatprep.subr.mxu0 0.0
    %63 = vmatpush1.msra.mxu0 0.0
    %64 = vmatprep.subr.mxu0 0.0
    %65 = vmatpush1.msra.mxu0 0.0
    %66 = vmatprep.subr.mxu0 0.0
    %67 = vmatpush1.msra.mxu0 0.0
    %68 = vmatprep.subr.mxu0 0.0
    %69 = vmatpush1.msra.mxu0 0.0
    %70 = vmatprep.subr.mxu0 0.0
    %71 = vmatpush1.msra.mxu0 0.0
    %72 = vmatprep.subr.mxu0 0.0
    %73 = vmatpush1.msra.mxu0 0.0
    %74 = vmatprep.subr.mxu0 0.0
    %75 = vmatpush1.msra.mxu0 0.0
    %76 = vmatprep.subr.mxu0 0.0
    %77 = vmatpush1.msra.mxu0 0.0
    %78 = vmatprep.subr.mxu0 0.0
    %79 = vmatpush1.msra.mxu0 %v31
    %80 = vmatprep.subr.mxu0 0.0
    %81 = vmatpush1.msra.mxu0 %v30
    %82 = vmatprep.subr.mxu0 0.0
    %83 = vmatpush2.msra.mxu0 0.0
    %84 = vmatprep.subr.mxu0 0.0
    %85 = vmatpush2.msra.mxu0 0.0
    %86 = vmatprep.subr.mxu0 0.0
    %87 = vmatpush2.msra.mxu0 0.0
    %88 = vmatprep.subr.mxu0 0.0
    %89 = vmatpush2.msra.mxu0 0.0
    %90 = vmatprep.subr.mxu0 0.0
    %91 = vmatpush2.msra.mxu0 0.0
    %92 = vmatprep.subr.mxu0 0.0
    %93 = vmatpush2.msra.mxu0 0.0
    %94 = vmatprep.subr.mxu0 0.0
    %95 = vmatpush2.msra.mxu0 0.0
    %96 = vmatprep.subr.mxu0 0.0
    %97 = vmatpush2.msra.mxu0 0.0
    %98 = vmatprep.subr.mxu0 0.0
    %99 = vmatpush2.msra.mxu0 0.0
    %100 = vmatprep.subr.mxu0 0.0
    %101 = vmatpush2.msra.mxu0 0.0
    %102 = vmatprep.subr.mxu0 0.0
    %103 = vmatpush2.msra.mxu0 0.0
    %104 = vmatprep.subr.mxu0 0.0
    %105 = vmatpush2.msra.mxu0 0.0
    %106 = vmatprep.subr.mxu0 0.0
    %107 = vmatpush2.msra.mxu0 0.0
    %108 = vmatprep.subr.mxu0 0.0
    %109 = vmatpush2.msra.mxu0 0.0
    %110 = vmatprep.subr.mxu0 0.0
    %111 = vmatpush2.msra.mxu0 0.0
    %112 = vmatprep.subr.mxu0 0.0
    %113 = vmatpush2.msra.mxu0 0.0
    %114 = vmatprep.mubr.f32.mxu0 0.0
    %115 = vmatmul.mubr.f32.gmra.mxu0 %v48
    %v116 = vpop.f32.mrf.mxu0
    %v117 = vadd.f32 0.0, %v116
    %v118 = vpop.f32.mrf.mxu0
    %119 = vdwg.mxu0
    %120 = vmatprep.subr.mxu0 0.0
    %121 = vmatpush1.msra.mxu0 0.0
    %122 = vmatprep.subr.mxu0 0.0
    %123 = vmatpush1.msra.mxu0 0.0
    %124 = vmatprep.subr.mxu0 0.0
    %125 = vmatpush1.msra.mxu0 0.0
    %126 = vmatprep.subr.mxu0 0.0
    %127 = vmatpush1.msra.mxu0 0.0
    %128 = vmatprep.subr.mxu0 0.0
    %129 = vmatpush1.msra.mxu0 0.0
    %130 = vmatprep.subr.mxu0 0.0
    %131 = vmatpush1.msra.mxu0 0.0
    %132 = vmatprep.subr.mxu0 0.0
    %133 = vmatpush1.msra.mxu0 0.0
    %134 = vmatprep.subr.mxu0 0.0
    %135 = vmatpush1.msra.mxu0 0.0
    %136 = vmatprep.subr.mxu0 0.0
    %137 = vmatpush1.msra.mxu0 0.0
    %138 = vmatprep.subr.mxu0 0.0
    %139 = vmatpush1.msra.mxu0 0.0
    %140 = vmatprep.subr.mxu0 0.0
    %141 = vmatpush1.msra.mxu0 0.0
    %142 = vmatprep.subr.mxu0 0.0
    %143 = vmatpush1.msra.mxu0 0.0
    %144 = vmatprep.subr.mxu0 0.0
    %145 = vmatpush1.msra.mxu0 0.0
    %146 = vmatprep.subr.mxu0 0.0
    %147 = vmatpush1.msra.mxu0 0.0
    %148 = vmatprep.subr.mxu0 0.0
    %149 = vmatpush1.msra.mxu0 %v34
    %150 = vmatprep.subr.mxu0 0.0
    %151 = vmatpush1.msra.mxu0 %v33
    %152 = vmatprep.subr.mxu0 0.0
    %153 = vmatpush2.msra.mxu0 0.0
    %154 = vmatprep.subr.mxu0 0.0
    %155 = vmatpush2.msra.mxu0 0.0
    %156 = vmatprep.subr.mxu0 0.0
    %157 = vmatpush2.msra.mxu0 0.0
    %158 = vmatprep.subr.mxu0 0.0
    %159 = vmatpush2.msra.mxu0 0.0
    %160 = vmatprep.subr.mxu0 0.0
    %161 = vmatpush2.msra.mxu0 0.0
    %162 = vmatprep.subr.mxu0 0.0
    %163 = vmatpush2.msra.mxu0 0.0
    %164 = vmatprep.subr.mxu0 0.0
    %165 = vmatpush2.msra.mxu0 0.0
    %166 = vmatprep.subr.mxu0 0.0
    %167 = vmatpush2.msra.mxu0 0.0
    %168 = vmatprep.subr.mxu0 0.0
    %169 = vmatpush2.msra.mxu0 0.0
    %170 = vmatprep.subr.mxu0 0.0
    %171 = vmatpush2.msra.mxu0 0.0
    %172 = vmatprep.subr.mxu0 0.0
    %173 = vmatpush2.msra.mxu0 0.0
    %174 = vmatprep.subr.mxu0 0.0
    %175 = vmatpush2.msra.mxu0 0.0
    %176 = vmatprep.subr.mxu0 0.0
    %177 = vmatpush2.msra.mxu0 0.0
    %178 = vmatprep.subr.mxu0 0.0
    %179 = vmatpush2.msra.mxu0 0.0
    %180 = vmatprep.subr.mxu0 0.0
    %181 = vmatpush2.msra.mxu0 0.0
    %182 = vmatprep.subr.mxu0 0.0
    %183 = vmatpush2.msra.mxu0 0.0
    %184 = vmatprep.mubr.f32.mxu0 0.0
    %185 = vmatmul.mubr.f32.gmra.mxu0 %v48
    %v186 = vpop.f32.mrf.mxu0
    %v187 = vadd.f32 0.0, %v186
    %v188 = vpop.f32.mrf.mxu0
    %189 = vdwg.mxu0
    %v191 = vrot.slane %v117, 2
    %v194 = vrot.slane %v187, 4
    %vm196 = vcmask 1045504
    %v197 = vsel %vm196, %v45, %v191
    %vm198 = vcmask 1043456
    %v199 = vsel %vm198, %v191, %v194
    %201 = vset.pattern.permute.xlu0 0
    %202 = vperm.xlu0 %201, %v37
    %v203 = vpop.permute.xlu0 %202
    %206 = vset.pattern.permute.xlu0 0
    %207 = vperm.xlu0 %206, %v38
    %v208 = vpop.permute.xlu0 %207
    %vm210 = vcmask 146432
    %v212 = vsel %vm210, %v35, 0
    %v215 = vsel %vm210, %v36, 0
    %v217 = vsel %vm44, %v194, 0
    %219 = vmatprep.subr.mxu0 0.0
    %220 = vmatpush1.msra.mxu0 0.0
    %221 = vmatprep.subr.mxu0 0.0
    %222 = vmatpush1.msra.mxu0 0.0
    %223 = vmatprep.subr.mxu0 0.0
    %224 = vmatpush1.msra.mxu0 0.0
    %225 = vmatprep.subr.mxu0 0.0
    %226 = vmatpush1.msra.mxu0 0.0
    %227 = vmatprep.subr.mxu0 0.0
    %228 = vmatpush1.msra.mxu0 0.0
    %229 = vmatprep.subr.mxu0 0.0
    %230 = vmatpush1.msra.mxu0 0.0
    %231 = vmatprep.subr.mxu0 0.0
    %232 = vmatpush1.msra.mxu0 0.0
    %233 = vmatprep.subr.mxu0 0.0
    %234 = vmatpush1.msra.mxu0 0.0
    %235 = vmatprep.subr.mxu0 0.0
    %236 = vmatpush1.msra.mxu0 0.0
    %237 = vmatprep.subr.mxu0 0.0
    %238 = vmatpush1.msra.mxu0 0.0
    %239 = vmatprep.subr.mxu0 0.0
    %240 = vmatpush1.msra.mxu0 0.0
    %241 = vmatprep.subr.mxu0 0.0
    %242 = vmatpush1.msra.mxu0 0.0
    %243 = vmatprep.subr.mxu0 0.0
    %244 = vmatpush1.msra.mxu0 0.0
    %245 = vmatprep.subr.mxu0 0.0
    %246 = vmatpush1.msra.mxu0 %v217
    %247 = vmatprep.subr.mxu0 0.0
    %248 = vmatpush1.msra.mxu0 %v199
    %249 = vmatprep.subr.mxu0 0.0
    %250 = vmatpush1.msra.mxu0 %v197
    %251 = vmatprep.subr.mxu0 0.0
    %252 = vmatpush2.msra.mxu0 0.0
    %253 = vmatprep.subr.mxu0 0.0
    %254 = vmatpush2.msra.mxu0 0.0
    %255 = vmatprep.subr.mxu0 0.0
    %256 = vmatpush2.msra.mxu0 0.0
    %257 = vmatprep.subr.mxu0 0.0
    %258 = vmatpush2.msra.mxu0 0.0
    %259 = vmatprep.subr.mxu0 0.0
    %260 = vmatpush2.msra.mxu0 0.0
    %261 = vmatprep.subr.mxu0 0.0
    %262 = vmatpush2.msra.mxu0 0.0
    %263 = vmatprep.subr.mxu0 0.0
    %264 = vmatpush2.msra.mxu0 0.0
    %265 = vmatprep.subr.mxu0 0.0
    %266 = vmatpush2.msra.mxu0 0.0
    %267 = vmatprep.subr.mxu0 0.0
    %268 = vmatpush2.msra.mxu0 0.0
    %269 = vmatprep.subr.mxu0 0.0
    %270 = vmatpush2.msra.mxu0 0.0
    %271 = vmatprep.subr.mxu0 0.0
    %272 = vmatpush2.msra.mxu0 0.0
    %273 = vmatprep.subr.mxu0 0.0
    %274 = vmatpush2.msra.mxu0 0.0
    %275 = vmatprep.subr.mxu0 0.0
    %276 = vmatpush2.msra.mxu0 0.0
    %277 = vmatprep.subr.mxu0 0.0
    %278 = vmatpush2.msra.mxu0 0.0
    %279 = vmatprep.subr.mxu0 0.0
    %280 = vmatpush2.msra.mxu0 0.0
    %281 = vmatprep.subr.mxu0 0.0
    %282 = vmatpush2.msra.mxu0 0.0
    %283 = vmatprep.mubr.f32.mxu0 0.0
    %284 = vmatmul.mubr.f32.gmra.mxu0 %v212
    %v285 = vpop.f32.mrf.mxu0
    %v286 = vadd.f32 %v203, %v285
    %v287 = vpop.f32.mrf.mxu0
    %288 = vmatprep.mubr.f32.mxu0 0.0
    %289 = vmatmul.mubr.f32.gmra.mxu0 %v215
    %v290 = vpop.f32.mrf.mxu0
    %v291 = vadd.f32 %v208, %v290
    %v292 = vpop.f32.mrf.mxu0
    %293 = vdwg.mxu0
    %v294 = vxor.u32 %v286, 2147483648
    %v295 = vxor.u32 %v291, 2147483648
    %v296 = vmul.f32 %v294, 1.442695
    %v297 = vpow.pop %v296
    %v298 = vmul.f32 %v295, 1.442695
    %v299 = vpow.pop %v298
    %v300 = vadd.f32 %v297, 1.0
    %v301 = vadd.f32 %v299, 1.0
    %v302 = vrcp.pop %v300
    %v303 = vmul.f32 1.0, %v302
    %v304 = vrcp.pop %v301
    %v305 = vmul.f32 1.0, %v304
    %v306 = vtanh.pop %v291
    %v307 = vmul.f32 %v303, 0.0
    %v309 = vrot.slane %v306, 4
    %v311 = vmul.f32 %v303, %v309
    %v313 = vrot.slane %v311, 4
    %v315 = vadd.f32 %v307, %v313
    %v316 = vtanh.pop %v315
    %v318 = vrot.slane %v305, 4
    %v320 = vmul.f32 %v316, %v318
    %v322 = vrot.slane %v320, 4
    %v324 = vsel %vm198, %v322, 0.0
    %v326 = vsel %vm46, %v324, 0
    %328 = vmatprep.subr.mxu0 0.0
    %329 = vmatpush1.msra.mxu0 0.0
    %330 = vmatprep.subr.mxu0 0.0
    %331 = vmatpush1.msra.mxu0 0.0
    %332 = vmatprep.subr.mxu0 0.0
    %333 = vmatpush1.msra.mxu0 0.0
    %334 = vmatprep.subr.mxu0 0.0
    %335 = vmatpush1.msra.mxu0 0.0
    %336 = vmatprep.subr.mxu0 0.0
    %337 = vmatpush1.msra.mxu0 0.0
    %338 = vmatprep.subr.mxu0 0.0
    %339 = vmatpush1.msra.mxu0 0.0
    %340 = vmatprep.subr.mxu0 0.0
    %341 = vmatpush1.msra.mxu0 0.0
    %342 = vmatprep.subr.mxu0 0.0
    %343 = vmatpush1.msra.mxu0 0.0
    %344 = vmatprep.subr.mxu0 0.0
    %345 = vmatpush1.msra.mxu0 0.0
    %346 = vmatprep.subr.mxu0 0.0
    %347 = vmatpush1.msra.mxu0 0.0
    %348 = vmatprep.subr.mxu0 0.0
    %349 = vmatpush1.msra.mxu0 0.0
    %350 = vmatprep.subr.mxu0 0.0
    %351 = vmatpush1.msra.mxu0 0.0
    %352 = vmatprep.subr.mxu0 0.0
    %353 = vmatpush1.msra.mxu0 0.0
    %354 = vmatprep.subr.mxu0 0.0
    %355 = vmatpush1.msra.mxu0 0.0
    %356 = vmatprep.subr.mxu0 0.0
    %357 = vmatpush1.msra.mxu0 %v31
    %358 = vmatprep.subr.mxu0 0.0
    %359 = vmatpush1.msra.mxu0 %v30
    %360 = vmatprep.subr.mxu0 0.0
    %361 = vmatpush2.msra.mxu0 0.0
    %362 = vmatprep.subr.mxu0 0.0
    %363 = vmatpush2.msra.mxu0 0.0
    %364 = vmatprep.subr.mxu0 0.0
    %365 = vmatpush2.msra.mxu0 0.0
    %366 = vmatprep.subr.mxu0 0.0
    %367 = vmatpush2.msra.mxu0 0.0
    %368 = vmatprep.subr.mxu0 0.0
    %369 = vmatpush2.msra.mxu0 0.0
    %370 = vmatprep.subr.mxu0 0.0
    %371 = vmatpush2.msra.mxu0 0.0
    %372 = vmatprep.subr.mxu0 0.0
    %373 = vmatpush2.msra.mxu0 0.0
    %374 = vmatprep.subr.mxu0 0.0
    %375 = vmatpush2.msra.mxu0 0.0
    %376 = vmatprep.subr.mxu0 0.0
    %377 = vmatpush2.msra.mxu0 0.0
    %378 = vmatprep.subr.mxu0 0.0
    %379 = vmatpush2.msra.mxu0 0.0
    %380 = vmatprep.subr.mxu0 0.0
    %381 = vmatpush2.msra.mxu0 0.0
    %382 = vmatprep.subr.mxu0 0.0
    %383 = vmatpush2.msra.mxu0 0.0
    %384 = vmatprep.subr.mxu0 0.0
    %385 = vmatpush2.msra.mxu0 0.0
    %386 = vmatprep.subr.mxu0 0.0
    %387 = vmatpush2.msra.mxu0 0.0
    %388 = vmatprep.subr.mxu0 0.0
    %389 = vmatpush2.msra.mxu0 0.0
    %390 = vmatprep.subr.mxu0 0.0
    %391 = vmatpush2.msra.mxu0 0.0
    %392 = vmatprep.mubr.f32.mxu0 0.0
    %393 = vmatmul.mubr.f32.gmra.mxu0 %v326
    %v394 = vpop.f32.mrf.mxu0
    %v395 = vadd.f32 0.0, %v394
    %v396 = vpop.f32.mrf.mxu0
    %397 = vdwg.mxu0
    %398 = vmatprep.subr.mxu0 0.0
    %399 = vmatpush1.msra.mxu0 0.0
    %400 = vmatprep.subr.mxu0 0.0
    %401 = vmatpush1.msra.mxu0 0.0
    %402 = vmatprep.subr.mxu0 0.0
    %403 = vmatpush1.msra.mxu0 0.0
    %404 = vmatprep.subr.mxu0 0.0
    %405 = vmatpush1.msra.mxu0 0.0
    %406 = vmatprep.subr.mxu0 0.0
    %407 = vmatpush1.msra.mxu0 0.0
    %408 = vmatprep.subr.mxu0 0.0
    %409 = vmatpush1.msra.mxu0 0.0
    %410 = vmatprep.subr.mxu0 0.0
    %411 = vmatpush1.msra.mxu0 0.0
    %412 = vmatprep.subr.mxu0 0.0
    %413 = vmatpush1.msra.mxu0 0.0
    %414 = vmatprep.subr.mxu0 0.0
    %415 = vmatpush1.msra.mxu0 0.0
    %416 = vmatprep.subr.mxu0 0.0
    %417 = vmatpush1.msra.mxu0 0.0
    %418 = vmatprep.subr.mxu0 0.0
    %419 = vmatpush1.msra.mxu0 0.0
    %420 = vmatprep.subr.mxu0 0.0
    %421 = vmatpush1.msra.mxu0 0.0
    %422 = vmatprep.subr.mxu0 0.0
    %423 = vmatpush1.msra.mxu0 0.0
    %424 = vmatprep.subr.mxu0 0.0
    %425 = vmatpush1.msra.mxu0 0.0
    %426 = vmatprep.subr.mxu0 0.0
    %427 = vmatpush1.msra.mxu0 %v34
    %428 = vmatprep.subr.mxu0 0.0
    %429 = vmatpush1.msra.mxu0 %v33
    %430 = vmatprep.subr.mxu0 0.0
    %431 = vmatpush2.msra.mxu0 0.0
    %432 = vmatprep.subr.mxu0 0.0
    %433 = vmatpush2.msra.mxu0 0.0
    %434 = vmatprep.subr.mxu0 0.0
    %435 = vmatpush2.msra.mxu0 0.0
    %436 = vmatprep.subr.mxu0 0.0
    %437 = vmatpush2.msra.mxu0 0.0
    %438 = vmatprep.subr.mxu0 0.0
    %439 = vmatpush2.msra.mxu0 0.0
    %440 = vmatprep.subr.mxu0 0.0
    %441 = vmatpush2.msra.mxu0 0.0
    %442 = vmatprep.subr.mxu0 0.0
    %443 = vmatpush2.msra.mxu0 0.0
    %444 = vmatprep.subr.mxu0 0.0
    %445 = vmatpush2.msra.mxu0 0.0
    %446 = vmatprep.subr.mxu0 0.0
    %447 = vmatpush2.msra.mxu0 0.0
    %448 = vmatprep.subr.mxu0 0.0
    %449 = vmatpush2.msra.mxu0 0.0
    %450 = vmatprep.subr.mxu0 0.0
    %451 = vmatpush2.msra.mxu0 0.0
    %452 = vmatprep.subr.mxu0 0.0
    %453 = vmatpush2.msra.mxu0 0.0
    %454 = vmatprep.subr.mxu0 0.0
    %455 = vmatpush2.msra.mxu0 0.0
    %456 = vmatprep.subr.mxu0 0.0
    %457 = vmatpush2.msra.mxu0 0.0
    %458 = vmatprep.subr.mxu0 0.0
    %459 = vmatpush2.msra.mxu0 0.0
    %460 = vmatprep.subr.mxu0 0.0
    %461 = vmatpush2.msra.mxu0 0.0
    %462 = vmatprep.mubr.f32.mxu0 0.0
    %463 = vmatmul.mubr.f32.gmra.mxu0 %v326
    %v464 = vpop.f32.mrf.mxu0
    %v465 = vadd.f32 0.0, %v464
    %v466 = vpop.f32.mrf.mxu0
    %467 = vdwg.mxu0
    %469 = vset.pattern.permute.xlu0 0
    %470 = vperm.xlu0 %469, %v41
    %v471 = vpop.permute.xlu0 %470
    %474 = vset.pattern.permute.xlu0 0
    %475 = vperm.xlu0 %474, %v42
    %v476 = vpop.permute.xlu0 %475
    %vm478 = vcmask 195584
    %v480 = vsel %vm478, %v39, 0
    %v483 = vsel %vm478, %v40, 0
    %485 = vmatprep.subr.mxu0 0.0
    %486 = vmatpush1.msra.mxu0 0.0
    %487 = vmatprep.subr.mxu0 0.0
    %488 = vmatpush1.msra.mxu0 0.0
    %489 = vmatprep.subr.mxu0 0.0
    %490 = vmatpush1.msra.mxu0 0.0
    %491 = vmatprep.subr.mxu0 0.0
    %492 = vmatpush1.msra.mxu0 0.0
    %493 = vmatprep.subr.mxu0 0.0
    %494 = vmatpush1.msra.mxu0 0.0
    %495 = vmatprep.subr.mxu0 0.0
    %496 = vmatpush1.msra.mxu0 0.0
    %497 = vmatprep.subr.mxu0 0.0
    %498 = vmatpush1.msra.mxu0 0.0
    %499 = vmatprep.subr.mxu0 0.0
    %500 = vmatpush1.msra.mxu0 0.0
    %501 = vmatprep.subr.mxu0 0.0
    %502 = vmatpush1.msra.mxu0 0.0
    %503 = vmatprep.subr.mxu0 0.0
    %504 = vmatpush1.msra.mxu0 0.0
    %505 = vmatprep.subr.mxu0 0.0
    %506 = vmatpush1.msra.mxu0 0.0
    %507 = vmatprep.subr.mxu0 0.0
    %508 = vmatpush1.msra.mxu0 0.0
    %509 = vmatprep.subr.mxu0 0.0
    %510 = vmatpush1.msra.mxu0 0.0
    %511 = vmatprep.subr.mxu0 0.0
    %512 = vmatpush1.msra.mxu0 %v465
    %513 = vmatprep.subr.mxu0 0.0
    %514 = vmatpush1.msra.mxu0 %v395
    %515 = vmatprep.subr.mxu0 0.0
    %516 = vmatpush1.msra.mxu0 %v324
    %517 = vmatprep.subr.mxu0 0.0
    %518 = vmatpush2.msra.mxu0 0.0
    %519 = vmatprep.subr.mxu0 0.0
    %520 = vmatpush2.msra.mxu0 0.0
    %521 = vmatprep.subr.mxu0 0.0
    %522 = vmatpush2.msra.mxu0 0.0
    %523 = vmatprep.subr.mxu0 0.0
    %524 = vmatpush2.msra.mxu0 0.0
    %525 = vmatprep.subr.mxu0 0.0
    %526 = vmatpush2.msra.mxu0 0.0
    %527 = vmatprep.subr.mxu0 0.0
    %528 = vmatpush2.msra.mxu0 0.0
    %529 = vmatprep.subr.mxu0 0.0
    %530 = vmatpush2.msra.mxu0 0.0
    %531 = vmatprep.subr.mxu0 0.0
    %532 = vmatpush2.msra.mxu0 0.0
    %533 = vmatprep.subr.mxu0 0.0
    %534 = vmatpush2.msra.mxu0 0.0
    %535 = vmatprep.subr.mxu0 0.0
    %536 = vmatpush2.msra.mxu0 0.0
    %537 = vmatprep.subr.mxu0 0.0
    %538 = vmatpush2.msra.mxu0 0.0
    %539 = vmatprep.subr.mxu0 0.0
    %540 = vmatpush2.msra.mxu0 0.0
    %541 = vmatprep.subr.mxu0 0.0
    %542 = vmatpush2.msra.mxu0 0.0
    %543 = vmatprep.subr.mxu0 0.0
    %544 = vmatpush2.msra.mxu0 0.0
    %545 = vmatprep.subr.mxu0 0.0
    %546 = vmatpush2.msra.mxu0 0.0
    %547 = vmatprep.subr.mxu0 0.0
    %548 = vmatpush2.msra.mxu0 0.0
    %549 = vmatprep.mubr.f32.mxu0 0.0
    %550 = vmatmul.mubr.f32.gmra.mxu0 %v480
    %v551 = vpop.f32.mrf.mxu0
    %v552 = vadd.f32 %v471, %v551
    %v553 = vpop.f32.mrf.mxu0
    %554 = vmatprep.mubr.f32.mxu0 0.0
    %555 = vmatmul.mubr.f32.gmra.mxu0 %v483
    %v556 = vpop.f32.mrf.mxu0
    %v557 = vadd.f32 %v476, %v556
    %v558 = vpop.f32.mrf.mxu0
    %559 = vdwg.mxu0
    %v560 = vxor.u32 %v552, 2147483648
    %v561 = vxor.u32 %v557, 2147483648
    %v562 = vmul.f32 %v560, 1.442695
    %v563 = vpow.pop %v562
    %v564 = vmul.f32 %v561, 1.442695
    %v565 = vpow.pop %v564
    %v566 = vadd.f32 %v563, 1.0
    %v567 = vadd.f32 %v565, 1.0
    %v568 = vrcp.pop %v566
    %v569 = vmul.f32 1.0, %v568
    %v570 = vrcp.pop %v567
    %v571 = vmul.f32 1.0, %v570
    %v572 = vtanh.pop %v557
    %v573 = vmul.f32 %v569, 0.0
    %v575 = vrot.slane %v572, 4
    %v577 = vmul.f32 %v569, %v575
    %v579 = vrot.slane %v577, 4
    %v581 = vadd.f32 %v573, %v579
    %v582 = vtanh.pop %v581
    %v584 = vrot.slane %v571, 4
    %v586 = vmul.f32 %v582, %v584
    %v587 = vld [vmem:[%s6] sm:$0xff]
    %v588 = vld [vmem:[%s6 + $0x8] sm:$0xf]
    %s589 = scalar_lea.vmem %s0, 2
    %v590 = vld [vmem:[%s589] sm:$0x3]
    %v591 = vrot.slane %v320, 2
    %v593 = vsel %vm44, %v590, %v591
    %v595 = vsel %vm46, %v593, 0
    %597 = vmatprep.subr.mxu0 0.0
    %598 = vmatpush1.msra.mxu0 0.0
    %599 = vmatprep.subr.mxu0 0.0
    %600 = vmatpush1.msra.mxu0 0.0
    %601 = vmatprep.subr.mxu0 0.0
    %602 = vmatpush1.msra.mxu0 0.0
    %603 = vmatprep.subr.mxu0 0.0
    %604 = vmatpush1.msra.mxu0 0.0
    %605 = vmatprep.subr.mxu0 0.0
    %606 = vmatpush1.msra.mxu0 0.0
    %607 = vmatprep.subr.mxu0 0.0
    %608 = vmatpush1.msra.mxu0 0.0
    %609 = vmatprep.subr.mxu0 0.0
    %610 = vmatpush1.msra.mxu0 0.0
    %611 = vmatprep.subr.mxu0 0.0
    %612 = vmatpush1.msra.mxu0 0.0
    %613 = vmatprep.subr.mxu0 0.0
    %614 = vmatpush1.msra.mxu0 0.0
    %615 = vmatprep.subr.mxu0 0.0
    %616 = vmatpush1.msra.mxu0 0.0
    %617 = vmatprep.subr.mxu0 0.0
    %618 = vmatpush1.msra.mxu0 0.0
    %619 = vmatprep.subr.mxu0 0.0
    %620 = vmatpush1.msra.mxu0 0.0
    %621 = vmatprep.subr.mxu0 0.0
    %622 = vmatpush1.msra.mxu0 0.0
    %623 = vmatprep.subr.mxu0 0.0
    %624 = vmatpush1.msra.mxu0 0.0
    %625 = vmatprep.subr.mxu0 0.0
    %626 = vmatpush1.msra.mxu0 %v31
    %627 = vmatprep.subr.mxu0 0.0
    %628 = vmatpush1.msra.mxu0 %v30
    %629 = vmatprep.subr.mxu0 0.0
    %630 = vmatpush2.msra.mxu0 0.0
    %631 = vmatprep.subr.mxu0 0.0
    %632 = vmatpush2.msra.mxu0 0.0
    %633 = vmatprep.subr.mxu0 0.0
    %634 = vmatpush2.msra.mxu0 0.0
    %635 = vmatprep.subr.mxu0 0.0
    %636 = vmatpush2.msra.mxu0 0.0
    %637 = vmatprep.subr.mxu0 0.0
    %638 = vmatpush2.msra.mxu0 0.0
    %639 = vmatprep.subr.mxu0 0.0
    %640 = vmatpush2.msra.mxu0 0.0
    %641 = vmatprep.subr.mxu0 0.0
    %642 = vmatpush2.msra.mxu0 0.0
    %643 = vmatprep.subr.mxu0 0.0
    %644 = vmatpush2.msra.mxu0 0.0
    %645 = vmatprep.subr.mxu0 0.0
    %646 = vmatpush2.msra.mxu0 0.0
    %647 = vmatprep.subr.mxu0 0.0
    %648 = vmatpush2.msra.mxu0 0.0
    %649 = vmatprep.subr.mxu0 0.0
    %650 = vmatpush2.msra.mxu0 0.0
    %651 = vmatprep.subr.mxu0 0.0
    %652 = vmatpush2.msra.mxu0 0.0
    %653 = vmatprep.subr.mxu0 0.0
    %654 = vmatpush2.msra.mxu0 0.0
    %655 = vmatprep.subr.mxu0 0.0
    %656 = vmatpush2.msra.mxu0 0.0
    %657 = vmatprep.subr.mxu0 0.0
    %658 = vmatpush2.msra.mxu0 0.0
    %659 = vmatprep.subr.mxu0 0.0
    %660 = vmatpush2.msra.mxu0 0.0
    %661 = vmatprep.mubr.f32.mxu0 0.0
    %662 = vmatmul.mubr.f32.gmra.mxu0 %v595
    %v663 = vpop.f32.mrf.mxu0
    %v664 = vadd.f32 0.0, %v663
    %v665 = vpop.f32.mrf.mxu0
    %666 = vdwg.mxu0
    %667 = vmatprep.subr.mxu0 0.0
    %668 = vmatpush1.msra.mxu0 0.0
    %669 = vmatprep.subr.mxu0 0.0
    %670 = vmatpush1.msra.mxu0 0.0
    %671 = vmatprep.subr.mxu0 0.0
    %672 = vmatpush1.msra.mxu0 0.0
    %673 = vmatprep.subr.mxu0 0.0
    %674 = vmatpush1.msra.mxu0 0.0
    %675 = vmatprep.subr.mxu0 0.0
    %676 = vmatpush1.msra.mxu0 0.0
    %677 = vmatprep.subr.mxu0 0.0
    %678 = vmatpush1.msra.mxu0 0.0
    %679 = vmatprep.subr.mxu0 0.0
    %680 = vmatpush1.msra.mxu0 0.0
    %681 = vmatprep.subr.mxu0 0.0
    %682 = vmatpush1.msra.mxu0 0.0
    %683 = vmatprep.subr.mxu0 0.0
    %684 = vmatpush1.msra.mxu0 0.0
    %685 = vmatprep.subr.mxu0 0.0
    %686 = vmatpush1.msra.mxu0 0.0
    %687 = vmatprep.subr.mxu0 0.0
    %688 = vmatpush1.msra.mxu0 0.0
    %689 = vmatprep.subr.mxu0 0.0
    %690 = vmatpush1.msra.mxu0 0.0
    %691 = vmatprep.subr.mxu0 0.0
    %692 = vmatpush1.msra.mxu0 0.0
    %693 = vmatprep.subr.mxu0 0.0
    %694 = vmatpush1.msra.mxu0 0.0
    %695 = vmatprep.subr.mxu0 0.0
    %696 = vmatpush1.msra.mxu0 %v34
    %697 = vmatprep.subr.mxu0 0.0
    %698 = vmatpush1.msra.mxu0 %v33
    %699 = vmatprep.subr.mxu0 0.0
    %700 = vmatpush2.msra.mxu0 0.0
    %701 = vmatprep.subr.mxu0 0.0
    %702 = vmatpush2.msra.mxu0 0.0
    %703 = vmatprep.subr.mxu0 0.0
    %704 = vmatpush2.msra.mxu0 0.0
    %705 = vmatprep.subr.mxu0 0.0
    %706 = vmatpush2.msra.mxu0 0.0
    %707 = vmatprep.subr.mxu0 0.0
    %708 = vmatpush2.msra.mxu0 0.0
    %709 = vmatprep.subr.mxu0 0.0
    %710 = vmatpush2.msra.mxu0 0.0
    %711 = vmatprep.subr.mxu0 0.0
    %712 = vmatpush2.msra.mxu0 0.0
    %713 = vmatprep.subr.mxu0 0.0
    %714 = vmatpush2.msra.mxu0 0.0
    %715 = vmatprep.subr.mxu0 0.0
    %716 = vmatpush2.msra.mxu0 0.0
    %717 = vmatprep.subr.mxu0 0.0
    %718 = vmatpush2.msra.mxu0 0.0
    %719 = vmatprep.subr.mxu0 0.0
    %720 = vmatpush2.msra.mxu0 0.0
    %721 = vmatprep.subr.mxu0 0.0
    %722 = vmatpush2.msra.mxu0 0.0
    %723 = vmatprep.subr.mxu0 0.0
    %724 = vmatpush2.msra.mxu0 0.0
    %725 = vmatprep.subr.mxu0 0.0
    %726 = vmatpush2.msra.mxu0 0.0
    %727 = vmatprep.subr.mxu0 0.0
    %728 = vmatpush2.msra.mxu0 0.0
    %729 = vmatprep.subr.mxu0 0.0
    %730 = vmatpush2.msra.mxu0 0.0
    %731 = vmatprep.mubr.f32.mxu0 0.0
    %732 = vmatmul.mubr.f32.gmra.mxu0 %v595
    %v733 = vpop.f32.mrf.mxu0
    %v734 = vadd.f32 0.0, %v733
    %v735 = vpop.f32.mrf.mxu0
    %736 = vdwg.mxu0
    %v738 = vrot.slane %v664, 2
    %v741 = vrot.slane %v734, 4
    %v743 = vsel %vm196, %v593, %v738
    %v744 = vsel %vm198, %v738, %v741
    %v745 = vsel %vm44, %v741, 0
    %747 = vmatprep.subr.mxu0 0.0
    %748 = vmatpush1.msra.mxu0 0.0
    %749 = vmatprep.subr.mxu0 0.0
    %750 = vmatpush1.msra.mxu0 0.0
    %751 = vmatprep.subr.mxu0 0.0
    %752 = vmatpush1.msra.mxu0 0.0
    %753 = vmatprep.subr.mxu0 0.0
    %754 = vmatpush1.msra.mxu0 0.0
    %755 = vmatprep.subr.mxu0 0.0
    %756 = vmatpush1.msra.mxu0 0.0
    %757 = vmatprep.subr.mxu0 0.0
    %758 = vmatpush1.msra.mxu0 0.0
    %759 = vmatprep.subr.mxu0 0.0
    %760 = vmatpush1.msra.mxu0 0.0
    %761 = vmatprep.subr.mxu0 0.0
    %762 = vmatpush1.msra.mxu0 0.0
    %763 = vmatprep.subr.mxu0 0.0
    %764 = vmatpush1.msra.mxu0 0.0
    %765 = vmatprep.subr.mxu0 0.0
    %766 = vmatpush1.msra.mxu0 0.0
    %767 = vmatprep.subr.mxu0 0.0
    %768 = vmatpush1.msra.mxu0 0.0
    %769 = vmatprep.subr.mxu0 0.0
    %770 = vmatpush1.msra.mxu0 0.0
    %771 = vmatprep.subr.mxu0 0.0
    %772 = vmatpush1.msra.mxu0 0.0
    %773 = vmatprep.subr.mxu0 0.0
    %774 = vmatpush1.msra.mxu0 %v745
    %775 = vmatprep.subr.mxu0 0.0
    %776 = vmatpush1.msra.mxu0 %v744
    %777 = vmatprep.subr.mxu0 0.0
    %778 = vmatpush1.msra.mxu0 %v743
    %779 = vmatprep.subr.mxu0 0.0
    %780 = vmatpush2.msra.mxu0 0.0
    %781 = vmatprep.subr.mxu0 0.0
    %782 = vmatpush2.msra.mxu0 0.0
    %783 = vmatprep.subr.mxu0 0.0
    %784 = vmatpush2.msra.mxu0 0.0
    %785 = vmatprep.subr.mxu0 0.0
    %786 = vmatpush2.msra.mxu0 0.0
    %787 = vmatprep.subr.mxu0 0.0
    %788 = vmatpush2.msra.mxu0 0.0
    %789 = vmatprep.subr.mxu0 0.0
    %790 = vmatpush2.msra.mxu0 0.0
    %791 = vmatprep.subr.mxu0 0.0
    %792 = vmatpush2.msra.mxu0 0.0
    %793 = vmatprep.subr.mxu0 0.0
    %794 = vmatpush2.msra.mxu0 0.0
    %795 = vmatprep.subr.mxu0 0.0
    %796 = vmatpush2.msra.mxu0 0.0
    %797 = vmatprep.subr.mxu0 0.0
    %798 = vmatpush2.msra.mxu0 0.0
    %799 = vmatprep.subr.mxu0 0.0
    %800 = vmatpush2.msra.mxu0 0.0
    %801 = vmatprep.subr.mxu0 0.0
    %802 = vmatpush2.msra.mxu0 0.0
    %803 = vmatprep.subr.mxu0 0.0
    %804 = vmatpush2.msra.mxu0 0.0
    %805 = vmatprep.subr.mxu0 0.0
    %806 = vmatpush2.msra.mxu0 0.0
    %807 = vmatprep.subr.mxu0 0.0
    %808 = vmatpush2.msra.mxu0 0.0
    %809 = vmatprep.subr.mxu0 0.0
    %810 = vmatpush2.msra.mxu0 0.0
    %811 = vmatprep.mubr.f32.mxu0 0.0
    %812 = vmatmul.mubr.f32.gmra.mxu0 %v212
    %v813 = vpop.f32.mrf.mxu0
    %v814 = vadd.f32 %v203, %v813
    %v815 = vpop.f32.mrf.mxu0
    %816 = vmatprep.mubr.f32.mxu0 0.0
    %817 = vmatmul.mubr.f32.gmra.mxu0 %v215
    %v818 = vpop.f32.mrf.mxu0
    %v819 = vadd.f32 %v208, %v818
    %v820 = vpop.f32.mrf.mxu0
    %821 = vdwg.mxu0
    %v822 = vxor.u32 %v814, 2147483648
    %v823 = vxor.u32 %v819, 2147483648
    %v824 = vmul.f32 %v822, 1.442695
    %v825 = vpow.pop %v824
    %v826 = vmul.f32 %v823, 1.442695
    %v827 = vpow.pop %v826
    %v828 = vadd.f32 %v825, 1.0
    %v829 = vadd.f32 %v827, 1.0
    %v830 = vrcp.pop %v828
    %v831 = vmul.f32 1.0, %v830
    %v832 = vrcp.pop %v829
    %v833 = vmul.f32 1.0, %v832
    %v834 = vtanh.pop %v819
    %v835 = vmul.f32 %v315, %v831
    %v837 = vrot.slane %v834, 4
    %v839 = vmul.f32 %v831, %v837
    %v841 = vrot.slane %v839, 4
    %v843 = vadd.f32 %v835, %v841
    %v844 = vtanh.pop %v843
    %v846 = vrot.slane %v833, 4
    %v848 = vmul.f32 %v844, %v846
    %v850 = vrot.slane %v848, 4
    %v852 = vsel %vm198, %v850, %v586
    %v854 = vsel %vm46, %v852, 0
    %856 = vmatprep.subr.mxu0 0.0
    %857 = vmatpush1.msra.mxu0 0.0
    %858 = vmatprep.subr.mxu0 0.0
    %859 = vmatpush1.msra.mxu0 0.0
    %860 = vmatprep.subr.mxu0 0.0
    %861 = vmatpush1.msra.mxu0 0.0
    %862 = vmatprep.subr.mxu0 0.0
    %863 = vmatpush1.msra.mxu0 0.0
    %864 = vmatprep.subr.mxu0 0.0
    %865 = vmatpush1.msra.mxu0 0.0
    %866 = vmatprep.subr.mxu0 0.0
    %867 = vmatpush1.msra.mxu0 0.0
    %868 = vmatprep.subr.mxu0 0.0
    %869 = vmatpush1.msra.mxu0 0.0
    %870 = vmatprep.subr.mxu0 0.0
    %871 = vmatpush1.msra.mxu0 0.0
    %872 = vmatprep.subr.mxu0 0.0
    %873 = vmatpush1.msra.mxu0 0.0
    %874 = vmatprep.subr.mxu0 0.0
    %875 = vmatpush1.msra.mxu0 0.0
    %876 = vmatprep.subr.mxu0 0.0
    %877 = vmatpush1.msra.mxu0 0.0
    %878 = vmatprep.subr.mxu0 0.0
    %879 = vmatpush1.msra.mxu0 0.0
    %880 = vmatprep.subr.mxu0 0.0
    %881 = vmatpush1.msra.mxu0 0.0
    %882 = vmatprep.subr.mxu0 0.0
    %883 = vmatpush1.msra.mxu0 0.0
    %884 = vmatprep.subr.mxu0 0.0
    %885 = vmatpush1.msra.mxu0 %v31
    %886 = vmatprep.subr.mxu0 0.0
    %887 = vmatpush1.msra.mxu0 %v30
    %888 = vmatprep.subr.mxu0 0.0
    %889 = vmatpush2.msra.mxu0 0.0
    %890 = vmatprep.subr.mxu0 0.0
    %891 = vmatpush2.msra.mxu0 0.0
    %892 = vmatprep.subr.mxu0 0.0
    %893 = vmatpush2.msra.mxu0 0.0
    %894 = vmatprep.subr.mxu0 0.0
    %895 = vmatpush2.msra.mxu0 0.0
    %896 = vmatprep.subr.mxu0 0.0
    %897 = vmatpush2.msra.mxu0 0.0
    %898 = vmatprep.subr.mxu0 0.0
    %899 = vmatpush2.msra.mxu0 0.0
    %900 = vmatprep.subr.mxu0 0.0
    %901 = vmatpush2.msra.mxu0 0.0
    %902 = vmatprep.subr.mxu0 0.0
    %903 = vmatpush2.msra.mxu0 0.0
    %904 = vmatprep.subr.mxu0 0.0
    %905 = vmatpush2.msra.mxu0 0.0
    %906 = vmatprep.subr.mxu0 0.0
    %907 = vmatpush2.msra.mxu0 0.0
    %908 = vmatprep.subr.mxu0 0.0
    %909 = vmatpush2.msra.mxu0 0.0
    %910 = vmatprep.subr.mxu0 0.0
    %911 = vmatpush2.msra.mxu0 0.0
    %912 = vmatprep.subr.mxu0 0.0
    %913 = vmatpush2.msra.mxu0 0.0
    %914 = vmatprep.subr.mxu0 0.0
    %915 = vmatpush2.msra.mxu0 0.0
    %916 = vmatprep.subr.mxu0 0.0
    %917 = vmatpush2.msra.mxu0 0.0
    %918 = vmatprep.subr.mxu0 0.0
    %919 = vmatpush2.msra.mxu0 0.0
    %920 = vmatprep.mubr.f32.mxu0 0.0
    %921 = vmatmul.mubr.f32.gmra.mxu0 %v854
    %v922 = vpop.f32.mrf.mxu0
    %v923 = vadd.f32 0.0, %v922
    %v924 = vpop.f32.mrf.mxu0
    %925 = vdwg.mxu0
    %926 = vmatprep.subr.mxu0 0.0
    %927 = vmatpush1.msra.mxu0 0.0
    %928 = vmatprep.subr.mxu0 0.0
    %929 = vmatpush1.msra.mxu0 0.0
    %930 = vmatprep.subr.mxu0 0.0
    %931 = vmatpush1.msra.mxu0 0.0
    %932 = vmatprep.subr.mxu0 0.0
    %933 = vmatpush1.msra.mxu0 0.0
    %934 = vmatprep.subr.mxu0 0.0
    %935 = vmatpush1.msra.mxu0 0.0
    %936 = vmatprep.subr.mxu0 0.0
    %937 = vmatpush1.msra.mxu0 0.0
    %938 = vmatprep.subr.mxu0 0.0
    %939 = vmatpush1.msra.mxu0 0.0
    %940 = vmatprep.subr.mxu0 0.0
    %941 = vmatpush1.msra.mxu0 0.0
    %942 = vmatprep.subr.mxu0 0.0
    %943 = vmatpush1.msra.mxu0 0.0
    %944 = vmatprep.subr.mxu0 0.0
    %945 = vmatpush1.msra.mxu0 0.0
    %946 = vmatprep.subr.mxu0 0.0
    %947 = vmatpush1.msra.mxu0 0.0
    %948 = vmatprep.subr.mxu0 0.0
    %949 = vmatpush1.msra.mxu0 0.0
    %950 = vmatprep.subr.mxu0 0.0
    %951 = vmatpush1.msra.mxu0 0.0
    %952 = vmatprep.subr.mxu0 0.0
    %953 = vmatpush1.msra.mxu0 0.0
    %954 = vmatprep.subr.mxu0 0.0
    %955 = vmatpush1.msra.mxu0 %v34
    %956 = vmatprep.subr.mxu0 0.0
    %957 = vmatpush1.msra.mxu0 %v33
    %958 = vmatprep.subr.mxu0 0.0
    %959 = vmatpush2.msra.mxu0 0.0
    %960 = vmatprep.subr.mxu0 0.0
    %961 = vmatpush2.msra.mxu0 0.0
    %962 = vmatprep.subr.mxu0 0.0
    %963 = vmatpush2.msra.mxu0 0.0
    %964 = vmatprep.subr.mxu0 0.0
    %965 = vmatpush2.msra.mxu0 0.0
    %966 = vmatprep.subr.mxu0 0.0
    %967 = vmatpush2.msra.mxu0 0.0
    %968 = vmatprep.subr.mxu0 0.0
    %969 = vmatpush2.msra.mxu0 0.0
    %970 = vmatprep.subr.mxu0 0.0
    %971 = vmatpush2.msra.mxu0 0.0
    %972 = vmatprep.subr.mxu0 0.0
    %973 = vmatpush2.msra.mxu0 0.0
    %974 = vmatprep.subr.mxu0 0.0
    %975 = vmatpush2.msra.mxu0 0.0
    %976 = vmatprep.subr.mxu0 0.0
    %977 = vmatpush2.msra.mxu0 0.0
    %978 = vmatprep.subr.mxu0 0.0
    %979 = vmatpush2.msra.mxu0 0.0
    %980 = vmatprep.subr.mxu0 0.0
    %981 = vmatpush2.msra.mxu0 0.0
    %982 = vmatprep.subr.mxu0 0.0
    %983 = vmatpush2.msra.mxu0 0.0
    %984 = vmatprep.subr.mxu0 0.0
    %985 = vmatpush2.msra.mxu0 0.0
    %986 = vmatprep.subr.mxu0 0.0
    %987 = vmatpush2.msra.mxu0 0.0
    %988 = vmatprep.subr.mxu0 0.0
    %989 = vmatpush2.msra.mxu0 0.0
    %990 = vmatprep.mubr.f32.mxu0 0.0
    %991 = vmatmul.mubr.f32.gmra.mxu0 %v854
    %v992 = vpop.f32.mrf.mxu0
    %v993 = vadd.f32 0.0, %v992
    %v994 = vpop.f32.mrf.mxu0
    %995 = vdwg.mxu0
    %996 = vmatprep.subr.mxu0 0.0
    %997 = vmatpush1.msra.mxu0 0.0
    %998 = vmatprep.subr.mxu0 0.0
    %999 = vmatpush1.msra.mxu0 0.0
    %1000 = vmatprep.subr.mxu0 0.0
    %1001 = vmatpush1.msra.mxu0 0.0
    %1002 = vmatprep.subr.mxu0 0.0
    %1003 = vmatpush1.msra.mxu0 0.0
    %1004 = vmatprep.subr.mxu0 0.0
    %1005 = vmatpush1.msra.mxu0 0.0
    %1006 = vmatprep.subr.mxu0 0.0
    %1007 = vmatpush1.msra.mxu0 0.0
    %1008 = vmatprep.subr.mxu0 0.0
    %1009 = vmatpush1.msra.mxu0 0.0
    %1010 = vmatprep.subr.mxu0 0.0
    %1011 = vmatpush1.msra.mxu0 0.0
    %1012 = vmatprep.subr.mxu0 0.0
    %1013 = vmatpush1.msra.mxu0 0.0
    %1014 = vmatprep.subr.mxu0 0.0
    %1015 = vmatpush1.msra.mxu0 0.0
    %1016 = vmatprep.subr.mxu0 0.0
    %1017 = vmatpush1.msra.mxu0 0.0
    %1018 = vmatprep.subr.mxu0 0.0
    %1019 = vmatpush1.msra.mxu0 0.0
    %1020 = vmatprep.subr.mxu0 0.0
    %1021 = vmatpush1.msra.mxu0 0.0
    %1022 = vmatprep.subr.mxu0 0.0
    %1023 = vmatpush1.msra.mxu0 %v993
    %1024 = vmatprep.subr.mxu0 0.0
    %1025 = vmatpush1.msra.mxu0 %v923
    %1026 = vmatprep.subr.mxu0 0.0
    %1027 = vmatpush1.msra.mxu0 %v852
    %1028 = vmatprep.subr.mxu0 0.0
    %1029 = vmatpush2.msra.mxu0 0.0
    %1030 = vmatprep.subr.mxu0 0.0
    %1031 = vmatpush2.msra.mxu0 0.0
    %1032 = vmatprep.subr.mxu0 0.0
    %1033 = vmatpush2.msra.mxu0 0.0
    %1034 = vmatprep.subr.mxu0 0.0
    %1035 = vmatpush2.msra.mxu0 0.0
    %1036 = vmatprep.subr.mxu0 0.0
    %1037 = vmatpush2.msra.mxu0 0.0
    %1038 = vmatprep.subr.mxu0 0.0
    %1039 = vmatpush2.msra.mxu0 0.0
    %1040 = vmatprep.subr.mxu0 0.0
    %1041 = vmatpush2.msra.mxu0 0.0
    %1042 = vmatprep.subr.mxu0 0.0
    %1043 = vmatpush2.msra.mxu0 0.0
    %1044 = vmatprep.subr.mxu0 0.0
    %1045 = vmatpush2.msra.mxu0 0.0
    %1046 = vmatprep.subr.mxu0 0.0
    %1047 = vmatpush2.msra.mxu0 0.0
    %1048 = vmatprep.subr.mxu0 0.0
    %1049 = vmatpush2.msra.mxu0 0.0
    %1050 = vmatprep.subr.mxu0 0.0
    %1051 = vmatpush2.msra.mxu0 0.0
    %1052 = vmatprep.subr.mxu0 0.0
    %1053 = vmatpush2.msra.mxu0 0.0
    %1054 = vmatprep.subr.mxu0 0.0
    %1055 = vmatpush2.msra.mxu0 0.0
    %1056 = vmatprep.subr.mxu0 0.0
    %1057 = vmatpush2.msra.mxu0 0.0
    %1058 = vmatprep.subr.mxu0 0.0
    %1059 = vmatpush2.msra.mxu0 0.0
    %1060 = vmatprep.mubr.f32.mxu0 0.0
    %1061 = vmatmul.mubr.f32.gmra.mxu0 %v480
    %v1062 = vpop.f32.mrf.mxu0
    %v1063 = vadd.f32 %v471, %v1062
    %v1064 = vpop.f32.mrf.mxu0
    %1065 = vmatprep.mubr.f32.mxu0 0.0
    %1066 = vmatmul.mubr.f32.gmra.mxu0 %v483
    %v1067 = vpop.f32.mrf.mxu0
    %v1068 = vadd.f32 %v476, %v1067
    %v1069 = vpop.f32.mrf.mxu0
    %1070 = vdwg.mxu0
    %v1071 = vxor.u32 %v1063, 2147483648
    %v1072 = vxor.u32 %v1068, 2147483648
    %v1073 = vmul.f32 %v1071, 1.442695
    %v1074 = vpow.pop %v1073
    %v1075 = vmul.f32 %v1072, 1.442695
    %v1076 = vpow.pop %v1075
    %v1077 = vadd.f32 %v1074, 1.0
    %v1078 = vadd.f32 %v1076, 1.0
    %v1079 = vrcp.pop %v1077
    %v1080 = vmul.f32 1.0, %v1079
    %v1081 = vrcp.pop %v1078
    %v1082 = vmul.f32 1.0, %v1081
    %v1083 = vtanh.pop %v1068
    %v1084 = vmul.f32 %v581, %v1080
    %v1086 = vrot.slane %v1083, 4
    %v1088 = vmul.f32 %v1080, %v1086
    %v1090 = vrot.slane %v1088, 4
    %v1092 = vadd.f32 %v1084, %v1090
    %v1093 = vtanh.pop %v1092
    %v1095 = vrot.slane %v1082, 4
    %v1097 = vmul.f32 %v1093, %v1095
    %s1098 = scalar_lea.vmem %s6, 16
    %v1099 = vld [vmem:[%s1098] sm:$0xff]
    %v1100 = vld [vmem:[%s1098 + $0x8] sm:$0xf]
    %v1102 = vrot.slane %v1097, 4
    %vm1103 = vcmask 31744
    %v1105 = vsel %vm1103, %v1099, 0
    %v1108 = vsel %vm1103, %v1100, 0
    %v1110 = vsel %vm198, %v1102, 0
    %1112 = vmatprep.subr.mxu0 0.0
    %1113 = vmatpush1.msra.mxu0 0.0
    %1114 = vmatprep.subr.mxu0 0.0
    %1115 = vmatpush1.msra.mxu0 0.0
    %1116 = vmatprep.subr.mxu0 0.0
    %1117 = vmatpush1.msra.mxu0 0.0
    %1118 = vmatprep.subr.mxu0 0.0
    %1119 = vmatpush1.msra.mxu0 0.0
    %1120 = vmatprep.subr.mxu0 0.0
    %1121 = vmatpush1.msra.mxu0 0.0
    %1122 = vmatprep.subr.mxu0 0.0
    %1123 = vmatpush1.msra.mxu0 0.0
    %1124 = vmatprep.subr.mxu0 0.0
    %1125 = vmatpush1.msra.mxu0 0.0
    %1126 = vmatprep.subr.mxu0 0.0
    %1127 = vmatpush1.msra.mxu0 0.0
    %1128 = vmatprep.subr.mxu0 0.0
    %1129 = vmatpush1.msra.mxu0 0.0
    %1130 = vmatprep.subr.mxu0 0.0
    %1131 = vmatpush1.msra.mxu0 0.0
    %1132 = vmatprep.subr.mxu0 0.0
    %1133 = vmatpush1.msra.mxu0 0.0
    %1134 = vmatprep.subr.mxu0 0.0
    %1135 = vmatpush1.msra.mxu0 0.0
    %1136 = vmatprep.subr.mxu0 0.0
    %1137 = vmatpush1.msra.mxu0 0.0
    %1138 = vmatprep.subr.mxu0 0.0
    %1139 = vmatpush1.msra.mxu0 0.0
    %1140 = vmatprep.subr.mxu0 0.0
    %1141 = vmatpush1.msra.mxu0 0.0
    %1142 = vmatprep.subr.mxu0 0.0
    %1143 = vmatpush1.msra.mxu0 %v1110
    %1144 = vmatprep.subr.mxu0 0.0
    %1145 = vmatpush2.msra.mxu0 0.0
    %1146 = vmatprep.subr.mxu0 0.0
    %1147 = vmatpush2.msra.mxu0 0.0
    %1148 = vmatprep.subr.mxu0 0.0
    %1149 = vmatpush2.msra.mxu0 0.0
    %1150 = vmatprep.subr.mxu0 0.0
    %1151 = vmatpush2.msra.mxu0 0.0
    %1152 = vmatprep.subr.mxu0 0.0
    %1153 = vmatpush2.msra.mxu0 0.0
    %1154 = vmatprep.subr.mxu0 0.0
    %1155 = vmatpush2.msra.mxu0 0.0
    %1156 = vmatprep.subr.mxu0 0.0
    %1157 = vmatpush2.msra.mxu0 0.0
    %1158 = vmatprep.subr.mxu0 0.0
    %1159 = vmatpush2.msra.mxu0 0.0
    %1160 = vmatprep.subr.mxu0 0.0
    %1161 = vmatpush2.msra.mxu0 0.0
    %1162 = vmatprep.subr.mxu0 0.0
    %1163 = vmatpush2.msra.mxu0 0.0
    %1164 = vmatprep.subr.mxu0 0.0
    %1165 = vmatpush2.msra.mxu0 0.0
    %1166 = vmatprep.subr.mxu0 0.0
    %1167 = vmatpush2.msra.mxu0 0.0
    %1168 = vmatprep.subr.mxu0 0.0
    %1169 = vmatpush2.msra.mxu0 0.0
    %1170 = vmatprep.subr.mxu0 0.0
    %1171 = vmatpush2.msra.mxu0 0.0
    %1172 = vmatprep.subr.mxu0 0.0
    %1173 = vmatpush2.msra.mxu0 0.0
    %1174 = vmatprep.subr.mxu0 0.0
    %1175 = vmatpush2.msra.mxu0 0.0
    %1176 = vmatprep.mubr.f32.mxu0 0.0
    %1177 = vmatmul.mubr.f32.gmra.mxu0 %v1105
    %v1178 = vpop.f32.mrf.mxu0
    %v1179 = vadd.f32 0.0, %v1178
    %v1180 = vpop.f32.mrf.mxu0
    %1181 = vmatprep.mubr.f32.mxu0 0.0
    %1182 = vmatmul.mubr.f32.gmra.mxu0 %v1108
    %v1183 = vpop.f32.mrf.mxu0
    %v1184 = vadd.f32 0.0, %v1183
    %v1185 = vpop.f32.mrf.mxu0
    %1186 = vdwg.mxu0
    %v1188 = vrot.slane %v586, 4
    %v1190 = vsel %vm1103, %v587, 0
    %v1193 = vsel %vm1103, %v588, 0
    %v1195 = vsel %vm198, %v1188, 0
    %1197 = vmatprep.subr.mxu0 0.0
    %1198 = vmatpush1.msra.mxu0 0.0
    %1199 = vmatprep.subr.mxu0 0.0
    %1200 = vmatpush1.msra.mxu0 0.0
    %1201 = vmatprep.subr.mxu0 0.0
    %1202 = vmatpush1.msra.mxu0 0.0
    %1203 = vmatprep.subr.mxu0 0.0
    %1204 = vmatpush1.msra.mxu0 0.0
    %1205 = vmatprep.subr.mxu0 0.0
    %1206 = vmatpush1.msra.mxu0 0.0
    %1207 = vmatprep.subr.mxu0 0.0
    %1208 = vmatpush1.msra.mxu0 0.0
    %1209 = vmatprep.subr.mxu0 0.0
    %1210 = vmatpush1.msra.mxu0 0.0
    %1211 = vmatprep.subr.mxu0 0.0
    %1212 = vmatpush1.msra.mxu0 0.0
    %1213 = vmatprep.subr.mxu0 0.0
    %1214 = vmatpush1.msra.mxu0 0.0
    %1215 = vmatprep.subr.mxu0 0.0
    %1216 = vmatpush1.msra.mxu0 0.0
    %1217 = vmatprep.subr.mxu0 0.0
    %1218 = vmatpush1.msra.mxu0 0.0
    %1219 = vmatprep.subr.mxu0 0.0
    %1220 = vmatpush1.msra.mxu0 0.0
    %1221 = vmatprep.subr.mxu0 0.0
    %1222 = vmatpush1.msra.mxu0 0.0
    %1223 = vmatprep.subr.mxu0 0.0
    %1224 = vmatpush1.msra.mxu0 0.0
    %1225 = vmatprep.subr.mxu0 0.0
    %1226 = vmatpush1.msra.mxu0 0.0
    %1227 = vmatprep.subr.mxu0 0.0
    %1228 = vmatpush1.msra.mxu0 %v1195
    %1229 = vmatprep.subr.mxu0 0.0
    %1230 = vmatpush2.msra.mxu0 0.0
    %1231 = vmatprep.subr.mxu0 0.0
    %1232 = vmatpush2.msra.mxu0 0.0
    %1233 = vmatprep.subr.mxu0 0.0
    %1234 = vmatpush2.msra.mxu0 0.0
    %1235 = vmatprep.subr.mxu0 0.0
    %1236 = vmatpush2.msra.mxu0 0.0
    %1237 = vmatprep.subr.mxu0 0.0
    %1238 = vmatpush2.msra.mxu0 0.0
    %1239 = vmatprep.subr.mxu0 0.0
    %1240 = vmatpush2.msra.mxu0 0.0
    %1241 = vmatprep.subr.mxu0 0.0
    %1242 = vmatpush2.msra.mxu0 0.0
    %1243 = vmatprep.subr.mxu0 0.0
    %1244 = vmatpush2.msra.mxu0 0.0
    %1245 = vmatprep.subr.mxu0 0.0
    %1246 = vmatpush2.msra.mxu0 0.0
    %1247 = vmatprep.subr.mxu0 0.0
    %1248 = vmatpush2.msra.mxu0 0.0
    %1249 = vmatprep.subr.mxu0 0.0
    %1250 = vmatpush2.msra.mxu0 0.0
    %1251 = vmatprep.subr.mxu0 0.0
    %1252 = vmatpush2.msra.mxu0 0.0
    %1253 = vmatprep.subr.mxu0 0.0
    %1254 = vmatpush2.msra.mxu0 0.0
    %1255 = vmatprep.subr.mxu0 0.0
    %1256 = vmatpush2.msra.mxu0 0.0
    %1257 = vmatprep.subr.mxu0 0.0
    %1258 = vmatpush2.msra.mxu0 0.0
    %1259 = vmatprep.subr.mxu0 0.0
    %1260 = vmatpush2.msra.mxu0 0.0
    %1261 = vmatprep.mubr.f32.mxu0 0.0
    %1262 = vmatmul.mubr.f32.gmra.mxu0 %v1190
    %v1263 = vpop.f32.mrf.mxu0
    %v1264 = vadd.f32 %v1179, %v1263
    %v1265 = vpop.f32.mrf.mxu0
    %1266 = vmatprep.mubr.f32.mxu0 0.0
    %1267 = vmatmul.mubr.f32.gmra.mxu0 %v1193
    %v1268 = vpop.f32.mrf.mxu0
    %v1269 = vadd.f32 %v1184, %v1268
    %v1270 = vpop.f32.mrf.mxu0
    %1271 = vdwg.mxu0
    %s1272 = scalar_lea.vmem %s0, 4
    %v1273 = vld [vmem:[%s1272] sm:$0x3]
    %v1274 = vrot.slane %v848, 2
    %v1276 = vsel %vm44, %v1273, %v1274
    %v1278 = vsel %vm46, %v1276, 0
    %1280 = vmatprep.subr.mxu0 0.0
    %1281 = vmatpush1.msra.mxu0 0.0
    %1282 = vmatprep.subr.mxu0 0.0
    %1283 = vmatpush1.msra.mxu0 0.0
    %1284 = vmatprep.subr.mxu0 0.0
    %1285 = vmatpush1.msra.mxu0 0.0
    %1286 = vmatprep.subr.mxu0 0.0
    %1287 = vmatpush1.msra.mxu0 0.0
    %1288 = vmatprep.subr.mxu0 0.0
    %1289 = vmatpush1.msra.mxu0 0.0
    %1290 = vmatprep.subr.mxu0 0.0
    %1291 = vmatpush1.msra.mxu0 0.0
    %1292 = vmatprep.subr.mxu0 0.0
    %1293 = vmatpush1.msra.mxu0 0.0
    %1294 = vmatprep.subr.mxu0 0.0
    %1295 = vmatpush1.msra.mxu0 0.0
    %1296 = vmatprep.subr.mxu0 0.0
    %1297 = vmatpush1.msra.mxu0 0.0
    %1298 = vmatprep.subr.mxu0 0.0
    %1299 = vmatpush1.msra.mxu0 0.0
    %1300 = vmatprep.subr.mxu0 0.0
    %1301 = vmatpush1.msra.mxu0 0.0
    %1302 = vmatprep.subr.mxu0 0.0
    %1303 = vmatpush1.msra.mxu0 0.0
    %1304 = vmatprep.subr.mxu0 0.0
    %1305 = vmatpush1.msra.mxu0 0.0
    %1306 = vmatprep.subr.mxu0 0.0
    %1307 = vmatpush1.msra.mxu0 0.0
    %1308 = vmatprep.subr.mxu0 0.0
    %1309 = vmatpush1.msra.mxu0 %v31
    %1310 = vmatprep.subr.mxu0 0.0
    %1311 = vmatpush1.msra.mxu0 %v30
    %1312 = vmatprep.subr.mxu0 0.0
    %1313 = vmatpush2.msra.mxu0 0.0
    %1314 = vmatprep.subr.mxu0 0.0
    %1315 = vmatpush2.msra.mxu0 0.0
    %1316 = vmatprep.subr.mxu0 0.0
    %1317 = vmatpush2.msra.mxu0 0.0
    %1318 = vmatprep.subr.mxu0 0.0
    %1319 = vmatpush2.msra.mxu0 0.0
    %1320 = vmatprep.subr.mxu0 0.0
    %1321 = vmatpush2.msra.mxu0 0.0
    %1322 = vmatprep.subr.mxu0 0.0
    %1323 = vmatpush2.msra.mxu0 0.0
    %1324 = vmatprep.subr.mxu0 0.0
    %1325 = vmatpush2.msra.mxu0 0.0
    %1326 = vmatprep.subr.mxu0 0.0
    %1327 = vmatpush2.msra.mxu0 0.0
    %1328 = vmatprep.subr.mxu0 0.0
    %1329 = vmatpush2.msra.mxu0 0.0
    %1330 = vmatprep.subr.mxu0 0.0
    %1331 = vmatpush2.msra.mxu0 0.0
    %1332 = vmatprep.subr.mxu0 0.0
    %1333 = vmatpush2.msra.mxu0 0.0
    %1334 = vmatprep.subr.mxu0 0.0
    %1335 = vmatpush2.msra.mxu0 0.0
    %1336 = vmatprep.subr.mxu0 0.0
    %1337 = vmatpush2.msra.mxu0 0.0
    %1338 = vmatprep.subr.mxu0 0.0
    %1339 = vmatpush2.msra.mxu0 0.0
    %1340 = vmatprep.subr.mxu0 0.0
    %1341 = vmatpush2.msra.mxu0 0.0
    %1342 = vmatprep.subr.mxu0 0.0
    %1343 = vmatpush2.msra.mxu0 0.0
    %1344 = vmatprep.mubr.f32.mxu0 0.0
    %1345 = vmatmul.mubr.f32.gmra.mxu0 %v1278
    %v1346 = vpop.f32.mrf.mxu0
    %v1347 = vadd.f32 0.0, %v1346
    %v1348 = vpop.f32.mrf.mxu0
    %1349 = vdwg.mxu0
    %1350 = vmatprep.subr.mxu0 0.0
    %1351 = vmatpush1.msra.mxu0 0.0
    %1352 = vmatprep.subr.mxu0 0.0
    %1353 = vmatpush1.msra.mxu0 0.0
    %1354 = vmatprep.subr.mxu0 0.0
    %1355 = vmatpush1.msra.mxu0 0.0
    %1356 = vmatprep.subr.mxu0 0.0
    %1357 = vmatpush1.msra.mxu0 0.0
    %1358 = vmatprep.subr.mxu0 0.0
    %1359 = vmatpush1.msra.mxu0 0.0
    %1360 = vmatprep.subr.mxu0 0.0
    %1361 = vmatpush1.msra.mxu0 0.0
    %1362 = vmatprep.subr.mxu0 0.0
    %1363 = vmatpush1.msra.mxu0 0.0
    %1364 = vmatprep.subr.mxu0 0.0
    %1365 = vmatpush1.msra.mxu0 0.0
    %1366 = vmatprep.subr.mxu0 0.0
    %1367 = vmatpush1.msra.mxu0 0.0
    %1368 = vmatprep.subr.mxu0 0.0
    %1369 = vmatpush1.msra.mxu0 0.0
    %1370 = vmatprep.subr.mxu0 0.0
    %1371 = vmatpush1.msra.mxu0 0.0
    %1372 = vmatprep.subr.mxu0 0.0
    %1373 = vmatpush1.msra.mxu0 0.0
    %1374 = vmatprep.subr.mxu0 0.0
    %1375 = vmatpush1.msra.mxu0 0.0
    %1376 = vmatprep.subr.mxu0 0.0
    %1377 = vmatpush1.msra.mxu0 0.0
    %1378 = vmatprep.subr.mxu0 0.0
    %1379 = vmatpush1.msra.mxu0 %v34
    %1380 = vmatprep.subr.mxu0 0.0
    %1381 = vmatpush1.msra.mxu0 %v33
    %1382 = vmatprep.subr.mxu0 0.0
    %1383 = vmatpush2.msra.mxu0 0.0
    %1384 = vmatprep.subr.mxu0 0.0
    %1385 = vmatpush2.msra.mxu0 0.0
    %1386 = vmatprep.subr.mxu0 0.0
    %1387 = vmatpush2.msra.mxu0 0.0
    %1388 = vmatprep.subr.mxu0 0.0
    %1389 = vmatpush2.msra.mxu0 0.0
    %1390 = vmatprep.subr.mxu0 0.0
    %1391 = vmatpush2.msra.mxu0 0.0
    %1392 = vmatprep.subr.mxu0 0.0
    %1393 = vmatpush2.msra.mxu0 0.0
    %1394 = vmatprep.subr.mxu0 0.0
    %1395 = vmatpush2.msra.mxu0 0.0
    %1396 = vmatprep.subr.mxu0 0.0
    %1397 = vmatpush2.msra.mxu0 0.0
    %1398 = vmatprep.subr.mxu0 0.0
    %1399 = vmatpush2.msra.mxu0 0.0
    %1400 = vmatprep.subr.mxu0 0.0
    %1401 = vmatpush2.msra.mxu0 0.0
    %1402 = vmatprep.subr.mxu0 0.0
    %1403 = vmatpush2.msra.mxu0 0.0
    %1404 = vmatprep.subr.mxu0 0.0
    %1405 = vmatpush2.msra.mxu0 0.0
    %1406 = vmatprep.subr.mxu0 0.0
    %1407 = vmatpush2.msra.mxu0 0.0
    %1408 = vmatprep.subr.mxu0 0.0
    %1409 = vmatpush2.msra.mxu0 0.0
    %1410 = vmatprep.subr.mxu0 0.0
    %1411 = vmatpush2.msra.mxu0 0.0
    %1412 = vmatprep.subr.mxu0 0.0
    %1413 = vmatpush2.msra.mxu0 0.0
    %1414 = vmatprep.mubr.f32.mxu0 0.0
    %1415 = vmatmul.mubr.f32.gmra.mxu0 %v1278
    %v1416 = vpop.f32.mrf.mxu0
    %v1417 = vadd.f32 0.0, %v1416
    %v1418 = vpop.f32.mrf.mxu0
    %1419 = vdwg.mxu0
    %v1421 = vrot.slane %v1347, 2
    %v1424 = vrot.slane %v1417, 4
    %v1426 = vsel %vm196, %v1276, %v1421
    %v1427 = vsel %vm198, %v1421, %v1424
    %v1428 = vsel %vm44, %v1424, 0
    %1430 = vmatprep.subr.mxu0 0.0
    %1431 = vmatpush1.msra.mxu0 0.0
    %1432 = vmatprep.subr.mxu0 0.0
    %1433 = vmatpush1.msra.mxu0 0.0
    %1434 = vmatprep.subr.mxu0 0.0
    %1435 = vmatpush1.msra.mxu0 0.0
    %1436 = vmatprep.subr.mxu0 0.0
    %1437 = vmatpush1.msra.mxu0 0.0
    %1438 = vmatprep.subr.mxu0 0.0
    %1439 = vmatpush1.msra.mxu0 0.0
    %1440 = vmatprep.subr.mxu0 0.0
    %1441 = vmatpush1.msra.mxu0 0.0
    %1442 = vmatprep.subr.mxu0 0.0
    %1443 = vmatpush1.msra.mxu0 0.0
    %1444 = vmatprep.subr.mxu0 0.0
    %1445 = vmatpush1.msra.mxu0 0.0
    %1446 = vmatprep.subr.mxu0 0.0
    %1447 = vmatpush1.msra.mxu0 0.0
    %1448 = vmatprep.subr.mxu0 0.0
    %1449 = vmatpush1.msra.mxu0 0.0
    %1450 = vmatprep.subr.mxu0 0.0
    %1451 = vmatpush1.msra.mxu0 0.0
    %1452 = vmatprep.subr.mxu0 0.0
    %1453 = vmatpush1.msra.mxu0 0.0
    %1454 = vmatprep.subr.mxu0 0.0
    %1455 = vmatpush1.msra.mxu0 0.0
    %1456 = vmatprep.subr.mxu0 0.0
    %1457 = vmatpush1.msra.mxu0 %v1428
    %1458 = vmatprep.subr.mxu0 0.0
    %1459 = vmatpush1.msra.mxu0 %v1427
    %1460 = vmatprep.subr.mxu0 0.0
    %1461 = vmatpush1.msra.mxu0 %v1426
    %1462 = vmatprep.subr.mxu0 0.0
    %1463 = vmatpush2.msra.mxu0 0.0
    %1464 = vmatprep.subr.mxu0 0.0
    %1465 = vmatpush2.msra.mxu0 0.0
    %1466 = vmatprep.subr.mxu0 0.0
    %1467 = vmatpush2.msra.mxu0 0.0
    %1468 = vmatprep.subr.mxu0 0.0
    %1469 = vmatpush2.msra.mxu0 0.0
    %1470 = vmatprep.subr.mxu0 0.0
    %1471 = vmatpush2.msra.mxu0 0.0
    %1472 = vmatprep.subr.mxu0 0.0
    %1473 = vmatpush2.msra.mxu0 0.0
    %1474 = vmatprep.subr.mxu0 0.0
    %1475 = vmatpush2.msra.mxu0 0.0
    %1476 = vmatprep.subr.mxu0 0.0
    %1477 = vmatpush2.msra.mxu0 0.0
    %1478 = vmatprep.subr.mxu0 0.0
    %1479 = vmatpush2.msra.mxu0 0.0
    %1480 = vmatprep.subr.mxu0 0.0
    %1481 = vmatpush2.msra.mxu0 0.0
    %1482 = vmatprep.subr.mxu0 0.0
    %1483 = vmatpush2.msra.mxu0 0.0
    %1484 = vmatprep.subr.mxu0 0.0
    %1485 = vmatpush2.msra.mxu0 0.0
    %1486 = vmatprep.subr.mxu0 0.0
    %1487 = vmatpush2.msra.mxu0 0.0
    %1488 = vmatprep.subr.mxu0 0.0
    %1489 = vmatpush2.msra.mxu0 0.0
    %1490 = vmatprep.subr.mxu0 0.0
    %1491 = vmatpush2.msra.mxu0 0.0
    %1492 = vmatprep.subr.mxu0 0.0
    %1493 = vmatpush2.msra.mxu0 0.0
    %1494 = vmatprep.mubr.f32.mxu0 0.0
    %1495 = vmatmul.mubr.f32.gmra.mxu0 %v212
    %v1496 = vpop.f32.mrf.mxu0
    %v1497 = vadd.f32 %v203, %v1496
    %v1498 = vpop.f32.mrf.mxu0
    %1499 = vmatprep.mubr.f32.mxu0 0.0
    %1500 = vmatmul.mubr.f32.gmra.mxu0 %v215
    %v1501 = vpop.f32.mrf.mxu0
    %v1502 = vadd.f32 %v208, %v1501
    %v1503 = vpop.f32.mrf.mxu0
    %1504 = vdwg.mxu0
    %v1505 = vxor.u32 %v1497, 2147483648
    %v1506 = vxor.u32 %v1502, 2147483648
    %v1507 = vmul.f32 %v1505, 1.442695
    %v1508 = vpow.pop %v1507
    %v1509 = vmul.f32 %v1506, 1.442695
    %v1510 = vpow.pop %v1509
    %v1511 = vadd.f32 %v1508, 1.0
    %v1512 = vadd.f32 %v1510, 1.0
    %v1513 = vrcp.pop %v1511
    %v1514 = vmul.f32 1.0, %v1513
    %v1515 = vrcp.pop %v1512
    %v1516 = vmul.f32 1.0, %v1515
    %v1517 = vtanh.pop %v1502
    %v1518 = vmul.f32 %v843, %v1514
    %v1520 = vrot.slane %v1517, 4
    %v1522 = vmul.f32 %v1514, %v1520
    %v1524 = vrot.slane %v1522, 4
    %v1526 = vadd.f32 %v1518, %v1524
    %v1527 = vtanh.pop %v1526
    %v1529 = vrot.slane %v1516, 4
    %v1531 = vmul.f32 %v1527, %v1529
    %v1533 = vrot.slane %v1531, 4
    %v1535 = vsel %vm198, %v1533, %v1097
    %v1537 = vsel %vm46, %v1535, 0
    %1539 = vmatprep.subr.mxu0 0.0
    %1540 = vmatpush1.msra.mxu0 0.0
    %1541 = vmatprep.subr.mxu0 0.0
    %1542 = vmatpush1.msra.mxu0 0.0
    %1543 = vmatprep.subr.mxu0 0.0
    %1544 = vmatpush1.msra.mxu0 0.0
    %1545 = vmatprep.subr.mxu0 0.0
    %1546 = vmatpush1.msra.mxu0 0.0
    %1547 = vmatprep.subr.mxu0 0.0
    %1548 = vmatpush1.msra.mxu0 0.0
    %1549 = vmatprep.subr.mxu0 0.0
    %1550 = vmatpush1.msra.mxu0 0.0
    %1551 = vmatprep.subr.mxu0 0.0
    %1552 = vmatpush1.msra.mxu0 0.0
    %1553 = vmatprep.subr.mxu0 0.0
    %1554 = vmatpush1.msra.mxu0 0.0
    %1555 = vmatprep.subr.mxu0 0.0
    %1556 = vmatpush1.msra.mxu0 0.0
    %1557 = vmatprep.subr.mxu0 0.0
    %1558 = vmatpush1.msra.mxu0 0.0
    %1559 = vmatprep.subr.mxu0 0.0
    %1560 = vmatpush1.msra.mxu0 0.0
    %1561 = vmatprep.subr.mxu0 0.0
    %1562 = vmatpush1.msra.mxu0 0.0
    %1563 = vmatprep.subr.mxu0 0.0
    %1564 = vmatpush1.msra.mxu0 0.0
    %1565 = vmatprep.subr.mxu0 0.0
    %1566 = vmatpush1.msra.mxu0 0.0
    %1567 = vmatprep.subr.mxu0 0.0
    %1568 = vmatpush1.msra.mxu0 %v31
    %1569 = vmatprep.subr.mxu0 0.0
    %1570 = vmatpush1.msra.mxu0 %v30
    %1571 = vmatprep.subr.mxu0 0.0
    %1572 = vmatpush2.msra.mxu0 0.0
    %1573 = vmatprep.subr.mxu0 0.0
    %1574 = vmatpush2.msra.mxu0 0.0
    %1575 = vmatprep.subr.mxu0 0.0
    %1576 = vmatpush2.msra.mxu0 0.0
    %1577 = vmatprep.subr.mxu0 0.0
    %1578 = vmatpush2.msra.mxu0 0.0
    %1579 = vmatprep.subr.mxu0 0.0
    %1580 = vmatpush2.msra.mxu0 0.0
    %1581 = vmatprep.subr.mxu0 0.0
    %1582 = vmatpush2.msra.mxu0 0.0
    %1583 = vmatprep.subr.mxu0 0.0
    %1584 = vmatpush2.msra.mxu0 0.0
    %1585 = vmatprep.subr.mxu0 0.0
    %1586 = vmatpush2.msra.mxu0 0.0
    %1587 = vmatprep.subr.mxu0 0.0
    %1588 = vmatpush2.msra.mxu0 0.0
    %1589 = vmatprep.subr.mxu0 0.0
    %1590 = vmatpush2.msra.mxu0 0.0
    %1591 = vmatprep.subr.mxu0 0.0
    %1592 = vmatpush2.msra.mxu0 0.0
    %1593 = vmatprep.subr.mxu0 0.0
    %1594 = vmatpush2.msra.mxu0 0.0
    %1595 = vmatprep.subr.mxu0 0.0
    %1596 = vmatpush2.msra.mxu0 0.0
    %1597 = vmatprep.subr.mxu0 0.0
    %1598 = vmatpush2.msra.mxu0 0.0
    %1599 = vmatprep.subr.mxu0 0.0
    %1600 = vmatpush2.msra.mxu0 0.0
    %1601 = vmatprep.subr.mxu0 0.0
    %1602 = vmatpush2.msra.mxu0 0.0
    %1603 = vmatprep.mubr.f32.mxu0 0.0
    %1604 = vmatmul.mubr.f32.gmra.mxu0 %v1537
    %v1605 = vpop.f32.mrf.mxu0
    %v1606 = vadd.f32 0.0, %v1605
    %v1607 = vpop.f32.mrf.mxu0
    %1608 = vdwg.mxu0
    %1609 = vmatprep.subr.mxu0 0.0
    %1610 = vmatpush1.msra.mxu0 0.0
    %1611 = vmatprep.subr.mxu0 0.0
    %1612 = vmatpush1.msra.mxu0 0.0
    %1613 = vmatprep.subr.mxu0 0.0
    %1614 = vmatpush1.msra.mxu0 0.0
    %1615 = vmatprep.subr.mxu0 0.0
    %1616 = vmatpush1.msra.mxu0 0.0
    %1617 = vmatprep.subr.mxu0 0.0
    %1618 = vmatpush1.msra.mxu0 0.0
    %1619 = vmatprep.subr.mxu0 0.0
    %1620 = vmatpush1.msra.mxu0 0.0
    %1621 = vmatprep.subr.mxu0 0.0
    %1622 = vmatpush1.msra.mxu0 0.0
    %1623 = vmatprep.subr.mxu0 0.0
    %1624 = vmatpush1.msra.mxu0 0.0
    %1625 = vmatprep.subr.mxu0 0.0
    %1626 = vmatpush1.msra.mxu0 0.0
    %1627 = vmatprep.subr.mxu0 0.0
    %1628 = vmatpush1.msra.mxu0 0.0
    %1629 = vmatprep.subr.mxu0 0.0
    %1630 = vmatpush1.msra.mxu0 0.0
    %1631 = vmatprep.subr.mxu0 0.0
    %1632 = vmatpush1.msra.mxu0 0.0
    %1633 = vmatprep.subr.mxu0 0.0
    %1634 = vmatpush1.msra.mxu0 0.0
    %1635 = vmatprep.subr.mxu0 0.0
    %1636 = vmatpush1.msra.mxu0 0.0
    %1637 = vmatprep.subr.mxu0 0.0
    %1638 = vmatpush1.msra.mxu0 %v34
    %1639 = vmatprep.subr.mxu0 0.0
    %1640 = vmatpush1.msra.mxu0 %v33
    %1641 = vmatprep.subr.mxu0 0.0
    %1642 = vmatpush2.msra.mxu0 0.0
    %1643 = vmatprep.subr.mxu0 0.0
    %1644 = vmatpush2.msra.mxu0 0.0
    %1645 = vmatprep.subr.mxu0 0.0
    %1646 = vmatpush2.msra.mxu0 0.0
    %1647 = vmatprep.subr.mxu0 0.0
    %1648 = vmatpush2.msra.mxu0 0.0
    %1649 = vmatprep.subr.mxu0 0.0
    %1650 = vmatpush2.msra.mxu0 0.0
    %1651 = vmatprep.subr.mxu0 0.0
    %1652 = vmatpush2.msra.mxu0 0.0
    %1653 = vmatprep.subr.mxu0 0.0
    %1654 = vmatpush2.msra.mxu0 0.0
    %1655 = vmatprep.subr.mxu0 0.0
    %1656 = vmatpush2.msra.mxu0 0.0
    %1657 = vmatprep.subr.mxu0 0.0
    %1658 = vmatpush2.msra.mxu0 0.0
    %1659 = vmatprep.subr.mxu0 0.0
    %1660 = vmatpush2.msra.mxu0 0.0
    %1661 = vmatprep.subr.mxu0 0.0
    %1662 = vmatpush2.msra.mxu0 0.0
    %1663 = vmatprep.subr.mxu0 0.0
    %1664 = vmatpush2.msra.mxu0 0.0
    %1665 = vmatprep.subr.mxu0 0.0
    %1666 = vmatpush2.msra.mxu0 0.0
    %1667 = vmatprep.subr.mxu0 0.0
    %1668 = vmatpush2.msra.mxu0 0.0
    %1669 = vmatprep.subr.mxu0 0.0
    %1670 = vmatpush2.msra.mxu0 0.0
    %1671 = vmatprep.subr.mxu0 0.0
    %1672 = vmatpush2.msra.mxu0 0.0
    %1673 = vmatprep.mubr.f32.mxu0 0.0
    %1674 = vmatmul.mubr.f32.gmra.mxu0 %v1537
    %v1675 = vpop.f32.mrf.mxu0
    %v1676 = vadd.f32 0.0, %v1675
    %v1677 = vpop.f32.mrf.mxu0
    %1678 = vdwg.mxu0
    %1679 = vmatprep.subr.mxu0 0.0
    %1680 = vmatpush1.msra.mxu0 0.0
    %1681 = vmatprep.subr.mxu0 0.0
    %1682 = vmatpush1.msra.mxu0 0.0
    %1683 = vmatprep.subr.mxu0 0.0
    %1684 = vmatpush1.msra.mxu0 0.0
    %1685 = vmatprep.subr.mxu0 0.0
    %1686 = vmatpush1.msra.mxu0 0.0
    %1687 = vmatprep.subr.mxu0 0.0
    %1688 = vmatpush1.msra.mxu0 0.0
    %1689 = vmatprep.subr.mxu0 0.0
    %1690 = vmatpush1.msra.mxu0 0.0
    %1691 = vmatprep.subr.mxu0 0.0
    %1692 = vmatpush1.msra.mxu0 0.0
    %1693 = vmatprep.subr.mxu0 0.0
    %1694 = vmatpush1.msra.mxu0 0.0
    %1695 = vmatprep.subr.mxu0 0.0
    %1696 = vmatpush1.msra.mxu0 0.0
    %1697 = vmatprep.subr.mxu0 0.0
    %1698 = vmatpush1.msra.mxu0 0.0
    %1699 = vmatprep.subr.mxu0 0.0
    %1700 = vmatpush1.msra.mxu0 0.0
    %1701 = vmatprep.subr.mxu0 0.0
    %1702 = vmatpush1.msra.mxu0 0.0
    %1703 = vmatprep.subr.mxu0 0.0
    %1704 = vmatpush1.msra.mxu0 0.0
    %1705 = vmatprep.subr.mxu0 0.0
    %1706 = vmatpush1.msra.mxu0 %v1676
    %1707 = vmatprep.subr.mxu0 0.0
    %1708 = vmatpush1.msra.mxu0 %v1606
    %1709 = vmatprep.subr.mxu0 0.0
    %1710 = vmatpush1.msra.mxu0 %v1535
    %1711 = vmatprep.subr.mxu0 0.0
    %1712 = vmatpush2.msra.mxu0 0.0
    %1713 = vmatprep.subr.mxu0 0.0
    %1714 = vmatpush2.msra.mxu0 0.0
    %1715 = vmatprep.subr.mxu0 0.0
    %1716 = vmatpush2.msra.mxu0 0.0
    %1717 = vmatprep.subr.mxu0 0.0
    %1718 = vmatpush2.msra.mxu0 0.0
    %1719 = vmatprep.subr.mxu0 0.0
    %1720 = vmatpush2.msra.mxu0 0.0
    %1721 = vmatprep.subr.mxu0 0.0
    %1722 = vmatpush2.msra.mxu0 0.0
    %1723 = vmatprep.subr.mxu0 0.0
    %1724 = vmatpush2.msra.mxu0 0.0
    %1725 = vmatprep.subr.mxu0 0.0
    %1726 = vmatpush2.msra.mxu0 0.0
    %1727 = vmatprep.subr.mxu0 0.0
    %1728 = vmatpush2.msra.mxu0 0.0
    %1729 = vmatprep.subr.mxu0 0.0
    %1730 = vmatpush2.msra.mxu0 0.0
    %1731 = vmatprep.subr.mxu0 0.0
    %1732 = vmatpush2.msra.mxu0 0.0
    %1733 = vmatprep.subr.mxu0 0.0
    %1734 = vmatpush2.msra.mxu0 0.0
    %1735 = vmatprep.subr.mxu0 0.0
    %1736 = vmatpush2.msra.mxu0 0.0
    %1737 = vmatprep.subr.mxu0 0.0
    %1738 = vmatpush2.msra.mxu0 0.0
    %1739 = vmatprep.subr.mxu0 0.0
    %1740 = vmatpush2.msra.mxu0 0.0
    %1741 = vmatprep.subr.mxu0 0.0
    %1742 = vmatpush2.msra.mxu0 0.0
    %1743 = vmatprep.mubr.f32.mxu0 0.0
    %1744 = vmatmul.mubr.f32.gmra.mxu0 %v480
    %v1745 = vpop.f32.mrf.mxu0
    %v1746 = vadd.f32 %v471, %v1745
    %v1747 = vpop.f32.mrf.mxu0
    %1748 = vmatprep.mubr.f32.mxu0 0.0
    %1749 = vmatmul.mubr.f32.gmra.mxu0 %v483
    %v1750 = vpop.f32.mrf.mxu0
    %v1751 = vadd.f32 %v476, %v1750
    %v1752 = vpop.f32.mrf.mxu0
    %1753 = vdwg.mxu0
    %v1754 = vxor.u32 %v1746, 2147483648
    %v1755 = vxor.u32 %v1751, 2147483648
    %v1756 = vmul.f32 %v1754, 1.442695
    %v1757 = vpow.pop %v1756
    %v1758 = vmul.f32 %v1755, 1.442695
    %v1759 = vpow.pop %v1758
    %v1760 = vadd.f32 %v1757, 1.0
    %v1761 = vadd.f32 %v1759, 1.0
    %v1762 = vrcp.pop %v1760
    %v1763 = vmul.f32 1.0, %v1762
    %v1764 = vrcp.pop %v1761
    %v1765 = vmul.f32 1.0, %v1764
    %v1766 = vtanh.pop %v1751
    %v1767 = vmul.f32 %v1092, %v1763
    %v1769 = vrot.slane %v1766, 4
    %v1771 = vmul.f32 %v1763, %v1769
    %v1773 = vrot.slane %v1771, 4
    %v1775 = vadd.f32 %v1767, %v1773
    %v1776 = vtanh.pop %v1775
    %v1778 = vrot.slane %v1765, 4
    %v1780 = vmul.f32 %v1776, %v1778
    %s1781 = scalar_lea.vmem %s6, 32
    %v1782 = vld [vmem:[%s1781] sm:$0xff]
    %v1783 = vld [vmem:[%s1781 + $0x8] sm:$0xf]
    %v1785 = vrot.slane %v1780, 4
    %v1787 = vsel %vm1103, %v1782, 0
    %v1790 = vsel %vm1103, %v1783, 0
    %v1792 = vsel %vm198, %v1785, 0
    %1794 = vmatprep.subr.mxu0 0.0
    %1795 = vmatpush1.msra.mxu0 0.0
    %1796 = vmatprep.subr.mxu0 0.0
    %1797 = vmatpush1.msra.mxu0 0.0
    %1798 = vmatprep.subr.mxu0 0.0
    %1799 = vmatpush1.msra.mxu0 0.0
    %1800 = vmatprep.subr.mxu0 0.0
    %1801 = vmatpush1.msra.mxu0 0.0
    %1802 = vmatprep.subr.mxu0 0.0
    %1803 = vmatpush1.msra.mxu0 0.0
    %1804 = vmatprep.subr.mxu0 0.0
    %1805 = vmatpush1.msra.mxu0 0.0
    %1806 = vmatprep.subr.mxu0 0.0
    %1807 = vmatpush1.msra.mxu0 0.0
    %1808 = vmatprep.subr.mxu0 0.0
    %1809 = vmatpush1.msra.mxu0 0.0
    %1810 = vmatprep.subr.mxu0 0.0
    %1811 = vmatpush1.msra.mxu0 0.0
    %1812 = vmatprep.subr.mxu0 0.0
    %1813 = vmatpush1.msra.mxu0 0.0
    %1814 = vmatprep.subr.mxu0 0.0
    %1815 = vmatpush1.msra.mxu0 0.0
    %1816 = vmatprep.subr.mxu0 0.0
    %1817 = vmatpush1.msra.mxu0 0.0
    %1818 = vmatprep.subr.mxu0 0.0
    %1819 = vmatpush1.msra.mxu0 0.0
    %1820 = vmatprep.subr.mxu0 0.0
    %1821 = vmatpush1.msra.mxu0 0.0
    %1822 = vmatprep.subr.mxu0 0.0
    %1823 = vmatpush1.msra.mxu0 0.0
    %1824 = vmatprep.subr.mxu0 0.0
    %1825 = vmatpush1.msra.mxu0 %v1792
    %1826 = vmatprep.subr.mxu0 0.0
    %1827 = vmatpush2.msra.mxu0 0.0
    %1828 = vmatprep.subr.mxu0 0.0
    %1829 = vmatpush2.msra.mxu0 0.0
    %1830 = vmatprep.subr.mxu0 0.0
    %1831 = vmatpush2.msra.mxu0 0.0
    %1832 = vmatprep.subr.mxu0 0.0
    %1833 = vmatpush2.msra.mxu0 0.0
    %1834 = vmatprep.subr.mxu0 0.0
    %1835 = vmatpush2.msra.mxu0 0.0
    %1836 = vmatprep.subr.mxu0 0.0
    %1837 = vmatpush2.msra.mxu0 0.0
    %1838 = vmatprep.subr.mxu0 0.0
    %1839 = vmatpush2.msra.mxu0 0.0
    %1840 = vmatprep.subr.mxu0 0.0
    %1841 = vmatpush2.msra.mxu0 0.0
    %1842 = vmatprep.subr.mxu0 0.0
    %1843 = vmatpush2.msra.mxu0 0.0
    %1844 = vmatprep.subr.mxu0 0.0
    %1845 = vmatpush2.msra.mxu0 0.0
    %1846 = vmatprep.subr.mxu0 0.0
    %1847 = vmatpush2.msra.mxu0 0.0
    %1848 = vmatprep.subr.mxu0 0.0
    %1849 = vmatpush2.msra.mxu0 0.0
    %1850 = vmatprep.subr.mxu0 0.0
    %1851 = vmatpush2.msra.mxu0 0.0
    %1852 = vmatprep.subr.mxu0 0.0
    %1853 = vmatpush2.msra.mxu0 0.0
    %1854 = vmatprep.subr.mxu0 0.0
    %1855 = vmatpush2.msra.mxu0 0.0
    %1856 = vmatprep.subr.mxu0 0.0
    %1857 = vmatpush2.msra.mxu0 0.0
    %1858 = vmatprep.mubr.f32.mxu0 0.0
    %1859 = vmatmul.mubr.f32.gmra.mxu0 %v1787
    %v1860 = vpop.f32.mrf.mxu0
    %v1861 = vadd.f32 0.0, %v1860
    %v1862 = vpop.f32.mrf.mxu0
    %1863 = vmatprep.mubr.f32.mxu0 0.0
    %1864 = vmatmul.mubr.f32.gmra.mxu0 %v1790
    %v1865 = vpop.f32.mrf.mxu0
    %v1866 = vadd.f32 0.0, %v1865
    %v1867 = vpop.f32.mrf.mxu0
    %1868 = vdwg.mxu0
    %v1869 = vadd.f32 %v1264, %v1861
    %v1870 = vadd.f32 %v1269, %v1866
    %s1871 = scalar_lea.vmem %s0, 6
    %v1872 = vld [vmem:[%s1871] sm:$0x3]
    %v1873 = vrot.slane %v1531, 2
    %v1875 = vsel %vm44, %v1872, %v1873
    %v1877 = vsel %vm46, %v1875, 0
    %1879 = vmatprep.subr.mxu0 0.0
    %1880 = vmatpush1.msra.mxu0 0.0
    %1881 = vmatprep.subr.mxu0 0.0
    %1882 = vmatpush1.msra.mxu0 0.0
    %1883 = vmatprep.subr.mxu0 0.0
    %1884 = vmatpush1.msra.mxu0 0.0
    %1885 = vmatprep.subr.mxu0 0.0
    %1886 = vmatpush1.msra.mxu0 0.0
    %1887 = vmatprep.subr.mxu0 0.0
    %1888 = vmatpush1.msra.mxu0 0.0
    %1889 = vmatprep.subr.mxu0 0.0
    %1890 = vmatpush1.msra.mxu0 0.0
    %1891 = vmatprep.subr.mxu0 0.0
    %1892 = vmatpush1.msra.mxu0 0.0
    %1893 = vmatprep.subr.mxu0 0.0
    %1894 = vmatpush1.msra.mxu0 0.0
    %1895 = vmatprep.subr.mxu0 0.0
    %1896 = vmatpush1.msra.mxu0 0.0
    %1897 = vmatprep.subr.mxu0 0.0
    %1898 = vmatpush1.msra.mxu0 0.0
    %1899 = vmatprep.subr.mxu0 0.0
    %1900 = vmatpush1.msra.mxu0 0.0
    %1901 = vmatprep.subr.mxu0 0.0
    %1902 = vmatpush1.msra.mxu0 0.0
    %1903 = vmatprep.subr.mxu0 0.0
    %1904 = vmatpush1.msra.mxu0 0.0
    %1905 = vmatprep.subr.mxu0 0.0
    %1906 = vmatpush1.msra.mxu0 0.0
    %1907 = vmatprep.subr.mxu0 0.0
    %1908 = vmatpush1.msra.mxu0 %v31
    %1909 = vmatprep.subr.mxu0 0.0
    %1910 = vmatpush1.msra.mxu0 %v30
    %1911 = vmatprep.subr.mxu0 0.0
    %1912 = vmatpush2.msra.mxu0 0.0
    %1913 = vmatprep.subr.mxu0 0.0
    %1914 = vmatpush2.msra.mxu0 0.0
    %1915 = vmatprep.subr.mxu0 0.0
    %1916 = vmatpush2.msra.mxu0 0.0
    %1917 = vmatprep.subr.mxu0 0.0
    %1918 = vmatpush2.msra.mxu0 0.0
    %1919 = vmatprep.subr.mxu0 0.0
    %1920 = vmatpush2.msra.mxu0 0.0
    %1921 = vmatprep.subr.mxu0 0.0
    %1922 = vmatpush2.msra.mxu0 0.0
    %1923 = vmatprep.subr.mxu0 0.0
    %1924 = vmatpush2.msra.mxu0 0.0
    %1925 = vmatprep.subr.mxu0 0.0
    %1926 = vmatpush2.msra.mxu0 0.0
    %1927 = vmatprep.subr.mxu0 0.0
    %1928 = vmatpush2.msra.mxu0 0.0
    %1929 = vmatprep.subr.mxu0 0.0
    %1930 = vmatpush2.msra.mxu0 0.0
    %1931 = vmatprep.subr.mxu0 0.0
    %1932 = vmatpush2.msra.mxu0 0.0
    %1933 = vmatprep.subr.mxu0 0.0
    %1934 = vmatpush2.msra.mxu0 0.0
    %1935 = vmatprep.subr.mxu0 0.0
    %1936 = vmatpush2.msra.mxu0 0.0
    %1937 = vmatprep.subr.mxu0 0.0
    %1938 = vmatpush2.msra.mxu0 0.0
    %1939 = vmatprep.subr.mxu0 0.0
    %1940 = vmatpush2.msra.mxu0 0.0
    %1941 = vmatprep.subr.mxu0 0.0
    %1942 = vmatpush2.msra.mxu0 0.0
    %1943 = vmatprep.mubr.f32.mxu0 0.0
    %1944 = vmatmul.mubr.f32.gmra.mxu0 %v1877
    %v1945 = vpop.f32.mrf.mxu0
    %v1946 = vadd.f32 0.0, %v1945
    %v1947 = vpop.f32.mrf.mxu0
    %1948 = vdwg.mxu0
    %1949 = vmatprep.subr.mxu0 0.0
    %1950 = vmatpush1.msra.mxu0 0.0
    %1951 = vmatprep.subr.mxu0 0.0
    %1952 = vmatpush1.msra.mxu0 0.0
    %1953 = vmatprep.subr.mxu0 0.0
    %1954 = vmatpush1.msra.mxu0 0.0
    %1955 = vmatprep.subr.mxu0 0.0
    %1956 = vmatpush1.msra.mxu0 0.0
    %1957 = vmatprep.subr.mxu0 0.0
    %1958 = vmatpush1.msra.mxu0 0.0
    %1959 = vmatprep.subr.mxu0 0.0
    %1960 = vmatpush1.msra.mxu0 0.0
    %1961 = vmatprep.subr.mxu0 0.0
    %1962 = vmatpush1.msra.mxu0 0.0
    %1963 = vmatprep.subr.mxu0 0.0
    %1964 = vmatpush1.msra.mxu0 0.0
    %1965 = vmatprep.subr.mxu0 0.0
    %1966 = vmatpush1.msra.mxu0 0.0
    %1967 = vmatprep.subr.mxu0 0.0
    %1968 = vmatpush1.msra.mxu0 0.0
    %1969 = vmatprep.subr.mxu0 0.0
    %1970 = vmatpush1.msra.mxu0 0.0
    %1971 = vmatprep.subr.mxu0 0.0
    %1972 = vmatpush1.msra.mxu0 0.0
    %1973 = vmatprep.subr.mxu0 0.0
    %1974 = vmatpush1.msra.mxu0 0.0
    %1975 = vmatprep.subr.mxu0 0.0
    %1976 = vmatpush1.msra.mxu0 0.0
    %1977 = vmatprep.subr.mxu0 0.0
    %1978 = vmatpush1.msra.mxu0 %v34
    %1979 = vmatprep.subr.mxu0 0.0
    %1980 = vmatpush1.msra.mxu0 %v33
    %1981 = vmatprep.subr.mxu0 0.0
    %1982 = vmatpush2.msra.mxu0 0.0
    %1983 = vmatprep.subr.mxu0 0.0
    %1984 = vmatpush2.msra.mxu0 0.0
    %1985 = vmatprep.subr.mxu0 0.0
    %1986 = vmatpush2.msra.mxu0 0.0
    %1987 = vmatprep.subr.mxu0 0.0
    %1988 = vmatpush2.msra.mxu0 0.0
    %1989 = vmatprep.subr.mxu0 0.0
    %1990 = vmatpush2.msra.mxu0 0.0
    %1991 = vmatprep.subr.mxu0 0.0
    %1992 = vmatpush2.msra.mxu0 0.0
    %1993 = vmatprep.subr.mxu0 0.0
    %1994 = vmatpush2.msra.mxu0 0.0
    %1995 = vmatprep.subr.mxu0 0.0
    %1996 = vmatpush2.msra.mxu0 0.0
    %1997 = vmatprep.subr.mxu0 0.0
    %1998 = vmatpush2.msra.mxu0 0.0
    %1999 = vmatprep.subr.mxu0 0.0
    %2000 = vmatpush2.msra.mxu0 0.0
    %2001 = vmatprep.subr.mxu0 0.0
    %2002 = vmatpush2.msra.mxu0 0.0
    %2003 = vmatprep.subr.mxu0 0.0
    %2004 = vmatpush2.msra.mxu0 0.0
    %2005 = vmatprep.subr.mxu0 0.0
    %2006 = vmatpush2.msra.mxu0 0.0
    %2007 = vmatprep.subr.mxu0 0.0
    %2008 = vmatpush2.msra.mxu0 0.0
    %2009 = vmatprep.subr.mxu0 0.0
    %2010 = vmatpush2.msra.mxu0 0.0
    %2011 = vmatprep.subr.mxu0 0.0
    %2012 = vmatpush2.msra.mxu0 0.0
    %2013 = vmatprep.mubr.f32.mxu0 0.0
    %2014 = vmatmul.mubr.f32.gmra.mxu0 %v1877
    %v2015 = vpop.f32.mrf.mxu0
    %v2016 = vadd.f32 0.0, %v2015
    %v2017 = vpop.f32.mrf.mxu0
    %2018 = vdwg.mxu0
    %v2020 = vrot.slane %v1946, 2
    %v2023 = vrot.slane %v2016, 4
    %v2025 = vsel %vm196, %v1875, %v2020
    %v2026 = vsel %vm198, %v2020, %v2023
    %v2027 = vsel %vm44, %v2023, 0
    %2029 = vmatprep.subr.mxu0 0.0
    %2030 = vmatpush1.msra.mxu0 0.0
    %2031 = vmatprep.subr.mxu0 0.0
    %2032 = vmatpush1.msra.mxu0 0.0
    %2033 = vmatprep.subr.mxu0 0.0
    %2034 = vmatpush1.msra.mxu0 0.0
    %2035 = vmatprep.subr.mxu0 0.0
    %2036 = vmatpush1.msra.mxu0 0.0
    %2037 = vmatprep.subr.mxu0 0.0
    %2038 = vmatpush1.msra.mxu0 0.0
    %2039 = vmatprep.subr.mxu0 0.0
    %2040 = vmatpush1.msra.mxu0 0.0
    %2041 = vmatprep.subr.mxu0 0.0
    %2042 = vmatpush1.msra.mxu0 0.0
    %2043 = vmatprep.subr.mxu0 0.0
    %2044 = vmatpush1.msra.mxu0 0.0
    %2045 = vmatprep.subr.mxu0 0.0
    %2046 = vmatpush1.msra.mxu0 0.0
    %2047 = vmatprep.subr.mxu0 0.0
    %2048 = vmatpush1.msra.mxu0 0.0
    %2049 = vmatprep.subr.mxu0 0.0
    %2050 = vmatpush1.msra.mxu0 0.0
    %2051 = vmatprep.subr.mxu0 0.0
    %2052 = vmatpush1.msra.mxu0 0.0
    %2053 = vmatprep.subr.mxu0 0.0
    %2054 = vmatpush1.msra.mxu0 0.0
    %2055 = vmatprep.subr.mxu0 0.0
    %2056 = vmatpush1.msra.mxu0 %v2027
    %2057 = vmatprep.subr.mxu0 0.0
    %2058 = vmatpush1.msra.mxu0 %v2026
    %2059 = vmatprep.subr.mxu0 0.0
    %2060 = vmatpush1.msra.mxu0 %v2025
    %2061 = vmatprep.subr.mxu0 0.0
    %2062 = vmatpush2.msra.mxu0 0.0
    %2063 = vmatprep.subr.mxu0 0.0
    %2064 = vmatpush2.msra.mxu0 0.0
    %2065 = vmatprep.subr.mxu0 0.0
    %2066 = vmatpush2.msra.mxu0 0.0
    %2067 = vmatprep.subr.mxu0 0.0
    %2068 = vmatpush2.msra.mxu0 0.0
    %2069 = vmatprep.subr.mxu0 0.0
    %2070 = vmatpush2.msra.mxu0 0.0
    %2071 = vmatprep.subr.mxu0 0.0
    %2072 = vmatpush2.msra.mxu0 0.0
    %2073 = vmatprep.subr.mxu0 0.0
    %2074 = vmatpush2.msra.mxu0 0.0
    %2075 = vmatprep.subr.mxu0 0.0
    %2076 = vmatpush2.msra.mxu0 0.0
    %2077 = vmatprep.subr.mxu0 0.0
    %2078 = vmatpush2.msra.mxu0 0.0
    %2079 = vmatprep.subr.mxu0 0.0
    %2080 = vmatpush2.msra.mxu0 0.0
    %2081 = vmatprep.subr.mxu0 0.0
    %2082 = vmatpush2.msra.mxu0 0.0
    %2083 = vmatprep.subr.mxu0 0.0
    %2084 = vmatpush2.msra.mxu0 0.0
    %2085 = vmatprep.subr.mxu0 0.0
    %2086 = vmatpush2.msra.mxu0 0.0
    %2087 = vmatprep.subr.mxu0 0.0
    %2088 = vmatpush2.msra.mxu0 0.0
    %2089 = vmatprep.subr.mxu0 0.0
    %2090 = vmatpush2.msra.mxu0 0.0
    %2091 = vmatprep.subr.mxu0 0.0
    %2092 = vmatpush2.msra.mxu0 0.0
    %2093 = vmatprep.mubr.f32.mxu0 0.0
    %2094 = vmatmul.mubr.f32.gmra.mxu0 %v212
    %v2095 = vpop.f32.mrf.mxu0
    %v2096 = vadd.f32 %v203, %v2095
    %v2097 = vpop.f32.mrf.mxu0
    %2098 = vmatprep.mubr.f32.mxu0 0.0
    %2099 = vmatmul.mubr.f32.gmra.mxu0 %v215
    %v2100 = vpop.f32.mrf.mxu0
    %v2101 = vadd.f32 %v208, %v2100
    %v2102 = vpop.f32.mrf.mxu0
    %2103 = vdwg.mxu0
    %v2104 = vxor.u32 %v2096, 2147483648
    %v2105 = vxor.u32 %v2101, 2147483648
    %v2106 = vmul.f32 %v2104, 1.442695
    %v2107 = vpow.pop %v2106
    %v2108 = vmul.f32 %v2105, 1.442695
    %v2109 = vpow.pop %v2108
    %v2110 = vadd.f32 %v2107, 1.0
    %v2111 = vadd.f32 %v2109, 1.0
    %v2112 = vrcp.pop %v2110
    %v2113 = vmul.f32 1.0, %v2112
    %v2114 = vrcp.pop %v2111
    %v2115 = vmul.f32 1.0, %v2114
    %v2116 = vtanh.pop %v2101
    %v2117 = vmul.f32 %v1526, %v2113
    %v2119 = vrot.slane %v2116, 4
    %v2121 = vmul.f32 %v2113, %v2119
    %v2123 = vrot.slane %v2121, 4
    %v2125 = vadd.f32 %v2117, %v2123
    %v2126 = vtanh.pop %v2125
    %v2128 = vrot.slane %v2115, 4
    %v2130 = vmul.f32 %v2126, %v2128
    %v2132 = vrot.slane %v2130, 4
    %v2134 = vsel %vm198, %v2132, %v1780
    %v2136 = vsel %vm46, %v2134, 0
    %2138 = vmatprep.subr.mxu0 0.0
    %2139 = vmatpush1.msra.mxu0 0.0
    %2140 = vmatprep.subr.mxu0 0.0
    %2141 = vmatpush1.msra.mxu0 0.0
    %2142 = vmatprep.subr.mxu0 0.0
    %2143 = vmatpush1.msra.mxu0 0.0
    %2144 = vmatprep.subr.mxu0 0.0
    %2145 = vmatpush1.msra.mxu0 0.0
    %2146 = vmatprep.subr.mxu0 0.0
    %2147 = vmatpush1.msra.mxu0 0.0
    %2148 = vmatprep.subr.mxu0 0.0
    %2149 = vmatpush1.msra.mxu0 0.0
    %2150 = vmatprep.subr.mxu0 0.0
    %2151 = vmatpush1.msra.mxu0 0.0
    %2152 = vmatprep.subr.mxu0 0.0
    %2153 = vmatpush1.msra.mxu0 0.0
    %2154 = vmatprep.subr.mxu0 0.0
    %2155 = vmatpush1.msra.mxu0 0.0
    %2156 = vmatprep.subr.mxu0 0.0
    %2157 = vmatpush1.msra.mxu0 0.0
    %2158 = vmatprep.subr.mxu0 0.0
    %2159 = vmatpush1.msra.mxu0 0.0
    %2160 = vmatprep.subr.mxu0 0.0
    %2161 = vmatpush1.msra.mxu0 0.0
    %2162 = vmatprep.subr.mxu0 0.0
    %2163 = vmatpush1.msra.mxu0 0.0
    %2164 = vmatprep.subr.mxu0 0.0
    %2165 = vmatpush1.msra.mxu0 0.0
    %2166 = vmatprep.subr.mxu0 0.0
    %2167 = vmatpush1.msra.mxu0 %v31
    %2168 = vmatprep.subr.mxu0 0.0
    %2169 = vmatpush1.msra.mxu0 %v30
    %2170 = vmatprep.subr.mxu0 0.0
    %2171 = vmatpush2.msra.mxu0 0.0
    %2172 = vmatprep.subr.mxu0 0.0
    %2173 = vmatpush2.msra.mxu0 0.0
    %2174 = vmatprep.subr.mxu0 0.0
    %2175 = vmatpush2.msra.mxu0 0.0
    %2176 = vmatprep.subr.mxu0 0.0
    %2177 = vmatpush2.msra.mxu0 0.0
    %2178 = vmatprep.subr.mxu0 0.0
    %2179 = vmatpush2.msra.mxu0 0.0
    %2180 = vmatprep.subr.mxu0 0.0
    %2181 = vmatpush2.msra.mxu0 0.0
    %2182 = vmatprep.subr.mxu0 0.0
    %2183 = vmatpush2.msra.mxu0 0.0
    %2184 = vmatprep.subr.mxu0 0.0
    %2185 = vmatpush2.msra.mxu0 0.0
    %2186 = vmatprep.subr.mxu0 0.0
    %2187 = vmatpush2.msra.mxu0 0.0
    %2188 = vmatprep.subr.mxu0 0.0
    %2189 = vmatpush2.msra.mxu0 0.0
    %2190 = vmatprep.subr.mxu0 0.0
    %2191 = vmatpush2.msra.mxu0 0.0
    %2192 = vmatprep.subr.mxu0 0.0
    %2193 = vmatpush2.msra.mxu0 0.0
    %2194 = vmatprep.subr.mxu0 0.0
    %2195 = vmatpush2.msra.mxu0 0.0
    %2196 = vmatprep.subr.mxu0 0.0
    %2197 = vmatpush2.msra.mxu0 0.0
    %2198 = vmatprep.subr.mxu0 0.0
    %2199 = vmatpush2.msra.mxu0 0.0
    %2200 = vmatprep.subr.mxu0 0.0
    %2201 = vmatpush2.msra.mxu0 0.0
    %2202 = vmatprep.mubr.f32.mxu0 0.0
    %2203 = vmatmul.mubr.f32.gmra.mxu0 %v2136
    %v2204 = vpop.f32.mrf.mxu0
    %v2205 = vadd.f32 0.0, %v2204
    %v2206 = vpop.f32.mrf.mxu0
    %2207 = vdwg.mxu0
    %2208 = vmatprep.subr.mxu0 0.0
    %2209 = vmatpush1.msra.mxu0 0.0
    %2210 = vmatprep.subr.mxu0 0.0
    %2211 = vmatpush1.msra.mxu0 0.0
    %2212 = vmatprep.subr.mxu0 0.0
    %2213 = vmatpush1.msra.mxu0 0.0
    %2214 = vmatprep.subr.mxu0 0.0
    %2215 = vmatpush1.msra.mxu0 0.0
    %2216 = vmatprep.subr.mxu0 0.0
    %2217 = vmatpush1.msra.mxu0 0.0
    %2218 = vmatprep.subr.mxu0 0.0
    %2219 = vmatpush1.msra.mxu0 0.0
    %2220 = vmatprep.subr.mxu0 0.0
    %2221 = vmatpush1.msra.mxu0 0.0
    %2222 = vmatprep.subr.mxu0 0.0
    %2223 = vmatpush1.msra.mxu0 0.0
    %2224 = vmatprep.subr.mxu0 0.0
    %2225 = vmatpush1.msra.mxu0 0.0
    %2226 = vmatprep.subr.mxu0 0.0
    %2227 = vmatpush1.msra.mxu0 0.0
    %2228 = vmatprep.subr.mxu0 0.0
    %2229 = vmatpush1.msra.mxu0 0.0
    %2230 = vmatprep.subr.mxu0 0.0
    %2231 = vmatpush1.msra.mxu0 0.0
    %2232 = vmatprep.subr.mxu0 0.0
    %2233 = vmatpush1.msra.mxu0 0.0
    %2234 = vmatprep.subr.mxu0 0.0
    %2235 = vmatpush1.msra.mxu0 0.0
    %2236 = vmatprep.subr.mxu0 0.0
    %2237 = vmatpush1.msra.mxu0 %v34
    %2238 = vmatprep.subr.mxu0 0.0
    %2239 = vmatpush1.msra.mxu0 %v33
    %2240 = vmatprep.subr.mxu0 0.0
    %2241 = vmatpush2.msra.mxu0 0.0
    %2242 = vmatprep.subr.mxu0 0.0
    %2243 = vmatpush2.msra.mxu0 0.0
    %2244 = vmatprep.subr.mxu0 0.0
    %2245 = vmatpush2.msra.mxu0 0.0
    %2246 = vmatprep.subr.mxu0 0.0
    %2247 = vmatpush2.msra.mxu0 0.0
    %2248 = vmatprep.subr.mxu0 0.0
    %2249 = vmatpush2.msra.mxu0 0.0
    %2250 = vmatprep.subr.mxu0 0.0
    %2251 = vmatpush2.msra.mxu0 0.0
    %2252 = vmatprep.subr.mxu0 0.0
    %2253 = vmatpush2.msra.mxu0 0.0
    %2254 = vmatprep.subr.mxu0 0.0
    %2255 = vmatpush2.msra.mxu0 0.0
    %2256 = vmatprep.subr.mxu0 0.0
    %2257 = vmatpush2.msra.mxu0 0.0
    %2258 = vmatprep.subr.mxu0 0.0
    %2259 = vmatpush2.msra.mxu0 0.0
    %2260 = vmatprep.subr.mxu0 0.0
    %2261 = vmatpush2.msra.mxu0 0.0
    %2262 = vmatprep.subr.mxu0 0.0
    %2263 = vmatpush2.msra.mxu0 0.0
    %2264 = vmatprep.subr.mxu0 0.0
    %2265 = vmatpush2.msra.mxu0 0.0
    %2266 = vmatprep.subr.mxu0 0.0
    %2267 = vmatpush2.msra.mxu0 0.0
    %2268 = vmatprep.subr.mxu0 0.0
    %2269 = vmatpush2.msra.mxu0 0.0
    %2270 = vmatprep.subr.mxu0 0.0
    %2271 = vmatpush2.msra.mxu0 0.0
    %2272 = vmatprep.mubr.f32.mxu0 0.0
    %2273 = vmatmul.mubr.f32.gmra.mxu0 %v2136
    %v2274 = vpop.f32.mrf.mxu0
    %v2275 = vadd.f32 0.0, %v2274
    %v2276 = vpop.f32.mrf.mxu0
    %2277 = vdwg.mxu0
    %2278 = vmatprep.subr.mxu0 0.0
    %2279 = vmatpush1.msra.mxu0 0.0
    %2280 = vmatprep.subr.mxu0 0.0
    %2281 = vmatpush1.msra.mxu0 0.0
    %2282 = vmatprep.subr.mxu0 0.0
    %2283 = vmatpush1.msra.mxu0 0.0
    %2284 = vmatprep.subr.mxu0 0.0
    %2285 = vmatpush1.msra.mxu0 0.0
    %2286 = vmatprep.subr.mxu0 0.0
    %2287 = vmatpush1.msra.mxu0 0.0
    %2288 = vmatprep.subr.mxu0 0.0
    %2289 = vmatpush1.msra.mxu0 0.0
    %2290 = vmatprep.subr.mxu0 0.0
    %2291 = vmatpush1.msra.mxu0 0.0
    %2292 = vmatprep.subr.mxu0 0.0
    %2293 = vmatpush1.msra.mxu0 0.0
    %2294 = vmatprep.subr.mxu0 0.0
    %2295 = vmatpush1.msra.mxu0 0.0
    %2296 = vmatprep.subr.mxu0 0.0
    %2297 = vmatpush1.msra.mxu0 0.0
    %2298 = vmatprep.subr.mxu0 0.0
    %2299 = vmatpush1.msra.mxu0 0.0
    %2300 = vmatprep.subr.mxu0 0.0
    %2301 = vmatpush1.msra.mxu0 0.0
    %2302 = vmatprep.subr.mxu0 0.0
    %2303 = vmatpush1.msra.mxu0 0.0
    %2304 = vmatprep.subr.mxu0 0.0
    %2305 = vmatpush1.msra.mxu0 %v2275
    %2306 = vmatprep.subr.mxu0 0.0
    %2307 = vmatpush1.msra.mxu0 %v2205
    %2308 = vmatprep.subr.mxu0 0.0
    %2309 = vmatpush1.msra.mxu0 %v2134
    %2310 = vmatprep.subr.mxu0 0.0
    %2311 = vmatpush2.msra.mxu0 0.0
    %2312 = vmatprep.subr.mxu0 0.0
    %2313 = vmatpush2.msra.mxu0 0.0
    %2314 = vmatprep.subr.mxu0 0.0
    %2315 = vmatpush2.msra.mxu0 0.0
    %2316 = vmatprep.subr.mxu0 0.0
    %2317 = vmatpush2.msra.mxu0 0.0
    %2318 = vmatprep.subr.mxu0 0.0
    %2319 = vmatpush2.msra.mxu0 0.0
    %2320 = vmatprep.subr.mxu0 0.0
    %2321 = vmatpush2.msra.mxu0 0.0
    %2322 = vmatprep.subr.mxu0 0.0
    %2323 = vmatpush2.msra.mxu0 0.0
    %2324 = vmatprep.subr.mxu0 0.0
    %2325 = vmatpush2.msra.mxu0 0.0
    %2326 = vmatprep.subr.mxu0 0.0
    %2327 = vmatpush2.msra.mxu0 0.0
    %2328 = vmatprep.subr.mxu0 0.0
    %2329 = vmatpush2.msra.mxu0 0.0
    %2330 = vmatprep.subr.mxu0 0.0
    %2331 = vmatpush2.msra.mxu0 0.0
    %2332 = vmatprep.subr.mxu0 0.0
    %2333 = vmatpush2.msra.mxu0 0.0
    %2334 = vmatprep.subr.mxu0 0.0
    %2335 = vmatpush2.msra.mxu0 0.0
    %2336 = vmatprep.subr.mxu0 0.0
    %2337 = vmatpush2.msra.mxu0 0.0
    %2338 = vmatprep.subr.mxu0 0.0
    %2339 = vmatpush2.msra.mxu0 0.0
    %2340 = vmatprep.subr.mxu0 0.0
    %2341 = vmatpush2.msra.mxu0 0.0
    %2342 = vmatprep.mubr.f32.mxu0 0.0
    %2343 = vmatmul.mubr.f32.gmra.mxu0 %v480
    %v2344 = vpop.f32.mrf.mxu0
    %v2345 = vadd.f32 %v471, %v2344
    %v2346 = vpop.f32.mrf.mxu0
    %2347 = vmatprep.mubr.f32.mxu0 0.0
    %2348 = vmatmul.mubr.f32.gmra.mxu0 %v483
    %v2349 = vpop.f32.mrf.mxu0
    %v2350 = vadd.f32 %v476, %v2349
    %v2351 = vpop.f32.mrf.mxu0
    %2352 = vdwg.mxu0
    %v2353 = vxor.u32 %v2345, 2147483648
    %v2354 = vxor.u32 %v2350, 2147483648
    %v2355 = vmul.f32 %v2353, 1.442695
    %v2356 = vpow.pop %v2355
    %v2357 = vmul.f32 %v2354, 1.442695
    %v2358 = vpow.pop %v2357
    %v2359 = vadd.f32 %v2356, 1.0
    %v2360 = vadd.f32 %v2358, 1.0
    %v2361 = vrcp.pop %v2359
    %v2362 = vmul.f32 1.0, %v2361
    %v2363 = vrcp.pop %v2360
    %v2364 = vmul.f32 1.0, %v2363
    %v2365 = vtanh.pop %v2350
    %v2366 = vmul.f32 %v1775, %v2362
    %v2368 = vrot.slane %v2365, 4
    %v2370 = vmul.f32 %v2362, %v2368
    %v2372 = vrot.slane %v2370, 4
    %v2374 = vadd.f32 %v2366, %v2372
    %v2375 = vtanh.pop %v2374
    %v2377 = vrot.slane %v2364, 4
    %v2379 = vmul.f32 %v2375, %v2377
    %s2380 = scalar_lea.vmem %s6, 48
    %v2381 = vld [vmem:[%s2380] sm:$0xff]
    %v2382 = vld [vmem:[%s2380 + $0x8] sm:$0xf]
    %v2384 = vrot.slane %v2379, 4
    %v2386 = vsel %vm1103, %v2381, 0
    %v2389 = vsel %vm1103, %v2382, 0
    %v2391 = vsel %vm198, %v2384, 0
    %2393 = vmatprep.subr.mxu0 0.0
    %2394 = vmatpush1.msra.mxu0 0.0
    %2395 = vmatprep.subr.mxu0 0.0
    %2396 = vmatpush1.msra.mxu0 0.0
    %2397 = vmatprep.subr.mxu0 0.0
    %2398 = vmatpush1.msra.mxu0 0.0
    %2399 = vmatprep.subr.mxu0 0.0
    %2400 = vmatpush1.msra.mxu0 0.0
    %2401 = vmatprep.subr.mxu0 0.0
    %2402 = vmatpush1.msra.mxu0 0.0
    %2403 = vmatprep.subr.mxu0 0.0
    %2404 = vmatpush1.msra.mxu0 0.0
    %2405 = vmatprep.subr.mxu0 0.0
    %2406 = vmatpush1.msra.mxu0 0.0
    %2407 = vmatprep.subr.mxu0 0.0
    %2408 = vmatpush1.msra.mxu0 0.0
    %2409 = vmatprep.subr.mxu0 0.0
    %2410 = vmatpush1.msra.mxu0 0.0
    %2411 = vmatprep.subr.mxu0 0.0
    %2412 = vmatpush1.msra.mxu0 0.0
    %2413 = vmatprep.subr.mxu0 0.0
    %2414 = vmatpush1.msra.mxu0 0.0
    %2415 = vmatprep.subr.mxu0 0.0
    %2416 = vmatpush1.msra.mxu0 0.0
    %2417 = vmatprep.subr.mxu0 0.0
    %2418 = vmatpush1.msra.mxu0 0.0
    %2419 = vmatprep.subr.mxu0 0.0
    %2420 = vmatpush1.msra.mxu0 0.0
    %2421 = vmatprep.subr.mxu0 0.0
    %2422 = vmatpush1.msra.mxu0 0.0
    %2423 = vmatprep.subr.mxu0 0.0
    %2424 = vmatpush1.msra.mxu0 %v2391
    %2425 = vmatprep.subr.mxu0 0.0
    %2426 = vmatpush2.msra.mxu0 0.0
    %2427 = vmatprep.subr.mxu0 0.0
    %2428 = vmatpush2.msra.mxu0 0.0
    %2429 = vmatprep.subr.mxu0 0.0
    %2430 = vmatpush2.msra.mxu0 0.0
    %2431 = vmatprep.subr.mxu0 0.0
    %2432 = vmatpush2.msra.mxu0 0.0
    %2433 = vmatprep.subr.mxu0 0.0
    %2434 = vmatpush2.msra.mxu0 0.0
    %2435 = vmatprep.subr.mxu0 0.0
    %2436 = vmatpush2.msra.mxu0 0.0
    %2437 = vmatprep.subr.mxu0 0.0
    %2438 = vmatpush2.msra.mxu0 0.0
    %2439 = vmatprep.subr.mxu0 0.0
    %2440 = vmatpush2.msra.mxu0 0.0
    %2441 = vmatprep.subr.mxu0 0.0
    %2442 = vmatpush2.msra.mxu0 0.0
    %2443 = vmatprep.subr.mxu0 0.0
    %2444 = vmatpush2.msra.mxu0 0.0
    %2445 = vmatprep.subr.mxu0 0.0
    %2446 = vmatpush2.msra.mxu0 0.0
    %2447 = vmatprep.subr.mxu0 0.0
    %2448 = vmatpush2.msra.mxu0 0.0
    %2449 = vmatprep.subr.mxu0 0.0
    %2450 = vmatpush2.msra.mxu0 0.0
    %2451 = vmatprep.subr.mxu0 0.0
    %2452 = vmatpush2.msra.mxu0 0.0
    %2453 = vmatprep.subr.mxu0 0.0
    %2454 = vmatpush2.msra.mxu0 0.0
    %2455 = vmatprep.subr.mxu0 0.0
    %2456 = vmatpush2.msra.mxu0 0.0
    %2457 = vmatprep.mubr.f32.mxu0 0.0
    %2458 = vmatmul.mubr.f32.gmra.mxu0 %v2386
    %v2459 = vpop.f32.mrf.mxu0
    %v2460 = vadd.f32 0.0, %v2459
    %v2461 = vpop.f32.mrf.mxu0
    %2462 = vmatprep.mubr.f32.mxu0 0.0
    %2463 = vmatmul.mubr.f32.gmra.mxu0 %v2389
    %v2464 = vpop.f32.mrf.mxu0
    %v2465 = vadd.f32 0.0, %v2464
    %v2466 = vpop.f32.mrf.mxu0
    %2467 = vdwg.mxu0
    %v2468 = vadd.f32 %v1869, %v2460
    %v2469 = vadd.f32 %v1870, %v2465
    %s2470 = scalar_lea.vmem %s0, 8
    %v2471 = vld [vmem:[%s2470] sm:$0x3]
    %v2472 = vrot.slane %v2130, 2
    %v2474 = vsel %vm44, %v2471, %v2472
    %v2476 = vsel %vm46, %v2474, 0
    %2478 = vmatprep.subr.mxu0 0.0
    %2479 = vmatpush1.msra.mxu0 0.0
    %2480 = vmatprep.subr.mxu0 0.0
    %2481 = vmatpush1.msra.mxu0 0.0
    %2482 = vmatprep.subr.mxu0 0.0
    %2483 = vmatpush1.msra.mxu0 0.0
    %2484 = vmatprep.subr.mxu0 0.0
    %2485 = vmatpush1.msra.mxu0 0.0
    %2486 = vmatprep.subr.mxu0 0.0
    %2487 = vmatpush1.msra.mxu0 0.0
    %2488 = vmatprep.subr.mxu0 0.0
    %2489 = vmatpush1.msra.mxu0 0.0
    %2490 = vmatprep.subr.mxu0 0.0
    %2491 = vmatpush1.msra.mxu0 0.0
    %2492 = vmatprep.subr.mxu0 0.0
    %2493 = vmatpush1.msra.mxu0 0.0
    %2494 = vmatprep.subr.mxu0 0.0
    %2495 = vmatpush1.msra.mxu0 0.0
    %2496 = vmatprep.subr.mxu0 0.0
    %2497 = vmatpush1.msra.mxu0 0.0
    %2498 = vmatprep.subr.mxu0 0.0
    %2499 = vmatpush1.msra.mxu0 0.0
    %2500 = vmatprep.subr.mxu0 0.0
    %2501 = vmatpush1.msra.mxu0 0.0
    %2502 = vmatprep.subr.mxu0 0.0
    %2503 = vmatpush1.msra.mxu0 0.0
    %2504 = vmatprep.subr.mxu0 0.0
    %2505 = vmatpush1.msra.mxu0 0.0
    %2506 = vmatprep.subr.mxu0 0.0
    %2507 = vmatpush1.msra.mxu0 %v31
    %2508 = vmatprep.subr.mxu0 0.0
    %2509 = vmatpush1.msra.mxu0 %v30
    %2510 = vmatprep.subr.mxu0 0.0
    %2511 = vmatpush2.msra.mxu0 0.0
    %2512 = vmatprep.subr.mxu0 0.0
    %2513 = vmatpush2.msra.mxu0 0.0
    %2514 = vmatprep.subr.mxu0 0.0
    %2515 = vmatpush2.msra.mxu0 0.0
    %2516 = vmatprep.subr.mxu0 0.0
    %2517 = vmatpush2.msra.mxu0 0.0
    %2518 = vmatprep.subr.mxu0 0.0
    %2519 = vmatpush2.msra.mxu0 0.0
    %2520 = vmatprep.subr.mxu0 0.0
    %2521 = vmatpush2.msra.mxu0 0.0
    %2522 = vmatprep.subr.mxu0 0.0
    %2523 = vmatpush2.msra.mxu0 0.0
    %2524 = vmatprep.subr.mxu0 0.0
    %2525 = vmatpush2.msra.mxu0 0.0
    %2526 = vmatprep.subr.mxu0 0.0
    %2527 = vmatpush2.msra.mxu0 0.0
    %2528 = vmatprep.subr.mxu0 0.0
    %2529 = vmatpush2.msra.mxu0 0.0
    %2530 = vmatprep.subr.mxu0 0.0
    %2531 = vmatpush2.msra.mxu0 0.0
    %2532 = vmatprep.subr.mxu0 0.0
    %2533 = vmatpush2.msra.mxu0 0.0
    %2534 = vmatprep.subr.mxu0 0.0
    %2535 = vmatpush2.msra.mxu0 0.0
    %2536 = vmatprep.subr.mxu0 0.0
    %2537 = vmatpush2.msra.mxu0 0.0
    %2538 = vmatprep.subr.mxu0 0.0
    %2539 = vmatpush2.msra.mxu0 0.0
    %2540 = vmatprep.subr.mxu0 0.0
    %2541 = vmatpush2.msra.mxu0 0.0
    %2542 = vmatprep.mubr.f32.mxu0 0.0
    %2543 = vmatmul.mubr.f32.gmra.mxu0 %v2476
    %v2544 = vpop.f32.mrf.mxu0
    %v2545 = vadd.f32 0.0, %v2544
    %v2546 = vpop.f32.mrf.mxu0
    %2547 = vdwg.mxu0
    %2548 = vmatprep.subr.mxu0 0.0
    %2549 = vmatpush1.msra.mxu0 0.0
    %2550 = vmatprep.subr.mxu0 0.0
    %2551 = vmatpush1.msra.mxu0 0.0
    %2552 = vmatprep.subr.mxu0 0.0
    %2553 = vmatpush1.msra.mxu0 0.0
    %2554 = vmatprep.subr.mxu0 0.0
    %2555 = vmatpush1.msra.mxu0 0.0
    %2556 = vmatprep.subr.mxu0 0.0
    %2557 = vmatpush1.msra.mxu0 0.0
    %2558 = vmatprep.subr.mxu0 0.0
    %2559 = vmatpush1.msra.mxu0 0.0
    %2560 = vmatprep.subr.mxu0 0.0
    %2561 = vmatpush1.msra.mxu0 0.0
    %2562 = vmatprep.subr.mxu0 0.0
    %2563 = vmatpush1.msra.mxu0 0.0
    %2564 = vmatprep.subr.mxu0 0.0
    %2565 = vmatpush1.msra.mxu0 0.0
    %2566 = vmatprep.subr.mxu0 0.0
    %2567 = vmatpush1.msra.mxu0 0.0
    %2568 = vmatprep.subr.mxu0 0.0
    %2569 = vmatpush1.msra.mxu0 0.0
    %2570 = vmatprep.subr.mxu0 0.0
    %2571 = vmatpush1.msra.mxu0 0.0
    %2572 = vmatprep.subr.mxu0 0.0
    %2573 = vmatpush1.msra.mxu0 0.0
    %2574 = vmatprep.subr.mxu0 0.0
    %2575 = vmatpush1.msra.mxu0 0.0
    %2576 = vmatprep.subr.mxu0 0.0
    %2577 = vmatpush1.msra.mxu0 %v34
    %2578 = vmatprep.subr.mxu0 0.0
    %2579 = vmatpush1.msra.mxu0 %v33
    %2580 = vmatprep.subr.mxu0 0.0
    %2581 = vmatpush2.msra.mxu0 0.0
    %2582 = vmatprep.subr.mxu0 0.0
    %2583 = vmatpush2.msra.mxu0 0.0
    %2584 = vmatprep.subr.mxu0 0.0
    %2585 = vmatpush2.msra.mxu0 0.0
    %2586 = vmatprep.subr.mxu0 0.0
    %2587 = vmatpush2.msra.mxu0 0.0
    %2588 = vmatprep.subr.mxu0 0.0
    %2589 = vmatpush2.msra.mxu0 0.0
    %2590 = vmatprep.subr.mxu0 0.0
    %2591 = vmatpush2.msra.mxu0 0.0
    %2592 = vmatprep.subr.mxu0 0.0
    %2593 = vmatpush2.msra.mxu0 0.0
    %2594 = vmatprep.subr.mxu0 0.0
    %2595 = vmatpush2.msra.mxu0 0.0
    %2596 = vmatprep.subr.mxu0 0.0
    %2597 = vmatpush2.msra.mxu0 0.0
    %2598 = vmatprep.subr.mxu0 0.0
    %2599 = vmatpush2.msra.mxu0 0.0
    %2600 = vmatprep.subr.mxu0 0.0
    %2601 = vmatpush2.msra.mxu0 0.0
    %2602 = vmatprep.subr.mxu0 0.0
    %2603 = vmatpush2.msra.mxu0 0.0
    %2604 = vmatprep.subr.mxu0 0.0
    %2605 = vmatpush2.msra.mxu0 0.0
    %2606 = vmatprep.subr.mxu0 0.0
    %2607 = vmatpush2.msra.mxu0 0.0
    %2608 = vmatprep.subr.mxu0 0.0
    %2609 = vmatpush2.msra.mxu0 0.0
    %2610 = vmatprep.subr.mxu0 0.0
    %2611 = vmatpush2.msra.mxu0 0.0
    %2612 = vmatprep.mubr.f32.mxu0 0.0
    %2613 = vmatmul.mubr.f32.gmra.mxu0 %v2476
    %v2614 = vpop.f32.mrf.mxu0
    %v2615 = vadd.f32 0.0, %v2614
    %v2616 = vpop.f32.mrf.mxu0
    %2617 = vdwg.mxu0
    %v2619 = vrot.slane %v2545, 2
    %v2622 = vrot.slane %v2615, 4
    %v2624 = vsel %vm196, %v2474, %v2619
    %v2625 = vsel %vm198, %v2619, %v2622
    %v2626 = vsel %vm44, %v2622, 0
    %2628 = vmatprep.subr.mxu0 0.0
    %2629 = vmatpush1.msra.mxu0 0.0
    %2630 = vmatprep.subr.mxu0 0.0
    %2631 = vmatpush1.msra.mxu0 0.0
    %2632 = vmatprep.subr.mxu0 0.0
    %2633 = vmatpush1.msra.mxu0 0.0
    %2634 = vmatprep.subr.mxu0 0.0
    %2635 = vmatpush1.msra.mxu0 0.0
    %2636 = vmatprep.subr.mxu0 0.0
    %2637 = vmatpush1.msra.mxu0 0.0
    %2638 = vmatprep.subr.mxu0 0.0
    %2639 = vmatpush1.msra.mxu0 0.0
    %2640 = vmatprep.subr.mxu0 0.0
    %2641 = vmatpush1.msra.mxu0 0.0
    %2642 = vmatprep.subr.mxu0 0.0
    %2643 = vmatpush1.msra.mxu0 0.0
    %2644 = vmatprep.subr.mxu0 0.0
    %2645 = vmatpush1.msra.mxu0 0.0
    %2646 = vmatprep.subr.mxu0 0.0
    %2647 = vmatpush1.msra.mxu0 0.0
    %2648 = vmatprep.subr.mxu0 0.0
    %2649 = vmatpush1.msra.mxu0 0.0
    %2650 = vmatprep.subr.mxu0 0.0
    %2651 = vmatpush1.msra.mxu0 0.0
    %2652 = vmatprep.subr.mxu0 0.0
    %2653 = vmatpush1.msra.mxu0 0.0
    %2654 = vmatprep.subr.mxu0 0.0
    %2655 = vmatpush1.msra.mxu0 %v2626
    %2656 = vmatprep.subr.mxu0 0.0
    %2657 = vmatpush1.msra.mxu0 %v2625
    %2658 = vmatprep.subr.mxu0 0.0
    %2659 = vmatpush1.msra.mxu0 %v2624
    %2660 = vmatprep.subr.mxu0 0.0
    %2661 = vmatpush2.msra.mxu0 0.0
    %2662 = vmatprep.subr.mxu0 0.0
    %2663 = vmatpush2.msra.mxu0 0.0
    %2664 = vmatprep.subr.mxu0 0.0
    %2665 = vmatpush2.msra.mxu0 0.0
    %2666 = vmatprep.subr.mxu0 0.0
    %2667 = vmatpush2.msra.mxu0 0.0
    %2668 = vmatprep.subr.mxu0 0.0
    %2669 = vmatpush2.msra.mxu0 0.0
    %2670 = vmatprep.subr.mxu0 0.0
    %2671 = vmatpush2.msra.mxu0 0.0
    %2672 = vmatprep.subr.mxu0 0.0
    %2673 = vmatpush2.msra.mxu0 0.0
    %2674 = vmatprep.subr.mxu0 0.0
    %2675 = vmatpush2.msra.mxu0 0.0
    %2676 = vmatprep.subr.mxu0 0.0
    %2677 = vmatpush2.msra.mxu0 0.0
    %2678 = vmatprep.subr.mxu0 0.0
    %2679 = vmatpush2.msra.mxu0 0.0
    %2680 = vmatprep.subr.mxu0 0.0
    %2681 = vmatpush2.msra.mxu0 0.0
    %2682 = vmatprep.subr.mxu0 0.0
    %2683 = vmatpush2.msra.mxu0 0.0
    %2684 = vmatprep.subr.mxu0 0.0
    %2685 = vmatpush2.msra.mxu0 0.0
    %2686 = vmatprep.subr.mxu0 0.0
    %2687 = vmatpush2.msra.mxu0 0.0
    %2688 = vmatprep.subr.mxu0 0.0
    %2689 = vmatpush2.msra.mxu0 0.0
    %2690 = vmatprep.subr.mxu0 0.0
    %2691 = vmatpush2.msra.mxu0 0.0
    %2692 = vmatprep.mubr.f32.mxu0 0.0
    %2693 = vmatmul.mubr.f32.gmra.mxu0 %v212
    %v2694 = vpop.f32.mrf.mxu0
    %v2695 = vadd.f32 %v203, %v2694
    %v2696 = vpop.f32.mrf.mxu0
    %2697 = vmatprep.mubr.f32.mxu0 0.0
    %2698 = vmatmul.mubr.f32.gmra.mxu0 %v215
    %v2699 = vpop.f32.mrf.mxu0
    %v2700 = vadd.f32 %v208, %v2699
    %v2701 = vpop.f32.mrf.mxu0
    %2702 = vdwg.mxu0
    %v2703 = vxor.u32 %v2695, 2147483648
    %v2704 = vxor.u32 %v2700, 2147483648
    %v2705 = vmul.f32 %v2703, 1.442695
    %v2706 = vpow.pop %v2705
    %v2707 = vmul.f32 %v2704, 1.442695
    %v2708 = vpow.pop %v2707
    %v2709 = vadd.f32 %v2706, 1.0
    %v2710 = vadd.f32 %v2708, 1.0
    %v2711 = vrcp.pop %v2709
    %v2712 = vmul.f32 1.0, %v2711
    %v2713 = vrcp.pop %v2710
    %v2714 = vmul.f32 1.0, %v2713
    %v2715 = vtanh.pop %v2700
    %v2716 = vmul.f32 %v2125, %v2712
    %v2718 = vrot.slane %v2715, 4
    %v2720 = vmul.f32 %v2712, %v2718
    %v2722 = vrot.slane %v2720, 4
    %v2724 = vadd.f32 %v2716, %v2722
    %v2725 = vtanh.pop %v2724
    %v2727 = vrot.slane %v2714, 4
    %v2729 = vmul.f32 %v2725, %v2727
    %v2731 = vrot.slane %v2729, 4
    %v2733 = vsel %vm198, %v2731, %v2379
    %v2735 = vsel %vm46, %v2733, 0
    %2737 = vmatprep.subr.mxu0 0.0
    %2738 = vmatpush1.msra.mxu0 0.0
    %2739 = vmatprep.subr.mxu0 0.0
    %2740 = vmatpush1.msra.mxu0 0.0
    %2741 = vmatprep.subr.mxu0 0.0
    %2742 = vmatpush1.msra.mxu0 0.0
    %2743 = vmatprep.subr.mxu0 0.0
    %2744 = vmatpush1.msra.mxu0 0.0
    %2745 = vmatprep.subr.mxu0 0.0
    %2746 = vmatpush1.msra.mxu0 0.0
    %2747 = vmatprep.subr.mxu0 0.0
    %2748 = vmatpush1.msra.mxu0 0.0
    %2749 = vmatprep.subr.mxu0 0.0
    %2750 = vmatpush1.msra.mxu0 0.0
    %2751 = vmatprep.subr.mxu0 0.0
    %2752 = vmatpush1.msra.mxu0 0.0
    %2753 = vmatprep.subr.mxu0 0.0
    %2754 = vmatpush1.msra.mxu0 0.0
    %2755 = vmatprep.subr.mxu0 0.0
    %2756 = vmatpush1.msra.mxu0 0.0
    %2757 = vmatprep.subr.mxu0 0.0
    %2758 = vmatpush1.msra.mxu0 0.0
    %2759 = vmatprep.subr.mxu0 0.0
    %2760 = vmatpush1.msra.mxu0 0.0
    %2761 = vmatprep.subr.mxu0 0.0
    %2762 = vmatpush1.msra.mxu0 0.0
    %2763 = vmatprep.subr.mxu0 0.0
    %2764 = vmatpush1.msra.mxu0 0.0
    %2765 = vmatprep.subr.mxu0 0.0
    %2766 = vmatpush1.msra.mxu0 %v31
    %2767 = vmatprep.subr.mxu0 0.0
    %2768 = vmatpush1.msra.mxu0 %v30
    %2769 = vmatprep.subr.mxu0 0.0
    %2770 = vmatpush2.msra.mxu0 0.0
    %2771 = vmatprep.subr.mxu0 0.0
    %2772 = vmatpush2.msra.mxu0 0.0
    %2773 = vmatprep.subr.mxu0 0.0
    %2774 = vmatpush2.msra.mxu0 0.0
    %2775 = vmatprep.subr.mxu0 0.0
    %2776 = vmatpush2.msra.mxu0 0.0
    %2777 = vmatprep.subr.mxu0 0.0
    %2778 = vmatpush2.msra.mxu0 0.0
    %2779 = vmatprep.subr.mxu0 0.0
    %2780 = vmatpush2.msra.mxu0 0.0
    %2781 = vmatprep.subr.mxu0 0.0
    %2782 = vmatpush2.msra.mxu0 0.0
    %2783 = vmatprep.subr.mxu0 0.0
    %2784 = vmatpush2.msra.mxu0 0.0
    %2785 = vmatprep.subr.mxu0 0.0
    %2786 = vmatpush2.msra.mxu0 0.0
    %2787 = vmatprep.subr.mxu0 0.0
    %2788 = vmatpush2.msra.mxu0 0.0
    %2789 = vmatprep.subr.mxu0 0.0
    %2790 = vmatpush2.msra.mxu0 0.0
    %2791 = vmatprep.subr.mxu0 0.0
    %2792 = vmatpush2.msra.mxu0 0.0
    %2793 = vmatprep.subr.mxu0 0.0
    %2794 = vmatpush2.msra.mxu0 0.0
    %2795 = vmatprep.subr.mxu0 0.0
    %2796 = vmatpush2.msra.mxu0 0.0
    %2797 = vmatprep.subr.mxu0 0.0
    %2798 = vmatpush2.msra.mxu0 0.0
    %2799 = vmatprep.subr.mxu0 0.0
    %2800 = vmatpush2.msra.mxu0 0.0
    %2801 = vmatprep.mubr.f32.mxu0 0.0
    %2802 = vmatmul.mubr.f32.gmra.mxu0 %v2735
    %v2803 = vpop.f32.mrf.mxu0
    %v2804 = vadd.f32 0.0, %v2803
    %v2805 = vpop.f32.mrf.mxu0
    %2806 = vdwg.mxu0
    %2807 = vmatprep.subr.mxu0 0.0
    %2808 = vmatpush1.msra.mxu0 0.0
    %2809 = vmatprep.subr.mxu0 0.0
    %2810 = vmatpush1.msra.mxu0 0.0
    %2811 = vmatprep.subr.mxu0 0.0
    %2812 = vmatpush1.msra.mxu0 0.0
    %2813 = vmatprep.subr.mxu0 0.0
    %2814 = vmatpush1.msra.mxu0 0.0
    %2815 = vmatprep.subr.mxu0 0.0
    %2816 = vmatpush1.msra.mxu0 0.0
    %2817 = vmatprep.subr.mxu0 0.0
    %2818 = vmatpush1.msra.mxu0 0.0
    %2819 = vmatprep.subr.mxu0 0.0
    %2820 = vmatpush1.msra.mxu0 0.0
    %2821 = vmatprep.subr.mxu0 0.0
    %2822 = vmatpush1.msra.mxu0 0.0
    %2823 = vmatprep.subr.mxu0 0.0
    %2824 = vmatpush1.msra.mxu0 0.0
    %2825 = vmatprep.subr.mxu0 0.0
    %2826 = vmatpush1.msra.mxu0 0.0
    %2827 = vmatprep.subr.mxu0 0.0
    %2828 = vmatpush1.msra.mxu0 0.0
    %2829 = vmatprep.subr.mxu0 0.0
    %2830 = vmatpush1.msra.mxu0 0.0
    %2831 = vmatprep.subr.mxu0 0.0
    %2832 = vmatpush1.msra.mxu0 0.0
    %2833 = vmatprep.subr.mxu0 0.0
    %2834 = vmatpush1.msra.mxu0 0.0
    %2835 = vmatprep.subr.mxu0 0.0
    %2836 = vmatpush1.msra.mxu0 %v34
    %2837 = vmatprep.subr.mxu0 0.0
    %2838 = vmatpush1.msra.mxu0 %v33
    %2839 = vmatprep.subr.mxu0 0.0
    %2840 = vmatpush2.msra.mxu0 0.0
    %2841 = vmatprep.subr.mxu0 0.0
    %2842 = vmatpush2.msra.mxu0 0.0
    %2843 = vmatprep.subr.mxu0 0.0
    %2844 = vmatpush2.msra.mxu0 0.0
    %2845 = vmatprep.subr.mxu0 0.0
    %2846 = vmatpush2.msra.mxu0 0.0
    %2847 = vmatprep.subr.mxu0 0.0
    %2848 = vmatpush2.msra.mxu0 0.0
    %2849 = vmatprep.subr.mxu0 0.0
    %2850 = vmatpush2.msra.mxu0 0.0
    %2851 = vmatprep.subr.mxu0 0.0
    %2852 = vmatpush2.msra.mxu0 0.0
    %2853 = vmatprep.subr.mxu0 0.0
    %2854 = vmatpush2.msra.mxu0 0.0
    %2855 = vmatprep.subr.mxu0 0.0
    %2856 = vmatpush2.msra.mxu0 0.0
    %2857 = vmatprep.subr.mxu0 0.0
    %2858 = vmatpush2.msra.mxu0 0.0
    %2859 = vmatprep.subr.mxu0 0.0
    %2860 = vmatpush2.msra.mxu0 0.0
    %2861 = vmatprep.subr.mxu0 0.0
    %2862 = vmatpush2.msra.mxu0 0.0
    %2863 = vmatprep.subr.mxu0 0.0
    %2864 = vmatpush2.msra.mxu0 0.0
    %2865 = vmatprep.subr.mxu0 0.0
    %2866 = vmatpush2.msra.mxu0 0.0
    %2867 = vmatprep.subr.mxu0 0.0
    %2868 = vmatpush2.msra.mxu0 0.0
    %2869 = vmatprep.subr.mxu0 0.0
    %2870 = vmatpush2.msra.mxu0 0.0
    %2871 = vmatprep.mubr.f32.mxu0 0.0
    %2872 = vmatmul.mubr.f32.gmra.mxu0 %v2735
    %v2873 = vpop.f32.mrf.mxu0
    %v2874 = vadd.f32 0.0, %v2873
    %v2875 = vpop.f32.mrf.mxu0
    %2876 = vdwg.mxu0
    %2877 = vmatprep.subr.mxu0 0.0
    %2878 = vmatpush1.msra.mxu0 0.0
    %2879 = vmatprep.subr.mxu0 0.0
    %2880 = vmatpush1.msra.mxu0 0.0
    %2881 = vmatprep.subr.mxu0 0.0
    %2882 = vmatpush1.msra.mxu0 0.0
    %2883 = vmatprep.subr.mxu0 0.0
    %2884 = vmatpush1.msra.mxu0 0.0
    %2885 = vmatprep.subr.mxu0 0.0
    %2886 = vmatpush1.msra.mxu0 0.0
    %2887 = vmatprep.subr.mxu0 0.0
    %2888 = vmatpush1.msra.mxu0 0.0
    %2889 = vmatprep.subr.mxu0 0.0
    %2890 = vmatpush1.msra.mxu0 0.0
    %2891 = vmatprep.subr.mxu0 0.0
    %2892 = vmatpush1.msra.mxu0 0.0
    %2893 = vmatprep.subr.mxu0 0.0
    %2894 = vmatpush1.msra.mxu0 0.0
    %2895 = vmatprep.subr.mxu0 0.0
    %2896 = vmatpush1.msra.mxu0 0.0
    %2897 = vmatprep.subr.mxu0 0.0
    %2898 = vmatpush1.msra.mxu0 0.0
    %2899 = vmatprep.subr.mxu0 0.0
    %2900 = vmatpush1.msra.mxu0 0.0
    %2901 = vmatprep.subr.mxu0 0.0
    %2902 = vmatpush1.msra.mxu0 0.0
    %2903 = vmatprep.subr.mxu0 0.0
    %2904 = vmatpush1.msra.mxu0 %v2874
    %2905 = vmatprep.subr.mxu0 0.0
    %2906 = vmatpush1.msra.mxu0 %v2804
    %2907 = vmatprep.subr.mxu0 0.0
    %2908 = vmatpush1.msra.mxu0 %v2733
    %2909 = vmatprep.subr.mxu0 0.0
    %2910 = vmatpush2.msra.mxu0 0.0
    %2911 = vmatprep.subr.mxu0 0.0
    %2912 = vmatpush2.msra.mxu0 0.0
    %2913 = vmatprep.subr.mxu0 0.0
    %2914 = vmatpush2.msra.mxu0 0.0
    %2915 = vmatprep.subr.mxu0 0.0
    %2916 = vmatpush2.msra.mxu0 0.0
    %2917 = vmatprep.subr.mxu0 0.0
    %2918 = vmatpush2.msra.mxu0 0.0
    %2919 = vmatprep.subr.mxu0 0.0
    %2920 = vmatpush2.msra.mxu0 0.0
    %2921 = vmatprep.subr.mxu0 0.0
    %2922 = vmatpush2.msra.mxu0 0.0
    %2923 = vmatprep.subr.mxu0 0.0
    %2924 = vmatpush2.msra.mxu0 0.0
    %2925 = vmatprep.subr.mxu0 0.0
    %2926 = vmatpush2.msra.mxu0 0.0
    %2927 = vmatprep.subr.mxu0 0.0
    %2928 = vmatpush2.msra.mxu0 0.0
    %2929 = vmatprep.subr.mxu0 0.0
    %2930 = vmatpush2.msra.mxu0 0.0
    %2931 = vmatprep.subr.mxu0 0.0
    %2932 = vmatpush2.msra.mxu0 0.0
    %2933 = vmatprep.subr.mxu0 0.0
    %2934 = vmatpush2.msra.mxu0 0.0
    %2935 = vmatprep.subr.mxu0 0.0
    %2936 = vmatpush2.msra.mxu0 0.0
    %2937 = vmatprep.subr.mxu0 0.0
    %2938 = vmatpush2.msra.mxu0 0.0
    %2939 = vmatprep.subr.mxu0 0.0
    %2940 = vmatpush2.msra.mxu0 0.0
    %2941 = vmatprep.mubr.f32.mxu0 0.0
    %2942 = vmatmul.mubr.f32.gmra.mxu0 %v480
    %v2943 = vpop.f32.mrf.mxu0
    %v2944 = vadd.f32 %v471, %v2943
    %v2945 = vpop.f32.mrf.mxu0
    %2946 = vmatprep.mubr.f32.mxu0 0.0
    %2947 = vmatmul.mubr.f32.gmra.mxu0 %v483
    %v2948 = vpop.f32.mrf.mxu0
    %v2949 = vadd.f32 %v476, %v2948
    %v2950 = vpop.f32.mrf.mxu0
    %2951 = vdwg.mxu0
    %v2952 = vxor.u32 %v2944, 2147483648
    %v2953 = vxor.u32 %v2949, 2147483648
    %v2954 = vmul.f32 %v2952, 1.442695
    %v2955 = vpow.pop %v2954
    %v2956 = vmul.f32 %v2953, 1.442695
    %v2957 = vpow.pop %v2956
    %v2958 = vadd.f32 %v2955, 1.0
    %v2959 = vadd.f32 %v2957, 1.0
    %v2960 = vrcp.pop %v2958
    %v2961 = vmul.f32 1.0, %v2960
    %v2962 = vrcp.pop %v2959
    %v2963 = vmul.f32 1.0, %v2962
    %v2964 = vtanh.pop %v2949
    %v2965 = vmul.f32 %v2374, %v2961
    %v2967 = vrot.slane %v2964, 4
    %v2969 = vmul.f32 %v2961, %v2967
    %v2971 = vrot.slane %v2969, 4
    %v2973 = vadd.f32 %v2965, %v2971
    %v2974 = vtanh.pop %v2973
    %v2976 = vrot.slane %v2963, 4
    %v2978 = vmul.f32 %v2974, %v2976
    %s2979 = scalar_lea.vmem %s6, 64
    %v2980 = vld [vmem:[%s2979] sm:$0xff]
    %v2981 = vld [vmem:[%s2979 + $0x8] sm:$0xf]
    %v2983 = vrot.slane %v2978, 4
    %v2985 = vsel %vm1103, %v2980, 0
    %v2988 = vsel %vm1103, %v2981, 0
    %v2990 = vsel %vm198, %v2983, 0
    %2992 = vmatprep.subr.mxu0 0.0
    %2993 = vmatpush1.msra.mxu0 0.0
    %2994 = vmatprep.subr.mxu0 0.0
    %2995 = vmatpush1.msra.mxu0 0.0
    %2996 = vmatprep.subr.mxu0 0.0
    %2997 = vmatpush1.msra.mxu0 0.0
    %2998 = vmatprep.subr.mxu0 0.0
    %2999 = vmatpush1.msra.mxu0 0.0
    %3000 = vmatprep.subr.mxu0 0.0
    %3001 = vmatpush1.msra.mxu0 0.0
    %3002 = vmatprep.subr.mxu0 0.0
    %3003 = vmatpush1.msra.mxu0 0.0
    %3004 = vmatprep.subr.mxu0 0.0
    %3005 = vmatpush1.msra.mxu0 0.0
    %3006 = vmatprep.subr.mxu0 0.0
    %3007 = vmatpush1.msra.mxu0 0.0
    %3008 = vmatprep.subr.mxu0 0.0
    %3009 = vmatpush1.msra.mxu0 0.0
    %3010 = vmatprep.subr.mxu0 0.0
    %3011 = vmatpush1.msra.mxu0 0.0
    %3012 = vmatprep.subr.mxu0 0.0
    %3013 = vmatpush1.msra.mxu0 0.0
    %3014 = vmatprep.subr.mxu0 0.0
    %3015 = vmatpush1.msra.mxu0 0.0
    %3016 = vmatprep.subr.mxu0 0.0
    %3017 = vmatpush1.msra.mxu0 0.0
    %3018 = vmatprep.subr.mxu0 0.0
    %3019 = vmatpush1.msra.mxu0 0.0
    %3020 = vmatprep.subr.mxu0 0.0
    %3021 = vmatpush1.msra.mxu0 0.0
    %3022 = vmatprep.subr.mxu0 0.0
    %3023 = vmatpush1.msra.mxu0 %v2990
    %3024 = vmatprep.subr.mxu0 0.0
    %3025 = vmatpush2.msra.mxu0 0.0
    %3026 = vmatprep.subr.mxu0 0.0
    %3027 = vmatpush2.msra.mxu0 0.0
    %3028 = vmatprep.subr.mxu0 0.0
    %3029 = vmatpush2.msra.mxu0 0.0
    %3030 = vmatprep.subr.mxu0 0.0
    %3031 = vmatpush2.msra.mxu0 0.0
    %3032 = vmatprep.subr.mxu0 0.0
    %3033 = vmatpush2.msra.mxu0 0.0
    %3034 = vmatprep.subr.mxu0 0.0
    %3035 = vmatpush2.msra.mxu0 0.0
    %3036 = vmatprep.subr.mxu0 0.0
    %3037 = vmatpush2.msra.mxu0 0.0
    %3038 = vmatprep.subr.mxu0 0.0
    %3039 = vmatpush2.msra.mxu0 0.0
    %3040 = vmatprep.subr.mxu0 0.0
    %3041 = vmatpush2.msra.mxu0 0.0
    %3042 = vmatprep.subr.mxu0 0.0
    %3043 = vmatpush2.msra.mxu0 0.0
    %3044 = vmatprep.subr.mxu0 0.0
    %3045 = vmatpush2.msra.mxu0 0.0
    %3046 = vmatprep.subr.mxu0 0.0
    %3047 = vmatpush2.msra.mxu0 0.0
    %3048 = vmatprep.subr.mxu0 0.0
    %3049 = vmatpush2.msra.mxu0 0.0
    %3050 = vmatprep.subr.mxu0 0.0
    %3051 = vmatpush2.msra.mxu0 0.0
    %3052 = vmatprep.subr.mxu0 0.0
    %3053 = vmatpush2.msra.mxu0 0.0
    %3054 = vmatprep.subr.mxu0 0.0
    %3055 = vmatpush2.msra.mxu0 0.0
    %3056 = vmatprep.mubr.f32.mxu0 0.0
    %3057 = vmatmul.mubr.f32.gmra.mxu0 %v2985
    %v3058 = vpop.f32.mrf.mxu0
    %v3059 = vadd.f32 0.0, %v3058
    %v3060 = vpop.f32.mrf.mxu0
    %3061 = vmatprep.mubr.f32.mxu0 0.0
    %3062 = vmatmul.mubr.f32.gmra.mxu0 %v2988
    %v3063 = vpop.f32.mrf.mxu0
    %v3064 = vadd.f32 0.0, %v3063
    %v3065 = vpop.f32.mrf.mxu0
    %3066 = vdwg.mxu0
    %v3067 = vadd.f32 %v2468, %v3059
    %v3068 = vadd.f32 %v2469, %v3064
    %s3069 = scalar_lea.vmem %s0, 10
    %v3070 = vld [vmem:[%s3069] sm:$0x3]
    %v3071 = vrot.slane %v2729, 2
    %v3073 = vsel %vm44, %v3070, %v3071
    %v3075 = vsel %vm46, %v3073, 0
    %3077 = vmatprep.subr.mxu0 0.0
    %3078 = vmatpush1.msra.mxu0 0.0
    %3079 = vmatprep.subr.mxu0 0.0
    %3080 = vmatpush1.msra.mxu0 0.0
    %3081 = vmatprep.subr.mxu0 0.0
    %3082 = vmatpush1.msra.mxu0 0.0
    %3083 = vmatprep.subr.mxu0 0.0
    %3084 = vmatpush1.msra.mxu0 0.0
    %3085 = vmatprep.subr.mxu0 0.0
    %3086 = vmatpush1.msra.mxu0 0.0
    %3087 = vmatprep.subr.mxu0 0.0
    %3088 = vmatpush1.msra.mxu0 0.0
    %3089 = vmatprep.subr.mxu0 0.0
    %3090 = vmatpush1.msra.mxu0 0.0
    %3091 = vmatprep.subr.mxu0 0.0
    %3092 = vmatpush1.msra.mxu0 0.0
    %3093 = vmatprep.subr.mxu0 0.0
    %3094 = vmatpush1.msra.mxu0 0.0
    %3095 = vmatprep.subr.mxu0 0.0
    %3096 = vmatpush1.msra.mxu0 0.0
    %3097 = vmatprep.subr.mxu0 0.0
    %3098 = vmatpush1.msra.mxu0 0.0
    %3099 = vmatprep.subr.mxu0 0.0
    %3100 = vmatpush1.msra.mxu0 0.0
    %3101 = vmatprep.subr.mxu0 0.0
    %3102 = vmatpush1.msra.mxu0 0.0
    %3103 = vmatprep.subr.mxu0 0.0
    %3104 = vmatpush1.msra.mxu0 0.0
    %3105 = vmatprep.subr.mxu0 0.0
    %3106 = vmatpush1.msra.mxu0 %v31
    %3107 = vmatprep.subr.mxu0 0.0
    %3108 = vmatpush1.msra.mxu0 %v30
    %3109 = vmatprep.subr.mxu0 0.0
    %3110 = vmatpush2.msra.mxu0 0.0
    %3111 = vmatprep.subr.mxu0 0.0
    %3112 = vmatpush2.msra.mxu0 0.0
    %3113 = vmatprep.subr.mxu0 0.0
    %3114 = vmatpush2.msra.mxu0 0.0
    %3115 = vmatprep.subr.mxu0 0.0
    %3116 = vmatpush2.msra.mxu0 0.0
    %3117 = vmatprep.subr.mxu0 0.0
    %3118 = vmatpush2.msra.mxu0 0.0
    %3119 = vmatprep.subr.mxu0 0.0
    %3120 = vmatpush2.msra.mxu0 0.0
    %3121 = vmatprep.subr.mxu0 0.0
    %3122 = vmatpush2.msra.mxu0 0.0
    %3123 = vmatprep.subr.mxu0 0.0
    %3124 = vmatpush2.msra.mxu0 0.0
    %3125 = vmatprep.subr.mxu0 0.0
    %3126 = vmatpush2.msra.mxu0 0.0
    %3127 = vmatprep.subr.mxu0 0.0
    %3128 = vmatpush2.msra.mxu0 0.0
    %3129 = vmatprep.subr.mxu0 0.0
    %3130 = vmatpush2.msra.mxu0 0.0
    %3131 = vmatprep.subr.mxu0 0.0
    %3132 = vmatpush2.msra.mxu0 0.0
    %3133 = vmatprep.subr.mxu0 0.0
    %3134 = vmatpush2.msra.mxu0 0.0
    %3135 = vmatprep.subr.mxu0 0.0
    %3136 = vmatpush2.msra.mxu0 0.0
    %3137 = vmatprep.subr.mxu0 0.0
    %3138 = vmatpush2.msra.mxu0 0.0
    %3139 = vmatprep.subr.mxu0 0.0
    %3140 = vmatpush2.msra.mxu0 0.0
    %3141 = vmatprep.mubr.f32.mxu0 0.0
    %3142 = vmatmul.mubr.f32.gmra.mxu0 %v3075
    %v3143 = vpop.f32.mrf.mxu0
    %v3144 = vadd.f32 0.0, %v3143
    %v3145 = vpop.f32.mrf.mxu0
    %3146 = vdwg.mxu0
    %3147 = vmatprep.subr.mxu0 0.0
    %3148 = vmatpush1.msra.mxu0 0.0
    %3149 = vmatprep.subr.mxu0 0.0
    %3150 = vmatpush1.msra.mxu0 0.0
    %3151 = vmatprep.subr.mxu0 0.0
    %3152 = vmatpush1.msra.mxu0 0.0
    %3153 = vmatprep.subr.mxu0 0.0
    %3154 = vmatpush1.msra.mxu0 0.0
    %3155 = vmatprep.subr.mxu0 0.0
    %3156 = vmatpush1.msra.mxu0 0.0
    %3157 = vmatprep.subr.mxu0 0.0
    %3158 = vmatpush1.msra.mxu0 0.0
    %3159 = vmatprep.subr.mxu0 0.0
    %3160 = vmatpush1.msra.mxu0 0.0
    %3161 = vmatprep.subr.mxu0 0.0
    %3162 = vmatpush1.msra.mxu0 0.0
    %3163 = vmatprep.subr.mxu0 0.0
    %3164 = vmatpush1.msra.mxu0 0.0
    %3165 = vmatprep.subr.mxu0 0.0
    %3166 = vmatpush1.msra.mxu0 0.0
    %3167 = vmatprep.subr.mxu0 0.0
    %3168 = vmatpush1.msra.mxu0 0.0
    %3169 = vmatprep.subr.mxu0 0.0
    %3170 = vmatpush1.msra.mxu0 0.0
    %3171 = vmatprep.subr.mxu0 0.0
    %3172 = vmatpush1.msra.mxu0 0.0
    %3173 = vmatprep.subr.mxu0 0.0
    %3174 = vmatpush1.msra.mxu0 0.0
    %3175 = vmatprep.subr.mxu0 0.0
    %3176 = vmatpush1.msra.mxu0 %v34
    %3177 = vmatprep.subr.mxu0 0.0
    %3178 = vmatpush1.msra.mxu0 %v33
    %3179 = vmatprep.subr.mxu0 0.0
    %3180 = vmatpush2.msra.mxu0 0.0
    %3181 = vmatprep.subr.mxu0 0.0
    %3182 = vmatpush2.msra.mxu0 0.0
    %3183 = vmatprep.subr.mxu0 0.0
    %3184 = vmatpush2.msra.mxu0 0.0
    %3185 = vmatprep.subr.mxu0 0.0
    %3186 = vmatpush2.msra.mxu0 0.0
    %3187 = vmatprep.subr.mxu0 0.0
    %3188 = vmatpush2.msra.mxu0 0.0
    %3189 = vmatprep.subr.mxu0 0.0
    %3190 = vmatpush2.msra.mxu0 0.0
    %3191 = vmatprep.subr.mxu0 0.0
    %3192 = vmatpush2.msra.mxu0 0.0
    %3193 = vmatprep.subr.mxu0 0.0
    %3194 = vmatpush2.msra.mxu0 0.0
    %3195 = vmatprep.subr.mxu0 0.0
    %3196 = vmatpush2.msra.mxu0 0.0
    %3197 = vmatprep.subr.mxu0 0.0
    %3198 = vmatpush2.msra.mxu0 0.0
    %3199 = vmatprep.subr.mxu0 0.0
    %3200 = vmatpush2.msra.mxu0 0.0
    %3201 = vmatprep.subr.mxu0 0.0
    %3202 = vmatpush2.msra.mxu0 0.0
    %3203 = vmatprep.subr.mxu0 0.0
    %3204 = vmatpush2.msra.mxu0 0.0
    %3205 = vmatprep.subr.mxu0 0.0
    %3206 = vmatpush2.msra.mxu0 0.0
    %3207 = vmatprep.subr.mxu0 0.0
    %3208 = vmatpush2.msra.mxu0 0.0
    %3209 = vmatprep.subr.mxu0 0.0
    %3210 = vmatpush2.msra.mxu0 0.0
    %3211 = vmatprep.mubr.f32.mxu0 0.0
    %3212 = vmatmul.mubr.f32.gmra.mxu0 %v3075
    %v3213 = vpop.f32.mrf.mxu0
    %v3214 = vadd.f32 0.0, %v3213
    %v3215 = vpop.f32.mrf.mxu0
    %3216 = vdwg.mxu0
    %v3218 = vrot.slane %v3144, 2
    %v3221 = vrot.slane %v3214, 4
    %v3223 = vsel %vm196, %v3073, %v3218
    %v3224 = vsel %vm198, %v3218, %v3221
    %v3225 = vsel %vm44, %v3221, 0
    %3227 = vmatprep.subr.mxu0 0.0
    %3228 = vmatpush1.msra.mxu0 0.0
    %3229 = vmatprep.subr.mxu0 0.0
    %3230 = vmatpush1.msra.mxu0 0.0
    %3231 = vmatprep.subr.mxu0 0.0
    %3232 = vmatpush1.msra.mxu0 0.0
    %3233 = vmatprep.subr.mxu0 0.0
    %3234 = vmatpush1.msra.mxu0 0.0
    %3235 = vmatprep.subr.mxu0 0.0
    %3236 = vmatpush1.msra.mxu0 0.0
    %3237 = vmatprep.subr.mxu0 0.0
    %3238 = vmatpush1.msra.mxu0 0.0
    %3239 = vmatprep.subr.mxu0 0.0
    %3240 = vmatpush1.msra.mxu0 0.0
    %3241 = vmatprep.subr.mxu0 0.0
    %3242 = vmatpush1.msra.mxu0 0.0
    %3243 = vmatprep.subr.mxu0 0.0
    %3244 = vmatpush1.msra.mxu0 0.0
    %3245 = vmatprep.subr.mxu0 0.0
    %3246 = vmatpush1.msra.mxu0 0.0
    %3247 = vmatprep.subr.mxu0 0.0
    %3248 = vmatpush1.msra.mxu0 0.0
    %3249 = vmatprep.subr.mxu0 0.0
    %3250 = vmatpush1.msra.mxu0 0.0
    %3251 = vmatprep.subr.mxu0 0.0
    %3252 = vmatpush1.msra.mxu0 0.0
    %3253 = vmatprep.subr.mxu0 0.0
    %3254 = vmatpush1.msra.mxu0 %v3225
    %3255 = vmatprep.subr.mxu0 0.0
    %3256 = vmatpush1.msra.mxu0 %v3224
    %3257 = vmatprep.subr.mxu0 0.0
    %3258 = vmatpush1.msra.mxu0 %v3223
    %3259 = vmatprep.subr.mxu0 0.0
    %3260 = vmatpush2.msra.mxu0 0.0
    %3261 = vmatprep.subr.mxu0 0.0
    %3262 = vmatpush2.msra.mxu0 0.0
    %3263 = vmatprep.subr.mxu0 0.0
    %3264 = vmatpush2.msra.mxu0 0.0
    %3265 = vmatprep.subr.mxu0 0.0
    %3266 = vmatpush2.msra.mxu0 0.0
    %3267 = vmatprep.subr.mxu0 0.0
    %3268 = vmatpush2.msra.mxu0 0.0
    %3269 = vmatprep.subr.mxu0 0.0
    %3270 = vmatpush2.msra.mxu0 0.0
    %3271 = vmatprep.subr.mxu0 0.0
    %3272 = vmatpush2.msra.mxu0 0.0
    %3273 = vmatprep.subr.mxu0 0.0
    %3274 = vmatpush2.msra.mxu0 0.0
    %3275 = vmatprep.subr.mxu0 0.0
    %3276 = vmatpush2.msra.mxu0 0.0
    %3277 = vmatprep.subr.mxu0 0.0
    %3278 = vmatpush2.msra.mxu0 0.0
    %3279 = vmatprep.subr.mxu0 0.0
    %3280 = vmatpush2.msra.mxu0 0.0
    %3281 = vmatprep.subr.mxu0 0.0
    %3282 = vmatpush2.msra.mxu0 0.0
    %3283 = vmatprep.subr.mxu0 0.0
    %3284 = vmatpush2.msra.mxu0 0.0
    %3285 = vmatprep.subr.mxu0 0.0
    %3286 = vmatpush2.msra.mxu0 0.0
    %3287 = vmatprep.subr.mxu0 0.0
    %3288 = vmatpush2.msra.mxu0 0.0
    %3289 = vmatprep.subr.mxu0 0.0
    %3290 = vmatpush2.msra.mxu0 0.0
    %3291 = vmatprep.mubr.f32.mxu0 0.0
    %3292 = vmatmul.mubr.f32.gmra.mxu0 %v212
    %v3293 = vpop.f32.mrf.mxu0
    %v3294 = vadd.f32 %v203, %v3293
    %v3295 = vpop.f32.mrf.mxu0
    %3296 = vmatprep.mubr.f32.mxu0 0.0
    %3297 = vmatmul.mubr.f32.gmra.mxu0 %v215
    %v3298 = vpop.f32.mrf.mxu0
    %v3299 = vadd.f32 %v208, %v3298
    %v3300 = vpop.f32.mrf.mxu0
    %3301 = vdwg.mxu0
    %v3302 = vxor.u32 %v3294, 2147483648
    %v3303 = vxor.u32 %v3299, 2147483648
    %v3304 = vmul.f32 %v3302, 1.442695
    %v3305 = vpow.pop %v3304
    %v3306 = vmul.f32 %v3303, 1.442695
    %v3307 = vpow.pop %v3306
    %v3308 = vadd.f32 %v3305, 1.0
    %v3309 = vadd.f32 %v3307, 1.0
    %v3310 = vrcp.pop %v3308
    %v3311 = vmul.f32 1.0, %v3310
    %v3312 = vrcp.pop %v3309
    %v3313 = vmul.f32 1.0, %v3312
    %v3314 = vtanh.pop %v3299
    %v3315 = vmul.f32 %v2724, %v3311
    %v3317 = vrot.slane %v3314, 4
    %v3319 = vmul.f32 %v3311, %v3317
    %v3321 = vrot.slane %v3319, 4
    %v3323 = vadd.f32 %v3315, %v3321
    %v3324 = vtanh.pop %v3323
    %v3326 = vrot.slane %v3313, 4
    %v3328 = vmul.f32 %v3324, %v3326
    %v3330 = vrot.slane %v3328, 4
    %v3332 = vsel %vm198, %v3330, %v2978
    %v3334 = vsel %vm46, %v3332, 0
    %3336 = vmatprep.subr.mxu0 0.0
    %3337 = vmatpush1.msra.mxu0 0.0
    %3338 = vmatprep.subr.mxu0 0.0
    %3339 = vmatpush1.msra.mxu0 0.0
    %3340 = vmatprep.subr.mxu0 0.0
    %3341 = vmatpush1.msra.mxu0 0.0
    %3342 = vmatprep.subr.mxu0 0.0
    %3343 = vmatpush1.msra.mxu0 0.0
    %3344 = vmatprep.subr.mxu0 0.0
    %3345 = vmatpush1.msra.mxu0 0.0
    %3346 = vmatprep.subr.mxu0 0.0
    %3347 = vmatpush1.msra.mxu0 0.0
    %3348 = vmatprep.subr.mxu0 0.0
    %3349 = vmatpush1.msra.mxu0 0.0
    %3350 = vmatprep.subr.mxu0 0.0
    %3351 = vmatpush1.msra.mxu0 0.0
    %3352 = vmatprep.subr.mxu0 0.0
    %3353 = vmatpush1.msra.mxu0 0.0
    %3354 = vmatprep.subr.mxu0 0.0
    %3355 = vmatpush1.msra.mxu0 0.0
    %3356 = vmatprep.subr.mxu0 0.0
    %3357 = vmatpush1.msra.mxu0 0.0
    %3358 = vmatprep.subr.mxu0 0.0
    %3359 = vmatpush1.msra.mxu0 0.0
    %3360 = vmatprep.subr.mxu0 0.0
    %3361 = vmatpush1.msra.mxu0 0.0
    %3362 = vmatprep.subr.mxu0 0.0
    %3363 = vmatpush1.msra.mxu0 0.0
    %3364 = vmatprep.subr.mxu0 0.0
    %3365 = vmatpush1.msra.mxu0 %v31
    %3366 = vmatprep.subr.mxu0 0.0
    %3367 = vmatpush1.msra.mxu0 %v30
    %3368 = vmatprep.subr.mxu0 0.0
    %3369 = vmatpush2.msra.mxu0 0.0
    %3370 = vmatprep.subr.mxu0 0.0
    %3371 = vmatpush2.msra.mxu0 0.0
    %3372 = vmatprep.subr.mxu0 0.0
    %3373 = vmatpush2.msra.mxu0 0.0
    %3374 = vmatprep.subr.mxu0 0.0
    %3375 = vmatpush2.msra.mxu0 0.0
    %3376 = vmatprep.subr.mxu0 0.0
    %3377 = vmatpush2.msra.mxu0 0.0
    %3378 = vmatprep.subr.mxu0 0.0
    %3379 = vmatpush2.msra.mxu0 0.0
    %3380 = vmatprep.subr.mxu0 0.0
    %3381 = vmatpush2.msra.mxu0 0.0
    %3382 = vmatprep.subr.mxu0 0.0
    %3383 = vmatpush2.msra.mxu0 0.0
    %3384 = vmatprep.subr.mxu0 0.0
    %3385 = vmatpush2.msra.mxu0 0.0
    %3386 = vmatprep.subr.mxu0 0.0
    %3387 = vmatpush2.msra.mxu0 0.0
    %3388 = vmatprep.subr.mxu0 0.0
    %3389 = vmatpush2.msra.mxu0 0.0
    %3390 = vmatprep.subr.mxu0 0.0
    %3391 = vmatpush2.msra.mxu0 0.0
    %3392 = vmatprep.subr.mxu0 0.0
    %3393 = vmatpush2.msra.mxu0 0.0
    %3394 = vmatprep.subr.mxu0 0.0
    %3395 = vmatpush2.msra.mxu0 0.0
    %3396 = vmatprep.subr.mxu0 0.0
    %3397 = vmatpush2.msra.mxu0 0.0
    %3398 = vmatprep.subr.mxu0 0.0
    %3399 = vmatpush2.msra.mxu0 0.0
    %3400 = vmatprep.mubr.f32.mxu0 0.0
    %3401 = vmatmul.mubr.f32.gmra.mxu0 %v3334
    %v3402 = vpop.f32.mrf.mxu0
    %v3403 = vadd.f32 0.0, %v3402
    %v3404 = vpop.f32.mrf.mxu0
    %3405 = vdwg.mxu0
    %3406 = vmatprep.subr.mxu0 0.0
    %3407 = vmatpush1.msra.mxu0 0.0
    %3408 = vmatprep.subr.mxu0 0.0
    %3409 = vmatpush1.msra.mxu0 0.0
    %3410 = vmatprep.subr.mxu0 0.0
    %3411 = vmatpush1.msra.mxu0 0.0
    %3412 = vmatprep.subr.mxu0 0.0
    %3413 = vmatpush1.msra.mxu0 0.0
    %3414 = vmatprep.subr.mxu0 0.0
    %3415 = vmatpush1.msra.mxu0 0.0
    %3416 = vmatprep.subr.mxu0 0.0
    %3417 = vmatpush1.msra.mxu0 0.0
    %3418 = vmatprep.subr.mxu0 0.0
    %3419 = vmatpush1.msra.mxu0 0.0
    %3420 = vmatprep.subr.mxu0 0.0
    %3421 = vmatpush1.msra.mxu0 0.0
    %3422 = vmatprep.subr.mxu0 0.0
    %3423 = vmatpush1.msra.mxu0 0.0
    %3424 = vmatprep.subr.mxu0 0.0
    %3425 = vmatpush1.msra.mxu0 0.0
    %3426 = vmatprep.subr.mxu0 0.0
    %3427 = vmatpush1.msra.mxu0 0.0
    %3428 = vmatprep.subr.mxu0 0.0
    %3429 = vmatpush1.msra.mxu0 0.0
    %3430 = vmatprep.subr.mxu0 0.0
    %3431 = vmatpush1.msra.mxu0 0.0
    %3432 = vmatprep.subr.mxu0 0.0
    %3433 = vmatpush1.msra.mxu0 0.0
    %3434 = vmatprep.subr.mxu0 0.0
    %3435 = vmatpush1.msra.mxu0 %v34
    %3436 = vmatprep.subr.mxu0 0.0
    %3437 = vmatpush1.msra.mxu0 %v33
    %3438 = vmatprep.subr.mxu0 0.0
    %3439 = vmatpush2.msra.mxu0 0.0
    %3440 = vmatprep.subr.mxu0 0.0
    %3441 = vmatpush2.msra.mxu0 0.0
    %3442 = vmatprep.subr.mxu0 0.0
    %3443 = vmatpush2.msra.mxu0 0.0
    %3444 = vmatprep.subr.mxu0 0.0
    %3445 = vmatpush2.msra.mxu0 0.0
    %3446 = vmatprep.subr.mxu0 0.0
    %3447 = vmatpush2.msra.mxu0 0.0
    %3448 = vmatprep.subr.mxu0 0.0
    %3449 = vmatpush2.msra.mxu0 0.0
    %3450 = vmatprep.subr.mxu0 0.0
    %3451 = vmatpush2.msra.mxu0 0.0
    %3452 = vmatprep.subr.mxu0 0.0
    %3453 = vmatpush2.msra.mxu0 0.0
    %3454 = vmatprep.subr.mxu0 0.0
    %3455 = vmatpush2.msra.mxu0 0.0
    %3456 = vmatprep.subr.mxu0 0.0
    %3457 = vmatpush2.msra.mxu0 0.0
    %3458 = vmatprep.subr.mxu0 0.0
    %3459 = vmatpush2.msra.mxu0 0.0
    %3460 = vmatprep.subr.mxu0 0.0
    %3461 = vmatpush2.msra.mxu0 0.0
    %3462 = vmatprep.subr.mxu0 0.0
    %3463 = vmatpush2.msra.mxu0 0.0
    %3464 = vmatprep.subr.mxu0 0.0
    %3465 = vmatpush2.msra.mxu0 0.0
    %3466 = vmatprep.subr.mxu0 0.0
    %3467 = vmatpush2.msra.mxu0 0.0
    %3468 = vmatprep.subr.mxu0 0.0
    %3469 = vmatpush2.msra.mxu0 0.0
    %3470 = vmatprep.mubr.f32.mxu0 0.0
    %3471 = vmatmul.mubr.f32.gmra.mxu0 %v3334
    %v3472 = vpop.f32.mrf.mxu0
    %v3473 = vadd.f32 0.0, %v3472
    %v3474 = vpop.f32.mrf.mxu0
    %3475 = vdwg.mxu0
    %3476 = vmatprep.subr.mxu0 0.0
    %3477 = vmatpush1.msra.mxu0 0.0
    %3478 = vmatprep.subr.mxu0 0.0
    %3479 = vmatpush1.msra.mxu0 0.0
    %3480 = vmatprep.subr.mxu0 0.0
    %3481 = vmatpush1.msra.mxu0 0.0
    %3482 = vmatprep.subr.mxu0 0.0
    %3483 = vmatpush1.msra.mxu0 0.0
    %3484 = vmatprep.subr.mxu0 0.0
    %3485 = vmatpush1.msra.mxu0 0.0
    %3486 = vmatprep.subr.mxu0 0.0
    %3487 = vmatpush1.msra.mxu0 0.0
    %3488 = vmatprep.subr.mxu0 0.0
    %3489 = vmatpush1.msra.mxu0 0.0
    %3490 = vmatprep.subr.mxu0 0.0
    %3491 = vmatpush1.msra.mxu0 0.0
    %3492 = vmatprep.subr.mxu0 0.0
    %3493 = vmatpush1.msra.mxu0 0.0
    %3494 = vmatprep.subr.mxu0 0.0
    %3495 = vmatpush1.msra.mxu0 0.0
    %3496 = vmatprep.subr.mxu0 0.0
    %3497 = vmatpush1.msra.mxu0 0.0
    %3498 = vmatprep.subr.mxu0 0.0
    %3499 = vmatpush1.msra.mxu0 0.0
    %3500 = vmatprep.subr.mxu0 0.0
    %3501 = vmatpush1.msra.mxu0 0.0
    %3502 = vmatprep.subr.mxu0 0.0
    %3503 = vmatpush1.msra.mxu0 %v3473
    %3504 = vmatprep.subr.mxu0 0.0
    %3505 = vmatpush1.msra.mxu0 %v3403
    %3506 = vmatprep.subr.mxu0 0.0
    %3507 = vmatpush1.msra.mxu0 %v3332
    %3508 = vmatprep.subr.mxu0 0.0
    %3509 = vmatpush2.msra.mxu0 0.0
    %3510 = vmatprep.subr.mxu0 0.0
    %3511 = vmatpush2.msra.mxu0 0.0
    %3512 = vmatprep.subr.mxu0 0.0
    %3513 = vmatpush2.msra.mxu0 0.0
    %3514 = vmatprep.subr.mxu0 0.0
    %3515 = vmatpush2.msra.mxu0 0.0
    %3516 = vmatprep.subr.mxu0 0.0
    %3517 = vmatpush2.msra.mxu0 0.0
    %3518 = vmatprep.subr.mxu0 0.0
    %3519 = vmatpush2.msra.mxu0 0.0
    %3520 = vmatprep.subr.mxu0 0.0
    %3521 = vmatpush2.msra.mxu0 0.0
    %3522 = vmatprep.subr.mxu0 0.0
    %3523 = vmatpush2.msra.mxu0 0.0
    %3524 = vmatprep.subr.mxu0 0.0
    %3525 = vmatpush2.msra.mxu0 0.0
    %3526 = vmatprep.subr.mxu0 0.0
    %3527 = vmatpush2.msra.mxu0 0.0
    %3528 = vmatprep.subr.mxu0 0.0
    %3529 = vmatpush2.msra.mxu0 0.0
    %3530 = vmatprep.subr.mxu0 0.0
    %3531 = vmatpush2.msra.mxu0 0.0
    %3532 = vmatprep.subr.mxu0 0.0
    %3533 = vmatpush2.msra.mxu0 0.0
    %3534 = vmatprep.subr.mxu0 0.0
    %3535 = vmatpush2.msra.mxu0 0.0
    %3536 = vmatprep.subr.mxu0 0.0
    %3537 = vmatpush2.msra.mxu0 0.0
    %3538 = vmatprep.subr.mxu0 0.0
    %3539 = vmatpush2.msra.mxu0 0.0
    %3540 = vmatprep.mubr.f32.mxu0 0.0
    %3541 = vmatmul.mubr.f32.gmra.mxu0 %v480
    %v3542 = vpop.f32.mrf.mxu0
    %v3543 = vadd.f32 %v471, %v3542
    %v3544 = vpop.f32.mrf.mxu0
    %3545 = vmatprep.mubr.f32.mxu0 0.0
    %3546 = vmatmul.mubr.f32.gmra.mxu0 %v483
    %v3547 = vpop.f32.mrf.mxu0
    %v3548 = vadd.f32 %v476, %v3547
    %v3549 = vpop.f32.mrf.mxu0
    %3550 = vdwg.mxu0
    %v3551 = vxor.u32 %v3543, 2147483648
    %v3552 = vxor.u32 %v3548, 2147483648
    %v3553 = vmul.f32 %v3551, 1.442695
    %v3554 = vpow.pop %v3553
    %v3555 = vmul.f32 %v3552, 1.442695
    %v3556 = vpow.pop %v3555
    %v3557 = vadd.f32 %v3554, 1.0
    %v3558 = vadd.f32 %v3556, 1.0
    %v3559 = vrcp.pop %v3557
    %v3560 = vmul.f32 1.0, %v3559
    %v3561 = vrcp.pop %v3558
    %v3562 = vmul.f32 1.0, %v3561
    %v3563 = vtanh.pop %v3548
    %v3564 = vmul.f32 %v2973, %v3560
    %v3566 = vrot.slane %v3563, 4
    %v3568 = vmul.f32 %v3560, %v3566
    %v3570 = vrot.slane %v3568, 4
    %v3572 = vadd.f32 %v3564, %v3570
    %v3573 = vtanh.pop %v3572
    %v3575 = vrot.slane %v3562, 4
    %v3577 = vmul.f32 %v3573, %v3575
    %s3578 = scalar_lea.vmem %s6, 80
    %v3579 = vld [vmem:[%s3578] sm:$0xff]
    %v3580 = vld [vmem:[%s3578 + $0x8] sm:$0xf]
    %v3582 = vrot.slane %v3577, 4
    %v3584 = vsel %vm1103, %v3579, 0
    %v3587 = vsel %vm1103, %v3580, 0
    %v3589 = vsel %vm198, %v3582, 0
    %3591 = vmatprep.subr.mxu0 0.0
    %3592 = vmatpush1.msra.mxu0 0.0
    %3593 = vmatprep.subr.mxu0 0.0
    %3594 = vmatpush1.msra.mxu0 0.0
    %3595 = vmatprep.subr.mxu0 0.0
    %3596 = vmatpush1.msra.mxu0 0.0
    %3597 = vmatprep.subr.mxu0 0.0
    %3598 = vmatpush1.msra.mxu0 0.0
    %3599 = vmatprep.subr.mxu0 0.0
    %3600 = vmatpush1.msra.mxu0 0.0
    %3601 = vmatprep.subr.mxu0 0.0
    %3602 = vmatpush1.msra.mxu0 0.0
    %3603 = vmatprep.subr.mxu0 0.0
    %3604 = vmatpush1.msra.mxu0 0.0
    %3605 = vmatprep.subr.mxu0 0.0
    %3606 = vmatpush1.msra.mxu0 0.0
    %3607 = vmatprep.subr.mxu0 0.0
    %3608 = vmatpush1.msra.mxu0 0.0
    %3609 = vmatprep.subr.mxu0 0.0
    %3610 = vmatpush1.msra.mxu0 0.0
    %3611 = vmatprep.subr.mxu0 0.0
    %3612 = vmatpush1.msra.mxu0 0.0
    %3613 = vmatprep.subr.mxu0 0.0
    %3614 = vmatpush1.msra.mxu0 0.0
    %3615 = vmatprep.subr.mxu0 0.0
    %3616 = vmatpush1.msra.mxu0 0.0
    %3617 = vmatprep.subr.mxu0 0.0
    %3618 = vmatpush1.msra.mxu0 0.0
    %3619 = vmatprep.subr.mxu0 0.0
    %3620 = vmatpush1.msra.mxu0 0.0
    %3621 = vmatprep.subr.mxu0 0.0
    %3622 = vmatpush1.msra.mxu0 %v3589
    %3623 = vmatprep.subr.mxu0 0.0
    %3624 = vmatpush2.msra.mxu0 0.0
    %3625 = vmatprep.subr.mxu0 0.0
    %3626 = vmatpush2.msra.mxu0 0.0
    %3627 = vmatprep.subr.mxu0 0.0
    %3628 = vmatpush2.msra.mxu0 0.0
    %3629 = vmatprep.subr.mxu0 0.0
    %3630 = vmatpush2.msra.mxu0 0.0
    %3631 = vmatprep.subr.mxu0 0.0
    %3632 = vmatpush2.msra.mxu0 0.0
    %3633 = vmatprep.subr.mxu0 0.0
    %3634 = vmatpush2.msra.mxu0 0.0
    %3635 = vmatprep.subr.mxu0 0.0
    %3636 = vmatpush2.msra.mxu0 0.0
    %3637 = vmatprep.subr.mxu0 0.0
    %3638 = vmatpush2.msra.mxu0 0.0
    %3639 = vmatprep.subr.mxu0 0.0
    %3640 = vmatpush2.msra.mxu0 0.0
    %3641 = vmatprep.subr.mxu0 0.0
    %3642 = vmatpush2.msra.mxu0 0.0
    %3643 = vmatprep.subr.mxu0 0.0
    %3644 = vmatpush2.msra.mxu0 0.0
    %3645 = vmatprep.subr.mxu0 0.0
    %3646 = vmatpush2.msra.mxu0 0.0
    %3647 = vmatprep.subr.mxu0 0.0
    %3648 = vmatpush2.msra.mxu0 0.0
    %3649 = vmatprep.subr.mxu0 0.0
    %3650 = vmatpush2.msra.mxu0 0.0
    %3651 = vmatprep.subr.mxu0 0.0
    %3652 = vmatpush2.msra.mxu0 0.0
    %3653 = vmatprep.subr.mxu0 0.0
    %3654 = vmatpush2.msra.mxu0 0.0
    %3655 = vmatprep.mubr.f32.mxu0 0.0
    %3656 = vmatmul.mubr.f32.gmra.mxu0 %v3584
    %v3657 = vpop.f32.mrf.mxu0
    %v3658 = vadd.f32 0.0, %v3657
    %v3659 = vpop.f32.mrf.mxu0
    %3660 = vmatprep.mubr.f32.mxu0 0.0
    %3661 = vmatmul.mubr.f32.gmra.mxu0 %v3587
    %v3662 = vpop.f32.mrf.mxu0
    %v3663 = vadd.f32 0.0, %v3662
    %v3664 = vpop.f32.mrf.mxu0
    %3665 = vdwg.mxu0
    %v3666 = vadd.f32 %v3067, %v3658
    %v3667 = vadd.f32 %v3068, %v3663
    %s3668 = scalar_lea.vmem %s0, 12
    %v3669 = vld [vmem:[%s3668] sm:$0x3]
    %v3670 = vrot.slane %v3328, 2
    %v3672 = vsel %vm44, %v3669, %v3670
    %v3674 = vsel %vm46, %v3672, 0
    %3676 = vmatprep.subr.mxu0 0.0
    %3677 = vmatpush1.msra.mxu0 0.0
    %3678 = vmatprep.subr.mxu0 0.0
    %3679 = vmatpush1.msra.mxu0 0.0
    %3680 = vmatprep.subr.mxu0 0.0
    %3681 = vmatpush1.msra.mxu0 0.0
    %3682 = vmatprep.subr.mxu0 0.0
    %3683 = vmatpush1.msra.mxu0 0.0
    %3684 = vmatprep.subr.mxu0 0.0
    %3685 = vmatpush1.msra.mxu0 0.0
    %3686 = vmatprep.subr.mxu0 0.0
    %3687 = vmatpush1.msra.mxu0 0.0
    %3688 = vmatprep.subr.mxu0 0.0
    %3689 = vmatpush1.msra.mxu0 0.0
    %3690 = vmatprep.subr.mxu0 0.0
    %3691 = vmatpush1.msra.mxu0 0.0
    %3692 = vmatprep.subr.mxu0 0.0
    %3693 = vmatpush1.msra.mxu0 0.0
    %3694 = vmatprep.subr.mxu0 0.0
    %3695 = vmatpush1.msra.mxu0 0.0
    %3696 = vmatprep.subr.mxu0 0.0
    %3697 = vmatpush1.msra.mxu0 0.0
    %3698 = vmatprep.subr.mxu0 0.0
    %3699 = vmatpush1.msra.mxu0 0.0
    %3700 = vmatprep.subr.mxu0 0.0
    %3701 = vmatpush1.msra.mxu0 0.0
    %3702 = vmatprep.subr.mxu0 0.0
    %3703 = vmatpush1.msra.mxu0 0.0
    %3704 = vmatprep.subr.mxu0 0.0
    %3705 = vmatpush1.msra.mxu0 %v31
    %3706 = vmatprep.subr.mxu0 0.0
    %3707 = vmatpush1.msra.mxu0 %v30
    %3708 = vmatprep.subr.mxu0 0.0
    %3709 = vmatpush2.msra.mxu0 0.0
    %3710 = vmatprep.subr.mxu0 0.0
    %3711 = vmatpush2.msra.mxu0 0.0
    %3712 = vmatprep.subr.mxu0 0.0
    %3713 = vmatpush2.msra.mxu0 0.0
    %3714 = vmatprep.subr.mxu0 0.0
    %3715 = vmatpush2.msra.mxu0 0.0
    %3716 = vmatprep.subr.mxu0 0.0
    %3717 = vmatpush2.msra.mxu0 0.0
    %3718 = vmatprep.subr.mxu0 0.0
    %3719 = vmatpush2.msra.mxu0 0.0
    %3720 = vmatprep.subr.mxu0 0.0
    %3721 = vmatpush2.msra.mxu0 0.0
    %3722 = vmatprep.subr.mxu0 0.0
    %3723 = vmatpush2.msra.mxu0 0.0
    %3724 = vmatprep.subr.mxu0 0.0
    %3725 = vmatpush2.msra.mxu0 0.0
    %3726 = vmatprep.subr.mxu0 0.0
    %3727 = vmatpush2.msra.mxu0 0.0
    %3728 = vmatprep.subr.mxu0 0.0
    %3729 = vmatpush2.msra.mxu0 0.0
    %3730 = vmatprep.subr.mxu0 0.0
    %3731 = vmatpush2.msra.mxu0 0.0
    %3732 = vmatprep.subr.mxu0 0.0
    %3733 = vmatpush2.msra.mxu0 0.0
    %3734 = vmatprep.subr.mxu0 0.0
    %3735 = vmatpush2.msra.mxu0 0.0
    %3736 = vmatprep.subr.mxu0 0.0
    %3737 = vmatpush2.msra.mxu0 0.0
    %3738 = vmatprep.subr.mxu0 0.0
    %3739 = vmatpush2.msra.mxu0 0.0
    %3740 = vmatprep.mubr.f32.mxu0 0.0
    %3741 = vmatmul.mubr.f32.gmra.mxu0 %v3674
    %v3742 = vpop.f32.mrf.mxu0
    %v3743 = vadd.f32 0.0, %v3742
    %v3744 = vpop.f32.mrf.mxu0
    %3745 = vdwg.mxu0
    %3746 = vmatprep.subr.mxu0 0.0
    %3747 = vmatpush1.msra.mxu0 0.0
    %3748 = vmatprep.subr.mxu0 0.0
    %3749 = vmatpush1.msra.mxu0 0.0
    %3750 = vmatprep.subr.mxu0 0.0
    %3751 = vmatpush1.msra.mxu0 0.0
    %3752 = vmatprep.subr.mxu0 0.0
    %3753 = vmatpush1.msra.mxu0 0.0
    %3754 = vmatprep.subr.mxu0 0.0
    %3755 = vmatpush1.msra.mxu0 0.0
    %3756 = vmatprep.subr.mxu0 0.0
    %3757 = vmatpush1.msra.mxu0 0.0
    %3758 = vmatprep.subr.mxu0 0.0
    %3759 = vmatpush1.msra.mxu0 0.0
    %3760 = vmatprep.subr.mxu0 0.0
    %3761 = vmatpush1.msra.mxu0 0.0
    %3762 = vmatprep.subr.mxu0 0.0
    %3763 = vmatpush1.msra.mxu0 0.0
    %3764 = vmatprep.subr.mxu0 0.0
    %3765 = vmatpush1.msra.mxu0 0.0
    %3766 = vmatprep.subr.mxu0 0.0
    %3767 = vmatpush1.msra.mxu0 0.0
    %3768 = vmatprep.subr.mxu0 0.0
    %3769 = vmatpush1.msra.mxu0 0.0
    %3770 = vmatprep.subr.mxu0 0.0
    %3771 = vmatpush1.msra.mxu0 0.0
    %3772 = vmatprep.subr.mxu0 0.0
    %3773 = vmatpush1.msra.mxu0 0.0
    %3774 = vmatprep.subr.mxu0 0.0
    %3775 = vmatpush1.msra.mxu0 %v34
    %3776 = vmatprep.subr.mxu0 0.0
    %3777 = vmatpush1.msra.mxu0 %v33
    %3778 = vmatprep.subr.mxu0 0.0
    %3779 = vmatpush2.msra.mxu0 0.0
    %3780 = vmatprep.subr.mxu0 0.0
    %3781 = vmatpush2.msra.mxu0 0.0
    %3782 = vmatprep.subr.mxu0 0.0
    %3783 = vmatpush2.msra.mxu0 0.0
    %3784 = vmatprep.subr.mxu0 0.0
    %3785 = vmatpush2.msra.mxu0 0.0
    %3786 = vmatprep.subr.mxu0 0.0
    %3787 = vmatpush2.msra.mxu0 0.0
    %3788 = vmatprep.subr.mxu0 0.0
    %3789 = vmatpush2.msra.mxu0 0.0
    %3790 = vmatprep.subr.mxu0 0.0
    %3791 = vmatpush2.msra.mxu0 0.0
    %3792 = vmatprep.subr.mxu0 0.0
    %3793 = vmatpush2.msra.mxu0 0.0
    %3794 = vmatprep.subr.mxu0 0.0
    %3795 = vmatpush2.msra.mxu0 0.0
    %3796 = vmatprep.subr.mxu0 0.0
    %3797 = vmatpush2.msra.mxu0 0.0
    %3798 = vmatprep.subr.mxu0 0.0
    %3799 = vmatpush2.msra.mxu0 0.0
    %3800 = vmatprep.subr.mxu0 0.0
    %3801 = vmatpush2.msra.mxu0 0.0
    %3802 = vmatprep.subr.mxu0 0.0
    %3803 = vmatpush2.msra.mxu0 0.0
    %3804 = vmatprep.subr.mxu0 0.0
    %3805 = vmatpush2.msra.mxu0 0.0
    %3806 = vmatprep.subr.mxu0 0.0
    %3807 = vmatpush2.msra.mxu0 0.0
    %3808 = vmatprep.subr.mxu0 0.0
    %3809 = vmatpush2.msra.mxu0 0.0
    %3810 = vmatprep.mubr.f32.mxu0 0.0
    %3811 = vmatmul.mubr.f32.gmra.mxu0 %v3674
    %v3812 = vpop.f32.mrf.mxu0
    %v3813 = vadd.f32 0.0, %v3812
    %v3814 = vpop.f32.mrf.mxu0
    %3815 = vdwg.mxu0
    %v3817 = vrot.slane %v3743, 2
    %v3820 = vrot.slane %v3813, 4
    %v3822 = vsel %vm196, %v3672, %v3817
    %v3823 = vsel %vm198, %v3817, %v3820
    %v3824 = vsel %vm44, %v3820, 0
    %3826 = vmatprep.subr.mxu0 0.0
    %3827 = vmatpush1.msra.mxu0 0.0
    %3828 = vmatprep.subr.mxu0 0.0
    %3829 = vmatpush1.msra.mxu0 0.0
    %3830 = vmatprep.subr.mxu0 0.0
    %3831 = vmatpush1.msra.mxu0 0.0
    %3832 = vmatprep.subr.mxu0 0.0
    %3833 = vmatpush1.msra.mxu0 0.0
    %3834 = vmatprep.subr.mxu0 0.0
    %3835 = vmatpush1.msra.mxu0 0.0
    %3836 = vmatprep.subr.mxu0 0.0
    %3837 = vmatpush1.msra.mxu0 0.0
    %3838 = vmatprep.subr.mxu0 0.0
    %3839 = vmatpush1.msra.mxu0 0.0
    %3840 = vmatprep.subr.mxu0 0.0
    %3841 = vmatpush1.msra.mxu0 0.0
    %3842 = vmatprep.subr.mxu0 0.0
    %3843 = vmatpush1.msra.mxu0 0.0
    %3844 = vmatprep.subr.mxu0 0.0
    %3845 = vmatpush1.msra.mxu0 0.0
    %3846 = vmatprep.subr.mxu0 0.0
    %3847 = vmatpush1.msra.mxu0 0.0
    %3848 = vmatprep.subr.mxu0 0.0
    %3849 = vmatpush1.msra.mxu0 0.0
    %3850 = vmatprep.subr.mxu0 0.0
    %3851 = vmatpush1.msra.mxu0 0.0
    %3852 = vmatprep.subr.mxu0 0.0
    %3853 = vmatpush1.msra.mxu0 %v3824
    %3854 = vmatprep.subr.mxu0 0.0
    %3855 = vmatpush1.msra.mxu0 %v3823
    %3856 = vmatprep.subr.mxu0 0.0
    %3857 = vmatpush1.msra.mxu0 %v3822
    %3858 = vmatprep.subr.mxu0 0.0
    %3859 = vmatpush2.msra.mxu0 0.0
    %3860 = vmatprep.subr.mxu0 0.0
    %3861 = vmatpush2.msra.mxu0 0.0
    %3862 = vmatprep.subr.mxu0 0.0
    %3863 = vmatpush2.msra.mxu0 0.0
    %3864 = vmatprep.subr.mxu0 0.0
    %3865 = vmatpush2.msra.mxu0 0.0
    %3866 = vmatprep.subr.mxu0 0.0
    %3867 = vmatpush2.msra.mxu0 0.0
    %3868 = vmatprep.subr.mxu0 0.0
    %3869 = vmatpush2.msra.mxu0 0.0
    %3870 = vmatprep.subr.mxu0 0.0
    %3871 = vmatpush2.msra.mxu0 0.0
    %3872 = vmatprep.subr.mxu0 0.0
    %3873 = vmatpush2.msra.mxu0 0.0
    %3874 = vmatprep.subr.mxu0 0.0
    %3875 = vmatpush2.msra.mxu0 0.0
    %3876 = vmatprep.subr.mxu0 0.0
    %3877 = vmatpush2.msra.mxu0 0.0
    %3878 = vmatprep.subr.mxu0 0.0
    %3879 = vmatpush2.msra.mxu0 0.0
    %3880 = vmatprep.subr.mxu0 0.0
    %3881 = vmatpush2.msra.mxu0 0.0
    %3882 = vmatprep.subr.mxu0 0.0
    %3883 = vmatpush2.msra.mxu0 0.0
    %3884 = vmatprep.subr.mxu0 0.0
    %3885 = vmatpush2.msra.mxu0 0.0
    %3886 = vmatprep.subr.mxu0 0.0
    %3887 = vmatpush2.msra.mxu0 0.0
    %3888 = vmatprep.subr.mxu0 0.0
    %3889 = vmatpush2.msra.mxu0 0.0
    %3890 = vmatprep.mubr.f32.mxu0 0.0
    %3891 = vmatmul.mubr.f32.gmra.mxu0 %v212
    %v3892 = vpop.f32.mrf.mxu0
    %v3893 = vadd.f32 %v203, %v3892
    %v3894 = vpop.f32.mrf.mxu0
    %3895 = vmatprep.mubr.f32.mxu0 0.0
    %3896 = vmatmul.mubr.f32.gmra.mxu0 %v215
    %v3897 = vpop.f32.mrf.mxu0
    %v3898 = vadd.f32 %v208, %v3897
    %v3899 = vpop.f32.mrf.mxu0
    %3900 = vdwg.mxu0
    %v3901 = vxor.u32 %v3893, 2147483648
    %v3902 = vxor.u32 %v3898, 2147483648
    %v3903 = vmul.f32 %v3901, 1.442695
    %v3904 = vpow.pop %v3903
    %v3905 = vmul.f32 %v3902, 1.442695
    %v3906 = vpow.pop %v3905
    %v3907 = vadd.f32 %v3904, 1.0
    %v3908 = vadd.f32 %v3906, 1.0
    %v3909 = vrcp.pop %v3907
    %v3910 = vmul.f32 1.0, %v3909
    %v3911 = vrcp.pop %v3908
    %v3912 = vmul.f32 1.0, %v3911
    %v3913 = vtanh.pop %v3898
    %v3914 = vmul.f32 %v3323, %v3910
    %v3916 = vrot.slane %v3913, 4
    %v3918 = vmul.f32 %v3910, %v3916
    %v3920 = vrot.slane %v3918, 4
    %v3922 = vadd.f32 %v3914, %v3920
    %v3923 = vtanh.pop %v3922
    %v3925 = vrot.slane %v3912, 4
    %v3927 = vmul.f32 %v3923, %v3925
    %v3929 = vrot.slane %v3927, 4
    %v3931 = vsel %vm198, %v3929, %v3577
    %v3933 = vsel %vm46, %v3931, 0
    %3935 = vmatprep.subr.mxu0 0.0
    %3936 = vmatpush1.msra.mxu0 0.0
    %3937 = vmatprep.subr.mxu0 0.0
    %3938 = vmatpush1.msra.mxu0 0.0
    %3939 = vmatprep.subr.mxu0 0.0
    %3940 = vmatpush1.msra.mxu0 0.0
    %3941 = vmatprep.subr.mxu0 0.0
    %3942 = vmatpush1.msra.mxu0 0.0
    %3943 = vmatprep.subr.mxu0 0.0
    %3944 = vmatpush1.msra.mxu0 0.0
    %3945 = vmatprep.subr.mxu0 0.0
    %3946 = vmatpush1.msra.mxu0 0.0
    %3947 = vmatprep.subr.mxu0 0.0
    %3948 = vmatpush1.msra.mxu0 0.0
    %3949 = vmatprep.subr.mxu0 0.0
    %3950 = vmatpush1.msra.mxu0 0.0
    %3951 = vmatprep.subr.mxu0 0.0
    %3952 = vmatpush1.msra.mxu0 0.0
    %3953 = vmatprep.subr.mxu0 0.0
    %3954 = vmatpush1.msra.mxu0 0.0
    %3955 = vmatprep.subr.mxu0 0.0
    %3956 = vmatpush1.msra.mxu0 0.0
    %3957 = vmatprep.subr.mxu0 0.0
    %3958 = vmatpush1.msra.mxu0 0.0
    %3959 = vmatprep.subr.mxu0 0.0
    %3960 = vmatpush1.msra.mxu0 0.0
    %3961 = vmatprep.subr.mxu0 0.0
    %3962 = vmatpush1.msra.mxu0 0.0
    %3963 = vmatprep.subr.mxu0 0.0
    %3964 = vmatpush1.msra.mxu0 %v31
    %3965 = vmatprep.subr.mxu0 0.0
    %3966 = vmatpush1.msra.mxu0 %v30
    %3967 = vmatprep.subr.mxu0 0.0
    %3968 = vmatpush2.msra.mxu0 0.0
    %3969 = vmatprep.subr.mxu0 0.0
    %3970 = vmatpush2.msra.mxu0 0.0
    %3971 = vmatprep.subr.mxu0 0.0
    %3972 = vmatpush2.msra.mxu0 0.0
    %3973 = vmatprep.subr.mxu0 0.0
    %3974 = vmatpush2.msra.mxu0 0.0
    %3975 = vmatprep.subr.mxu0 0.0
    %3976 = vmatpush2.msra.mxu0 0.0
    %3977 = vmatprep.subr.mxu0 0.0
    %3978 = vmatpush2.msra.mxu0 0.0
    %3979 = vmatprep.subr.mxu0 0.0
    %3980 = vmatpush2.msra.mxu0 0.0
    %3981 = vmatprep.subr.mxu0 0.0
    %3982 = vmatpush2.msra.mxu0 0.0
    %3983 = vmatprep.subr.mxu0 0.0
    %3984 = vmatpush2.msra.mxu0 0.0
    %3985 = vmatprep.subr.mxu0 0.0
    %3986 = vmatpush2.msra.mxu0 0.0
    %3987 = vmatprep.subr.mxu0 0.0
    %3988 = vmatpush2.msra.mxu0 0.0
    %3989 = vmatprep.subr.mxu0 0.0
    %3990 = vmatpush2.msra.mxu0 0.0
    %3991 = vmatprep.subr.mxu0 0.0
    %3992 = vmatpush2.msra.mxu0 0.0
    %3993 = vmatprep.subr.mxu0 0.0
    %3994 = vmatpush2.msra.mxu0 0.0
    %3995 = vmatprep.subr.mxu0 0.0
    %3996 = vmatpush2.msra.mxu0 0.0
    %3997 = vmatprep.subr.mxu0 0.0
    %3998 = vmatpush2.msra.mxu0 0.0
    %3999 = vmatprep.mubr.f32.mxu0 0.0
    %4000 = vmatmul.mubr.f32.gmra.mxu0 %v3933
    %v4001 = vpop.f32.mrf.mxu0
    %v4002 = vadd.f32 0.0, %v4001
    %v4003 = vpop.f32.mrf.mxu0
    %4004 = vdwg.mxu0
    %4005 = vmatprep.subr.mxu0 0.0
    %4006 = vmatpush1.msra.mxu0 0.0
    %4007 = vmatprep.subr.mxu0 0.0
    %4008 = vmatpush1.msra.mxu0 0.0
    %4009 = vmatprep.subr.mxu0 0.0
    %4010 = vmatpush1.msra.mxu0 0.0
    %4011 = vmatprep.subr.mxu0 0.0
    %4012 = vmatpush1.msra.mxu0 0.0
    %4013 = vmatprep.subr.mxu0 0.0
    %4014 = vmatpush1.msra.mxu0 0.0
    %4015 = vmatprep.subr.mxu0 0.0
    %4016 = vmatpush1.msra.mxu0 0.0
    %4017 = vmatprep.subr.mxu0 0.0
    %4018 = vmatpush1.msra.mxu0 0.0
    %4019 = vmatprep.subr.mxu0 0.0
    %4020 = vmatpush1.msra.mxu0 0.0
    %4021 = vmatprep.subr.mxu0 0.0
    %4022 = vmatpush1.msra.mxu0 0.0
    %4023 = vmatprep.subr.mxu0 0.0
    %4024 = vmatpush1.msra.mxu0 0.0
    %4025 = vmatprep.subr.mxu0 0.0
    %4026 = vmatpush1.msra.mxu0 0.0
    %4027 = vmatprep.subr.mxu0 0.0
    %4028 = vmatpush1.msra.mxu0 0.0
    %4029 = vmatprep.subr.mxu0 0.0
    %4030 = vmatpush1.msra.mxu0 0.0
    %4031 = vmatprep.subr.mxu0 0.0
    %4032 = vmatpush1.msra.mxu0 0.0
    %4033 = vmatprep.subr.mxu0 0.0
    %4034 = vmatpush1.msra.mxu0 %v34
    %4035 = vmatprep.subr.mxu0 0.0
    %4036 = vmatpush1.msra.mxu0 %v33
    %4037 = vmatprep.subr.mxu0 0.0
    %4038 = vmatpush2.msra.mxu0 0.0
    %4039 = vmatprep.subr.mxu0 0.0
    %4040 = vmatpush2.msra.mxu0 0.0
    %4041 = vmatprep.subr.mxu0 0.0
    %4042 = vmatpush2.msra.mxu0 0.0
    %4043 = vmatprep.subr.mxu0 0.0
    %4044 = vmatpush2.msra.mxu0 0.0
    %4045 = vmatprep.subr.mxu0 0.0
    %4046 = vmatpush2.msra.mxu0 0.0
    %4047 = vmatprep.subr.mxu0 0.0
    %4048 = vmatpush2.msra.mxu0 0.0
    %4049 = vmatprep.subr.mxu0 0.0
    %4050 = vmatpush2.msra.mxu0 0.0
    %4051 = vmatprep.subr.mxu0 0.0
    %4052 = vmatpush2.msra.mxu0 0.0
    %4053 = vmatprep.subr.mxu0 0.0
    %4054 = vmatpush2.msra.mxu0 0.0
    %4055 = vmatprep.subr.mxu0 0.0
    %4056 = vmatpush2.msra.mxu0 0.0
    %4057 = vmatprep.subr.mxu0 0.0
    %4058 = vmatpush2.msra.mxu0 0.0
    %4059 = vmatprep.subr.mxu0 0.0
    %4060 = vmatpush2.msra.mxu0 0.0
    %4061 = vmatprep.subr.mxu0 0.0
    %4062 = vmatpush2.msra.mxu0 0.0
    %4063 = vmatprep.subr.mxu0 0.0
    %4064 = vmatpush2.msra.mxu0 0.0
    %4065 = vmatprep.subr.mxu0 0.0
    %4066 = vmatpush2.msra.mxu0 0.0
    %4067 = vmatprep.subr.mxu0 0.0
    %4068 = vmatpush2.msra.mxu0 0.0
    %4069 = vmatprep.mubr.f32.mxu0 0.0
    %4070 = vmatmul.mubr.f32.gmra.mxu0 %v3933
    %v4071 = vpop.f32.mrf.mxu0
    %v4072 = vadd.f32 0.0, %v4071
    %v4073 = vpop.f32.mrf.mxu0
    %4074 = vdwg.mxu0
    %4075 = vmatprep.subr.mxu0 0.0
    %4076 = vmatpush1.msra.mxu0 0.0
    %4077 = vmatprep.subr.mxu0 0.0
    %4078 = vmatpush1.msra.mxu0 0.0
    %4079 = vmatprep.subr.mxu0 0.0
    %4080 = vmatpush1.msra.mxu0 0.0
    %4081 = vmatprep.subr.mxu0 0.0
    %4082 = vmatpush1.msra.mxu0 0.0
    %4083 = vmatprep.subr.mxu0 0.0
    %4084 = vmatpush1.msra.mxu0 0.0
    %4085 = vmatprep.subr.mxu0 0.0
    %4086 = vmatpush1.msra.mxu0 0.0
    %4087 = vmatprep.subr.mxu0 0.0
    %4088 = vmatpush1.msra.mxu0 0.0
    %4089 = vmatprep.subr.mxu0 0.0
    %4090 = vmatpush1.msra.mxu0 0.0
    %4091 = vmatprep.subr.mxu0 0.0
    %4092 = vmatpush1.msra.mxu0 0.0
    %4093 = vmatprep.subr.mxu0 0.0
    %4094 = vmatpush1.msra.mxu0 0.0
    %4095 = vmatprep.subr.mxu0 0.0
    %4096 = vmatpush1.msra.mxu0 0.0
    %4097 = vmatprep.subr.mxu0 0.0
    %4098 = vmatpush1.msra.mxu0 0.0
    %4099 = vmatprep.subr.mxu0 0.0
    %4100 = vmatpush1.msra.mxu0 0.0
    %4101 = vmatprep.subr.mxu0 0.0
    %4102 = vmatpush1.msra.mxu0 %v4072
    %4103 = vmatprep.subr.mxu0 0.0
    %4104 = vmatpush1.msra.mxu0 %v4002
    %4105 = vmatprep.subr.mxu0 0.0
    %4106 = vmatpush1.msra.mxu0 %v3931
    %4107 = vmatprep.subr.mxu0 0.0
    %4108 = vmatpush2.msra.mxu0 0.0
    %4109 = vmatprep.subr.mxu0 0.0
    %4110 = vmatpush2.msra.mxu0 0.0
    %4111 = vmatprep.subr.mxu0 0.0
    %4112 = vmatpush2.msra.mxu0 0.0
    %4113 = vmatprep.subr.mxu0 0.0
    %4114 = vmatpush2.msra.mxu0 0.0
    %4115 = vmatprep.subr.mxu0 0.0
    %4116 = vmatpush2.msra.mxu0 0.0
    %4117 = vmatprep.subr.mxu0 0.0
    %4118 = vmatpush2.msra.mxu0 0.0
    %4119 = vmatprep.subr.mxu0 0.0
    %4120 = vmatpush2.msra.mxu0 0.0
    %4121 = vmatprep.subr.mxu0 0.0
    %4122 = vmatpush2.msra.mxu0 0.0
    %4123 = vmatprep.subr.mxu0 0.0
    %4124 = vmatpush2.msra.mxu0 0.0
    %4125 = vmatprep.subr.mxu0 0.0
    %4126 = vmatpush2.msra.mxu0 0.0
    %4127 = vmatprep.subr.mxu0 0.0
    %4128 = vmatpush2.msra.mxu0 0.0
    %4129 = vmatprep.subr.mxu0 0.0
    %4130 = vmatpush2.msra.mxu0 0.0
    %4131 = vmatprep.subr.mxu0 0.0
    %4132 = vmatpush2.msra.mxu0 0.0
    %4133 = vmatprep.subr.mxu0 0.0
    %4134 = vmatpush2.msra.mxu0 0.0
    %4135 = vmatprep.subr.mxu0 0.0
    %4136 = vmatpush2.msra.mxu0 0.0
    %4137 = vmatprep.subr.mxu0 0.0
    %4138 = vmatpush2.msra.mxu0 0.0
    %4139 = vmatprep.mubr.f32.mxu0 0.0
    %4140 = vmatmul.mubr.f32.gmra.mxu0 %v480
    %v4141 = vpop.f32.mrf.mxu0
    %v4142 = vadd.f32 %v471, %v4141
    %v4143 = vpop.f32.mrf.mxu0
    %4144 = vmatprep.mubr.f32.mxu0 0.0
    %4145 = vmatmul.mubr.f32.gmra.mxu0 %v483
    %v4146 = vpop.f32.mrf.mxu0
    %v4147 = vadd.f32 %v476, %v4146
    %v4148 = vpop.f32.mrf.mxu0
    %4149 = vdwg.mxu0
    %v4150 = vxor.u32 %v4142, 2147483648
    %v4151 = vxor.u32 %v4147, 2147483648
    %v4152 = vmul.f32 %v4150, 1.442695
    %v4153 = vpow.pop %v4152
    %v4154 = vmul.f32 %v4151, 1.442695
    %v4155 = vpow.pop %v4154
    %v4156 = vadd.f32 %v4153, 1.0
    %v4157 = vadd.f32 %v4155, 1.0
    %v4158 = vrcp.pop %v4156
    %v4159 = vmul.f32 1.0, %v4158
    %v4160 = vrcp.pop %v4157
    %v4161 = vmul.f32 1.0, %v4160
    %v4162 = vtanh.pop %v4147
    %v4163 = vmul.f32 %v3572, %v4159
    %v4165 = vrot.slane %v4162, 4
    %v4167 = vmul.f32 %v4159, %v4165
    %v4169 = vrot.slane %v4167, 4
    %v4171 = vadd.f32 %v4163, %v4169
    %v4172 = vtanh.pop %v4171
    %v4174 = vrot.slane %v4161, 4
    %v4176 = vmul.f32 %v4172, %v4174
    %s4177 = scalar_lea.vmem %s6, 96
    %v4178 = vld [vmem:[%s4177] sm:$0xff]
    %v4179 = vld [vmem:[%s4177 + $0x8] sm:$0xf]
    %v4181 = vrot.slane %v4176, 4
    %v4183 = vsel %vm1103, %v4178, 0
    %v4186 = vsel %vm1103, %v4179, 0
    %v4188 = vsel %vm198, %v4181, 0
    %4190 = vmatprep.subr.mxu0 0.0
    %4191 = vmatpush1.msra.mxu0 0.0
    %4192 = vmatprep.subr.mxu0 0.0
    %4193 = vmatpush1.msra.mxu0 0.0
    %4194 = vmatprep.subr.mxu0 0.0
    %4195 = vmatpush1.msra.mxu0 0.0
    %4196 = vmatprep.subr.mxu0 0.0
    %4197 = vmatpush1.msra.mxu0 0.0
    %4198 = vmatprep.subr.mxu0 0.0
    %4199 = vmatpush1.msra.mxu0 0.0
    %4200 = vmatprep.subr.mxu0 0.0
    %4201 = vmatpush1.msra.mxu0 0.0
    %4202 = vmatprep.subr.mxu0 0.0
    %4203 = vmatpush1.msra.mxu0 0.0
    %4204 = vmatprep.subr.mxu0 0.0
    %4205 = vmatpush1.msra.mxu0 0.0
    %4206 = vmatprep.subr.mxu0 0.0
    %4207 = vmatpush1.msra.mxu0 0.0
    %4208 = vmatprep.subr.mxu0 0.0
    %4209 = vmatpush1.msra.mxu0 0.0
    %4210 = vmatprep.subr.mxu0 0.0
    %4211 = vmatpush1.msra.mxu0 0.0
    %4212 = vmatprep.subr.mxu0 0.0
    %4213 = vmatpush1.msra.mxu0 0.0
    %4214 = vmatprep.subr.mxu0 0.0
    %4215 = vmatpush1.msra.mxu0 0.0
    %4216 = vmatprep.subr.mxu0 0.0
    %4217 = vmatpush1.msra.mxu0 0.0
    %4218 = vmatprep.subr.mxu0 0.0
    %4219 = vmatpush1.msra.mxu0 0.0
    %4220 = vmatprep.subr.mxu0 0.0
    %4221 = vmatpush1.msra.mxu0 %v4188
    %4222 = vmatprep.subr.mxu0 0.0
    %4223 = vmatpush2.msra.mxu0 0.0
    %4224 = vmatprep.subr.mxu0 0.0
    %4225 = vmatpush2.msra.mxu0 0.0
    %4226 = vmatprep.subr.mxu0 0.0
    %4227 = vmatpush2.msra.mxu0 0.0
    %4228 = vmatprep.subr.mxu0 0.0
    %4229 = vmatpush2.msra.mxu0 0.0
    %4230 = vmatprep.subr.mxu0 0.0
    %4231 = vmatpush2.msra.mxu0 0.0
    %4232 = vmatprep.subr.mxu0 0.0
    %4233 = vmatpush2.msra.mxu0 0.0
    %4234 = vmatprep.subr.mxu0 0.0
    %4235 = vmatpush2.msra.mxu0 0.0
    %4236 = vmatprep.subr.mxu0 0.0
    %4237 = vmatpush2.msra.mxu0 0.0
    %4238 = vmatprep.subr.mxu0 0.0
    %4239 = vmatpush2.msra.mxu0 0.0
    %4240 = vmatprep.subr.mxu0 0.0
    %4241 = vmatpush2.msra.mxu0 0.0
    %4242 = vmatprep.subr.mxu0 0.0
    %4243 = vmatpush2.msra.mxu0 0.0
    %4244 = vmatprep.subr.mxu0 0.0
    %4245 = vmatpush2.msra.mxu0 0.0
    %4246 = vmatprep.subr.mxu0 0.0
    %4247 = vmatpush2.msra.mxu0 0.0
    %4248 = vmatprep.subr.mxu0 0.0
    %4249 = vmatpush2.msra.mxu0 0.0
    %4250 = vmatprep.subr.mxu0 0.0
    %4251 = vmatpush2.msra.mxu0 0.0
    %4252 = vmatprep.subr.mxu0 0.0
    %4253 = vmatpush2.msra.mxu0 0.0
    %4254 = vmatprep.mubr.f32.mxu0 0.0
    %4255 = vmatmul.mubr.f32.gmra.mxu0 %v4183
    %v4256 = vpop.f32.mrf.mxu0
    %v4257 = vadd.f32 0.0, %v4256
    %v4258 = vpop.f32.mrf.mxu0
    %4259 = vmatprep.mubr.f32.mxu0 0.0
    %4260 = vmatmul.mubr.f32.gmra.mxu0 %v4186
    %v4261 = vpop.f32.mrf.mxu0
    %v4262 = vadd.f32 0.0, %v4261
    %v4263 = vpop.f32.mrf.mxu0
    %4264 = vdwg.mxu0
    %v4265 = vadd.f32 %v3666, %v4257
    %v4266 = vadd.f32 %v3667, %v4262
    %s4267 = scalar_lea.vmem %s0, 14
    %v4268 = vld [vmem:[%s4267] sm:$0x3]
    %v4269 = vrot.slane %v3927, 2
    %v4271 = vsel %vm44, %v4268, %v4269
    %v4273 = vsel %vm46, %v4271, 0
    %4275 = vmatprep.subr.mxu0 0.0
    %4276 = vmatpush1.msra.mxu0 0.0
    %4277 = vmatprep.subr.mxu0 0.0
    %4278 = vmatpush1.msra.mxu0 0.0
    %4279 = vmatprep.subr.mxu0 0.0
    %4280 = vmatpush1.msra.mxu0 0.0
    %4281 = vmatprep.subr.mxu0 0.0
    %4282 = vmatpush1.msra.mxu0 0.0
    %4283 = vmatprep.subr.mxu0 0.0
    %4284 = vmatpush1.msra.mxu0 0.0
    %4285 = vmatprep.subr.mxu0 0.0
    %4286 = vmatpush1.msra.mxu0 0.0
    %4287 = vmatprep.subr.mxu0 0.0
    %4288 = vmatpush1.msra.mxu0 0.0
    %4289 = vmatprep.subr.mxu0 0.0
    %4290 = vmatpush1.msra.mxu0 0.0
    %4291 = vmatprep.subr.mxu0 0.0
    %4292 = vmatpush1.msra.mxu0 0.0
    %4293 = vmatprep.subr.mxu0 0.0
    %4294 = vmatpush1.msra.mxu0 0.0
    %4295 = vmatprep.subr.mxu0 0.0
    %4296 = vmatpush1.msra.mxu0 0.0
    %4297 = vmatprep.subr.mxu0 0.0
    %4298 = vmatpush1.msra.mxu0 0.0
    %4299 = vmatprep.subr.mxu0 0.0
    %4300 = vmatpush1.msra.mxu0 0.0
    %4301 = vmatprep.subr.mxu0 0.0
    %4302 = vmatpush1.msra.mxu0 0.0
    %4303 = vmatprep.subr.mxu0 0.0
    %4304 = vmatpush1.msra.mxu0 %v31
    %4305 = vmatprep.subr.mxu0 0.0
    %4306 = vmatpush1.msra.mxu0 %v30
    %4307 = vmatprep.subr.mxu0 0.0
    %4308 = vmatpush2.msra.mxu0 0.0
    %4309 = vmatprep.subr.mxu0 0.0
    %4310 = vmatpush2.msra.mxu0 0.0
    %4311 = vmatprep.subr.mxu0 0.0
    %4312 = vmatpush2.msra.mxu0 0.0
    %4313 = vmatprep.subr.mxu0 0.0
    %4314 = vmatpush2.msra.mxu0 0.0
    %4315 = vmatprep.subr.mxu0 0.0
    %4316 = vmatpush2.msra.mxu0 0.0
    %4317 = vmatprep.subr.mxu0 0.0
    %4318 = vmatpush2.msra.mxu0 0.0
    %4319 = vmatprep.subr.mxu0 0.0
    %4320 = vmatpush2.msra.mxu0 0.0
    %4321 = vmatprep.subr.mxu0 0.0
    %4322 = vmatpush2.msra.mxu0 0.0
    %4323 = vmatprep.subr.mxu0 0.0
    %4324 = vmatpush2.msra.mxu0 0.0
    %4325 = vmatprep.subr.mxu0 0.0
    %4326 = vmatpush2.msra.mxu0 0.0
    %4327 = vmatprep.subr.mxu0 0.0
    %4328 = vmatpush2.msra.mxu0 0.0
    %4329 = vmatprep.subr.mxu0 0.0
    %4330 = vmatpush2.msra.mxu0 0.0
    %4331 = vmatprep.subr.mxu0 0.0
    %4332 = vmatpush2.msra.mxu0 0.0
    %4333 = vmatprep.subr.mxu0 0.0
    %4334 = vmatpush2.msra.mxu0 0.0
    %4335 = vmatprep.subr.mxu0 0.0
    %4336 = vmatpush2.msra.mxu0 0.0
    %4337 = vmatprep.subr.mxu0 0.0
    %4338 = vmatpush2.msra.mxu0 0.0
    %4339 = vmatprep.mubr.f32.mxu0 0.0
    %4340 = vmatmul.mubr.f32.gmra.mxu0 %v4273
    %v4341 = vpop.f32.mrf.mxu0
    %v4342 = vadd.f32 0.0, %v4341
    %v4343 = vpop.f32.mrf.mxu0
    %4344 = vdwg.mxu0
    %4345 = vmatprep.subr.mxu0 0.0
    %4346 = vmatpush1.msra.mxu0 0.0
    %4347 = vmatprep.subr.mxu0 0.0
    %4348 = vmatpush1.msra.mxu0 0.0
    %4349 = vmatprep.subr.mxu0 0.0
    %4350 = vmatpush1.msra.mxu0 0.0
    %4351 = vmatprep.subr.mxu0 0.0
    %4352 = vmatpush1.msra.mxu0 0.0
    %4353 = vmatprep.subr.mxu0 0.0
    %4354 = vmatpush1.msra.mxu0 0.0
    %4355 = vmatprep.subr.mxu0 0.0
    %4356 = vmatpush1.msra.mxu0 0.0
    %4357 = vmatprep.subr.mxu0 0.0
    %4358 = vmatpush1.msra.mxu0 0.0
    %4359 = vmatprep.subr.mxu0 0.0
    %4360 = vmatpush1.msra.mxu0 0.0
    %4361 = vmatprep.subr.mxu0 0.0
    %4362 = vmatpush1.msra.mxu0 0.0
    %4363 = vmatprep.subr.mxu0 0.0
    %4364 = vmatpush1.msra.mxu0 0.0
    %4365 = vmatprep.subr.mxu0 0.0
    %4366 = vmatpush1.msra.mxu0 0.0
    %4367 = vmatprep.subr.mxu0 0.0
    %4368 = vmatpush1.msra.mxu0 0.0
    %4369 = vmatprep.subr.mxu0 0.0
    %4370 = vmatpush1.msra.mxu0 0.0
    %4371 = vmatprep.subr.mxu0 0.0
    %4372 = vmatpush1.msra.mxu0 0.0
    %4373 = vmatprep.subr.mxu0 0.0
    %4374 = vmatpush1.msra.mxu0 %v34
    %4375 = vmatprep.subr.mxu0 0.0
    %4376 = vmatpush1.msra.mxu0 %v33
    %4377 = vmatprep.subr.mxu0 0.0
    %4378 = vmatpush2.msra.mxu0 0.0
    %4379 = vmatprep.subr.mxu0 0.0
    %4380 = vmatpush2.msra.mxu0 0.0
    %4381 = vmatprep.subr.mxu0 0.0
    %4382 = vmatpush2.msra.mxu0 0.0
    %4383 = vmatprep.subr.mxu0 0.0
    %4384 = vmatpush2.msra.mxu0 0.0
    %4385 = vmatprep.subr.mxu0 0.0
    %4386 = vmatpush2.msra.mxu0 0.0
    %4387 = vmatprep.subr.mxu0 0.0
    %4388 = vmatpush2.msra.mxu0 0.0
    %4389 = vmatprep.subr.mxu0 0.0
    %4390 = vmatpush2.msra.mxu0 0.0
    %4391 = vmatprep.subr.mxu0 0.0
    %4392 = vmatpush2.msra.mxu0 0.0
    %4393 = vmatprep.subr.mxu0 0.0
    %4394 = vmatpush2.msra.mxu0 0.0
    %4395 = vmatprep.subr.mxu0 0.0
    %4396 = vmatpush2.msra.mxu0 0.0
    %4397 = vmatprep.subr.mxu0 0.0
    %4398 = vmatpush2.msra.mxu0 0.0
    %4399 = vmatprep.subr.mxu0 0.0
    %4400 = vmatpush2.msra.mxu0 0.0
    %4401 = vmatprep.subr.mxu0 0.0
    %4402 = vmatpush2.msra.mxu0 0.0
    %4403 = vmatprep.subr.mxu0 0.0
    %4404 = vmatpush2.msra.mxu0 0.0
    %4405 = vmatprep.subr.mxu0 0.0
    %4406 = vmatpush2.msra.mxu0 0.0
    %4407 = vmatprep.subr.mxu0 0.0
    %4408 = vmatpush2.msra.mxu0 0.0
    %4409 = vmatprep.mubr.f32.mxu0 0.0
    %4410 = vmatmul.mubr.f32.gmra.mxu0 %v4273
    %v4411 = vpop.f32.mrf.mxu0
    %v4412 = vadd.f32 0.0, %v4411
    %v4413 = vpop.f32.mrf.mxu0
    %4414 = vdwg.mxu0
    %v4416 = vrot.slane %v4342, 2
    %v4419 = vrot.slane %v4412, 4
    %v4421 = vsel %vm196, %v4271, %v4416
    %v4422 = vsel %vm198, %v4416, %v4419
    %v4423 = vsel %vm44, %v4419, 0
    %4425 = vmatprep.subr.mxu0 0.0
    %4426 = vmatpush1.msra.mxu0 0.0
    %4427 = vmatprep.subr.mxu0 0.0
    %4428 = vmatpush1.msra.mxu0 0.0
    %4429 = vmatprep.subr.mxu0 0.0
    %4430 = vmatpush1.msra.mxu0 0.0
    %4431 = vmatprep.subr.mxu0 0.0
    %4432 = vmatpush1.msra.mxu0 0.0
    %4433 = vmatprep.subr.mxu0 0.0
    %4434 = vmatpush1.msra.mxu0 0.0
    %4435 = vmatprep.subr.mxu0 0.0
    %4436 = vmatpush1.msra.mxu0 0.0
    %4437 = vmatprep.subr.mxu0 0.0
    %4438 = vmatpush1.msra.mxu0 0.0
    %4439 = vmatprep.subr.mxu0 0.0
    %4440 = vmatpush1.msra.mxu0 0.0
    %4441 = vmatprep.subr.mxu0 0.0
    %4442 = vmatpush1.msra.mxu0 0.0
    %4443 = vmatprep.subr.mxu0 0.0
    %4444 = vmatpush1.msra.mxu0 0.0
    %4445 = vmatprep.subr.mxu0 0.0
    %4446 = vmatpush1.msra.mxu0 0.0
    %4447 = vmatprep.subr.mxu0 0.0
    %4448 = vmatpush1.msra.mxu0 0.0
    %4449 = vmatprep.subr.mxu0 0.0
    %4450 = vmatpush1.msra.mxu0 0.0
    %4451 = vmatprep.subr.mxu0 0.0
    %4452 = vmatpush1.msra.mxu0 %v4423
    %4453 = vmatprep.subr.mxu0 0.0
    %4454 = vmatpush1.msra.mxu0 %v4422
    %4455 = vmatprep.subr.mxu0 0.0
    %4456 = vmatpush1.msra.mxu0 %v4421
    %4457 = vmatprep.subr.mxu0 0.0
    %4458 = vmatpush2.msra.mxu0 0.0
    %4459 = vmatprep.subr.mxu0 0.0
    %4460 = vmatpush2.msra.mxu0 0.0
    %4461 = vmatprep.subr.mxu0 0.0
    %4462 = vmatpush2.msra.mxu0 0.0
    %4463 = vmatprep.subr.mxu0 0.0
    %4464 = vmatpush2.msra.mxu0 0.0
    %4465 = vmatprep.subr.mxu0 0.0
    %4466 = vmatpush2.msra.mxu0 0.0
    %4467 = vmatprep.subr.mxu0 0.0
    %4468 = vmatpush2.msra.mxu0 0.0
    %4469 = vmatprep.subr.mxu0 0.0
    %4470 = vmatpush2.msra.mxu0 0.0
    %4471 = vmatprep.subr.mxu0 0.0
    %4472 = vmatpush2.msra.mxu0 0.0
    %4473 = vmatprep.subr.mxu0 0.0
    %4474 = vmatpush2.msra.mxu0 0.0
    %4475 = vmatprep.subr.mxu0 0.0
    %4476 = vmatpush2.msra.mxu0 0.0
    %4477 = vmatprep.subr.mxu0 0.0
    %4478 = vmatpush2.msra.mxu0 0.0
    %4479 = vmatprep.subr.mxu0 0.0
    %4480 = vmatpush2.msra.mxu0 0.0
    %4481 = vmatprep.subr.mxu0 0.0
    %4482 = vmatpush2.msra.mxu0 0.0
    %4483 = vmatprep.subr.mxu0 0.0
    %4484 = vmatpush2.msra.mxu0 0.0
    %4485 = vmatprep.subr.mxu0 0.0
    %4486 = vmatpush2.msra.mxu0 0.0
    %4487 = vmatprep.subr.mxu0 0.0
    %4488 = vmatpush2.msra.mxu0 0.0
    %4489 = vmatprep.mubr.f32.mxu0 0.0
    %4490 = vmatmul.mubr.f32.gmra.mxu0 %v212
    %v4491 = vpop.f32.mrf.mxu0
    %v4492 = vadd.f32 %v203, %v4491
    %v4493 = vpop.f32.mrf.mxu0
    %4494 = vmatprep.mubr.f32.mxu0 0.0
    %4495 = vmatmul.mubr.f32.gmra.mxu0 %v215
    %v4496 = vpop.f32.mrf.mxu0
    %v4497 = vadd.f32 %v208, %v4496
    %v4498 = vpop.f32.mrf.mxu0
    %4499 = vdwg.mxu0
    %v4500 = vxor.u32 %v4492, 2147483648
    %v4501 = vxor.u32 %v4497, 2147483648
    %v4502 = vmul.f32 %v4500, 1.442695
    %v4503 = vpow.pop %v4502
    %v4504 = vmul.f32 %v4501, 1.442695
    %v4505 = vpow.pop %v4504
    %v4506 = vadd.f32 %v4503, 1.0
    %v4507 = vadd.f32 %v4505, 1.0
    %v4508 = vrcp.pop %v4506
    %v4509 = vmul.f32 1.0, %v4508
    %v4510 = vrcp.pop %v4507
    %v4511 = vmul.f32 1.0, %v4510
    %v4512 = vtanh.pop %v4497
    %v4513 = vmul.f32 %v3922, %v4509
    %v4515 = vrot.slane %v4512, 4
    %v4517 = vmul.f32 %v4509, %v4515
    %v4519 = vrot.slane %v4517, 4
    %v4521 = vadd.f32 %v4513, %v4519
    %v4522 = vtanh.pop %v4521
    %v4524 = vrot.slane %v4511, 4
    %v4526 = vmul.f32 %v4522, %v4524
    %v4528 = vrot.slane %v4526, 4
    %v4530 = vsel %vm198, %v4528, %v4176
    %v4532 = vsel %vm46, %v4530, 0
    %4534 = vmatprep.subr.mxu0 0.0
    %4535 = vmatpush1.msra.mxu0 0.0
    %4536 = vmatprep.subr.mxu0 0.0
    %4537 = vmatpush1.msra.mxu0 0.0
    %4538 = vmatprep.subr.mxu0 0.0
    %4539 = vmatpush1.msra.mxu0 0.0
    %4540 = vmatprep.subr.mxu0 0.0
    %4541 = vmatpush1.msra.mxu0 0.0
    %4542 = vmatprep.subr.mxu0 0.0
    %4543 = vmatpush1.msra.mxu0 0.0
    %4544 = vmatprep.subr.mxu0 0.0
    %4545 = vmatpush1.msra.mxu0 0.0
    %4546 = vmatprep.subr.mxu0 0.0
    %4547 = vmatpush1.msra.mxu0 0.0
    %4548 = vmatprep.subr.mxu0 0.0
    %4549 = vmatpush1.msra.mxu0 0.0
    %4550 = vmatprep.subr.mxu0 0.0
    %4551 = vmatpush1.msra.mxu0 0.0
    %4552 = vmatprep.subr.mxu0 0.0
    %4553 = vmatpush1.msra.mxu0 0.0
    %4554 = vmatprep.subr.mxu0 0.0
    %4555 = vmatpush1.msra.mxu0 0.0
    %4556 = vmatprep.subr.mxu0 0.0
    %4557 = vmatpush1.msra.mxu0 0.0
    %4558 = vmatprep.subr.mxu0 0.0
    %4559 = vmatpush1.msra.mxu0 0.0
    %4560 = vmatprep.subr.mxu0 0.0
    %4561 = vmatpush1.msra.mxu0 0.0
    %4562 = vmatprep.subr.mxu0 0.0
    %4563 = vmatpush1.msra.mxu0 %v31
    %4564 = vmatprep.subr.mxu0 0.0
    %4565 = vmatpush1.msra.mxu0 %v30
    %4566 = vmatprep.subr.mxu0 0.0
    %4567 = vmatpush2.msra.mxu0 0.0
    %4568 = vmatprep.subr.mxu0 0.0
    %4569 = vmatpush2.msra.mxu0 0.0
    %4570 = vmatprep.subr.mxu0 0.0
    %4571 = vmatpush2.msra.mxu0 0.0
    %4572 = vmatprep.subr.mxu0 0.0
    %4573 = vmatpush2.msra.mxu0 0.0
    %4574 = vmatprep.subr.mxu0 0.0
    %4575 = vmatpush2.msra.mxu0 0.0
    %4576 = vmatprep.subr.mxu0 0.0
    %4577 = vmatpush2.msra.mxu0 0.0
    %4578 = vmatprep.subr.mxu0 0.0
    %4579 = vmatpush2.msra.mxu0 0.0
    %4580 = vmatprep.subr.mxu0 0.0
    %4581 = vmatpush2.msra.mxu0 0.0
    %4582 = vmatprep.subr.mxu0 0.0
    %4583 = vmatpush2.msra.mxu0 0.0
    %4584 = vmatprep.subr.mxu0 0.0
    %4585 = vmatpush2.msra.mxu0 0.0
    %4586 = vmatprep.subr.mxu0 0.0
    %4587 = vmatpush2.msra.mxu0 0.0
    %4588 = vmatprep.subr.mxu0 0.0
    %4589 = vmatpush2.msra.mxu0 0.0
    %4590 = vmatprep.subr.mxu0 0.0
    %4591 = vmatpush2.msra.mxu0 0.0
    %4592 = vmatprep.subr.mxu0 0.0
    %4593 = vmatpush2.msra.mxu0 0.0
    %4594 = vmatprep.subr.mxu0 0.0
    %4595 = vmatpush2.msra.mxu0 0.0
    %4596 = vmatprep.subr.mxu0 0.0
    %4597 = vmatpush2.msra.mxu0 0.0
    %4598 = vmatprep.mubr.f32.mxu0 0.0
    %4599 = vmatmul.mubr.f32.gmra.mxu0 %v4532
    %v4600 = vpop.f32.mrf.mxu0
    %v4601 = vadd.f32 0.0, %v4600
    %v4602 = vpop.f32.mrf.mxu0
    %4603 = vdwg.mxu0
    %4604 = vmatprep.subr.mxu0 0.0
    %4605 = vmatpush1.msra.mxu0 0.0
    %4606 = vmatprep.subr.mxu0 0.0
    %4607 = vmatpush1.msra.mxu0 0.0
    %4608 = vmatprep.subr.mxu0 0.0
    %4609 = vmatpush1.msra.mxu0 0.0
    %4610 = vmatprep.subr.mxu0 0.0
    %4611 = vmatpush1.msra.mxu0 0.0
    %4612 = vmatprep.subr.mxu0 0.0
    %4613 = vmatpush1.msra.mxu0 0.0
    %4614 = vmatprep.subr.mxu0 0.0
    %4615 = vmatpush1.msra.mxu0 0.0
    %4616 = vmatprep.subr.mxu0 0.0
    %4617 = vmatpush1.msra.mxu0 0.0
    %4618 = vmatprep.subr.mxu0 0.0
    %4619 = vmatpush1.msra.mxu0 0.0
    %4620 = vmatprep.subr.mxu0 0.0
    %4621 = vmatpush1.msra.mxu0 0.0
    %4622 = vmatprep.subr.mxu0 0.0
    %4623 = vmatpush1.msra.mxu0 0.0
    %4624 = vmatprep.subr.mxu0 0.0
    %4625 = vmatpush1.msra.mxu0 0.0
    %4626 = vmatprep.subr.mxu0 0.0
    %4627 = vmatpush1.msra.mxu0 0.0
    %4628 = vmatprep.subr.mxu0 0.0
    %4629 = vmatpush1.msra.mxu0 0.0
    %4630 = vmatprep.subr.mxu0 0.0
    %4631 = vmatpush1.msra.mxu0 0.0
    %4632 = vmatprep.subr.mxu0 0.0
    %4633 = vmatpush1.msra.mxu0 %v34
    %4634 = vmatprep.subr.mxu0 0.0
    %4635 = vmatpush1.msra.mxu0 %v33
    %4636 = vmatprep.subr.mxu0 0.0
    %4637 = vmatpush2.msra.mxu0 0.0
    %4638 = vmatprep.subr.mxu0 0.0
    %4639 = vmatpush2.msra.mxu0 0.0
    %4640 = vmatprep.subr.mxu0 0.0
    %4641 = vmatpush2.msra.mxu0 0.0
    %4642 = vmatprep.subr.mxu0 0.0
    %4643 = vmatpush2.msra.mxu0 0.0
    %4644 = vmatprep.subr.mxu0 0.0
    %4645 = vmatpush2.msra.mxu0 0.0
    %4646 = vmatprep.subr.mxu0 0.0
    %4647 = vmatpush2.msra.mxu0 0.0
    %4648 = vmatprep.subr.mxu0 0.0
    %4649 = vmatpush2.msra.mxu0 0.0
    %4650 = vmatprep.subr.mxu0 0.0
    %4651 = vmatpush2.msra.mxu0 0.0
    %4652 = vmatprep.subr.mxu0 0.0
    %4653 = vmatpush2.msra.mxu0 0.0
    %4654 = vmatprep.subr.mxu0 0.0
    %4655 = vmatpush2.msra.mxu0 0.0
    %4656 = vmatprep.subr.mxu0 0.0
    %4657 = vmatpush2.msra.mxu0 0.0
    %4658 = vmatprep.subr.mxu0 0.0
    %4659 = vmatpush2.msra.mxu0 0.0
    %4660 = vmatprep.subr.mxu0 0.0
    %4661 = vmatpush2.msra.mxu0 0.0
    %4662 = vmatprep.subr.mxu0 0.0
    %4663 = vmatpush2.msra.mxu0 0.0
    %4664 = vmatprep.subr.mxu0 0.0
    %4665 = vmatpush2.msra.mxu0 0.0
    %4666 = vmatprep.subr.mxu0 0.0
    %4667 = vmatpush2.msra.mxu0 0.0
    %4668 = vmatprep.mubr.f32.mxu0 0.0
    %4669 = vmatmul.mubr.f32.gmra.mxu0 %v4532
    %v4670 = vpop.f32.mrf.mxu0
    %v4671 = vadd.f32 0.0, %v4670
    %v4672 = vpop.f32.mrf.mxu0
    %4673 = vdwg.mxu0
    %4674 = vmatprep.subr.mxu0 0.0
    %4675 = vmatpush1.msra.mxu0 0.0
    %4676 = vmatprep.subr.mxu0 0.0
    %4677 = vmatpush1.msra.mxu0 0.0
    %4678 = vmatprep.subr.mxu0 0.0
    %4679 = vmatpush1.msra.mxu0 0.0
    %4680 = vmatprep.subr.mxu0 0.0
    %4681 = vmatpush1.msra.mxu0 0.0
    %4682 = vmatprep.subr.mxu0 0.0
    %4683 = vmatpush1.msra.mxu0 0.0
    %4684 = vmatprep.subr.mxu0 0.0
    %4685 = vmatpush1.msra.mxu0 0.0
    %4686 = vmatprep.subr.mxu0 0.0
    %4687 = vmatpush1.msra.mxu0 0.0
    %4688 = vmatprep.subr.mxu0 0.0
    %4689 = vmatpush1.msra.mxu0 0.0
    %4690 = vmatprep.subr.mxu0 0.0
    %4691 = vmatpush1.msra.mxu0 0.0
    %4692 = vmatprep.subr.mxu0 0.0
    %4693 = vmatpush1.msra.mxu0 0.0
    %4694 = vmatprep.subr.mxu0 0.0
    %4695 = vmatpush1.msra.mxu0 0.0
    %4696 = vmatprep.subr.mxu0 0.0
    %4697 = vmatpush1.msra.mxu0 0.0
    %4698 = vmatprep.subr.mxu0 0.0
    %4699 = vmatpush1.msra.mxu0 0.0
    %4700 = vmatprep.subr.mxu0 0.0
    %4701 = vmatpush1.msra.mxu0 %v4671
    %4702 = vmatprep.subr.mxu0 0.0
    %4703 = vmatpush1.msra.mxu0 %v4601
    %4704 = vmatprep.subr.mxu0 0.0
    %4705 = vmatpush1.msra.mxu0 %v4530
    %4706 = vmatprep.subr.mxu0 0.0
    %4707 = vmatpush2.msra.mxu0 0.0
    %4708 = vmatprep.subr.mxu0 0.0
    %4709 = vmatpush2.msra.mxu0 0.0
    %4710 = vmatprep.subr.mxu0 0.0
    %4711 = vmatpush2.msra.mxu0 0.0
    %4712 = vmatprep.subr.mxu0 0.0
    %4713 = vmatpush2.msra.mxu0 0.0
    %4714 = vmatprep.subr.mxu0 0.0
    %4715 = vmatpush2.msra.mxu0 0.0
    %4716 = vmatprep.subr.mxu0 0.0
    %4717 = vmatpush2.msra.mxu0 0.0
    %4718 = vmatprep.subr.mxu0 0.0
    %4719 = vmatpush2.msra.mxu0 0.0
    %4720 = vmatprep.subr.mxu0 0.0
    %4721 = vmatpush2.msra.mxu0 0.0
    %4722 = vmatprep.subr.mxu0 0.0
    %4723 = vmatpush2.msra.mxu0 0.0
    %4724 = vmatprep.subr.mxu0 0.0
    %4725 = vmatpush2.msra.mxu0 0.0
    %4726 = vmatprep.subr.mxu0 0.0
    %4727 = vmatpush2.msra.mxu0 0.0
    %4728 = vmatprep.subr.mxu0 0.0
    %4729 = vmatpush2.msra.mxu0 0.0
    %4730 = vmatprep.subr.mxu0 0.0
    %4731 = vmatpush2.msra.mxu0 0.0
    %4732 = vmatprep.subr.mxu0 0.0
    %4733 = vmatpush2.msra.mxu0 0.0
    %4734 = vmatprep.subr.mxu0 0.0
    %4735 = vmatpush2.msra.mxu0 0.0
    %4736 = vmatprep.subr.mxu0 0.0
    %4737 = vmatpush2.msra.mxu0 0.0
    %4738 = vmatprep.mubr.f32.mxu0 0.0
    %4739 = vmatmul.mubr.f32.gmra.mxu0 %v480
    %v4740 = vpop.f32.mrf.mxu0
    %v4741 = vadd.f32 %v471, %v4740
    %v4742 = vpop.f32.mrf.mxu0
    %4743 = vmatprep.mubr.f32.mxu0 0.0
    %4744 = vmatmul.mubr.f32.gmra.mxu0 %v483
    %v4745 = vpop.f32.mrf.mxu0
    %v4746 = vadd.f32 %v476, %v4745
    %v4747 = vpop.f32.mrf.mxu0
    %4748 = vdwg.mxu0
    %v4749 = vxor.u32 %v4741, 2147483648
    %v4750 = vxor.u32 %v4746, 2147483648
    %v4751 = vmul.f32 %v4749, 1.442695
    %v4752 = vpow.pop %v4751
    %v4753 = vmul.f32 %v4750, 1.442695
    %v4754 = vpow.pop %v4753
    %v4755 = vadd.f32 %v4752, 1.0
    %v4756 = vadd.f32 %v4754, 1.0
    %v4757 = vrcp.pop %v4755
    %v4758 = vmul.f32 1.0, %v4757
    %v4759 = vrcp.pop %v4756
    %v4760 = vmul.f32 1.0, %v4759
    %v4761 = vtanh.pop %v4746
    %v4762 = vmul.f32 %v4171, %v4758
    %v4764 = vrot.slane %v4761, 4
    %v4766 = vmul.f32 %v4758, %v4764
    %v4768 = vrot.slane %v4766, 4
    %v4770 = vadd.f32 %v4762, %v4768
    %v4771 = vtanh.pop %v4770
    %v4773 = vrot.slane %v4760, 4
    %v4775 = vmul.f32 %v4771, %v4773
    %s4776 = scalar_lea.vmem %s6, 112
    %v4777 = vld [vmem:[%s4776] sm:$0xff]
    %v4778 = vld [vmem:[%s4776 + $0x8] sm:$0xf]
    %v4780 = vrot.slane %v4775, 4
    %v4782 = vsel %vm1103, %v4777, 0
    %v4785 = vsel %vm1103, %v4778, 0
    %v4787 = vsel %vm198, %v4780, 0
    %4789 = vmatprep.subr.mxu0 0.0
    %4790 = vmatpush1.msra.mxu0 0.0
    %4791 = vmatprep.subr.mxu0 0.0
    %4792 = vmatpush1.msra.mxu0 0.0
    %4793 = vmatprep.subr.mxu0 0.0
    %4794 = vmatpush1.msra.mxu0 0.0
    %4795 = vmatprep.subr.mxu0 0.0
    %4796 = vmatpush1.msra.mxu0 0.0
    %4797 = vmatprep.subr.mxu0 0.0
    %4798 = vmatpush1.msra.mxu0 0.0
    %4799 = vmatprep.subr.mxu0 0.0
    %4800 = vmatpush1.msra.mxu0 0.0
    %4801 = vmatprep.subr.mxu0 0.0
    %4802 = vmatpush1.msra.mxu0 0.0
    %4803 = vmatprep.subr.mxu0 0.0
    %4804 = vmatpush1.msra.mxu0 0.0
    %4805 = vmatprep.subr.mxu0 0.0
    %4806 = vmatpush1.msra.mxu0 0.0
    %4807 = vmatprep.subr.mxu0 0.0
    %4808 = vmatpush1.msra.mxu0 0.0
    %4809 = vmatprep.subr.mxu0 0.0
    %4810 = vmatpush1.msra.mxu0 0.0
    %4811 = vmatprep.subr.mxu0 0.0
    %4812 = vmatpush1.msra.mxu0 0.0
    %4813 = vmatprep.subr.mxu0 0.0
    %4814 = vmatpush1.msra.mxu0 0.0
    %4815 = vmatprep.subr.mxu0 0.0
    %4816 = vmatpush1.msra.mxu0 0.0
    %4817 = vmatprep.subr.mxu0 0.0
    %4818 = vmatpush1.msra.mxu0 0.0
    %4819 = vmatprep.subr.mxu0 0.0
    %4820 = vmatpush1.msra.mxu0 %v4787
    %4821 = vmatprep.subr.mxu0 0.0
    %4822 = vmatpush2.msra.mxu0 0.0
    %4823 = vmatprep.subr.mxu0 0.0
    %4824 = vmatpush2.msra.mxu0 0.0
    %4825 = vmatprep.subr.mxu0 0.0
    %4826 = vmatpush2.msra.mxu0 0.0
    %4827 = vmatprep.subr.mxu0 0.0
    %4828 = vmatpush2.msra.mxu0 0.0
    %4829 = vmatprep.subr.mxu0 0.0
    %4830 = vmatpush2.msra.mxu0 0.0
    %4831 = vmatprep.subr.mxu0 0.0
    %4832 = vmatpush2.msra.mxu0 0.0
    %4833 = vmatprep.subr.mxu0 0.0
    %4834 = vmatpush2.msra.mxu0 0.0
    %4835 = vmatprep.subr.mxu0 0.0
    %4836 = vmatpush2.msra.mxu0 0.0
    %4837 = vmatprep.subr.mxu0 0.0
    %4838 = vmatpush2.msra.mxu0 0.0
    %4839 = vmatprep.subr.mxu0 0.0
    %4840 = vmatpush2.msra.mxu0 0.0
    %4841 = vmatprep.subr.mxu0 0.0
    %4842 = vmatpush2.msra.mxu0 0.0
    %4843 = vmatprep.subr.mxu0 0.0
    %4844 = vmatpush2.msra.mxu0 0.0
    %4845 = vmatprep.subr.mxu0 0.0
    %4846 = vmatpush2.msra.mxu0 0.0
    %4847 = vmatprep.subr.mxu0 0.0
    %4848 = vmatpush2.msra.mxu0 0.0
    %4849 = vmatprep.subr.mxu0 0.0
    %4850 = vmatpush2.msra.mxu0 0.0
    %4851 = vmatprep.subr.mxu0 0.0
    %4852 = vmatpush2.msra.mxu0 0.0
    %4853 = vmatprep.mubr.f32.mxu0 0.0
    %4854 = vmatmul.mubr.f32.gmra.mxu0 %v4782
    %v4855 = vpop.f32.mrf.mxu0
    %v4856 = vadd.f32 0.0, %v4855
    %v4857 = vpop.f32.mrf.mxu0
    %4858 = vmatprep.mubr.f32.mxu0 0.0
    %4859 = vmatmul.mubr.f32.gmra.mxu0 %v4785
    %v4860 = vpop.f32.mrf.mxu0
    %v4861 = vadd.f32 0.0, %v4860
    %v4862 = vpop.f32.mrf.mxu0
    %4863 = vdwg.mxu0
    %v4864 = vadd.f32 %v4265, %v4856
    %v4865 = vadd.f32 %v4266, %v4861
    %s4866 = scalar_lea.vmem %s0, 16
    %v4867 = vld [vmem:[%s4866] sm:$0x3]
    %v4868 = vrot.slane %v4526, 2
    %v4870 = vsel %vm44, %v4867, %v4868
    %v4872 = vsel %vm46, %v4870, 0
    %4874 = vmatprep.subr.mxu0 0.0
    %4875 = vmatpush1.msra.mxu0 0.0
    %4876 = vmatprep.subr.mxu0 0.0
    %4877 = vmatpush1.msra.mxu0 0.0
    %4878 = vmatprep.subr.mxu0 0.0
    %4879 = vmatpush1.msra.mxu0 0.0
    %4880 = vmatprep.subr.mxu0 0.0
    %4881 = vmatpush1.msra.mxu0 0.0
    %4882 = vmatprep.subr.mxu0 0.0
    %4883 = vmatpush1.msra.mxu0 0.0
    %4884 = vmatprep.subr.mxu0 0.0
    %4885 = vmatpush1.msra.mxu0 0.0
    %4886 = vmatprep.subr.mxu0 0.0
    %4887 = vmatpush1.msra.mxu0 0.0
    %4888 = vmatprep.subr.mxu0 0.0
    %4889 = vmatpush1.msra.mxu0 0.0
    %4890 = vmatprep.subr.mxu0 0.0
    %4891 = vmatpush1.msra.mxu0 0.0
    %4892 = vmatprep.subr.mxu0 0.0
    %4893 = vmatpush1.msra.mxu0 0.0
    %4894 = vmatprep.subr.mxu0 0.0
    %4895 = vmatpush1.msra.mxu0 0.0
    %4896 = vmatprep.subr.mxu0 0.0
    %4897 = vmatpush1.msra.mxu0 0.0
    %4898 = vmatprep.subr.mxu0 0.0
    %4899 = vmatpush1.msra.mxu0 0.0
    %4900 = vmatprep.subr.mxu0 0.0
    %4901 = vmatpush1.msra.mxu0 0.0
    %4902 = vmatprep.subr.mxu0 0.0
    %4903 = vmatpush1.msra.mxu0 %v31
    %4904 = vmatprep.subr.mxu0 0.0
    %4905 = vmatpush1.msra.mxu0 %v30
    %4906 = vmatprep.subr.mxu0 0.0
    %4907 = vmatpush2.msra.mxu0 0.0
    %4908 = vmatprep.subr.mxu0 0.0
    %4909 = vmatpush2.msra.mxu0 0.0
    %4910 = vmatprep.subr.mxu0 0.0
    %4911 = vmatpush2.msra.mxu0 0.0
    %4912 = vmatprep.subr.mxu0 0.0
    %4913 = vmatpush2.msra.mxu0 0.0
    %4914 = vmatprep.subr.mxu0 0.0
    %4915 = vmatpush2.msra.mxu0 0.0
    %4916 = vmatprep.subr.mxu0 0.0
    %4917 = vmatpush2.msra.mxu0 0.0
    %4918 = vmatprep.subr.mxu0 0.0
    %4919 = vmatpush2.msra.mxu0 0.0
    %4920 = vmatprep.subr.mxu0 0.0
    %4921 = vmatpush2.msra.mxu0 0.0
    %4922 = vmatprep.subr.mxu0 0.0
    %4923 = vmatpush2.msra.mxu0 0.0
    %4924 = vmatprep.subr.mxu0 0.0
    %4925 = vmatpush2.msra.mxu0 0.0
    %4926 = vmatprep.subr.mxu0 0.0
    %4927 = vmatpush2.msra.mxu0 0.0
    %4928 = vmatprep.subr.mxu0 0.0
    %4929 = vmatpush2.msra.mxu0 0.0
    %4930 = vmatprep.subr.mxu0 0.0
    %4931 = vmatpush2.msra.mxu0 0.0
    %4932 = vmatprep.subr.mxu0 0.0
    %4933 = vmatpush2.msra.mxu0 0.0
    %4934 = vmatprep.subr.mxu0 0.0
    %4935 = vmatpush2.msra.mxu0 0.0
    %4936 = vmatprep.subr.mxu0 0.0
    %4937 = vmatpush2.msra.mxu0 0.0
    %4938 = vmatprep.mubr.f32.mxu0 0.0
    %4939 = vmatmul.mubr.f32.gmra.mxu0 %v4872
    %v4940 = vpop.f32.mrf.mxu0
    %v4941 = vadd.f32 0.0, %v4940
    %v4942 = vpop.f32.mrf.mxu0
    %4943 = vdwg.mxu0
    %4944 = vmatprep.subr.mxu0 0.0
    %4945 = vmatpush1.msra.mxu0 0.0
    %4946 = vmatprep.subr.mxu0 0.0
    %4947 = vmatpush1.msra.mxu0 0.0
    %4948 = vmatprep.subr.mxu0 0.0
    %4949 = vmatpush1.msra.mxu0 0.0
    %4950 = vmatprep.subr.mxu0 0.0
    %4951 = vmatpush1.msra.mxu0 0.0
    %4952 = vmatprep.subr.mxu0 0.0
    %4953 = vmatpush1.msra.mxu0 0.0
    %4954 = vmatprep.subr.mxu0 0.0
    %4955 = vmatpush1.msra.mxu0 0.0
    %4956 = vmatprep.subr.mxu0 0.0
    %4957 = vmatpush1.msra.mxu0 0.0
    %4958 = vmatprep.subr.mxu0 0.0
    %4959 = vmatpush1.msra.mxu0 0.0
    %4960 = vmatprep.subr.mxu0 0.0
    %4961 = vmatpush1.msra.mxu0 0.0
    %4962 = vmatprep.subr.mxu0 0.0
    %4963 = vmatpush1.msra.mxu0 0.0
    %4964 = vmatprep.subr.mxu0 0.0
    %4965 = vmatpush1.msra.mxu0 0.0
    %4966 = vmatprep.subr.mxu0 0.0
    %4967 = vmatpush1.msra.mxu0 0.0
    %4968 = vmatprep.subr.mxu0 0.0
    %4969 = vmatpush1.msra.mxu0 0.0
    %4970 = vmatprep.subr.mxu0 0.0
    %4971 = vmatpush1.msra.mxu0 0.0
    %4972 = vmatprep.subr.mxu0 0.0
    %4973 = vmatpush1.msra.mxu0 %v34
    %4974 = vmatprep.subr.mxu0 0.0
    %4975 = vmatpush1.msra.mxu0 %v33
    %4976 = vmatprep.subr.mxu0 0.0
    %4977 = vmatpush2.msra.mxu0 0.0
    %4978 = vmatprep.subr.mxu0 0.0
    %4979 = vmatpush2.msra.mxu0 0.0
    %4980 = vmatprep.subr.mxu0 0.0
    %4981 = vmatpush2.msra.mxu0 0.0
    %4982 = vmatprep.subr.mxu0 0.0
    %4983 = vmatpush2.msra.mxu0 0.0
    %4984 = vmatprep.subr.mxu0 0.0
    %4985 = vmatpush2.msra.mxu0 0.0
    %4986 = vmatprep.subr.mxu0 0.0
    %4987 = vmatpush2.msra.mxu0 0.0
    %4988 = vmatprep.subr.mxu0 0.0
    %4989 = vmatpush2.msra.mxu0 0.0
    %4990 = vmatprep.subr.mxu0 0.0
    %4991 = vmatpush2.msra.mxu0 0.0
    %4992 = vmatprep.subr.mxu0 0.0
    %4993 = vmatpush2.msra.mxu0 0.0
    %4994 = vmatprep.subr.mxu0 0.0
    %4995 = vmatpush2.msra.mxu0 0.0
    %4996 = vmatprep.subr.mxu0 0.0
    %4997 = vmatpush2.msra.mxu0 0.0
    %4998 = vmatprep.subr.mxu0 0.0
    %4999 = vmatpush2.msra.mxu0 0.0
    %5000 = vmatprep.subr.mxu0 0.0
    %5001 = vmatpush2.msra.mxu0 0.0
    %5002 = vmatprep.subr.mxu0 0.0
    %5003 = vmatpush2.msra.mxu0 0.0
    %5004 = vmatprep.subr.mxu0 0.0
    %5005 = vmatpush2.msra.mxu0 0.0
    %5006 = vmatprep.subr.mxu0 0.0
    %5007 = vmatpush2.msra.mxu0 0.0
    %5008 = vmatprep.mubr.f32.mxu0 0.0
    %5009 = vmatmul.mubr.f32.gmra.mxu0 %v4872
    %v5010 = vpop.f32.mrf.mxu0
    %v5011 = vadd.f32 0.0, %v5010
    %v5012 = vpop.f32.mrf.mxu0
    %5013 = vdwg.mxu0
    %v5015 = vrot.slane %v4941, 2
    %v5018 = vrot.slane %v5011, 4
    %v5020 = vsel %vm196, %v4870, %v5015
    %v5021 = vsel %vm198, %v5015, %v5018
    %v5022 = vsel %vm44, %v5018, 0
    %5024 = vmatprep.subr.mxu0 0.0
    %5025 = vmatpush1.msra.mxu0 0.0
    %5026 = vmatprep.subr.mxu0 0.0
    %5027 = vmatpush1.msra.mxu0 0.0
    %5028 = vmatprep.subr.mxu0 0.0
    %5029 = vmatpush1.msra.mxu0 0.0
    %5030 = vmatprep.subr.mxu0 0.0
    %5031 = vmatpush1.msra.mxu0 0.0
    %5032 = vmatprep.subr.mxu0 0.0
    %5033 = vmatpush1.msra.mxu0 0.0
    %5034 = vmatprep.subr.mxu0 0.0
    %5035 = vmatpush1.msra.mxu0 0.0
    %5036 = vmatprep.subr.mxu0 0.0
    %5037 = vmatpush1.msra.mxu0 0.0
    %5038 = vmatprep.subr.mxu0 0.0
    %5039 = vmatpush1.msra.mxu0 0.0
    %5040 = vmatprep.subr.mxu0 0.0
    %5041 = vmatpush1.msra.mxu0 0.0
    %5042 = vmatprep.subr.mxu0 0.0
    %5043 = vmatpush1.msra.mxu0 0.0
    %5044 = vmatprep.subr.mxu0 0.0
    %5045 = vmatpush1.msra.mxu0 0.0
    %5046 = vmatprep.subr.mxu0 0.0
    %5047 = vmatpush1.msra.mxu0 0.0
    %5048 = vmatprep.subr.mxu0 0.0
    %5049 = vmatpush1.msra.mxu0 0.0
    %5050 = vmatprep.subr.mxu0 0.0
    %5051 = vmatpush1.msra.mxu0 %v5022
    %5052 = vmatprep.subr.mxu0 0.0
    %5053 = vmatpush1.msra.mxu0 %v5021
    %5054 = vmatprep.subr.mxu0 0.0
    %5055 = vmatpush1.msra.mxu0 %v5020
    %5056 = vmatprep.subr.mxu0 0.0
    %5057 = vmatpush2.msra.mxu0 0.0
    %5058 = vmatprep.subr.mxu0 0.0
    %5059 = vmatpush2.msra.mxu0 0.0
    %5060 = vmatprep.subr.mxu0 0.0
    %5061 = vmatpush2.msra.mxu0 0.0
    %5062 = vmatprep.subr.mxu0 0.0
    %5063 = vmatpush2.msra.mxu0 0.0
    %5064 = vmatprep.subr.mxu0 0.0
    %5065 = vmatpush2.msra.mxu0 0.0
    %5066 = vmatprep.subr.mxu0 0.0
    %5067 = vmatpush2.msra.mxu0 0.0
    %5068 = vmatprep.subr.mxu0 0.0
    %5069 = vmatpush2.msra.mxu0 0.0
    %5070 = vmatprep.subr.mxu0 0.0
    %5071 = vmatpush2.msra.mxu0 0.0
    %5072 = vmatprep.subr.mxu0 0.0
    %5073 = vmatpush2.msra.mxu0 0.0
    %5074 = vmatprep.subr.mxu0 0.0
    %5075 = vmatpush2.msra.mxu0 0.0
    %5076 = vmatprep.subr.mxu0 0.0
    %5077 = vmatpush2.msra.mxu0 0.0
    %5078 = vmatprep.subr.mxu0 0.0
    %5079 = vmatpush2.msra.mxu0 0.0
    %5080 = vmatprep.subr.mxu0 0.0
    %5081 = vmatpush2.msra.mxu0 0.0
    %5082 = vmatprep.subr.mxu0 0.0
    %5083 = vmatpush2.msra.mxu0 0.0
    %5084 = vmatprep.subr.mxu0 0.0
    %5085 = vmatpush2.msra.mxu0 0.0
    %5086 = vmatprep.subr.mxu0 0.0
    %5087 = vmatpush2.msra.mxu0 0.0
    %5088 = vmatprep.mubr.f32.mxu0 0.0
    %5089 = vmatmul.mubr.f32.gmra.mxu0 %v212
    %v5090 = vpop.f32.mrf.mxu0
    %v5091 = vadd.f32 %v203, %v5090
    %v5092 = vpop.f32.mrf.mxu0
    %5093 = vmatprep.mubr.f32.mxu0 0.0
    %5094 = vmatmul.mubr.f32.gmra.mxu0 %v215
    %v5095 = vpop.f32.mrf.mxu0
    %v5096 = vadd.f32 %v208, %v5095
    %v5097 = vpop.f32.mrf.mxu0
    %5098 = vdwg.mxu0
    %v5099 = vxor.u32 %v5091, 2147483648
    %v5100 = vxor.u32 %v5096, 2147483648
    %v5101 = vmul.f32 %v5099, 1.442695
    %v5102 = vpow.pop %v5101
    %v5103 = vmul.f32 %v5100, 1.442695
    %v5104 = vpow.pop %v5103
    %v5105 = vadd.f32 %v5102, 1.0
    %v5106 = vadd.f32 %v5104, 1.0
    %v5107 = vrcp.pop %v5105
    %v5108 = vmul.f32 1.0, %v5107
    %v5109 = vrcp.pop %v5106
    %v5110 = vmul.f32 1.0, %v5109
    %v5111 = vtanh.pop %v5096
    %v5112 = vmul.f32 %v4521, %v5108
    %v5114 = vrot.slane %v5111, 4
    %v5116 = vmul.f32 %v5108, %v5114
    %v5118 = vrot.slane %v5116, 4
    %v5120 = vadd.f32 %v5112, %v5118
    %v5121 = vtanh.pop %v5120
    %v5123 = vrot.slane %v5110, 4
    %v5125 = vmul.f32 %v5121, %v5123
    %v5127 = vrot.slane %v5125, 4
    %v5129 = vsel %vm198, %v5127, %v4775
    %v5131 = vsel %vm46, %v5129, 0
    %5133 = vmatprep.subr.mxu0 0.0
    %5134 = vmatpush1.msra.mxu0 0.0
    %5135 = vmatprep.subr.mxu0 0.0
    %5136 = vmatpush1.msra.mxu0 0.0
    %5137 = vmatprep.subr.mxu0 0.0
    %5138 = vmatpush1.msra.mxu0 0.0
    %5139 = vmatprep.subr.mxu0 0.0
    %5140 = vmatpush1.msra.mxu0 0.0
    %5141 = vmatprep.subr.mxu0 0.0
    %5142 = vmatpush1.msra.mxu0 0.0
    %5143 = vmatprep.subr.mxu0 0.0
    %5144 = vmatpush1.msra.mxu0 0.0
    %5145 = vmatprep.subr.mxu0 0.0
    %5146 = vmatpush1.msra.mxu0 0.0
    %5147 = vmatprep.subr.mxu0 0.0
    %5148 = vmatpush1.msra.mxu0 0.0
    %5149 = vmatprep.subr.mxu0 0.0
    %5150 = vmatpush1.msra.mxu0 0.0
    %5151 = vmatprep.subr.mxu0 0.0
    %5152 = vmatpush1.msra.mxu0 0.0
    %5153 = vmatprep.subr.mxu0 0.0
    %5154 = vmatpush1.msra.mxu0 0.0
    %5155 = vmatprep.subr.mxu0 0.0
    %5156 = vmatpush1.msra.mxu0 0.0
    %5157 = vmatprep.subr.mxu0 0.0
    %5158 = vmatpush1.msra.mxu0 0.0
    %5159 = vmatprep.subr.mxu0 0.0
    %5160 = vmatpush1.msra.mxu0 0.0
    %5161 = vmatprep.subr.mxu0 0.0
    %5162 = vmatpush1.msra.mxu0 %v31
    %5163 = vmatprep.subr.mxu0 0.0
    %5164 = vmatpush1.msra.mxu0 %v30
    %5165 = vmatprep.subr.mxu0 0.0
    %5166 = vmatpush2.msra.mxu0 0.0
    %5167 = vmatprep.subr.mxu0 0.0
    %5168 = vmatpush2.msra.mxu0 0.0
    %5169 = vmatprep.subr.mxu0 0.0
    %5170 = vmatpush2.msra.mxu0 0.0
    %5171 = vmatprep.subr.mxu0 0.0
    %5172 = vmatpush2.msra.mxu0 0.0
    %5173 = vmatprep.subr.mxu0 0.0
    %5174 = vmatpush2.msra.mxu0 0.0
    %5175 = vmatprep.subr.mxu0 0.0
    %5176 = vmatpush2.msra.mxu0 0.0
    %5177 = vmatprep.subr.mxu0 0.0
    %5178 = vmatpush2.msra.mxu0 0.0
    %5179 = vmatprep.subr.mxu0 0.0
    %5180 = vmatpush2.msra.mxu0 0.0
    %5181 = vmatprep.subr.mxu0 0.0
    %5182 = vmatpush2.msra.mxu0 0.0
    %5183 = vmatprep.subr.mxu0 0.0
    %5184 = vmatpush2.msra.mxu0 0.0
    %5185 = vmatprep.subr.mxu0 0.0
    %5186 = vmatpush2.msra.mxu0 0.0
    %5187 = vmatprep.subr.mxu0 0.0
    %5188 = vmatpush2.msra.mxu0 0.0
    %5189 = vmatprep.subr.mxu0 0.0
    %5190 = vmatpush2.msra.mxu0 0.0
    %5191 = vmatprep.subr.mxu0 0.0
    %5192 = vmatpush2.msra.mxu0 0.0
    %5193 = vmatprep.subr.mxu0 0.0
    %5194 = vmatpush2.msra.mxu0 0.0
    %5195 = vmatprep.subr.mxu0 0.0
    %5196 = vmatpush2.msra.mxu0 0.0
    %5197 = vmatprep.mubr.f32.mxu0 0.0
    %5198 = vmatmul.mubr.f32.gmra.mxu0 %v5131
    %v5199 = vpop.f32.mrf.mxu0
    %v5200 = vadd.f32 0.0, %v5199
    %v5201 = vpop.f32.mrf.mxu0
    %5202 = vdwg.mxu0
    %5203 = vmatprep.subr.mxu0 0.0
    %5204 = vmatpush1.msra.mxu0 0.0
    %5205 = vmatprep.subr.mxu0 0.0
    %5206 = vmatpush1.msra.mxu0 0.0
    %5207 = vmatprep.subr.mxu0 0.0
    %5208 = vmatpush1.msra.mxu0 0.0
    %5209 = vmatprep.subr.mxu0 0.0
    %5210 = vmatpush1.msra.mxu0 0.0
    %5211 = vmatprep.subr.mxu0 0.0
    %5212 = vmatpush1.msra.mxu0 0.0
    %5213 = vmatprep.subr.mxu0 0.0
    %5214 = vmatpush1.msra.mxu0 0.0
    %5215 = vmatprep.subr.mxu0 0.0
    %5216 = vmatpush1.msra.mxu0 0.0
    %5217 = vmatprep.subr.mxu0 0.0
    %5218 = vmatpush1.msra.mxu0 0.0
    %5219 = vmatprep.subr.mxu0 0.0
    %5220 = vmatpush1.msra.mxu0 0.0
    %5221 = vmatprep.subr.mxu0 0.0
    %5222 = vmatpush1.msra.mxu0 0.0
    %5223 = vmatprep.subr.mxu0 0.0
    %5224 = vmatpush1.msra.mxu0 0.0
    %5225 = vmatprep.subr.mxu0 0.0
    %5226 = vmatpush1.msra.mxu0 0.0
    %5227 = vmatprep.subr.mxu0 0.0
    %5228 = vmatpush1.msra.mxu0 0.0
    %5229 = vmatprep.subr.mxu0 0.0
    %5230 = vmatpush1.msra.mxu0 0.0
    %5231 = vmatprep.subr.mxu0 0.0
    %5232 = vmatpush1.msra.mxu0 %v34
    %5233 = vmatprep.subr.mxu0 0.0
    %5234 = vmatpush1.msra.mxu0 %v33
    %5235 = vmatprep.subr.mxu0 0.0
    %5236 = vmatpush2.msra.mxu0 0.0
    %5237 = vmatprep.subr.mxu0 0.0
    %5238 = vmatpush2.msra.mxu0 0.0
    %5239 = vmatprep.subr.mxu0 0.0
    %5240 = vmatpush2.msra.mxu0 0.0
    %5241 = vmatprep.subr.mxu0 0.0
    %5242 = vmatpush2.msra.mxu0 0.0
    %5243 = vmatprep.subr.mxu0 0.0
    %5244 = vmatpush2.msra.mxu0 0.0
    %5245 = vmatprep.subr.mxu0 0.0
    %5246 = vmatpush2.msra.mxu0 0.0
    %5247 = vmatprep.subr.mxu0 0.0
    %5248 = vmatpush2.msra.mxu0 0.0
    %5249 = vmatprep.subr.mxu0 0.0
    %5250 = vmatpush2.msra.mxu0 0.0
    %5251 = vmatprep.subr.mxu0 0.0
    %5252 = vmatpush2.msra.mxu0 0.0
    %5253 = vmatprep.subr.mxu0 0.0
    %5254 = vmatpush2.msra.mxu0 0.0
    %5255 = vmatprep.subr.mxu0 0.0
    %5256 = vmatpush2.msra.mxu0 0.0
    %5257 = vmatprep.subr.mxu0 0.0
    %5258 = vmatpush2.msra.mxu0 0.0
    %5259 = vmatprep.subr.mxu0 0.0
    %5260 = vmatpush2.msra.mxu0 0.0
    %5261 = vmatprep.subr.mxu0 0.0
    %5262 = vmatpush2.msra.mxu0 0.0
    %5263 = vmatprep.subr.mxu0 0.0
    %5264 = vmatpush2.msra.mxu0 0.0
    %5265 = vmatprep.subr.mxu0 0.0
    %5266 = vmatpush2.msra.mxu0 0.0
    %5267 = vmatprep.mubr.f32.mxu0 0.0
    %5268 = vmatmul.mubr.f32.gmra.mxu0 %v5131
    %v5269 = vpop.f32.mrf.mxu0
    %v5270 = vadd.f32 0.0, %v5269
    %v5271 = vpop.f32.mrf.mxu0
    %5272 = vdwg.mxu0
    %5273 = vmatprep.subr.mxu0 0.0
    %5274 = vmatpush1.msra.mxu0 0.0
    %5275 = vmatprep.subr.mxu0 0.0
    %5276 = vmatpush1.msra.mxu0 0.0
    %5277 = vmatprep.subr.mxu0 0.0
    %5278 = vmatpush1.msra.mxu0 0.0
    %5279 = vmatprep.subr.mxu0 0.0
    %5280 = vmatpush1.msra.mxu0 0.0
    %5281 = vmatprep.subr.mxu0 0.0
    %5282 = vmatpush1.msra.mxu0 0.0
    %5283 = vmatprep.subr.mxu0 0.0
    %5284 = vmatpush1.msra.mxu0 0.0
    %5285 = vmatprep.subr.mxu0 0.0
    %5286 = vmatpush1.msra.mxu0 0.0
    %5287 = vmatprep.subr.mxu0 0.0
    %5288 = vmatpush1.msra.mxu0 0.0
    %5289 = vmatprep.subr.mxu0 0.0
    %5290 = vmatpush1.msra.mxu0 0.0
    %5291 = vmatprep.subr.mxu0 0.0
    %5292 = vmatpush1.msra.mxu0 0.0
    %5293 = vmatprep.subr.mxu0 0.0
    %5294 = vmatpush1.msra.mxu0 0.0
    %5295 = vmatprep.subr.mxu0 0.0
    %5296 = vmatpush1.msra.mxu0 0.0
    %5297 = vmatprep.subr.mxu0 0.0
    %5298 = vmatpush1.msra.mxu0 0.0
    %5299 = vmatprep.subr.mxu0 0.0
    %5300 = vmatpush1.msra.mxu0 %v5270
    %5301 = vmatprep.subr.mxu0 0.0
    %5302 = vmatpush1.msra.mxu0 %v5200
    %5303 = vmatprep.subr.mxu0 0.0
    %5304 = vmatpush1.msra.mxu0 %v5129
    %5305 = vmatprep.subr.mxu0 0.0
    %5306 = vmatpush2.msra.mxu0 0.0
    %5307 = vmatprep.subr.mxu0 0.0
    %5308 = vmatpush2.msra.mxu0 0.0
    %5309 = vmatprep.subr.mxu0 0.0
    %5310 = vmatpush2.msra.mxu0 0.0
    %5311 = vmatprep.subr.mxu0 0.0
    %5312 = vmatpush2.msra.mxu0 0.0
    %5313 = vmatprep.subr.mxu0 0.0
    %5314 = vmatpush2.msra.mxu0 0.0
    %5315 = vmatprep.subr.mxu0 0.0
    %5316 = vmatpush2.msra.mxu0 0.0
    %5317 = vmatprep.subr.mxu0 0.0
    %5318 = vmatpush2.msra.mxu0 0.0
    %5319 = vmatprep.subr.mxu0 0.0
    %5320 = vmatpush2.msra.mxu0 0.0
    %5321 = vmatprep.subr.mxu0 0.0
    %5322 = vmatpush2.msra.mxu0 0.0
    %5323 = vmatprep.subr.mxu0 0.0
    %5324 = vmatpush2.msra.mxu0 0.0
    %5325 = vmatprep.subr.mxu0 0.0
    %5326 = vmatpush2.msra.mxu0 0.0
    %5327 = vmatprep.subr.mxu0 0.0
    %5328 = vmatpush2.msra.mxu0 0.0
    %5329 = vmatprep.subr.mxu0 0.0
    %5330 = vmatpush2.msra.mxu0 0.0
    %5331 = vmatprep.subr.mxu0 0.0
    %5332 = vmatpush2.msra.mxu0 0.0
    %5333 = vmatprep.subr.mxu0 0.0
    %5334 = vmatpush2.msra.mxu0 0.0
    %5335 = vmatprep.subr.mxu0 0.0
    %5336 = vmatpush2.msra.mxu0 0.0
    %5337 = vmatprep.mubr.f32.mxu0 0.0
    %5338 = vmatmul.mubr.f32.gmra.mxu0 %v480
    %v5339 = vpop.f32.mrf.mxu0
    %v5340 = vadd.f32 %v471, %v5339
    %v5341 = vpop.f32.mrf.mxu0
    %5342 = vmatprep.mubr.f32.mxu0 0.0
    %5343 = vmatmul.mubr.f32.gmra.mxu0 %v483
    %v5344 = vpop.f32.mrf.mxu0
    %v5345 = vadd.f32 %v476, %v5344
    %v5346 = vpop.f32.mrf.mxu0
    %5347 = vdwg.mxu0
    %v5348 = vxor.u32 %v5340, 2147483648
    %v5349 = vxor.u32 %v5345, 2147483648
    %v5350 = vmul.f32 %v5348, 1.442695
    %v5351 = vpow.pop %v5350
    %v5352 = vmul.f32 %v5349, 1.442695
    %v5353 = vpow.pop %v5352
    %v5354 = vadd.f32 %v5351, 1.0
    %v5355 = vadd.f32 %v5353, 1.0
    %v5356 = vrcp.pop %v5354
    %v5357 = vmul.f32 1.0, %v5356
    %v5358 = vrcp.pop %v5355
    %v5359 = vmul.f32 1.0, %v5358
    %v5360 = vtanh.pop %v5345
    %v5361 = vmul.f32 %v4770, %v5357
    %v5363 = vrot.slane %v5360, 4
    %v5365 = vmul.f32 %v5357, %v5363
    %v5367 = vrot.slane %v5365, 4
    %v5369 = vadd.f32 %v5361, %v5367
    %v5370 = vtanh.pop %v5369
    %v5372 = vrot.slane %v5359, 4
    %v5374 = vmul.f32 %v5370, %v5372
    %s5375 = scalar_lea.vmem %s6, 128
    %v5376 = vld [vmem:[%s5375] sm:$0xff]
    %v5377 = vld [vmem:[%s5375 + $0x8] sm:$0xf]
    %v5379 = vrot.slane %v5374, 4
    %v5381 = vsel %vm1103, %v5376, 0
    %v5384 = vsel %vm1103, %v5377, 0
    %v5386 = vsel %vm198, %v5379, 0
    %5388 = vmatprep.subr.mxu0 0.0
    %5389 = vmatpush1.msra.mxu0 0.0
    %5390 = vmatprep.subr.mxu0 0.0
    %5391 = vmatpush1.msra.mxu0 0.0
    %5392 = vmatprep.subr.mxu0 0.0
    %5393 = vmatpush1.msra.mxu0 0.0
    %5394 = vmatprep.subr.mxu0 0.0
    %5395 = vmatpush1.msra.mxu0 0.0
    %5396 = vmatprep.subr.mxu0 0.0
    %5397 = vmatpush1.msra.mxu0 0.0
    %5398 = vmatprep.subr.mxu0 0.0
    %5399 = vmatpush1.msra.mxu0 0.0
    %5400 = vmatprep.subr.mxu0 0.0
    %5401 = vmatpush1.msra.mxu0 0.0
    %5402 = vmatprep.subr.mxu0 0.0
    %5403 = vmatpush1.msra.mxu0 0.0
    %5404 = vmatprep.subr.mxu0 0.0
    %5405 = vmatpush1.msra.mxu0 0.0
    %5406 = vmatprep.subr.mxu0 0.0
    %5407 = vmatpush1.msra.mxu0 0.0
    %5408 = vmatprep.subr.mxu0 0.0
    %5409 = vmatpush1.msra.mxu0 0.0
    %5410 = vmatprep.subr.mxu0 0.0
    %5411 = vmatpush1.msra.mxu0 0.0
    %5412 = vmatprep.subr.mxu0 0.0
    %5413 = vmatpush1.msra.mxu0 0.0
    %5414 = vmatprep.subr.mxu0 0.0
    %5415 = vmatpush1.msra.mxu0 0.0
    %5416 = vmatprep.subr.mxu0 0.0
    %5417 = vmatpush1.msra.mxu0 0.0
    %5418 = vmatprep.subr.mxu0 0.0
    %5419 = vmatpush1.msra.mxu0 %v5386
    %5420 = vmatprep.subr.mxu0 0.0
    %5421 = vmatpush2.msra.mxu0 0.0
    %5422 = vmatprep.subr.mxu0 0.0
    %5423 = vmatpush2.msra.mxu0 0.0
    %5424 = vmatprep.subr.mxu0 0.0
    %5425 = vmatpush2.msra.mxu0 0.0
    %5426 = vmatprep.subr.mxu0 0.0
    %5427 = vmatpush2.msra.mxu0 0.0
    %5428 = vmatprep.subr.mxu0 0.0
    %5429 = vmatpush2.msra.mxu0 0.0
    %5430 = vmatprep.subr.mxu0 0.0
    %5431 = vmatpush2.msra.mxu0 0.0
    %5432 = vmatprep.subr.mxu0 0.0
    %5433 = vmatpush2.msra.mxu0 0.0
    %5434 = vmatprep.subr.mxu0 0.0
    %5435 = vmatpush2.msra.mxu0 0.0
    %5436 = vmatprep.subr.mxu0 0.0
    %5437 = vmatpush2.msra.mxu0 0.0
    %5438 = vmatprep.subr.mxu0 0.0
    %5439 = vmatpush2.msra.mxu0 0.0
    %5440 = vmatprep.subr.mxu0 0.0
    %5441 = vmatpush2.msra.mxu0 0.0
    %5442 = vmatprep.subr.mxu0 0.0
    %5443 = vmatpush2.msra.mxu0 0.0
    %5444 = vmatprep.subr.mxu0 0.0
    %5445 = vmatpush2.msra.mxu0 0.0
    %5446 = vmatprep.subr.mxu0 0.0
    %5447 = vmatpush2.msra.mxu0 0.0
    %5448 = vmatprep.subr.mxu0 0.0
    %5449 = vmatpush2.msra.mxu0 0.0
    %5450 = vmatprep.subr.mxu0 0.0
    %5451 = vmatpush2.msra.mxu0 0.0
    %5452 = vmatprep.mubr.f32.mxu0 0.0
    %5453 = vmatmul.mubr.f32.gmra.mxu0 %v5381
    %v5454 = vpop.f32.mrf.mxu0
    %v5455 = vadd.f32 0.0, %v5454
    %v5456 = vpop.f32.mrf.mxu0
    %5457 = vmatprep.mubr.f32.mxu0 0.0
    %5458 = vmatmul.mubr.f32.gmra.mxu0 %v5384
    %v5459 = vpop.f32.mrf.mxu0
    %v5460 = vadd.f32 0.0, %v5459
    %v5461 = vpop.f32.mrf.mxu0
    %5462 = vdwg.mxu0
    %v5463 = vadd.f32 %v4864, %v5455
    %v5464 = vadd.f32 %v4865, %v5460
    %s5465 = scalar_lea.vmem %s0, 18
    %v5466 = vld [vmem:[%s5465] sm:$0x3]
    %v5467 = vrot.slane %v5125, 2
    %v5469 = vsel %vm44, %v5466, %v5467
    %v5471 = vsel %vm46, %v5469, 0
    %5473 = vmatprep.subr.mxu0 0.0
    %5474 = vmatpush1.msra.mxu0 0.0
    %5475 = vmatprep.subr.mxu0 0.0
    %5476 = vmatpush1.msra.mxu0 0.0
    %5477 = vmatprep.subr.mxu0 0.0
    %5478 = vmatpush1.msra.mxu0 0.0
    %5479 = vmatprep.subr.mxu0 0.0
    %5480 = vmatpush1.msra.mxu0 0.0
    %5481 = vmatprep.subr.mxu0 0.0
    %5482 = vmatpush1.msra.mxu0 0.0
    %5483 = vmatprep.subr.mxu0 0.0
    %5484 = vmatpush1.msra.mxu0 0.0
    %5485 = vmatprep.subr.mxu0 0.0
    %5486 = vmatpush1.msra.mxu0 0.0
    %5487 = vmatprep.subr.mxu0 0.0
    %5488 = vmatpush1.msra.mxu0 0.0
    %5489 = vmatprep.subr.mxu0 0.0
    %5490 = vmatpush1.msra.mxu0 0.0
    %5491 = vmatprep.subr.mxu0 0.0
    %5492 = vmatpush1.msra.mxu0 0.0
    %5493 = vmatprep.subr.mxu0 0.0
    %5494 = vmatpush1.msra.mxu0 0.0
    %5495 = vmatprep.subr.mxu0 0.0
    %5496 = vmatpush1.msra.mxu0 0.0
    %5497 = vmatprep.subr.mxu0 0.0
    %5498 = vmatpush1.msra.mxu0 0.0
    %5499 = vmatprep.subr.mxu0 0.0
    %5500 = vmatpush1.msra.mxu0 0.0
    %5501 = vmatprep.subr.mxu0 0.0
    %5502 = vmatpush1.msra.mxu0 %v31
    %5503 = vmatprep.subr.mxu0 0.0
    %5504 = vmatpush1.msra.mxu0 %v30
    %5505 = vmatprep.subr.mxu0 0.0
    %5506 = vmatpush2.msra.mxu0 0.0
    %5507 = vmatprep.subr.mxu0 0.0
    %5508 = vmatpush2.msra.mxu0 0.0
    %5509 = vmatprep.subr.mxu0 0.0
    %5510 = vmatpush2.msra.mxu0 0.0
    %5511 = vmatprep.subr.mxu0 0.0
    %5512 = vmatpush2.msra.mxu0 0.0
    %5513 = vmatprep.subr.mxu0 0.0
    %5514 = vmatpush2.msra.mxu0 0.0
    %5515 = vmatprep.subr.mxu0 0.0
    %5516 = vmatpush2.msra.mxu0 0.0
    %5517 = vmatprep.subr.mxu0 0.0
    %5518 = vmatpush2.msra.mxu0 0.0
    %5519 = vmatprep.subr.mxu0 0.0
    %5520 = vmatpush2.msra.mxu0 0.0
    %5521 = vmatprep.subr.mxu0 0.0
    %5522 = vmatpush2.msra.mxu0 0.0
    %5523 = vmatprep.subr.mxu0 0.0
    %5524 = vmatpush2.msra.mxu0 0.0
    %5525 = vmatprep.subr.mxu0 0.0
    %5526 = vmatpush2.msra.mxu0 0.0
    %5527 = vmatprep.subr.mxu0 0.0
    %5528 = vmatpush2.msra.mxu0 0.0
    %5529 = vmatprep.subr.mxu0 0.0
    %5530 = vmatpush2.msra.mxu0 0.0
    %5531 = vmatprep.subr.mxu0 0.0
    %5532 = vmatpush2.msra.mxu0 0.0
    %5533 = vmatprep.subr.mxu0 0.0
    %5534 = vmatpush2.msra.mxu0 0.0
    %5535 = vmatprep.subr.mxu0 0.0
    %5536 = vmatpush2.msra.mxu0 0.0
    %5537 = vmatprep.mubr.f32.mxu0 0.0
    %5538 = vmatmul.mubr.f32.gmra.mxu0 %v5471
    %v5539 = vpop.f32.mrf.mxu0
    %v5540 = vadd.f32 0.0, %v5539
    %v5541 = vpop.f32.mrf.mxu0
    %5542 = vdwg.mxu0
    %5543 = vmatprep.subr.mxu0 0.0
    %5544 = vmatpush1.msra.mxu0 0.0
    %5545 = vmatprep.subr.mxu0 0.0
    %5546 = vmatpush1.msra.mxu0 0.0
    %5547 = vmatprep.subr.mxu0 0.0
    %5548 = vmatpush1.msra.mxu0 0.0
    %5549 = vmatprep.subr.mxu0 0.0
    %5550 = vmatpush1.msra.mxu0 0.0
    %5551 = vmatprep.subr.mxu0 0.0
    %5552 = vmatpush1.msra.mxu0 0.0
    %5553 = vmatprep.subr.mxu0 0.0
    %5554 = vmatpush1.msra.mxu0 0.0
    %5555 = vmatprep.subr.mxu0 0.0
    %5556 = vmatpush1.msra.mxu0 0.0
    %5557 = vmatprep.subr.mxu0 0.0
    %5558 = vmatpush1.msra.mxu0 0.0
    %5559 = vmatprep.subr.mxu0 0.0
    %5560 = vmatpush1.msra.mxu0 0.0
    %5561 = vmatprep.subr.mxu0 0.0
    %5562 = vmatpush1.msra.mxu0 0.0
    %5563 = vmatprep.subr.mxu0 0.0
    %5564 = vmatpush1.msra.mxu0 0.0
    %5565 = vmatprep.subr.mxu0 0.0
    %5566 = vmatpush1.msra.mxu0 0.0
    %5567 = vmatprep.subr.mxu0 0.0
    %5568 = vmatpush1.msra.mxu0 0.0
    %5569 = vmatprep.subr.mxu0 0.0
    %5570 = vmatpush1.msra.mxu0 0.0
    %5571 = vmatprep.subr.mxu0 0.0
    %5572 = vmatpush1.msra.mxu0 %v34
    %5573 = vmatprep.subr.mxu0 0.0
    %5574 = vmatpush1.msra.mxu0 %v33
    %5575 = vmatprep.subr.mxu0 0.0
    %5576 = vmatpush2.msra.mxu0 0.0
    %5577 = vmatprep.subr.mxu0 0.0
    %5578 = vmatpush2.msra.mxu0 0.0
    %5579 = vmatprep.subr.mxu0 0.0
    %5580 = vmatpush2.msra.mxu0 0.0
    %5581 = vmatprep.subr.mxu0 0.0
    %5582 = vmatpush2.msra.mxu0 0.0
    %5583 = vmatprep.subr.mxu0 0.0
    %5584 = vmatpush2.msra.mxu0 0.0
    %5585 = vmatprep.subr.mxu0 0.0
    %5586 = vmatpush2.msra.mxu0 0.0
    %5587 = vmatprep.subr.mxu0 0.0
    %5588 = vmatpush2.msra.mxu0 0.0
    %5589 = vmatprep.subr.mxu0 0.0
    %5590 = vmatpush2.msra.mxu0 0.0
    %5591 = vmatprep.subr.mxu0 0.0
    %5592 = vmatpush2.msra.mxu0 0.0
    %5593 = vmatprep.subr.mxu0 0.0
    %5594 = vmatpush2.msra.mxu0 0.0
    %5595 = vmatprep.subr.mxu0 0.0
    %5596 = vmatpush2.msra.mxu0 0.0
    %5597 = vmatprep.subr.mxu0 0.0
    %5598 = vmatpush2.msra.mxu0 0.0
    %5599 = vmatprep.subr.mxu0 0.0
    %5600 = vmatpush2.msra.mxu0 0.0
    %5601 = vmatprep.subr.mxu0 0.0
    %5602 = vmatpush2.msra.mxu0 0.0
    %5603 = vmatprep.subr.mxu0 0.0
    %5604 = vmatpush2.msra.mxu0 0.0
    %5605 = vmatprep.subr.mxu0 0.0
    %5606 = vmatpush2.msra.mxu0 0.0
    %5607 = vmatprep.mubr.f32.mxu0 0.0
    %5608 = vmatmul.mubr.f32.gmra.mxu0 %v5471
    %v5609 = vpop.f32.mrf.mxu0
    %v5610 = vadd.f32 0.0, %v5609
    %v5611 = vpop.f32.mrf.mxu0
    %5612 = vdwg.mxu0
    %v5614 = vrot.slane %v5540, 2
    %v5617 = vrot.slane %v5610, 4
    %v5619 = vsel %vm196, %v5469, %v5614
    %v5620 = vsel %vm198, %v5614, %v5617
    %v5621 = vsel %vm44, %v5617, 0
    %5623 = vmatprep.subr.mxu0 0.0
    %5624 = vmatpush1.msra.mxu0 0.0
    %5625 = vmatprep.subr.mxu0 0.0
    %5626 = vmatpush1.msra.mxu0 0.0
    %5627 = vmatprep.subr.mxu0 0.0
    %5628 = vmatpush1.msra.mxu0 0.0
    %5629 = vmatprep.subr.mxu0 0.0
    %5630 = vmatpush1.msra.mxu0 0.0
    %5631 = vmatprep.subr.mxu0 0.0
    %5632 = vmatpush1.msra.mxu0 0.0
    %5633 = vmatprep.subr.mxu0 0.0
    %5634 = vmatpush1.msra.mxu0 0.0
    %5635 = vmatprep.subr.mxu0 0.0
    %5636 = vmatpush1.msra.mxu0 0.0
    %5637 = vmatprep.subr.mxu0 0.0
    %5638 = vmatpush1.msra.mxu0 0.0
    %5639 = vmatprep.subr.mxu0 0.0
    %5640 = vmatpush1.msra.mxu0 0.0
    %5641 = vmatprep.subr.mxu0 0.0
    %5642 = vmatpush1.msra.mxu0 0.0
    %5643 = vmatprep.subr.mxu0 0.0
    %5644 = vmatpush1.msra.mxu0 0.0
    %5645 = vmatprep.subr.mxu0 0.0
    %5646 = vmatpush1.msra.mxu0 0.0
    %5647 = vmatprep.subr.mxu0 0.0
    %5648 = vmatpush1.msra.mxu0 0.0
    %5649 = vmatprep.subr.mxu0 0.0
    %5650 = vmatpush1.msra.mxu0 %v5621
    %5651 = vmatprep.subr.mxu0 0.0
    %5652 = vmatpush1.msra.mxu0 %v5620
    %5653 = vmatprep.subr.mxu0 0.0
    %5654 = vmatpush1.msra.mxu0 %v5619
    %5655 = vmatprep.subr.mxu0 0.0
    %5656 = vmatpush2.msra.mxu0 0.0
    %5657 = vmatprep.subr.mxu0 0.0
    %5658 = vmatpush2.msra.mxu0 0.0
    %5659 = vmatprep.subr.mxu0 0.0
    %5660 = vmatpush2.msra.mxu0 0.0
    %5661 = vmatprep.subr.mxu0 0.0
    %5662 = vmatpush2.msra.mxu0 0.0
    %5663 = vmatprep.subr.mxu0 0.0
    %5664 = vmatpush2.msra.mxu0 0.0
    %5665 = vmatprep.subr.mxu0 0.0
    %5666 = vmatpush2.msra.mxu0 0.0
    %5667 = vmatprep.subr.mxu0 0.0
    %5668 = vmatpush2.msra.mxu0 0.0
    %5669 = vmatprep.subr.mxu0 0.0
    %5670 = vmatpush2.msra.mxu0 0.0
    %5671 = vmatprep.subr.mxu0 0.0
    %5672 = vmatpush2.msra.mxu0 0.0
    %5673 = vmatprep.subr.mxu0 0.0
    %5674 = vmatpush2.msra.mxu0 0.0
    %5675 = vmatprep.subr.mxu0 0.0
    %5676 = vmatpush2.msra.mxu0 0.0
    %5677 = vmatprep.subr.mxu0 0.0
    %5678 = vmatpush2.msra.mxu0 0.0
    %5679 = vmatprep.subr.mxu0 0.0
    %5680 = vmatpush2.msra.mxu0 0.0
    %5681 = vmatprep.subr.mxu0 0.0
    %5682 = vmatpush2.msra.mxu0 0.0
    %5683 = vmatprep.subr.mxu0 0.0
    %5684 = vmatpush2.msra.mxu0 0.0
    %5685 = vmatprep.subr.mxu0 0.0
    %5686 = vmatpush2.msra.mxu0 0.0
    %5687 = vmatprep.mubr.f32.mxu0 0.0
    %5688 = vmatmul.mubr.f32.gmra.mxu0 %v212
    %v5689 = vpop.f32.mrf.mxu0
    %v5690 = vadd.f32 %v203, %v5689
    %v5691 = vpop.f32.mrf.mxu0
    %5692 = vmatprep.mubr.f32.mxu0 0.0
    %5693 = vmatmul.mubr.f32.gmra.mxu0 %v215
    %v5694 = vpop.f32.mrf.mxu0
    %v5695 = vadd.f32 %v208, %v5694
    %v5696 = vpop.f32.mrf.mxu0
    %5697 = vdwg.mxu0
    %v5698 = vxor.u32 %v5690, 2147483648
    %v5699 = vxor.u32 %v5695, 2147483648
    %v5700 = vmul.f32 %v5698, 1.442695
    %v5701 = vpow.pop %v5700
    %v5702 = vmul.f32 %v5699, 1.442695
    %v5703 = vpow.pop %v5702
    %v5704 = vadd.f32 %v5701, 1.0
    %v5705 = vadd.f32 %v5703, 1.0
    %v5706 = vrcp.pop %v5704
    %v5707 = vmul.f32 1.0, %v5706
    %v5708 = vrcp.pop %v5705
    %v5709 = vmul.f32 1.0, %v5708
    %v5710 = vtanh.pop %v5695
    %v5711 = vmul.f32 %v5120, %v5707
    %v5713 = vrot.slane %v5710, 4
    %v5715 = vmul.f32 %v5707, %v5713
    %v5717 = vrot.slane %v5715, 4
    %v5719 = vadd.f32 %v5711, %v5717
    %v5720 = vtanh.pop %v5719
    %v5722 = vrot.slane %v5709, 4
    %v5724 = vmul.f32 %v5720, %v5722
    %v5726 = vrot.slane %v5724, 4
    %v5728 = vsel %vm198, %v5726, %v5374
    %v5730 = vsel %vm46, %v5728, 0
    %5732 = vmatprep.subr.mxu0 0.0
    %5733 = vmatpush1.msra.mxu0 0.0
    %5734 = vmatprep.subr.mxu0 0.0
    %5735 = vmatpush1.msra.mxu0 0.0
    %5736 = vmatprep.subr.mxu0 0.0
    %5737 = vmatpush1.msra.mxu0 0.0
    %5738 = vmatprep.subr.mxu0 0.0
    %5739 = vmatpush1.msra.mxu0 0.0
    %5740 = vmatprep.subr.mxu0 0.0
    %5741 = vmatpush1.msra.mxu0 0.0
    %5742 = vmatprep.subr.mxu0 0.0
    %5743 = vmatpush1.msra.mxu0 0.0
    %5744 = vmatprep.subr.mxu0 0.0
    %5745 = vmatpush1.msra.mxu0 0.0
    %5746 = vmatprep.subr.mxu0 0.0
    %5747 = vmatpush1.msra.mxu0 0.0
    %5748 = vmatprep.subr.mxu0 0.0
    %5749 = vmatpush1.msra.mxu0 0.0
    %5750 = vmatprep.subr.mxu0 0.0
    %5751 = vmatpush1.msra.mxu0 0.0
    %5752 = vmatprep.subr.mxu0 0.0
    %5753 = vmatpush1.msra.mxu0 0.0
    %5754 = vmatprep.subr.mxu0 0.0
    %5755 = vmatpush1.msra.mxu0 0.0
    %5756 = vmatprep.subr.mxu0 0.0
    %5757 = vmatpush1.msra.mxu0 0.0
    %5758 = vmatprep.subr.mxu0 0.0
    %5759 = vmatpush1.msra.mxu0 0.0
    %5760 = vmatprep.subr.mxu0 0.0
    %5761 = vmatpush1.msra.mxu0 %v31
    %5762 = vmatprep.subr.mxu0 0.0
    %5763 = vmatpush1.msra.mxu0 %v30
    %5764 = vmatprep.subr.mxu0 0.0
    %5765 = vmatpush2.msra.mxu0 0.0
    %5766 = vmatprep.subr.mxu0 0.0
    %5767 = vmatpush2.msra.mxu0 0.0
    %5768 = vmatprep.subr.mxu0 0.0
    %5769 = vmatpush2.msra.mxu0 0.0
    %5770 = vmatprep.subr.mxu0 0.0
    %5771 = vmatpush2.msra.mxu0 0.0
    %5772 = vmatprep.subr.mxu0 0.0
    %5773 = vmatpush2.msra.mxu0 0.0
    %5774 = vmatprep.subr.mxu0 0.0
    %5775 = vmatpush2.msra.mxu0 0.0
    %5776 = vmatprep.subr.mxu0 0.0
    %5777 = vmatpush2.msra.mxu0 0.0
    %5778 = vmatprep.subr.mxu0 0.0
    %5779 = vmatpush2.msra.mxu0 0.0
    %5780 = vmatprep.subr.mxu0 0.0
    %5781 = vmatpush2.msra.mxu0 0.0
    %5782 = vmatprep.subr.mxu0 0.0
    %5783 = vmatpush2.msra.mxu0 0.0
    %5784 = vmatprep.subr.mxu0 0.0
    %5785 = vmatpush2.msra.mxu0 0.0
    %5786 = vmatprep.subr.mxu0 0.0
    %5787 = vmatpush2.msra.mxu0 0.0
    %5788 = vmatprep.subr.mxu0 0.0
    %5789 = vmatpush2.msra.mxu0 0.0
    %5790 = vmatprep.subr.mxu0 0.0
    %5791 = vmatpush2.msra.mxu0 0.0
    %5792 = vmatprep.subr.mxu0 0.0
    %5793 = vmatpush2.msra.mxu0 0.0
    %5794 = vmatprep.subr.mxu0 0.0
    %5795 = vmatpush2.msra.mxu0 0.0
    %5796 = vmatprep.mubr.f32.mxu0 0.0
    %5797 = vmatmul.mubr.f32.gmra.mxu0 %v5730
    %v5798 = vpop.f32.mrf.mxu0
    %v5799 = vadd.f32 0.0, %v5798
    %v5800 = vpop.f32.mrf.mxu0
    %5801 = vdwg.mxu0
    %5802 = vmatprep.subr.mxu0 0.0
    %5803 = vmatpush1.msra.mxu0 0.0
    %5804 = vmatprep.subr.mxu0 0.0
    %5805 = vmatpush1.msra.mxu0 0.0
    %5806 = vmatprep.subr.mxu0 0.0
    %5807 = vmatpush1.msra.mxu0 0.0
    %5808 = vmatprep.subr.mxu0 0.0
    %5809 = vmatpush1.msra.mxu0 0.0
    %5810 = vmatprep.subr.mxu0 0.0
    %5811 = vmatpush1.msra.mxu0 0.0
    %5812 = vmatprep.subr.mxu0 0.0
    %5813 = vmatpush1.msra.mxu0 0.0
    %5814 = vmatprep.subr.mxu0 0.0
    %5815 = vmatpush1.msra.mxu0 0.0
    %5816 = vmatprep.subr.mxu0 0.0
    %5817 = vmatpush1.msra.mxu0 0.0
    %5818 = vmatprep.subr.mxu0 0.0
    %5819 = vmatpush1.msra.mxu0 0.0
    %5820 = vmatprep.subr.mxu0 0.0
    %5821 = vmatpush1.msra.mxu0 0.0
    %5822 = vmatprep.subr.mxu0 0.0
    %5823 = vmatpush1.msra.mxu0 0.0
    %5824 = vmatprep.subr.mxu0 0.0
    %5825 = vmatpush1.msra.mxu0 0.0
    %5826 = vmatprep.subr.mxu0 0.0
    %5827 = vmatpush1.msra.mxu0 0.0
    %5828 = vmatprep.subr.mxu0 0.0
    %5829 = vmatpush1.msra.mxu0 0.0
    %5830 = vmatprep.subr.mxu0 0.0
    %5831 = vmatpush1.msra.mxu0 %v34
    %5832 = vmatprep.subr.mxu0 0.0
    %5833 = vmatpush1.msra.mxu0 %v33
    %5834 = vmatprep.subr.mxu0 0.0
    %5835 = vmatpush2.msra.mxu0 0.0
    %5836 = vmatprep.subr.mxu0 0.0
    %5837 = vmatpush2.msra.mxu0 0.0
    %5838 = vmatprep.subr.mxu0 0.0
    %5839 = vmatpush2.msra.mxu0 0.0
    %5840 = vmatprep.subr.mxu0 0.0
    %5841 = vmatpush2.msra.mxu0 0.0
    %5842 = vmatprep.subr.mxu0 0.0
    %5843 = vmatpush2.msra.mxu0 0.0
    %5844 = vmatprep.subr.mxu0 0.0
    %5845 = vmatpush2.msra.mxu0 0.0
    %5846 = vmatprep.subr.mxu0 0.0
    %5847 = vmatpush2.msra.mxu0 0.0
    %5848 = vmatprep.subr.mxu0 0.0
    %5849 = vmatpush2.msra.mxu0 0.0
    %5850 = vmatprep.subr.mxu0 0.0
    %5851 = vmatpush2.msra.mxu0 0.0
    %5852 = vmatprep.subr.mxu0 0.0
    %5853 = vmatpush2.msra.mxu0 0.0
    %5854 = vmatprep.subr.mxu0 0.0
    %5855 = vmatpush2.msra.mxu0 0.0
    %5856 = vmatprep.subr.mxu0 0.0
    %5857 = vmatpush2.msra.mxu0 0.0
    %5858 = vmatprep.subr.mxu0 0.0
    %5859 = vmatpush2.msra.mxu0 0.0
    %5860 = vmatprep.subr.mxu0 0.0
    %5861 = vmatpush2.msra.mxu0 0.0
    %5862 = vmatprep.subr.mxu0 0.0
    %5863 = vmatpush2.msra.mxu0 0.0
    %5864 = vmatprep.subr.mxu0 0.0
    %5865 = vmatpush2.msra.mxu0 0.0
    %5866 = vmatprep.mubr.f32.mxu0 0.0
    %5867 = vmatmul.mubr.f32.gmra.mxu0 %v5730
    %v5868 = vpop.f32.mrf.mxu0
    %v5869 = vadd.f32 0.0, %v5868
    %v5870 = vpop.f32.mrf.mxu0
    %5871 = vdwg.mxu0
    %5872 = vmatprep.subr.mxu0 0.0
    %5873 = vmatpush1.msra.mxu0 0.0
    %5874 = vmatprep.subr.mxu0 0.0
    %5875 = vmatpush1.msra.mxu0 0.0
    %5876 = vmatprep.subr.mxu0 0.0
    %5877 = vmatpush1.msra.mxu0 0.0
    %5878 = vmatprep.subr.mxu0 0.0
    %5879 = vmatpush1.msra.mxu0 0.0
    %5880 = vmatprep.subr.mxu0 0.0
    %5881 = vmatpush1.msra.mxu0 0.0
    %5882 = vmatprep.subr.mxu0 0.0
    %5883 = vmatpush1.msra.mxu0 0.0
    %5884 = vmatprep.subr.mxu0 0.0
    %5885 = vmatpush1.msra.mxu0 0.0
    %5886 = vmatprep.subr.mxu0 0.0
    %5887 = vmatpush1.msra.mxu0 0.0
    %5888 = vmatprep.subr.mxu0 0.0
    %5889 = vmatpush1.msra.mxu0 0.0
    %5890 = vmatprep.subr.mxu0 0.0
    %5891 = vmatpush1.msra.mxu0 0.0
    %5892 = vmatprep.subr.mxu0 0.0
    %5893 = vmatpush1.msra.mxu0 0.0
    %5894 = vmatprep.subr.mxu0 0.0
    %5895 = vmatpush1.msra.mxu0 0.0
    %5896 = vmatprep.subr.mxu0 0.0
    %5897 = vmatpush1.msra.mxu0 0.0
    %5898 = vmatprep.subr.mxu0 0.0
    %5899 = vmatpush1.msra.mxu0 %v5869
    %5900 = vmatprep.subr.mxu0 0.0
    %5901 = vmatpush1.msra.mxu0 %v5799
    %5902 = vmatprep.subr.mxu0 0.0
    %5903 = vmatpush1.msra.mxu0 %v5728
    %5904 = vmatprep.subr.mxu0 0.0
    %5905 = vmatpush2.msra.mxu0 0.0
    %5906 = vmatprep.subr.mxu0 0.0
    %5907 = vmatpush2.msra.mxu0 0.0
    %5908 = vmatprep.subr.mxu0 0.0
    %5909 = vmatpush2.msra.mxu0 0.0
    %5910 = vmatprep.subr.mxu0 0.0
    %5911 = vmatpush2.msra.mxu0 0.0
    %5912 = vmatprep.subr.mxu0 0.0
    %5913 = vmatpush2.msra.mxu0 0.0
    %5914 = vmatprep.subr.mxu0 0.0
    %5915 = vmatpush2.msra.mxu0 0.0
    %5916 = vmatprep.subr.mxu0 0.0
    %5917 = vmatpush2.msra.mxu0 0.0
    %5918 = vmatprep.subr.mxu0 0.0
    %5919 = vmatpush2.msra.mxu0 0.0
    %5920 = vmatprep.subr.mxu0 0.0
    %5921 = vmatpush2.msra.mxu0 0.0
    %5922 = vmatprep.subr.mxu0 0.0
    %5923 = vmatpush2.msra.mxu0 0.0
    %5924 = vmatprep.subr.mxu0 0.0
    %5925 = vmatpush2.msra.mxu0 0.0
    %5926 = vmatprep.subr.mxu0 0.0
    %5927 = vmatpush2.msra.mxu0 0.0
    %5928 = vmatprep.subr.mxu0 0.0
    %5929 = vmatpush2.msra.mxu0 0.0
    %5930 = vmatprep.subr.mxu0 0.0
    %5931 = vmatpush2.msra.mxu0 0.0
    %5932 = vmatprep.subr.mxu0 0.0
    %5933 = vmatpush2.msra.mxu0 0.0
    %5934 = vmatprep.subr.mxu0 0.0
    %5935 = vmatpush2.msra.mxu0 0.0
    %5936 = vmatprep.mubr.f32.mxu0 0.0
    %5937 = vmatmul.mubr.f32.gmra.mxu0 %v480
    %v5938 = vpop.f32.mrf.mxu0
    %v5939 = vadd.f32 %v471, %v5938
    %v5940 = vpop.f32.mrf.mxu0
    %5941 = vmatprep.mubr.f32.mxu0 0.0
    %5942 = vmatmul.mubr.f32.gmra.mxu0 %v483
    %v5943 = vpop.f32.mrf.mxu0
    %v5944 = vadd.f32 %v476, %v5943
    %v5945 = vpop.f32.mrf.mxu0
    %5946 = vdwg.mxu0
    %v5947 = vxor.u32 %v5939, 2147483648
    %v5948 = vxor.u32 %v5944, 2147483648
    %v5949 = vmul.f32 %v5947, 1.442695
    %v5950 = vpow.pop %v5949
    %v5951 = vmul.f32 %v5948, 1.442695
    %v5952 = vpow.pop %v5951
    %v5953 = vadd.f32 %v5950, 1.0
    %v5954 = vadd.f32 %v5952, 1.0
    %v5955 = vrcp.pop %v5953
    %v5956 = vmul.f32 1.0, %v5955
    %v5957 = vrcp.pop %v5954
    %v5958 = vmul.f32 1.0, %v5957
    %v5959 = vtanh.pop %v5944
    %v5960 = vmul.f32 %v5369, %v5956
    %v5962 = vrot.slane %v5959, 4
    %v5964 = vmul.f32 %v5956, %v5962
    %v5966 = vrot.slane %v5964, 4
    %v5968 = vadd.f32 %v5960, %v5966
    %v5969 = vtanh.pop %v5968
    %v5971 = vrot.slane %v5958, 4
    %v5973 = vmul.f32 %v5969, %v5971
    %s5974 = scalar_lea.vmem %s6, 144
    %v5975 = vld [vmem:[%s5974] sm:$0xff]
    %v5976 = vld [vmem:[%s5974 + $0x8] sm:$0xf]
    %v5978 = vrot.slane %v5973, 4
    %v5980 = vsel %vm1103, %v5975, 0
    %v5983 = vsel %vm1103, %v5976, 0
    %v5985 = vsel %vm198, %v5978, 0
    %5987 = vmatprep.subr.mxu0 0.0
    %5988 = vmatpush1.msra.mxu0 0.0
    %5989 = vmatprep.subr.mxu0 0.0
    %5990 = vmatpush1.msra.mxu0 0.0
    %5991 = vmatprep.subr.mxu0 0.0
    %5992 = vmatpush1.msra.mxu0 0.0
    %5993 = vmatprep.subr.mxu0 0.0
    %5994 = vmatpush1.msra.mxu0 0.0
    %5995 = vmatprep.subr.mxu0 0.0
    %5996 = vmatpush1.msra.mxu0 0.0
    %5997 = vmatprep.subr.mxu0 0.0
    %5998 = vmatpush1.msra.mxu0 0.0
    %5999 = vmatprep.subr.mxu0 0.0
    %6000 = vmatpush1.msra.mxu0 0.0
    %6001 = vmatprep.subr.mxu0 0.0
    %6002 = vmatpush1.msra.mxu0 0.0
    %6003 = vmatprep.subr.mxu0 0.0
    %6004 = vmatpush1.msra.mxu0 0.0
    %6005 = vmatprep.subr.mxu0 0.0
    %6006 = vmatpush1.msra.mxu0 0.0
    %6007 = vmatprep.subr.mxu0 0.0
    %6008 = vmatpush1.msra.mxu0 0.0
    %6009 = vmatprep.subr.mxu0 0.0
    %6010 = vmatpush1.msra.mxu0 0.0
    %6011 = vmatprep.subr.mxu0 0.0
    %6012 = vmatpush1.msra.mxu0 0.0
    %6013 = vmatprep.subr.mxu0 0.0
    %6014 = vmatpush1.msra.mxu0 0.0
    %6015 = vmatprep.subr.mxu0 0.0
    %6016 = vmatpush1.msra.mxu0 0.0
    %6017 = vmatprep.subr.mxu0 0.0
    %6018 = vmatpush1.msra.mxu0 %v5985
    %6019 = vmatprep.subr.mxu0 0.0
    %6020 = vmatpush2.msra.mxu0 0.0
    %6021 = vmatprep.subr.mxu0 0.0
    %6022 = vmatpush2.msra.mxu0 0.0
    %6023 = vmatprep.subr.mxu0 0.0
    %6024 = vmatpush2.msra.mxu0 0.0
    %6025 = vmatprep.subr.mxu0 0.0
    %6026 = vmatpush2.msra.mxu0 0.0
    %6027 = vmatprep.subr.mxu0 0.0
    %6028 = vmatpush2.msra.mxu0 0.0
    %6029 = vmatprep.subr.mxu0 0.0
    %6030 = vmatpush2.msra.mxu0 0.0
    %6031 = vmatprep.subr.mxu0 0.0
    %6032 = vmatpush2.msra.mxu0 0.0
    %6033 = vmatprep.subr.mxu0 0.0
    %6034 = vmatpush2.msra.mxu0 0.0
    %6035 = vmatprep.subr.mxu0 0.0
    %6036 = vmatpush2.msra.mxu0 0.0
    %6037 = vmatprep.subr.mxu0 0.0
    %6038 = vmatpush2.msra.mxu0 0.0
    %6039 = vmatprep.subr.mxu0 0.0
    %6040 = vmatpush2.msra.mxu0 0.0
    %6041 = vmatprep.subr.mxu0 0.0
    %6042 = vmatpush2.msra.mxu0 0.0
    %6043 = vmatprep.subr.mxu0 0.0
    %6044 = vmatpush2.msra.mxu0 0.0
    %6045 = vmatprep.subr.mxu0 0.0
    %6046 = vmatpush2.msra.mxu0 0.0
    %6047 = vmatprep.subr.mxu0 0.0
    %6048 = vmatpush2.msra.mxu0 0.0
    %6049 = vmatprep.subr.mxu0 0.0
    %6050 = vmatpush2.msra.mxu0 0.0
    %6051 = vmatprep.mubr.f32.mxu0 0.0
    %6052 = vmatmul.mubr.f32.gmra.mxu0 %v5980
    %v6053 = vpop.f32.mrf.mxu0
    %v6054 = vadd.f32 0.0, %v6053
    %v6055 = vpop.f32.mrf.mxu0
    %6056 = vmatprep.mubr.f32.mxu0 0.0
    %6057 = vmatmul.mubr.f32.gmra.mxu0 %v5983
    %v6058 = vpop.f32.mrf.mxu0
    %v6059 = vadd.f32 0.0, %v6058
    %v6060 = vpop.f32.mrf.mxu0
    %6061 = vdwg.mxu0
    %v6062 = vadd.f32 %v5463, %v6054
    %v6063 = vadd.f32 %v5464, %v6059
    %s6064 = scalar_lea.vmem %s0, 20
    %v6065 = vld [vmem:[%s6064] sm:$0x3]
    %v6066 = vrot.slane %v5724, 2
    %v6068 = vsel %vm44, %v6065, %v6066
    %v6070 = vsel %vm46, %v6068, 0
    %6072 = vmatprep.subr.mxu0 0.0
    %6073 = vmatpush1.msra.mxu0 0.0
    %6074 = vmatprep.subr.mxu0 0.0
    %6075 = vmatpush1.msra.mxu0 0.0
    %6076 = vmatprep.subr.mxu0 0.0
    %6077 = vmatpush1.msra.mxu0 0.0
    %6078 = vmatprep.subr.mxu0 0.0
    %6079 = vmatpush1.msra.mxu0 0.0
    %6080 = vmatprep.subr.mxu0 0.0
    %6081 = vmatpush1.msra.mxu0 0.0
    %6082 = vmatprep.subr.mxu0 0.0
    %6083 = vmatpush1.msra.mxu0 0.0
    %6084 = vmatprep.subr.mxu0 0.0
    %6085 = vmatpush1.msra.mxu0 0.0
    %6086 = vmatprep.subr.mxu0 0.0
    %6087 = vmatpush1.msra.mxu0 0.0
    %6088 = vmatprep.subr.mxu0 0.0
    %6089 = vmatpush1.msra.mxu0 0.0
    %6090 = vmatprep.subr.mxu0 0.0
    %6091 = vmatpush1.msra.mxu0 0.0
    %6092 = vmatprep.subr.mxu0 0.0
    %6093 = vmatpush1.msra.mxu0 0.0
    %6094 = vmatprep.subr.mxu0 0.0
    %6095 = vmatpush1.msra.mxu0 0.0
    %6096 = vmatprep.subr.mxu0 0.0
    %6097 = vmatpush1.msra.mxu0 0.0
    %6098 = vmatprep.subr.mxu0 0.0
    %6099 = vmatpush1.msra.mxu0 0.0
    %6100 = vmatprep.subr.mxu0 0.0
    %6101 = vmatpush1.msra.mxu0 %v31
    %6102 = vmatprep.subr.mxu0 0.0
    %6103 = vmatpush1.msra.mxu0 %v30
    %6104 = vmatprep.subr.mxu0 0.0
    %6105 = vmatpush2.msra.mxu0 0.0
    %6106 = vmatprep.subr.mxu0 0.0
    %6107 = vmatpush2.msra.mxu0 0.0
    %6108 = vmatprep.subr.mxu0 0.0
    %6109 = vmatpush2.msra.mxu0 0.0
    %6110 = vmatprep.subr.mxu0 0.0
    %6111 = vmatpush2.msra.mxu0 0.0
    %6112 = vmatprep.subr.mxu0 0.0
    %6113 = vmatpush2.msra.mxu0 0.0
    %6114 = vmatprep.subr.mxu0 0.0
    %6115 = vmatpush2.msra.mxu0 0.0
    %6116 = vmatprep.subr.mxu0 0.0
    %6117 = vmatpush2.msra.mxu0 0.0
    %6118 = vmatprep.subr.mxu0 0.0
    %6119 = vmatpush2.msra.mxu0 0.0
    %6120 = vmatprep.subr.mxu0 0.0
    %6121 = vmatpush2.msra.mxu0 0.0
    %6122 = vmatprep.subr.mxu0 0.0
    %6123 = vmatpush2.msra.mxu0 0.0
    %6124 = vmatprep.subr.mxu0 0.0
    %6125 = vmatpush2.msra.mxu0 0.0
    %6126 = vmatprep.subr.mxu0 0.0
    %6127 = vmatpush2.msra.mxu0 0.0
    %6128 = vmatprep.subr.mxu0 0.0
    %6129 = vmatpush2.msra.mxu0 0.0
    %6130 = vmatprep.subr.mxu0 0.0
    %6131 = vmatpush2.msra.mxu0 0.0
    %6132 = vmatprep.subr.mxu0 0.0
    %6133 = vmatpush2.msra.mxu0 0.0
    %6134 = vmatprep.subr.mxu0 0.0
    %6135 = vmatpush2.msra.mxu0 0.0
    %6136 = vmatprep.mubr.f32.mxu0 0.0
    %6137 = vmatmul.mubr.f32.gmra.mxu0 %v6070
    %v6138 = vpop.f32.mrf.mxu0
    %v6139 = vadd.f32 0.0, %v6138
    %v6140 = vpop.f32.mrf.mxu0
    %6141 = vdwg.mxu0
    %6142 = vmatprep.subr.mxu0 0.0
    %6143 = vmatpush1.msra.mxu0 0.0
    %6144 = vmatprep.subr.mxu0 0.0
    %6145 = vmatpush1.msra.mxu0 0.0
    %6146 = vmatprep.subr.mxu0 0.0
    %6147 = vmatpush1.msra.mxu0 0.0
    %6148 = vmatprep.subr.mxu0 0.0
    %6149 = vmatpush1.msra.mxu0 0.0
    %6150 = vmatprep.subr.mxu0 0.0
    %6151 = vmatpush1.msra.mxu0 0.0
    %6152 = vmatprep.subr.mxu0 0.0
    %6153 = vmatpush1.msra.mxu0 0.0
    %6154 = vmatprep.subr.mxu0 0.0
    %6155 = vmatpush1.msra.mxu0 0.0
    %6156 = vmatprep.subr.mxu0 0.0
    %6157 = vmatpush1.msra.mxu0 0.0
    %6158 = vmatprep.subr.mxu0 0.0
    %6159 = vmatpush1.msra.mxu0 0.0
    %6160 = vmatprep.subr.mxu0 0.0
    %6161 = vmatpush1.msra.mxu0 0.0
    %6162 = vmatprep.subr.mxu0 0.0
    %6163 = vmatpush1.msra.mxu0 0.0
    %6164 = vmatprep.subr.mxu0 0.0
    %6165 = vmatpush1.msra.mxu0 0.0
    %6166 = vmatprep.subr.mxu0 0.0
    %6167 = vmatpush1.msra.mxu0 0.0
    %6168 = vmatprep.subr.mxu0 0.0
    %6169 = vmatpush1.msra.mxu0 0.0
    %6170 = vmatprep.subr.mxu0 0.0
    %6171 = vmatpush1.msra.mxu0 %v34
    %6172 = vmatprep.subr.mxu0 0.0
    %6173 = vmatpush1.msra.mxu0 %v33
    %6174 = vmatprep.subr.mxu0 0.0
    %6175 = vmatpush2.msra.mxu0 0.0
    %6176 = vmatprep.subr.mxu0 0.0
    %6177 = vmatpush2.msra.mxu0 0.0
    %6178 = vmatprep.subr.mxu0 0.0
    %6179 = vmatpush2.msra.mxu0 0.0
    %6180 = vmatprep.subr.mxu0 0.0
    %6181 = vmatpush2.msra.mxu0 0.0
    %6182 = vmatprep.subr.mxu0 0.0
    %6183 = vmatpush2.msra.mxu0 0.0
    %6184 = vmatprep.subr.mxu0 0.0
    %6185 = vmatpush2.msra.mxu0 0.0
    %6186 = vmatprep.subr.mxu0 0.0
    %6187 = vmatpush2.msra.mxu0 0.0
    %6188 = vmatprep.subr.mxu0 0.0
    %6189 = vmatpush2.msra.mxu0 0.0
    %6190 = vmatprep.subr.mxu0 0.0
    %6191 = vmatpush2.msra.mxu0 0.0
    %6192 = vmatprep.subr.mxu0 0.0
    %6193 = vmatpush2.msra.mxu0 0.0
    %6194 = vmatprep.subr.mxu0 0.0
    %6195 = vmatpush2.msra.mxu0 0.0
    %6196 = vmatprep.subr.mxu0 0.0
    %6197 = vmatpush2.msra.mxu0 0.0
    %6198 = vmatprep.subr.mxu0 0.0
    %6199 = vmatpush2.msra.mxu0 0.0
    %6200 = vmatprep.subr.mxu0 0.0
    %6201 = vmatpush2.msra.mxu0 0.0
    %6202 = vmatprep.subr.mxu0 0.0
    %6203 = vmatpush2.msra.mxu0 0.0
    %6204 = vmatprep.subr.mxu0 0.0
    %6205 = vmatpush2.msra.mxu0 0.0
    %6206 = vmatprep.mubr.f32.mxu0 0.0
    %6207 = vmatmul.mubr.f32.gmra.mxu0 %v6070
    %v6208 = vpop.f32.mrf.mxu0
    %v6209 = vadd.f32 0.0, %v6208
    %v6210 = vpop.f32.mrf.mxu0
    %6211 = vdwg.mxu0
    %v6213 = vrot.slane %v6139, 2
    %v6216 = vrot.slane %v6209, 4
    %v6218 = vsel %vm196, %v6068, %v6213
    %v6219 = vsel %vm198, %v6213, %v6216
    %v6220 = vsel %vm44, %v6216, 0
    %6222 = vmatprep.subr.mxu0 0.0
    %6223 = vmatpush1.msra.mxu0 0.0
    %6224 = vmatprep.subr.mxu0 0.0
    %6225 = vmatpush1.msra.mxu0 0.0
    %6226 = vmatprep.subr.mxu0 0.0
    %6227 = vmatpush1.msra.mxu0 0.0
    %6228 = vmatprep.subr.mxu0 0.0
    %6229 = vmatpush1.msra.mxu0 0.0
    %6230 = vmatprep.subr.mxu0 0.0
    %6231 = vmatpush1.msra.mxu0 0.0
    %6232 = vmatprep.subr.mxu0 0.0
    %6233 = vmatpush1.msra.mxu0 0.0
    %6234 = vmatprep.subr.mxu0 0.0
    %6235 = vmatpush1.msra.mxu0 0.0
    %6236 = vmatprep.subr.mxu0 0.0
    %6237 = vmatpush1.msra.mxu0 0.0
    %6238 = vmatprep.subr.mxu0 0.0
    %6239 = vmatpush1.msra.mxu0 0.0
    %6240 = vmatprep.subr.mxu0 0.0
    %6241 = vmatpush1.msra.mxu0 0.0
    %6242 = vmatprep.subr.mxu0 0.0
    %6243 = vmatpush1.msra.mxu0 0.0
    %6244 = vmatprep.subr.mxu0 0.0
    %6245 = vmatpush1.msra.mxu0 0.0
    %6246 = vmatprep.subr.mxu0 0.0
    %6247 = vmatpush1.msra.mxu0 0.0
    %6248 = vmatprep.subr.mxu0 0.0
    %6249 = vmatpush1.msra.mxu0 %v6220
    %6250 = vmatprep.subr.mxu0 0.0
    %6251 = vmatpush1.msra.mxu0 %v6219
    %6252 = vmatprep.subr.mxu0 0.0
    %6253 = vmatpush1.msra.mxu0 %v6218
    %6254 = vmatprep.subr.mxu0 0.0
    %6255 = vmatpush2.msra.mxu0 0.0
    %6256 = vmatprep.subr.mxu0 0.0
    %6257 = vmatpush2.msra.mxu0 0.0
    %6258 = vmatprep.subr.mxu0 0.0
    %6259 = vmatpush2.msra.mxu0 0.0
    %6260 = vmatprep.subr.mxu0 0.0
    %6261 = vmatpush2.msra.mxu0 0.0
    %6262 = vmatprep.subr.mxu0 0.0
    %6263 = vmatpush2.msra.mxu0 0.0
    %6264 = vmatprep.subr.mxu0 0.0
    %6265 = vmatpush2.msra.mxu0 0.0
    %6266 = vmatprep.subr.mxu0 0.0
    %6267 = vmatpush2.msra.mxu0 0.0
    %6268 = vmatprep.subr.mxu0 0.0
    %6269 = vmatpush2.msra.mxu0 0.0
    %6270 = vmatprep.subr.mxu0 0.0
    %6271 = vmatpush2.msra.mxu0 0.0
    %6272 = vmatprep.subr.mxu0 0.0
    %6273 = vmatpush2.msra.mxu0 0.0
    %6274 = vmatprep.subr.mxu0 0.0
    %6275 = vmatpush2.msra.mxu0 0.0
    %6276 = vmatprep.subr.mxu0 0.0
    %6277 = vmatpush2.msra.mxu0 0.0
    %6278 = vmatprep.subr.mxu0 0.0
    %6279 = vmatpush2.msra.mxu0 0.0
    %6280 = vmatprep.subr.mxu0 0.0
    %6281 = vmatpush2.msra.mxu0 0.0
    %6282 = vmatprep.subr.mxu0 0.0
    %6283 = vmatpush2.msra.mxu0 0.0
    %6284 = vmatprep.subr.mxu0 0.0
    %6285 = vmatpush2.msra.mxu0 0.0
    %6286 = vmatprep.mubr.f32.mxu0 0.0
    %6287 = vmatmul.mubr.f32.gmra.mxu0 %v212
    %v6288 = vpop.f32.mrf.mxu0
    %v6289 = vadd.f32 %v203, %v6288
    %v6290 = vpop.f32.mrf.mxu0
    %6291 = vmatprep.mubr.f32.mxu0 0.0
    %6292 = vmatmul.mubr.f32.gmra.mxu0 %v215
    %v6293 = vpop.f32.mrf.mxu0
    %v6294 = vadd.f32 %v208, %v6293
    %v6295 = vpop.f32.mrf.mxu0
    %6296 = vdwg.mxu0
    %v6297 = vxor.u32 %v6289, 2147483648
    %v6298 = vxor.u32 %v6294, 2147483648
    %v6299 = vmul.f32 %v6297, 1.442695
    %v6300 = vpow.pop %v6299
    %v6301 = vmul.f32 %v6298, 1.442695
    %v6302 = vpow.pop %v6301
    %v6303 = vadd.f32 %v6300, 1.0
    %v6304 = vadd.f32 %v6302, 1.0
    %v6305 = vrcp.pop %v6303
    %v6306 = vmul.f32 1.0, %v6305
    %v6307 = vrcp.pop %v6304
    %v6308 = vmul.f32 1.0, %v6307
    %v6309 = vtanh.pop %v6294
    %v6310 = vmul.f32 %v5719, %v6306
    %v6312 = vrot.slane %v6309, 4
    %v6314 = vmul.f32 %v6306, %v6312
    %v6316 = vrot.slane %v6314, 4
    %v6318 = vadd.f32 %v6310, %v6316
    %v6319 = vtanh.pop %v6318
    %v6321 = vrot.slane %v6308, 4
    %v6323 = vmul.f32 %v6319, %v6321
    %v6325 = vrot.slane %v6323, 4
    %v6327 = vsel %vm198, %v6325, %v5973
    %v6329 = vsel %vm46, %v6327, 0
    %6331 = vmatprep.subr.mxu0 0.0
    %6332 = vmatpush1.msra.mxu0 0.0
    %6333 = vmatprep.subr.mxu0 0.0
    %6334 = vmatpush1.msra.mxu0 0.0
    %6335 = vmatprep.subr.mxu0 0.0
    %6336 = vmatpush1.msra.mxu0 0.0
    %6337 = vmatprep.subr.mxu0 0.0
    %6338 = vmatpush1.msra.mxu0 0.0
    %6339 = vmatprep.subr.mxu0 0.0
    %6340 = vmatpush1.msra.mxu0 0.0
    %6341 = vmatprep.subr.mxu0 0.0
    %6342 = vmatpush1.msra.mxu0 0.0
    %6343 = vmatprep.subr.mxu0 0.0
    %6344 = vmatpush1.msra.mxu0 0.0
    %6345 = vmatprep.subr.mxu0 0.0
    %6346 = vmatpush1.msra.mxu0 0.0
    %6347 = vmatprep.subr.mxu0 0.0
    %6348 = vmatpush1.msra.mxu0 0.0
    %6349 = vmatprep.subr.mxu0 0.0
    %6350 = vmatpush1.msra.mxu0 0.0
    %6351 = vmatprep.subr.mxu0 0.0
    %6352 = vmatpush1.msra.mxu0 0.0
    %6353 = vmatprep.subr.mxu0 0.0
    %6354 = vmatpush1.msra.mxu0 0.0
    %6355 = vmatprep.subr.mxu0 0.0
    %6356 = vmatpush1.msra.mxu0 0.0
    %6357 = vmatprep.subr.mxu0 0.0
    %6358 = vmatpush1.msra.mxu0 0.0
    %6359 = vmatprep.subr.mxu0 0.0
    %6360 = vmatpush1.msra.mxu0 %v31
    %6361 = vmatprep.subr.mxu0 0.0
    %6362 = vmatpush1.msra.mxu0 %v30
    %6363 = vmatprep.subr.mxu0 0.0
    %6364 = vmatpush2.msra.mxu0 0.0
    %6365 = vmatprep.subr.mxu0 0.0
    %6366 = vmatpush2.msra.mxu0 0.0
    %6367 = vmatprep.subr.mxu0 0.0
    %6368 = vmatpush2.msra.mxu0 0.0
    %6369 = vmatprep.subr.mxu0 0.0
    %6370 = vmatpush2.msra.mxu0 0.0
    %6371 = vmatprep.subr.mxu0 0.0
    %6372 = vmatpush2.msra.mxu0 0.0
    %6373 = vmatprep.subr.mxu0 0.0
    %6374 = vmatpush2.msra.mxu0 0.0
    %6375 = vmatprep.subr.mxu0 0.0
    %6376 = vmatpush2.msra.mxu0 0.0
    %6377 = vmatprep.subr.mxu0 0.0
    %6378 = vmatpush2.msra.mxu0 0.0
    %6379 = vmatprep.subr.mxu0 0.0
    %6380 = vmatpush2.msra.mxu0 0.0
    %6381 = vmatprep.subr.mxu0 0.0
    %6382 = vmatpush2.msra.mxu0 0.0
    %6383 = vmatprep.subr.mxu0 0.0
    %6384 = vmatpush2.msra.mxu0 0.0
    %6385 = vmatprep.subr.mxu0 0.0
    %6386 = vmatpush2.msra.mxu0 0.0
    %6387 = vmatprep.subr.mxu0 0.0
    %6388 = vmatpush2.msra.mxu0 0.0
    %6389 = vmatprep.subr.mxu0 0.0
    %6390 = vmatpush2.msra.mxu0 0.0
    %6391 = vmatprep.subr.mxu0 0.0
    %6392 = vmatpush2.msra.mxu0 0.0
    %6393 = vmatprep.subr.mxu0 0.0
    %6394 = vmatpush2.msra.mxu0 0.0
    %6395 = vmatprep.mubr.f32.mxu0 0.0
    %6396 = vmatmul.mubr.f32.gmra.mxu0 %v6329
    %v6397 = vpop.f32.mrf.mxu0
    %v6398 = vadd.f32 0.0, %v6397
    %v6399 = vpop.f32.mrf.mxu0
    %6400 = vdwg.mxu0
    %6401 = vmatprep.subr.mxu0 0.0
    %6402 = vmatpush1.msra.mxu0 0.0
    %6403 = vmatprep.subr.mxu0 0.0
    %6404 = vmatpush1.msra.mxu0 0.0
    %6405 = vmatprep.subr.mxu0 0.0
    %6406 = vmatpush1.msra.mxu0 0.0
    %6407 = vmatprep.subr.mxu0 0.0
    %6408 = vmatpush1.msra.mxu0 0.0
    %6409 = vmatprep.subr.mxu0 0.0
    %6410 = vmatpush1.msra.mxu0 0.0
    %6411 = vmatprep.subr.mxu0 0.0
    %6412 = vmatpush1.msra.mxu0 0.0
    %6413 = vmatprep.subr.mxu0 0.0
    %6414 = vmatpush1.msra.mxu0 0.0
    %6415 = vmatprep.subr.mxu0 0.0
    %6416 = vmatpush1.msra.mxu0 0.0
    %6417 = vmatprep.subr.mxu0 0.0
    %6418 = vmatpush1.msra.mxu0 0.0
    %6419 = vmatprep.subr.mxu0 0.0
    %6420 = vmatpush1.msra.mxu0 0.0
    %6421 = vmatprep.subr.mxu0 0.0
    %6422 = vmatpush1.msra.mxu0 0.0
    %6423 = vmatprep.subr.mxu0 0.0
    %6424 = vmatpush1.msra.mxu0 0.0
    %6425 = vmatprep.subr.mxu0 0.0
    %6426 = vmatpush1.msra.mxu0 0.0
    %6427 = vmatprep.subr.mxu0 0.0
    %6428 = vmatpush1.msra.mxu0 0.0
    %6429 = vmatprep.subr.mxu0 0.0
    %6430 = vmatpush1.msra.mxu0 %v34
    %6431 = vmatprep.subr.mxu0 0.0
    %6432 = vmatpush1.msra.mxu0 %v33
    %6433 = vmatprep.subr.mxu0 0.0
    %6434 = vmatpush2.msra.mxu0 0.0
    %6435 = vmatprep.subr.mxu0 0.0
    %6436 = vmatpush2.msra.mxu0 0.0
    %6437 = vmatprep.subr.mxu0 0.0
    %6438 = vmatpush2.msra.mxu0 0.0
    %6439 = vmatprep.subr.mxu0 0.0
    %6440 = vmatpush2.msra.mxu0 0.0
    %6441 = vmatprep.subr.mxu0 0.0
    %6442 = vmatpush2.msra.mxu0 0.0
    %6443 = vmatprep.subr.mxu0 0.0
    %6444 = vmatpush2.msra.mxu0 0.0
    %6445 = vmatprep.subr.mxu0 0.0
    %6446 = vmatpush2.msra.mxu0 0.0
    %6447 = vmatprep.subr.mxu0 0.0
    %6448 = vmatpush2.msra.mxu0 0.0
    %6449 = vmatprep.subr.mxu0 0.0
    %6450 = vmatpush2.msra.mxu0 0.0
    %6451 = vmatprep.subr.mxu0 0.0
    %6452 = vmatpush2.msra.mxu0 0.0
    %6453 = vmatprep.subr.mxu0 0.0
    %6454 = vmatpush2.msra.mxu0 0.0
    %6455 = vmatprep.subr.mxu0 0.0
    %6456 = vmatpush2.msra.mxu0 0.0
    %6457 = vmatprep.subr.mxu0 0.0
    %6458 = vmatpush2.msra.mxu0 0.0
    %6459 = vmatprep.subr.mxu0 0.0
    %6460 = vmatpush2.msra.mxu0 0.0
    %6461 = vmatprep.subr.mxu0 0.0
    %6462 = vmatpush2.msra.mxu0 0.0
    %6463 = vmatprep.subr.mxu0 0.0
    %6464 = vmatpush2.msra.mxu0 0.0
    %6465 = vmatprep.mubr.f32.mxu0 0.0
    %6466 = vmatmul.mubr.f32.gmra.mxu0 %v6329
    %v6467 = vpop.f32.mrf.mxu0
    %v6468 = vadd.f32 0.0, %v6467
    %v6469 = vpop.f32.mrf.mxu0
    %6470 = vdwg.mxu0
    %6471 = vmatprep.subr.mxu0 0.0
    %6472 = vmatpush1.msra.mxu0 0.0
    %6473 = vmatprep.subr.mxu0 0.0
    %6474 = vmatpush1.msra.mxu0 0.0
    %6475 = vmatprep.subr.mxu0 0.0
    %6476 = vmatpush1.msra.mxu0 0.0
    %6477 = vmatprep.subr.mxu0 0.0
    %6478 = vmatpush1.msra.mxu0 0.0
    %6479 = vmatprep.subr.mxu0 0.0
    %6480 = vmatpush1.msra.mxu0 0.0
    %6481 = vmatprep.subr.mxu0 0.0
    %6482 = vmatpush1.msra.mxu0 0.0
    %6483 = vmatprep.subr.mxu0 0.0
    %6484 = vmatpush1.msra.mxu0 0.0
    %6485 = vmatprep.subr.mxu0 0.0
    %6486 = vmatpush1.msra.mxu0 0.0
    %6487 = vmatprep.subr.mxu0 0.0
    %6488 = vmatpush1.msra.mxu0 0.0
    %6489 = vmatprep.subr.mxu0 0.0
    %6490 = vmatpush1.msra.mxu0 0.0
    %6491 = vmatprep.subr.mxu0 0.0
    %6492 = vmatpush1.msra.mxu0 0.0
    %6493 = vmatprep.subr.mxu0 0.0
    %6494 = vmatpush1.msra.mxu0 0.0
    %6495 = vmatprep.subr.mxu0 0.0
    %6496 = vmatpush1.msra.mxu0 0.0
    %6497 = vmatprep.subr.mxu0 0.0
    %6498 = vmatpush1.msra.mxu0 %v6468
    %6499 = vmatprep.subr.mxu0 0.0
    %6500 = vmatpush1.msra.mxu0 %v6398
    %6501 = vmatprep.subr.mxu0 0.0
    %6502 = vmatpush1.msra.mxu0 %v6327
    %6503 = vmatprep.subr.mxu0 0.0
    %6504 = vmatpush2.msra.mxu0 0.0
    %6505 = vmatprep.subr.mxu0 0.0
    %6506 = vmatpush2.msra.mxu0 0.0
    %6507 = vmatprep.subr.mxu0 0.0
    %6508 = vmatpush2.msra.mxu0 0.0
    %6509 = vmatprep.subr.mxu0 0.0
    %6510 = vmatpush2.msra.mxu0 0.0
    %6511 = vmatprep.subr.mxu0 0.0
    %6512 = vmatpush2.msra.mxu0 0.0
    %6513 = vmatprep.subr.mxu0 0.0
    %6514 = vmatpush2.msra.mxu0 0.0
    %6515 = vmatprep.subr.mxu0 0.0
    %6516 = vmatpush2.msra.mxu0 0.0
    %6517 = vmatprep.subr.mxu0 0.0
    %6518 = vmatpush2.msra.mxu0 0.0
    %6519 = vmatprep.subr.mxu0 0.0
    %6520 = vmatpush2.msra.mxu0 0.0
    %6521 = vmatprep.subr.mxu0 0.0
    %6522 = vmatpush2.msra.mxu0 0.0
    %6523 = vmatprep.subr.mxu0 0.0
    %6524 = vmatpush2.msra.mxu0 0.0
    %6525 = vmatprep.subr.mxu0 0.0
    %6526 = vmatpush2.msra.mxu0 0.0
    %6527 = vmatprep.subr.mxu0 0.0
    %6528 = vmatpush2.msra.mxu0 0.0
    %6529 = vmatprep.subr.mxu0 0.0
    %6530 = vmatpush2.msra.mxu0 0.0
    %6531 = vmatprep.subr.mxu0 0.0
    %6532 = vmatpush2.msra.mxu0 0.0
    %6533 = vmatprep.subr.mxu0 0.0
    %6534 = vmatpush2.msra.mxu0 0.0
    %6535 = vmatprep.mubr.f32.mxu0 0.0
    %6536 = vmatmul.mubr.f32.gmra.mxu0 %v480
    %v6537 = vpop.f32.mrf.mxu0
    %v6538 = vadd.f32 %v471, %v6537
    %v6539 = vpop.f32.mrf.mxu0
    %6540 = vmatprep.mubr.f32.mxu0 0.0
    %6541 = vmatmul.mubr.f32.gmra.mxu0 %v483
    %v6542 = vpop.f32.mrf.mxu0
    %v6543 = vadd.f32 %v476, %v6542
    %v6544 = vpop.f32.mrf.mxu0
    %6545 = vdwg.mxu0
    %v6546 = vxor.u32 %v6538, 2147483648
    %v6547 = vxor.u32 %v6543, 2147483648
    %v6548 = vmul.f32 %v6546, 1.442695
    %v6549 = vpow.pop %v6548
    %v6550 = vmul.f32 %v6547, 1.442695
    %v6551 = vpow.pop %v6550
    %v6552 = vadd.f32 %v6549, 1.0
    %v6553 = vadd.f32 %v6551, 1.0
    %v6554 = vrcp.pop %v6552
    %v6555 = vmul.f32 1.0, %v6554
    %v6556 = vrcp.pop %v6553
    %v6557 = vmul.f32 1.0, %v6556
    %v6558 = vtanh.pop %v6543
    %v6559 = vmul.f32 %v5968, %v6555
    %v6561 = vrot.slane %v6558, 4
    %v6563 = vmul.f32 %v6555, %v6561
    %v6565 = vrot.slane %v6563, 4
    %v6567 = vadd.f32 %v6559, %v6565
    %v6568 = vtanh.pop %v6567
    %v6570 = vrot.slane %v6557, 4
    %v6572 = vmul.f32 %v6568, %v6570
    %s6573 = scalar_lea.vmem %s6, 160
    %v6574 = vld [vmem:[%s6573] sm:$0xff]
    %v6575 = vld [vmem:[%s6573 + $0x8] sm:$0xf]
    %v6577 = vrot.slane %v6572, 4
    %v6579 = vsel %vm1103, %v6574, 0
    %v6582 = vsel %vm1103, %v6575, 0
    %v6584 = vsel %vm198, %v6577, 0
    %6586 = vmatprep.subr.mxu0 0.0
    %6587 = vmatpush1.msra.mxu0 0.0
    %6588 = vmatprep.subr.mxu0 0.0
    %6589 = vmatpush1.msra.mxu0 0.0
    %6590 = vmatprep.subr.mxu0 0.0
    %6591 = vmatpush1.msra.mxu0 0.0
    %6592 = vmatprep.subr.mxu0 0.0
    %6593 = vmatpush1.msra.mxu0 0.0
    %6594 = vmatprep.subr.mxu0 0.0
    %6595 = vmatpush1.msra.mxu0 0.0
    %6596 = vmatprep.subr.mxu0 0.0
    %6597 = vmatpush1.msra.mxu0 0.0
    %6598 = vmatprep.subr.mxu0 0.0
    %6599 = vmatpush1.msra.mxu0 0.0
    %6600 = vmatprep.subr.mxu0 0.0
    %6601 = vmatpush1.msra.mxu0 0.0
    %6602 = vmatprep.subr.mxu0 0.0
    %6603 = vmatpush1.msra.mxu0 0.0
    %6604 = vmatprep.subr.mxu0 0.0
    %6605 = vmatpush1.msra.mxu0 0.0
    %6606 = vmatprep.subr.mxu0 0.0
    %6607 = vmatpush1.msra.mxu0 0.0
    %6608 = vmatprep.subr.mxu0 0.0
    %6609 = vmatpush1.msra.mxu0 0.0
    %6610 = vmatprep.subr.mxu0 0.0
    %6611 = vmatpush1.msra.mxu0 0.0
    %6612 = vmatprep.subr.mxu0 0.0
    %6613 = vmatpush1.msra.mxu0 0.0
    %6614 = vmatprep.subr.mxu0 0.0
    %6615 = vmatpush1.msra.mxu0 0.0
    %6616 = vmatprep.subr.mxu0 0.0
    %6617 = vmatpush1.msra.mxu0 %v6584
    %6618 = vmatprep.subr.mxu0 0.0
    %6619 = vmatpush2.msra.mxu0 0.0
    %6620 = vmatprep.subr.mxu0 0.0
    %6621 = vmatpush2.msra.mxu0 0.0
    %6622 = vmatprep.subr.mxu0 0.0
    %6623 = vmatpush2.msra.mxu0 0.0
    %6624 = vmatprep.subr.mxu0 0.0
    %6625 = vmatpush2.msra.mxu0 0.0
    %6626 = vmatprep.subr.mxu0 0.0
    %6627 = vmatpush2.msra.mxu0 0.0
    %6628 = vmatprep.subr.mxu0 0.0
    %6629 = vmatpush2.msra.mxu0 0.0
    %6630 = vmatprep.subr.mxu0 0.0
    %6631 = vmatpush2.msra.mxu0 0.0
    %6632 = vmatprep.subr.mxu0 0.0
    %6633 = vmatpush2.msra.mxu0 0.0
    %6634 = vmatprep.subr.mxu0 0.0
    %6635 = vmatpush2.msra.mxu0 0.0
    %6636 = vmatprep.subr.mxu0 0.0
    %6637 = vmatpush2.msra.mxu0 0.0
    %6638 = vmatprep.subr.mxu0 0.0
    %6639 = vmatpush2.msra.mxu0 0.0
    %6640 = vmatprep.subr.mxu0 0.0
    %6641 = vmatpush2.msra.mxu0 0.0
    %6642 = vmatprep.subr.mxu0 0.0
    %6643 = vmatpush2.msra.mxu0 0.0
    %6644 = vmatprep.subr.mxu0 0.0
    %6645 = vmatpush2.msra.mxu0 0.0
    %6646 = vmatprep.subr.mxu0 0.0
    %6647 = vmatpush2.msra.mxu0 0.0
    %6648 = vmatprep.subr.mxu0 0.0
    %6649 = vmatpush2.msra.mxu0 0.0
    %6650 = vmatprep.mubr.f32.mxu0 0.0
    %6651 = vmatmul.mubr.f32.gmra.mxu0 %v6579
    %v6652 = vpop.f32.mrf.mxu0
    %v6653 = vadd.f32 0.0, %v6652
    %v6654 = vpop.f32.mrf.mxu0
    %6655 = vmatprep.mubr.f32.mxu0 0.0
    %6656 = vmatmul.mubr.f32.gmra.mxu0 %v6582
    %v6657 = vpop.f32.mrf.mxu0
    %v6658 = vadd.f32 0.0, %v6657
    %v6659 = vpop.f32.mrf.mxu0
    %6660 = vdwg.mxu0
    %v6661 = vadd.f32 %v6062, %v6653
    %v6662 = vadd.f32 %v6063, %v6658
    %s6663 = scalar_lea.vmem %s0, 22
    %v6664 = vld [vmem:[%s6663] sm:$0x3]
    %v6665 = vrot.slane %v6323, 2
    %v6667 = vsel %vm44, %v6664, %v6665
    %v6669 = vsel %vm46, %v6667, 0
    %6671 = vmatprep.subr.mxu0 0.0
    %6672 = vmatpush1.msra.mxu0 0.0
    %6673 = vmatprep.subr.mxu0 0.0
    %6674 = vmatpush1.msra.mxu0 0.0
    %6675 = vmatprep.subr.mxu0 0.0
    %6676 = vmatpush1.msra.mxu0 0.0
    %6677 = vmatprep.subr.mxu0 0.0
    %6678 = vmatpush1.msra.mxu0 0.0
    %6679 = vmatprep.subr.mxu0 0.0
    %6680 = vmatpush1.msra.mxu0 0.0
    %6681 = vmatprep.subr.mxu0 0.0
    %6682 = vmatpush1.msra.mxu0 0.0
    %6683 = vmatprep.subr.mxu0 0.0
    %6684 = vmatpush1.msra.mxu0 0.0
    %6685 = vmatprep.subr.mxu0 0.0
    %6686 = vmatpush1.msra.mxu0 0.0
    %6687 = vmatprep.subr.mxu0 0.0
    %6688 = vmatpush1.msra.mxu0 0.0
    %6689 = vmatprep.subr.mxu0 0.0
    %6690 = vmatpush1.msra.mxu0 0.0
    %6691 = vmatprep.subr.mxu0 0.0
    %6692 = vmatpush1.msra.mxu0 0.0
    %6693 = vmatprep.subr.mxu0 0.0
    %6694 = vmatpush1.msra.mxu0 0.0
    %6695 = vmatprep.subr.mxu0 0.0
    %6696 = vmatpush1.msra.mxu0 0.0
    %6697 = vmatprep.subr.mxu0 0.0
    %6698 = vmatpush1.msra.mxu0 0.0
    %6699 = vmatprep.subr.mxu0 0.0
    %6700 = vmatpush1.msra.mxu0 %v31
    %6701 = vmatprep.subr.mxu0 0.0
    %6702 = vmatpush1.msra.mxu0 %v30
    %6703 = vmatprep.subr.mxu0 0.0
    %6704 = vmatpush2.msra.mxu0 0.0
    %6705 = vmatprep.subr.mxu0 0.0
    %6706 = vmatpush2.msra.mxu0 0.0
    %6707 = vmatprep.subr.mxu0 0.0
    %6708 = vmatpush2.msra.mxu0 0.0
    %6709 = vmatprep.subr.mxu0 0.0
    %6710 = vmatpush2.msra.mxu0 0.0
    %6711 = vmatprep.subr.mxu0 0.0
    %6712 = vmatpush2.msra.mxu0 0.0
    %6713 = vmatprep.subr.mxu0 0.0
    %6714 = vmatpush2.msra.mxu0 0.0
    %6715 = vmatprep.subr.mxu0 0.0
    %6716 = vmatpush2.msra.mxu0 0.0
    %6717 = vmatprep.subr.mxu0 0.0
    %6718 = vmatpush2.msra.mxu0 0.0
    %6719 = vmatprep.subr.mxu0 0.0
    %6720 = vmatpush2.msra.mxu0 0.0
    %6721 = vmatprep.subr.mxu0 0.0
    %6722 = vmatpush2.msra.mxu0 0.0
    %6723 = vmatprep.subr.mxu0 0.0
    %6724 = vmatpush2.msra.mxu0 0.0
    %6725 = vmatprep.subr.mxu0 0.0
    %6726 = vmatpush2.msra.mxu0 0.0
    %6727 = vmatprep.subr.mxu0 0.0
    %6728 = vmatpush2.msra.mxu0 0.0
    %6729 = vmatprep.subr.mxu0 0.0
    %6730 = vmatpush2.msra.mxu0 0.0
    %6731 = vmatprep.subr.mxu0 0.0
    %6732 = vmatpush2.msra.mxu0 0.0
    %6733 = vmatprep.subr.mxu0 0.0
    %6734 = vmatpush2.msra.mxu0 0.0
    %6735 = vmatprep.mubr.f32.mxu0 0.0
    %6736 = vmatmul.mubr.f32.gmra.mxu0 %v6669
    %v6737 = vpop.f32.mrf.mxu0
    %v6738 = vadd.f32 0.0, %v6737
    %v6739 = vpop.f32.mrf.mxu0
    %6740 = vdwg.mxu0
    %6741 = vmatprep.subr.mxu0 0.0
    %6742 = vmatpush1.msra.mxu0 0.0
    %6743 = vmatprep.subr.mxu0 0.0
    %6744 = vmatpush1.msra.mxu0 0.0
    %6745 = vmatprep.subr.mxu0 0.0
    %6746 = vmatpush1.msra.mxu0 0.0
    %6747 = vmatprep.subr.mxu0 0.0
    %6748 = vmatpush1.msra.mxu0 0.0
    %6749 = vmatprep.subr.mxu0 0.0
    %6750 = vmatpush1.msra.mxu0 0.0
    %6751 = vmatprep.subr.mxu0 0.0
    %6752 = vmatpush1.msra.mxu0 0.0
    %6753 = vmatprep.subr.mxu0 0.0
    %6754 = vmatpush1.msra.mxu0 0.0
    %6755 = vmatprep.subr.mxu0 0.0
    %6756 = vmatpush1.msra.mxu0 0.0
    %6757 = vmatprep.subr.mxu0 0.0
    %6758 = vmatpush1.msra.mxu0 0.0
    %6759 = vmatprep.subr.mxu0 0.0
    %6760 = vmatpush1.msra.mxu0 0.0
    %6761 = vmatprep.subr.mxu0 0.0
    %6762 = vmatpush1.msra.mxu0 0.0
    %6763 = vmatprep.subr.mxu0 0.0
    %6764 = vmatpush1.msra.mxu0 0.0
    %6765 = vmatprep.subr.mxu0 0.0
    %6766 = vmatpush1.msra.mxu0 0.0
    %6767 = vmatprep.subr.mxu0 0.0
    %6768 = vmatpush1.msra.mxu0 0.0
    %6769 = vmatprep.subr.mxu0 0.0
    %6770 = vmatpush1.msra.mxu0 %v34
    %6771 = vmatprep.subr.mxu0 0.0
    %6772 = vmatpush1.msra.mxu0 %v33
    %6773 = vmatprep.subr.mxu0 0.0
    %6774 = vmatpush2.msra.mxu0 0.0
    %6775 = vmatprep.subr.mxu0 0.0
    %6776 = vmatpush2.msra.mxu0 0.0
    %6777 = vmatprep.subr.mxu0 0.0
    %6778 = vmatpush2.msra.mxu0 0.0
    %6779 = vmatprep.subr.mxu0 0.0
    %6780 = vmatpush2.msra.mxu0 0.0
    %6781 = vmatprep.subr.mxu0 0.0
    %6782 = vmatpush2.msra.mxu0 0.0
    %6783 = vmatprep.subr.mxu0 0.0
    %6784 = vmatpush2.msra.mxu0 0.0
    %6785 = vmatprep.subr.mxu0 0.0
    %6786 = vmatpush2.msra.mxu0 0.0
    %6787 = vmatprep.subr.mxu0 0.0
    %6788 = vmatpush2.msra.mxu0 0.0
    %6789 = vmatprep.subr.mxu0 0.0
    %6790 = vmatpush2.msra.mxu0 0.0
    %6791 = vmatprep.subr.mxu0 0.0
    %6792 = vmatpush2.msra.mxu0 0.0
    %6793 = vmatprep.subr.mxu0 0.0
    %6794 = vmatpush2.msra.mxu0 0.0
    %6795 = vmatprep.subr.mxu0 0.0
    %6796 = vmatpush2.msra.mxu0 0.0
    %6797 = vmatprep.subr.mxu0 0.0
    %6798 = vmatpush2.msra.mxu0 0.0
    %6799 = vmatprep.subr.mxu0 0.0
    %6800 = vmatpush2.msra.mxu0 0.0
    %6801 = vmatprep.subr.mxu0 0.0
    %6802 = vmatpush2.msra.mxu0 0.0
    %6803 = vmatprep.subr.mxu0 0.0
    %6804 = vmatpush2.msra.mxu0 0.0
    %6805 = vmatprep.mubr.f32.mxu0 0.0
    %6806 = vmatmul.mubr.f32.gmra.mxu0 %v6669
    %v6807 = vpop.f32.mrf.mxu0
    %v6808 = vadd.f32 0.0, %v6807
    %v6809 = vpop.f32.mrf.mxu0
    %6810 = vdwg.mxu0
    %v6812 = vrot.slane %v6738, 2
    %v6815 = vrot.slane %v6808, 4
    %v6817 = vsel %vm196, %v6667, %v6812
    %v6818 = vsel %vm198, %v6812, %v6815
    %v6819 = vsel %vm44, %v6815, 0
    %6821 = vmatprep.subr.mxu0 0.0
    %6822 = vmatpush1.msra.mxu0 0.0
    %6823 = vmatprep.subr.mxu0 0.0
    %6824 = vmatpush1.msra.mxu0 0.0
    %6825 = vmatprep.subr.mxu0 0.0
    %6826 = vmatpush1.msra.mxu0 0.0
    %6827 = vmatprep.subr.mxu0 0.0
    %6828 = vmatpush1.msra.mxu0 0.0
    %6829 = vmatprep.subr.mxu0 0.0
    %6830 = vmatpush1.msra.mxu0 0.0
    %6831 = vmatprep.subr.mxu0 0.0
    %6832 = vmatpush1.msra.mxu0 0.0
    %6833 = vmatprep.subr.mxu0 0.0
    %6834 = vmatpush1.msra.mxu0 0.0
    %6835 = vmatprep.subr.mxu0 0.0
    %6836 = vmatpush1.msra.mxu0 0.0
    %6837 = vmatprep.subr.mxu0 0.0
    %6838 = vmatpush1.msra.mxu0 0.0
    %6839 = vmatprep.subr.mxu0 0.0
    %6840 = vmatpush1.msra.mxu0 0.0
    %6841 = vmatprep.subr.mxu0 0.0
    %6842 = vmatpush1.msra.mxu0 0.0
    %6843 = vmatprep.subr.mxu0 0.0
    %6844 = vmatpush1.msra.mxu0 0.0
    %6845 = vmatprep.subr.mxu0 0.0
    %6846 = vmatpush1.msra.mxu0 0.0
    %6847 = vmatprep.subr.mxu0 0.0
    %6848 = vmatpush1.msra.mxu0 %v6819
    %6849 = vmatprep.subr.mxu0 0.0
    %6850 = vmatpush1.msra.mxu0 %v6818
    %6851 = vmatprep.subr.mxu0 0.0
    %6852 = vmatpush1.msra.mxu0 %v6817
    %6853 = vmatprep.subr.mxu0 0.0
    %6854 = vmatpush2.msra.mxu0 0.0
    %6855 = vmatprep.subr.mxu0 0.0
    %6856 = vmatpush2.msra.mxu0 0.0
    %6857 = vmatprep.subr.mxu0 0.0
    %6858 = vmatpush2.msra.mxu0 0.0
    %6859 = vmatprep.subr.mxu0 0.0
    %6860 = vmatpush2.msra.mxu0 0.0
    %6861 = vmatprep.subr.mxu0 0.0
    %6862 = vmatpush2.msra.mxu0 0.0
    %6863 = vmatprep.subr.mxu0 0.0
    %6864 = vmatpush2.msra.mxu0 0.0
    %6865 = vmatprep.subr.mxu0 0.0
    %6866 = vmatpush2.msra.mxu0 0.0
    %6867 = vmatprep.subr.mxu0 0.0
    %6868 = vmatpush2.msra.mxu0 0.0
    %6869 = vmatprep.subr.mxu0 0.0
    %6870 = vmatpush2.msra.mxu0 0.0
    %6871 = vmatprep.subr.mxu0 0.0
    %6872 = vmatpush2.msra.mxu0 0.0
    %6873 = vmatprep.subr.mxu0 0.0
    %6874 = vmatpush2.msra.mxu0 0.0
    %6875 = vmatprep.subr.mxu0 0.0
    %6876 = vmatpush2.msra.mxu0 0.0
    %6877 = vmatprep.subr.mxu0 0.0
    %6878 = vmatpush2.msra.mxu0 0.0
    %6879 = vmatprep.subr.mxu0 0.0
    %6880 = vmatpush2.msra.mxu0 0.0
    %6881 = vmatprep.subr.mxu0 0.0
    %6882 = vmatpush2.msra.mxu0 0.0
    %6883 = vmatprep.subr.mxu0 0.0
    %6884 = vmatpush2.msra.mxu0 0.0
    %6885 = vmatprep.mubr.f32.mxu0 0.0
    %6886 = vmatmul.mubr.f32.gmra.mxu0 %v212
    %v6887 = vpop.f32.mrf.mxu0
    %v6888 = vadd.f32 %v203, %v6887
    %v6889 = vpop.f32.mrf.mxu0
    %6890 = vmatprep.mubr.f32.mxu0 0.0
    %6891 = vmatmul.mubr.f32.gmra.mxu0 %v215
    %v6892 = vpop.f32.mrf.mxu0
    %v6893 = vadd.f32 %v208, %v6892
    %v6894 = vpop.f32.mrf.mxu0
    %6895 = vdwg.mxu0
    %v6896 = vxor.u32 %v6888, 2147483648
    %v6897 = vxor.u32 %v6893, 2147483648
    %v6898 = vmul.f32 %v6896, 1.442695
    %v6899 = vpow.pop %v6898
    %v6900 = vmul.f32 %v6897, 1.442695
    %v6901 = vpow.pop %v6900
    %v6902 = vadd.f32 %v6899, 1.0
    %v6903 = vadd.f32 %v6901, 1.0
    %v6904 = vrcp.pop %v6902
    %v6905 = vmul.f32 1.0, %v6904
    %v6906 = vrcp.pop %v6903
    %v6907 = vmul.f32 1.0, %v6906
    %v6908 = vtanh.pop %v6893
    %v6909 = vmul.f32 %v6318, %v6905
    %v6911 = vrot.slane %v6908, 4
    %v6913 = vmul.f32 %v6905, %v6911
    %v6915 = vrot.slane %v6913, 4
    %v6917 = vadd.f32 %v6909, %v6915
    %v6918 = vtanh.pop %v6917
    %v6920 = vrot.slane %v6907, 4
    %v6922 = vmul.f32 %v6918, %v6920
    %v6924 = vrot.slane %v6922, 4
    %v6926 = vsel %vm198, %v6924, %v6572
    %v6928 = vsel %vm46, %v6926, 0
    %6930 = vmatprep.subr.mxu0 0.0
    %6931 = vmatpush1.msra.mxu0 0.0
    %6932 = vmatprep.subr.mxu0 0.0
    %6933 = vmatpush1.msra.mxu0 0.0
    %6934 = vmatprep.subr.mxu0 0.0
    %6935 = vmatpush1.msra.mxu0 0.0
    %6936 = vmatprep.subr.mxu0 0.0
    %6937 = vmatpush1.msra.mxu0 0.0
    %6938 = vmatprep.subr.mxu0 0.0
    %6939 = vmatpush1.msra.mxu0 0.0
    %6940 = vmatprep.subr.mxu0 0.0
    %6941 = vmatpush1.msra.mxu0 0.0
    %6942 = vmatprep.subr.mxu0 0.0
    %6943 = vmatpush1.msra.mxu0 0.0
    %6944 = vmatprep.subr.mxu0 0.0
    %6945 = vmatpush1.msra.mxu0 0.0
    %6946 = vmatprep.subr.mxu0 0.0
    %6947 = vmatpush1.msra.mxu0 0.0
    %6948 = vmatprep.subr.mxu0 0.0
    %6949 = vmatpush1.msra.mxu0 0.0
    %6950 = vmatprep.subr.mxu0 0.0
    %6951 = vmatpush1.msra.mxu0 0.0
    %6952 = vmatprep.subr.mxu0 0.0
    %6953 = vmatpush1.msra.mxu0 0.0
    %6954 = vmatprep.subr.mxu0 0.0
    %6955 = vmatpush1.msra.mxu0 0.0
    %6956 = vmatprep.subr.mxu0 0.0
    %6957 = vmatpush1.msra.mxu0 0.0
    %6958 = vmatprep.subr.mxu0 0.0
    %6959 = vmatpush1.msra.mxu0 %v31
    %6960 = vmatprep.subr.mxu0 0.0
    %6961 = vmatpush1.msra.mxu0 %v30
    %6962 = vmatprep.subr.mxu0 0.0
    %6963 = vmatpush2.msra.mxu0 0.0
    %6964 = vmatprep.subr.mxu0 0.0
    %6965 = vmatpush2.msra.mxu0 0.0
    %6966 = vmatprep.subr.mxu0 0.0
    %6967 = vmatpush2.msra.mxu0 0.0
    %6968 = vmatprep.subr.mxu0 0.0
    %6969 = vmatpush2.msra.mxu0 0.0
    %6970 = vmatprep.subr.mxu0 0.0
    %6971 = vmatpush2.msra.mxu0 0.0
    %6972 = vmatprep.subr.mxu0 0.0
    %6973 = vmatpush2.msra.mxu0 0.0
    %6974 = vmatprep.subr.mxu0 0.0
    %6975 = vmatpush2.msra.mxu0 0.0
    %6976 = vmatprep.subr.mxu0 0.0
    %6977 = vmatpush2.msra.mxu0 0.0
    %6978 = vmatprep.subr.mxu0 0.0
    %6979 = vmatpush2.msra.mxu0 0.0
    %6980 = vmatprep.subr.mxu0 0.0
    %6981 = vmatpush2.msra.mxu0 0.0
    %6982 = vmatprep.subr.mxu0 0.0
    %6983 = vmatpush2.msra.mxu0 0.0
    %6984 = vmatprep.subr.mxu0 0.0
    %6985 = vmatpush2.msra.mxu0 0.0
    %6986 = vmatprep.subr.mxu0 0.0
    %6987 = vmatpush2.msra.mxu0 0.0
    %6988 = vmatprep.subr.mxu0 0.0
    %6989 = vmatpush2.msra.mxu0 0.0
    %6990 = vmatprep.subr.mxu0 0.0
    %6991 = vmatpush2.msra.mxu0 0.0
    %6992 = vmatprep.subr.mxu0 0.0
    %6993 = vmatpush2.msra.mxu0 0.0
    %6994 = vmatprep.mubr.f32.mxu0 0.0
    %6995 = vmatmul.mubr.f32.gmra.mxu0 %v6928
    %v6996 = vpop.f32.mrf.mxu0
    %v6997 = vadd.f32 0.0, %v6996
    %v6998 = vpop.f32.mrf.mxu0
    %6999 = vdwg.mxu0
    %7000 = vmatprep.subr.mxu0 0.0
    %7001 = vmatpush1.msra.mxu0 0.0
    %7002 = vmatprep.subr.mxu0 0.0
    %7003 = vmatpush1.msra.mxu0 0.0
    %7004 = vmatprep.subr.mxu0 0.0
    %7005 = vmatpush1.msra.mxu0 0.0
    %7006 = vmatprep.subr.mxu0 0.0
    %7007 = vmatpush1.msra.mxu0 0.0
    %7008 = vmatprep.subr.mxu0 0.0
    %7009 = vmatpush1.msra.mxu0 0.0
    %7010 = vmatprep.subr.mxu0 0.0
    %7011 = vmatpush1.msra.mxu0 0.0
    %7012 = vmatprep.subr.mxu0 0.0
    %7013 = vmatpush1.msra.mxu0 0.0
    %7014 = vmatprep.subr.mxu0 0.0
    %7015 = vmatpush1.msra.mxu0 0.0
    %7016 = vmatprep.subr.mxu0 0.0
    %7017 = vmatpush1.msra.mxu0 0.0
    %7018 = vmatprep.subr.mxu0 0.0
    %7019 = vmatpush1.msra.mxu0 0.0
    %7020 = vmatprep.subr.mxu0 0.0
    %7021 = vmatpush1.msra.mxu0 0.0
    %7022 = vmatprep.subr.mxu0 0.0
    %7023 = vmatpush1.msra.mxu0 0.0
    %7024 = vmatprep.subr.mxu0 0.0
    %7025 = vmatpush1.msra.mxu0 0.0
    %7026 = vmatprep.subr.mxu0 0.0
    %7027 = vmatpush1.msra.mxu0 0.0
    %7028 = vmatprep.subr.mxu0 0.0
    %7029 = vmatpush1.msra.mxu0 %v34
    %7030 = vmatprep.subr.mxu0 0.0
    %7031 = vmatpush1.msra.mxu0 %v33
    %7032 = vmatprep.subr.mxu0 0.0
    %7033 = vmatpush2.msra.mxu0 0.0
    %7034 = vmatprep.subr.mxu0 0.0
    %7035 = vmatpush2.msra.mxu0 0.0
    %7036 = vmatprep.subr.mxu0 0.0
    %7037 = vmatpush2.msra.mxu0 0.0
    %7038 = vmatprep.subr.mxu0 0.0
    %7039 = vmatpush2.msra.mxu0 0.0
    %7040 = vmatprep.subr.mxu0 0.0
    %7041 = vmatpush2.msra.mxu0 0.0
    %7042 = vmatprep.subr.mxu0 0.0
    %7043 = vmatpush2.msra.mxu0 0.0
    %7044 = vmatprep.subr.mxu0 0.0
    %7045 = vmatpush2.msra.mxu0 0.0
    %7046 = vmatprep.subr.mxu0 0.0
    %7047 = vmatpush2.msra.mxu0 0.0
    %7048 = vmatprep.subr.mxu0 0.0
    %7049 = vmatpush2.msra.mxu0 0.0
    %7050 = vmatprep.subr.mxu0 0.0
    %7051 = vmatpush2.msra.mxu0 0.0
    %7052 = vmatprep.subr.mxu0 0.0
    %7053 = vmatpush2.msra.mxu0 0.0
    %7054 = vmatprep.subr.mxu0 0.0
    %7055 = vmatpush2.msra.mxu0 0.0
    %7056 = vmatprep.subr.mxu0 0.0
    %7057 = vmatpush2.msra.mxu0 0.0
    %7058 = vmatprep.subr.mxu0 0.0
    %7059 = vmatpush2.msra.mxu0 0.0
    %7060 = vmatprep.subr.mxu0 0.0
    %7061 = vmatpush2.msra.mxu0 0.0
    %7062 = vmatprep.subr.mxu0 0.0
    %7063 = vmatpush2.msra.mxu0 0.0
    %7064 = vmatprep.mubr.f32.mxu0 0.0
    %7065 = vmatmul.mubr.f32.gmra.mxu0 %v6928
    %v7066 = vpop.f32.mrf.mxu0
    %v7067 = vadd.f32 0.0, %v7066
    %v7068 = vpop.f32.mrf.mxu0
    %7069 = vdwg.mxu0
    %7070 = vmatprep.subr.mxu0 0.0
    %7071 = vmatpush1.msra.mxu0 0.0
    %7072 = vmatprep.subr.mxu0 0.0
    %7073 = vmatpush1.msra.mxu0 0.0
    %7074 = vmatprep.subr.mxu0 0.0
    %7075 = vmatpush1.msra.mxu0 0.0
    %7076 = vmatprep.subr.mxu0 0.0
    %7077 = vmatpush1.msra.mxu0 0.0
    %7078 = vmatprep.subr.mxu0 0.0
    %7079 = vmatpush1.msra.mxu0 0.0
    %7080 = vmatprep.subr.mxu0 0.0
    %7081 = vmatpush1.msra.mxu0 0.0
    %7082 = vmatprep.subr.mxu0 0.0
    %7083 = vmatpush1.msra.mxu0 0.0
    %7084 = vmatprep.subr.mxu0 0.0
    %7085 = vmatpush1.msra.mxu0 0.0
    %7086 = vmatprep.subr.mxu0 0.0
    %7087 = vmatpush1.msra.mxu0 0.0
    %7088 = vmatprep.subr.mxu0 0.0
    %7089 = vmatpush1.msra.mxu0 0.0
    %7090 = vmatprep.subr.mxu0 0.0
    %7091 = vmatpush1.msra.mxu0 0.0
    %7092 = vmatprep.subr.mxu0 0.0
    %7093 = vmatpush1.msra.mxu0 0.0
    %7094 = vmatprep.subr.mxu0 0.0
    %7095 = vmatpush1.msra.mxu0 0.0
    %7096 = vmatprep.subr.mxu0 0.0
    %7097 = vmatpush1.msra.mxu0 %v7067
    %7098 = vmatprep.subr.mxu0 0.0
    %7099 = vmatpush1.msra.mxu0 %v6997
    %7100 = vmatprep.subr.mxu0 0.0
    %7101 = vmatpush1.msra.mxu0 %v6926
    %7102 = vmatprep.subr.mxu0 0.0
    %7103 = vmatpush2.msra.mxu0 0.0
    %7104 = vmatprep.subr.mxu0 0.0
    %7105 = vmatpush2.msra.mxu0 0.0
    %7106 = vmatprep.subr.mxu0 0.0
    %7107 = vmatpush2.msra.mxu0 0.0
    %7108 = vmatprep.subr.mxu0 0.0
    %7109 = vmatpush2.msra.mxu0 0.0
    %7110 = vmatprep.subr.mxu0 0.0
    %7111 = vmatpush2.msra.mxu0 0.0
    %7112 = vmatprep.subr.mxu0 0.0
    %7113 = vmatpush2.msra.mxu0 0.0
    %7114 = vmatprep.subr.mxu0 0.0
    %7115 = vmatpush2.msra.mxu0 0.0
    %7116 = vmatprep.subr.mxu0 0.0
    %7117 = vmatpush2.msra.mxu0 0.0
    %7118 = vmatprep.subr.mxu0 0.0
    %7119 = vmatpush2.msra.mxu0 0.0
    %7120 = vmatprep.subr.mxu0 0.0
    %7121 = vmatpush2.msra.mxu0 0.0
    %7122 = vmatprep.subr.mxu0 0.0
    %7123 = vmatpush2.msra.mxu0 0.0
    %7124 = vmatprep.subr.mxu0 0.0
    %7125 = vmatpush2.msra.mxu0 0.0
    %7126 = vmatprep.subr.mxu0 0.0
    %7127 = vmatpush2.msra.mxu0 0.0
    %7128 = vmatprep.subr.mxu0 0.0
    %7129 = vmatpush2.msra.mxu0 0.0
    %7130 = vmatprep.subr.mxu0 0.0
    %7131 = vmatpush2.msra.mxu0 0.0
    %7132 = vmatprep.subr.mxu0 0.0
    %7133 = vmatpush2.msra.mxu0 0.0
    %7134 = vmatprep.mubr.f32.mxu0 0.0
    %7135 = vmatmul.mubr.f32.gmra.mxu0 %v480
    %v7136 = vpop.f32.mrf.mxu0
    %v7137 = vadd.f32 %v471, %v7136
    %v7138 = vpop.f32.mrf.mxu0
    %7139 = vmatprep.mubr.f32.mxu0 0.0
    %7140 = vmatmul.mubr.f32.gmra.mxu0 %v483
    %v7141 = vpop.f32.mrf.mxu0
    %v7142 = vadd.f32 %v476, %v7141
    %v7143 = vpop.f32.mrf.mxu0
    %7144 = vdwg.mxu0
    %v7145 = vxor.u32 %v7137, 2147483648
    %v7146 = vxor.u32 %v7142, 2147483648
    %v7147 = vmul.f32 %v7145, 1.442695
    %v7148 = vpow.pop %v7147
    %v7149 = vmul.f32 %v7146, 1.442695
    %v7150 = vpow.pop %v7149
    %v7151 = vadd.f32 %v7148, 1.0
    %v7152 = vadd.f32 %v7150, 1.0
    %v7153 = vrcp.pop %v7151
    %v7154 = vmul.f32 1.0, %v7153
    %v7155 = vrcp.pop %v7152
    %v7156 = vmul.f32 1.0, %v7155
    %v7157 = vtanh.pop %v7142
    %v7158 = vmul.f32 %v6567, %v7154
    %v7160 = vrot.slane %v7157, 4
    %v7162 = vmul.f32 %v7154, %v7160
    %v7164 = vrot.slane %v7162, 4
    %v7166 = vadd.f32 %v7158, %v7164
    %v7167 = vtanh.pop %v7166
    %v7169 = vrot.slane %v7156, 4
    %v7171 = vmul.f32 %v7167, %v7169
    %s7172 = scalar_lea.vmem %s6, 176
    %v7173 = vld [vmem:[%s7172] sm:$0xff]
    %v7174 = vld [vmem:[%s7172 + $0x8] sm:$0xf]
    %v7176 = vrot.slane %v7171, 4
    %v7178 = vsel %vm1103, %v7173, 0
    %v7181 = vsel %vm1103, %v7174, 0
    %v7183 = vsel %vm198, %v7176, 0
    %7185 = vmatprep.subr.mxu0 0.0
    %7186 = vmatpush1.msra.mxu0 0.0
    %7187 = vmatprep.subr.mxu0 0.0
    %7188 = vmatpush1.msra.mxu0 0.0
    %7189 = vmatprep.subr.mxu0 0.0
    %7190 = vmatpush1.msra.mxu0 0.0
    %7191 = vmatprep.subr.mxu0 0.0
    %7192 = vmatpush1.msra.mxu0 0.0
    %7193 = vmatprep.subr.mxu0 0.0
    %7194 = vmatpush1.msra.mxu0 0.0
    %7195 = vmatprep.subr.mxu0 0.0
    %7196 = vmatpush1.msra.mxu0 0.0
    %7197 = vmatprep.subr.mxu0 0.0
    %7198 = vmatpush1.msra.mxu0 0.0
    %7199 = vmatprep.subr.mxu0 0.0
    %7200 = vmatpush1.msra.mxu0 0.0
    %7201 = vmatprep.subr.mxu0 0.0
    %7202 = vmatpush1.msra.mxu0 0.0
    %7203 = vmatprep.subr.mxu0 0.0
    %7204 = vmatpush1.msra.mxu0 0.0
    %7205 = vmatprep.subr.mxu0 0.0
    %7206 = vmatpush1.msra.mxu0 0.0
    %7207 = vmatprep.subr.mxu0 0.0
    %7208 = vmatpush1.msra.mxu0 0.0
    %7209 = vmatprep.subr.mxu0 0.0
    %7210 = vmatpush1.msra.mxu0 0.0
    %7211 = vmatprep.subr.mxu0 0.0
    %7212 = vmatpush1.msra.mxu0 0.0
    %7213 = vmatprep.subr.mxu0 0.0
    %7214 = vmatpush1.msra.mxu0 0.0
    %7215 = vmatprep.subr.mxu0 0.0
    %7216 = vmatpush1.msra.mxu0 %v7183
    %7217 = vmatprep.subr.mxu0 0.0
    %7218 = vmatpush2.msra.mxu0 0.0
    %7219 = vmatprep.subr.mxu0 0.0
    %7220 = vmatpush2.msra.mxu0 0.0
    %7221 = vmatprep.subr.mxu0 0.0
    %7222 = vmatpush2.msra.mxu0 0.0
    %7223 = vmatprep.subr.mxu0 0.0
    %7224 = vmatpush2.msra.mxu0 0.0
    %7225 = vmatprep.subr.mxu0 0.0
    %7226 = vmatpush2.msra.mxu0 0.0
    %7227 = vmatprep.subr.mxu0 0.0
    %7228 = vmatpush2.msra.mxu0 0.0
    %7229 = vmatprep.subr.mxu0 0.0
    %7230 = vmatpush2.msra.mxu0 0.0
    %7231 = vmatprep.subr.mxu0 0.0
    %7232 = vmatpush2.msra.mxu0 0.0
    %7233 = vmatprep.subr.mxu0 0.0
    %7234 = vmatpush2.msra.mxu0 0.0
    %7235 = vmatprep.subr.mxu0 0.0
    %7236 = vmatpush2.msra.mxu0 0.0
    %7237 = vmatprep.subr.mxu0 0.0
    %7238 = vmatpush2.msra.mxu0 0.0
    %7239 = vmatprep.subr.mxu0 0.0
    %7240 = vmatpush2.msra.mxu0 0.0
    %7241 = vmatprep.subr.mxu0 0.0
    %7242 = vmatpush2.msra.mxu0 0.0
    %7243 = vmatprep.subr.mxu0 0.0
    %7244 = vmatpush2.msra.mxu0 0.0
    %7245 = vmatprep.subr.mxu0 0.0
    %7246 = vmatpush2.msra.mxu0 0.0
    %7247 = vmatprep.subr.mxu0 0.0
    %7248 = vmatpush2.msra.mxu0 0.0
    %7249 = vmatprep.mubr.f32.mxu0 0.0
    %7250 = vmatmul.mubr.f32.gmra.mxu0 %v7178
    %v7251 = vpop.f32.mrf.mxu0
    %v7252 = vadd.f32 0.0, %v7251
    %v7253 = vpop.f32.mrf.mxu0
    %7254 = vmatprep.mubr.f32.mxu0 0.0
    %7255 = vmatmul.mubr.f32.gmra.mxu0 %v7181
    %v7256 = vpop.f32.mrf.mxu0
    %v7257 = vadd.f32 0.0, %v7256
    %v7258 = vpop.f32.mrf.mxu0
    %7259 = vdwg.mxu0
    %v7260 = vadd.f32 %v6661, %v7252
    %v7261 = vadd.f32 %v6662, %v7257
    %7262 = vxpose.xlu0.b32.start [1/16] %v7260, 128
    %7263 = vxpose.xlu0.b32.cont [2/16] %v7261, 128
    %7264 = vxpose.xlu0.b32.cont [3/16] 0.0, 128
    %7265 = vxpose.xlu0.b32.cont [4/16] 0.0, 128
    %7266 = vxpose.xlu0.b32.cont [5/16] 0.0, 128
    %7267 = vxpose.xlu0.b32.cont [6/16] 0.0, 128
    %7268 = vxpose.xlu0.b32.cont [7/16] 0.0, 128
    %7269 = vxpose.xlu0.b32.cont [8/16] 0.0, 128
    %7270 = vxpose.xlu0.b32.cont [9/16] 0.0, 128
    %7271 = vxpose.xlu0.b32.cont [10/16] 0.0, 128
    %7272 = vxpose.xlu0.b32.cont [11/16] 0.0, 128
    %7273 = vxpose.xlu0.b32.cont [12/16] 0.0, 128
    %7274 = vxpose.xlu0.b32.cont [13/16] 0.0, 128
    %7275 = vxpose.xlu0.b32.cont [14/16] 0.0, 128
    %7276 = vxpose.xlu0.b32.cont [15/16] 0.0, 128
    %7277 = vxpose.xlu0.b32.end [16/16] 0.0, 128
    %v7278 = vpop.trf.xlu0
    %v7279 = vpop.trf.xlu0
    %v7280 = vpop.trf.xlu0
    %v7281 = vpop.trf.xlu0
    %v7282 = vpop.trf.xlu0
    %v7283 = vpop.trf.xlu0
    %v7284 = vpop.trf.xlu0
    %v7285 = vpop.trf.xlu0
    %v7286 = vpop.trf.xlu0
    %v7287 = vpop.trf.xlu0
    %v7288 = vpop.trf.xlu0
    %v7289 = vpop.trf.xlu0
    %v7290 = vpop.trf.xlu0
    %v7291 = vpop.trf.xlu0
    %v7292 = vpop.trf.xlu0
    %v7293 = vpop.trf.xlu0
    %v7294 = vld [vmem:[%s7] sm:$0x1]
    %v7296 = vlaneseq
    %v7297 = vshrl.u32 %v7296, 7
    %v7298 = vsub.s32 0, %v7297
    %v7299 = vrot.slane %v7294, %v7298
    %v7301 = vadd.f32 %v7278, %v7299
    %v7302 = vadd.f32 %v7279, %v7299
    %vm7303 = vcmask 97280
    %7304 = vst.msk [vmem:[#allocation2] sm:$0xff] %vm7303, %v7301
    %7305 = vst.msk [vmem:[#allocation2 + $0x8] sm:$0xff] %vm7303, %v7302
    // Predicated region
    $region34: #{grcn_forward.1} parent=1 // pred_check
      _
    $region35: #{grcn_forward.1} parent=1 // pred_check_branch
      %7307 = sbr.rel (0) target = $region37
    $region36: #{grcn_forward.1} parent=1 // pred_region
      %s7309 = ssub.s32 256, 256
      %7310 = vsyncadd [#allocation3], %s7309
      %s7311 = sshll.u32 [#allocation2], 4
      %s7312 = int_to_ptr.vmem [resolvable:$true] %s7311
      %7317 = dma.vmem_to_hbm [thread:$0]  %s7312, 256, %s8, [#allocation3], 128, 128, 8
    $region37: #{grcn_forward.1} parent=1 // pred_fallthru
      _
    // Predicated region
    $region38: #{grcn_forward.1} parent=1 // pred_check
      _
    $region39: #{grcn_forward.1} parent=1 // pred_check_branch
      %7319 = sbr.rel (0) target = $region41
    $region40: #{grcn_forward.1} parent=1 // pred_region
      %7320 = dma.done [#allocation3], 256
    $region41: #{grcn_forward.1} parent=1 // pred_fallthru
      _
    %7321 = vsyncpa [#allocation3], 1

</llo_original>
